<compile_context>
chip_gen: v6e
topology: v6e:2x2x1
jax: 0.10.0
libtpu: 0.0.40
codegen_flags: <defaults>
</compile_context>

<pallas_src>
import functools

import jax
import jax.numpy as jnp
from jax.experimental import pallas as pl
from jax.experimental.pallas import tpu as pltpu


def _mm(a, b, dtype):
    """Matmul with castable MXU operand dtype and f32 accumulation."""
    return jnp.dot(a.astype(dtype), b.astype(dtype),
                   preferred_element_type=jnp.float32)


# ---------------------------------------------------------------------------
# Fully fused kernel:
#   transposed1(tap0) + qkv + multi-head attention + LocalRD(GN1 analytic)
#   + pointwise + residual + transposed2 + final GroupNorm, one grid step / batch.
# ---------------------------------------------------------------------------
def _fused_kernel(xr_ref, wq_ref, bq_ref, wt_ref, bt_ref, g1_ref, be1_ref,
                  wcp_ref, wres_ref, bst_ref, g2_ref, be2_ref, out_ref, *,
                  heads, hd, c2, co, cin, r3, n_pos, eps, mm_dtype, approx_recip):
    # xr_ref:  (1, cin + r3*co, Np)   stacked [x_flat ; feature in layout L]
    # wq_ref:  (3*c2, cin + co)       qkv composed with transposed1 tap-0 | feature part
    # bq_ref:  (3*c2, 1)              wqkv[:, :co] @ b1
    # wt/bt:   (c2, r3) / (c2, 1)     depthwise ConvTranspose taps + bias
    # g1/be1:  (c2, 1)                GroupNorm1 affine
    # wcp_ref: (co, c2)               transposed2^T @ pointwise  (composed 1x1 convs)
    # wres:    (r3*co, cin + r3*co)   [transposed2∘transposed1 | blockdiag(transposed2_feat)]
    # bst:     (co, 1)                b2 + transposed2^T[:, :co] @ b1
    # g2/be2:  (r3*co, 1)             final GroupNorm affine tiled per tap row
    # out_ref: (1, r3*co, Np)         final output in layout L
    xr = xr_ref[0]                                           # (cin + r3*co, Np)

    # ---------------- GlobalSparseTransformer ------------------------------
    # One fused qkv projection for all heads; xr[:cin+co] == [x ; feature_tap0].
    qkv = _mm(wq_ref[...], xr[:cin + co], mm_dtype) + bq_ref[...]   # (3*c2, Np)

    ones_row = jnp.ones((1, n_pos), jnp.float32)             # hoisted out of the loop
    head_outs = []
    for h in range(heads):
        base = 3 * hd * h
        q = qkv[base:base + hd]                              # (hd, Np)
        k = qkv[base + hd:base + 2 * hd]                     # (hd, Np)
        v = qkv[base + 2 * hd:base + 3 * hd]                 # (hd, Np)

        # s[i, j] = sum_d q[d, i] * k[d, j]   (the module defines a scale but
        # never applies it in forward -- kept faithful).
        s = jax.lax.dot_general(q.astype(mm_dtype), k.astype(mm_dtype),
                                (((0,), (0,)), ((), ())),
                                preferred_element_type=jnp.float32)   # (Np, Np)
        p = jnp.exp(s - jnp.max(s, axis=-1, keepdims=True))  # unnormalized softmax

        # Deferred normalization: one MXU launch gives v @ p^T AND the row sums
        # (ones row appended to v); scale the (hd, Np) output, not the (Np, Np) p.
        v_aug = jnp.concatenate([v, ones_row], axis=0)       # (hd+1, Np)
        o_aug = jax.lax.dot_general(v_aug.astype(mm_dtype), p.astype(mm_dtype),
                                    (((1,), (1,)), ((), ())),
                                    preferred_element_type=jnp.float32)  # (hd+1, Np)
        inv = pl.reciprocal(o_aug[hd:hd + 1, :], approx=approx_recip)    # (1, Np)
        head_outs.append(o_aug[:hd] * inv)
    y = jnp.concatenate(head_outs, axis=0)                   # (c2, Np), stays in VMEM

    # ---------------- LocalReverseDiffusion + residual + transposed2 --------
    wt = wt_ref[...]                                          # (c2, r3)
    bt = bt_ref[...]                                          # (c2, 1)

    # GroupNorm(1, C2) stats of t[c,m,n] = y[c,n]*wt[c,m] + bt[c], analytically
    # (the (C2, r3*Np) upsampled tensor is never materialized).  Centered form.
    sy = jnp.sum(y, axis=1, keepdims=True)                    # (c2, 1)
    sy2 = jnp.sum(y * y, axis=1, keepdims=True)
    sw = jnp.sum(wt, axis=1, keepdims=True)
    sw2 = jnp.sum(wt * wt, axis=1, keepdims=True)
    cnt = float(r3 * n_pos)
    inv_n1 = 1.0 / float(c2 * r3 * n_pos)
    mean1 = (jnp.sum(sy * sw) + cnt * jnp.sum(bt)) * inv_n1
    btc = bt - mean1
    var1 = (jnp.sum(sy2 * sw2) + 2.0 * jnp.sum(btc * sy * sw)
            + cnt * jnp.sum(btc * btc)) * inv_n1
    rstd1 = jax.lax.rsqrt(var1 + eps)

    g1r = rstd1 * g1_ref[...]                                 # (c2, 1)
    scale = wt * g1r                                          # (c2, r3)
    shift = btc * g1r + be1_ref[...]                          # (c2, 1)

    # Fold the runtime GN1 scale into the (pointwise ∘ transposed2) weight so the
    # LocalRD contribution for ALL r^3 taps is a single matmul; fold the shift
    # into the bias row.
    wcp = wcp_ref[...]                                        # (co, c2)
    wbig = (scale.T[:, None, :] * wcp[None, :, :]).reshape(r3 * co, c2)
    b_loc = jnp.dot(wcp, shift, preferred_element_type=jnp.float32)    # (co, 1)
    brow = jnp.tile(bst_ref[...] + b_loc, (r3, 1))            # (r3*co, 1)

    z = (_mm(wbig, y, mm_dtype)                               # LocalRD∘pointwise∘transposed2
         + _mm(wres_ref[...], xr, mm_dtype)                   # residual∘transposed2 (x & feature)
         + brow)                                              # (r3*co, Np)

    # ---------------- final GroupNorm(1, Co): single output store -----------
    inv_n2 = 1.0 / float(co * r3 * n_pos)
    mean2 = jnp.sum(z) * inv_n2
    zc = z - mean2
    var2 = jnp.sum(zc * zc) * inv_n2
    rstd2 = jax.lax.rsqrt(var2 + eps)
    out_ref[0] = zc * (rstd2 * g2_ref[...]) + be2_ref[...]


# ---------------------------------------------------------------------------
# Host wrapper
# ---------------------------------------------------------------------------
def transposed_conv_layer_pallas(x, feature, params, *, heads, r,
                                 mm_dtype=jnp.float32):
    B, cin, D, H, W = x.shape
    co = params["b1"].shape[0]
    c2 = 2 * co
    hd = c2 // heads
    r3 = r ** 3
    n_pos = D * H * W
    Df, Hf, Wf = D * r, H * r, W * r
    assert feature.shape == (B, co, Df, Hf, Wf)
    assert c2 % heads == 0 and hd % 8 == 0 and co % 8 == 0
    assert (cin + co) % 8 == 0
    assert n_pos % 128 == 0, "pick spatial dims so D*H*W is a multiple of 128"

    # ---- host-side layout prep: feature -> layout L, then ONE stacked operand
    #      [x_flat ; feature_L] so both the qkv and the residual are single matmuls.
    x_flat = x.reshape(B, cin, n_pos)
    feat_l = (feature.reshape(B, co, D, r, H, r, W, r)
                      .transpose(0, 3, 5, 7, 1, 2, 4, 6)
                      .reshape(B, r3 * co, n_pos))
    xr = jnp.concatenate([x_flat, feat_l], axis=1)            # (B, cin + r3*co, Np)

    # ---- tiny weight preprocessing / composition (once, on host).
    w1r = jnp.transpose(params["w1"], (2, 3, 4, 1, 0)).reshape(r3 * co, cin)
    b1col = params["b1"].reshape(co, 1)
    wqkv = params["wqkv"]                                     # (3*C2, C2)
    wqkv_a, wqkv_b = wqkv[:, :co], wqkv[:, co:]
    wq = jnp.concatenate([wqkv_a @ w1r[:co], wqkv_b], axis=1) # (3*C2, cin+co)
    bq = wqkv_a @ b1col                                       # (3*C2, 1)

    wt = params["wt"].reshape(c2, r3)
    bt = params["bt"].reshape(c2, 1)
    g1 = params["gamma1"].reshape(c2, 1)
    be1 = params["beta1"].reshape(c2, 1)

    w2t = params["w2"].T                                      # (Co, C2)
    wcp = w2t @ params["wp"]                                  # composed 1x1 convs (Co, C2)
    w2a, w2b = w2t[:, :co], w2t[:, co:]
    w21 = jnp.einsum('po,moc->mpc', w2a,
                     w1r.reshape(r3, co, cin)).reshape(r3 * co, cin)
    w2b_bd = jnp.kron(jnp.eye(r3, dtype=w2b.dtype), w2b)      # (r3*Co, r3*Co) block-diag
    wres = jnp.concatenate([w21, w2b_bd], axis=1)             # (r3*Co, cin + r3*Co)
    bst = params["b2"].reshape(co, 1) + w2a @ b1col           # (Co, 1)
    g2row = jnp.tile(params["gamma2"], r3).reshape(r3 * co, 1)
    be2row = jnp.tile(params["beta2"], r3).reshape(r3 * co, 1)

    if mm_dtype != jnp.float32:
        # host pre-cast: halves weight/operand DMA bytes, no per-step VPU casts.
        xr = xr.astype(mm_dtype)
        wq = wq.astype(mm_dtype)
        wres = wres.astype(mm_dtype)

    kern = functools.partial(
        _fused_kernel, heads=heads, hd=hd, c2=c2, co=co, cin=cin, r3=r3,
        n_pos=n_pos, eps=1e-5, mm_dtype=mm_dtype,
        approx_recip=(mm_dtype != jnp.float32))

    out_l = pl.pallas_call(
        kern,
        out_shape=jax.ShapeDtypeStruct((B, r3 * co, n_pos), jnp.float32),
        grid_spec=pltpu.PrefetchScalarGridSpec(
            num_scalar_prefetch=0,
            grid=(B,),
            in_specs=[
                pl.BlockSpec((1, cin + r3 * co, n_pos), lambda b: (b, 0, 0)),  # xr
                pl.BlockSpec((3 * c2, cin + co), lambda b: (0, 0)),            # wq
                pl.BlockSpec((3 * c2, 1), lambda b: (0, 0)),                   # bq
                pl.BlockSpec((c2, r3), lambda b: (0, 0)),                      # wt
                pl.BlockSpec((c2, 1), lambda b: (0, 0)),                       # bt
                pl.BlockSpec((c2, 1), lambda b: (0, 0)),                       # gamma1
                pl.BlockSpec((c2, 1), lambda b: (0, 0)),                       # beta1
                pl.BlockSpec((co, c2), lambda b: (0, 0)),                      # wcp
                pl.BlockSpec((r3 * co, cin + r3 * co), lambda b: (0, 0)),      # wres
                pl.BlockSpec((co, 1), lambda b: (0, 0)),                       # bst
                pl.BlockSpec((r3 * co, 1), lambda b: (0, 0)),                  # gamma2 row
                pl.BlockSpec((r3 * co, 1), lambda b: (0, 0)),                  # beta2 row
            ],
            out_specs=pl.BlockSpec((1, r3 * co, n_pos), lambda b: (b, 0, 0)),
        ),
        compiler_params=pltpu.CompilerParams(
            dimension_semantics=("parallel",),
            vmem_limit_bytes=32 * 1024 * 1024),
    )(xr, wq, bq, wt, bt, g1, be1, wcp, wres, bst, g2row, be2row)

    # ---- single host-side un-permute back to NCDHW.
    out = (out_l.reshape(B, r, r, r, co, D, H, W)
                 .transpose(0, 4, 5, 1, 6, 2, 7, 3)
                 .reshape(B, co, Df, Hf, Wf))
    return out


# ---------------------------------------------------------------------------
# Pure-JAX reference (PyTorch semantics)
# ---------------------------------------------------------------------------
def transposed_conv_layer_reference(x, feature, params, *, heads, r):
    B, cin, D, H, W = x.shape
    co = params["b1"].shape[0]
    c2 = 2 * co
    hd = c2 // heads
    eps = 1e-5

    # transposed1 (k=s=r, with bias)
    t1 = jnp.einsum('bcdhw,coijk->bodihjwk', x, params["w1"])
    t1 = t1.reshape(B, co, D * r, H * r, W * r) + params["b1"][None, :, None, None, None]
    xa = jnp.concatenate([t1, feature], axis=1)               # (B, C2, Df, Hf, Wf)

    # GlobalSparseTransformer
    xs = xa[:, :, ::r, ::r, ::r]
    n = D * H * W
    xf = xs.reshape(B, c2, n)
    qkv = jnp.einsum('oc,bcn->bon', params["wqkv"], xf).reshape(B, heads, 3 * hd, n)
    q, k, v = qkv[:, :, :hd], qkv[:, :, hd:2 * hd], qkv[:, :, 2 * hd:]
    attn = jax.nn.softmax(jnp.einsum('bhdi,bhdj->bhij', q, k), axis=-1)
    y = jnp.einsum('bhdj,bhij->bhdi', v, attn).reshape(B, c2, D, H, W)

    # LocalReverseDiffusion
    wt = params["wt"].reshape(c2, r, r, r)
    t = (y[:, :, :, None, :, None, :, None] *
         wt[None, :, None, :, None, :, None, :]).reshape(B, c2, D * r, H * r, W * r)
    t = t + params["bt"][None, :, None, None, None]
    mean = t.mean(axis=(1, 2, 3, 4), keepdims=True)
    var = t.var(axis=(1, 2, 3, 4), keepdims=True)
    tn = (t - mean) / jnp.sqrt(var + eps)
    tn = tn * params["gamma1"][None, :, None, None, None] + params["beta1"][None, :, None, None, None]
    a = jnp.einsum('oc,bcdhw->bodhw', params["wp"], tn) + xa

    # transposed2 (1x1, with bias) + final GroupNorm(1, co)
    z = jnp.einsum('co,bcdhw->bodhw', params["w2"], a) + params["b2"][None, :, None, None, None]
    mean2 = z.mean(axis=(1, 2, 3, 4), keepdims=True)
    var2 = z.var(axis=(1, 2, 3, 4), keepdims=True)
    zn = (z - mean2) / jnp.sqrt(var2 + eps)
    return zn * params["gamma2"][None, :, None, None, None] + params["beta2"][None, :, None, None, None]


# ---------------------------------------------------------------------------
if __name__ == "__main__":
    B, dim_in, dim_out = 2, 8, 8
    heads, r = 2, 2
    D = H = W = 8                       # coarse spatial; full-res = 16^3, Np = 512
    c2 = 2 * dim_out

    key = jax.random.PRNGKey(0)
    ks = jax.random.split(key, 14)

    x = jax.random.normal(ks[0], (B, dim_in, D, H, W), jnp.float32)
    feature = jax.random.normal(ks[1], (B, dim_out, D * r, H * r, W * r), jnp.float32)
    params = {
        "w1": 0.2 * jax.random.normal(ks[2], (dim_in, dim_out, r, r, r), jnp.float32),
        "b1": 0.1 * jax.random.normal(ks[3], (dim_out,), jnp.float32),
        "wqkv": 0.2 * jax.random.normal(ks[4], (3 * c2, c2), jnp.float32),
        "wt": 0.2 * jax.random.normal(ks[5], (c2, r, r, r), jnp.float32),
        "bt": 0.1 * jax.random.normal(ks[6], (c2,), jnp.float32),
        "gamma1": 1.0 + 0.1 * jax.random.normal(ks[7], (c2,), jnp.float32),
        "beta1": 0.1 * jax.random.normal(ks[8], (c2,), jnp.float32),
        "wp": 0.2 * jax.random.normal(ks[9], (c2, c2), jnp.float32),
        "w2": 0.2 * jax.random.normal(ks[10], (c2, dim_out), jnp.float32),
        "b2": 0.1 * jax.random.normal(ks[11], (dim_out,), jnp.float32),
        "gamma2": 1.0 + 0.1 * jax.random.normal(ks[12], (dim_out,), jnp.float32),
        "beta2": 0.1 * jax.random.normal(ks[13], (dim_out,), jnp.float32),
    }

    out = jax.block_until_ready(
        transposed_conv_layer_pallas(x, feature, params, heads=heads, r=r))
    ref = jax.block_until_ready(
        transposed_conv_layer_reference(x, feature, params, heads=heads, r=r))

    assert out.shape == (B, dim_out, D * r, H * r, W * r)
    max_err = float(jnp.max(jnp.abs(out - ref)))
    assert max_err < 2e-3, f"mismatch vs reference: max abs err = {max_err}"
    print("KERNEL_OK")
</pallas_src>

<mosaic_0001>
module attributes {stable_mosaic.version = 11 : i64} {
  func.func @_fused_kernel(%arg0: i32, %arg1: memref<1x72x512xf32, #tpu.memory_space<vmem>>, %arg2: memref<48x16xf32, #tpu.memory_space<vmem>>, %arg3: memref<48x1xf32, #tpu.memory_space<vmem>>, %arg4: memref<16x8xf32, #tpu.memory_space<vmem>>, %arg5: memref<16x1xf32, #tpu.memory_space<vmem>>, %arg6: memref<16x1xf32, #tpu.memory_space<vmem>>, %arg7: memref<16x1xf32, #tpu.memory_space<vmem>>, %arg8: memref<8x16xf32, #tpu.memory_space<vmem>>, %arg9: memref<64x72xf32, #tpu.memory_space<vmem>>, %arg10: memref<8x1xf32, #tpu.memory_space<vmem>>, %arg11: memref<64x1xf32, #tpu.memory_space<vmem>>, %arg12: memref<64x1xf32, #tpu.memory_space<vmem>>, %arg13: memref<1x64x512xf32, #tpu.memory_space<vmem>>) attributes {dimension_semantics = [#tpu.dimension_semantics<parallel>], iteration_bounds = array<i64: 2>, scalar_prefetch = 0 : i64, scratch_operands = 0 : i64, tpu.core_type = #tpu.core_type<tc>, window_params = [{transform_indices = @transform_0, window_bounds = array<i64: 1, 72, 512>}, {pipeline_mode = #tpu.pipeline_mode<synchronous>, transform_indices = @transform_1, window_bounds = array<i64: 48, 16>}, {pipeline_mode = #tpu.pipeline_mode<synchronous>, transform_indices = @transform_2, window_bounds = array<i64: 48, 1>}, {pipeline_mode = #tpu.pipeline_mode<synchronous>, transform_indices = @transform_3, window_bounds = array<i64: 16, 8>}, {pipeline_mode = #tpu.pipeline_mode<synchronous>, transform_indices = @transform_4, window_bounds = array<i64: 16, 1>}, {pipeline_mode = #tpu.pipeline_mode<synchronous>, transform_indices = @transform_5, window_bounds = array<i64: 16, 1>}, {pipeline_mode = #tpu.pipeline_mode<synchronous>, transform_indices = @transform_6, window_bounds = array<i64: 16, 1>}, {pipeline_mode = #tpu.pipeline_mode<synchronous>, transform_indices = @transform_7, window_bounds = array<i64: 8, 16>}, {pipeline_mode = #tpu.pipeline_mode<synchronous>, transform_indices = @transform_8, window_bounds = array<i64: 64, 72>}, {pipeline_mode = #tpu.pipeline_mode<synchronous>, transform_indices = @transform_9, window_bounds = array<i64: 8, 1>}, {pipeline_mode = #tpu.pipeline_mode<synchronous>, transform_indices = @transform_10, window_bounds = array<i64: 64, 1>}, {pipeline_mode = #tpu.pipeline_mode<synchronous>, transform_indices = @transform_11, window_bounds = array<i64: 64, 1>}, {transform_indices = @transform_12, window_bounds = array<i64: 1, 64, 512>}]} {
    %c0 = arith.constant 0 : index
    %c0_0 = arith.constant 0 : index
    %c0_1 = arith.constant 0 : index
    %0 = vector.load %arg1[%c0, %c0_0, %c0_1] : memref<1x72x512xf32, #tpu.memory_space<vmem>>, vector<1x72x512xf32>
    %1 = vector.shape_cast %0 : vector<1x72x512xf32> to vector<72x512xf32>
    %c0_2 = arith.constant 0 : index
    %c0_3 = arith.constant 0 : index
    %2 = vector.load %arg2[%c0_2, %c0_3] : memref<48x16xf32, #tpu.memory_space<vmem>>, vector<48x16xf32>
    %3 = vector.extract_strided_slice %1 {offsets = [0, 0], sizes = [16, 512], strides = [1, 1]} : vector<72x512xf32> to vector<16x512xf32>
    %cst = arith.constant dense<0.000000e+00> : vector<48x512xf32>
    %4 = tpu.matmul %2, %3, %cst {dimension_numbers = #tpu.dot_dimension_numbers<[1], [0], [0], [1], [0, 0, 1, 1], [], []>} : vector<48x16xf32>, vector<16x512xf32>, vector<48x512xf32> -> vector<48x512xf32>
    %c0_4 = arith.constant 0 : index
    %c0_5 = arith.constant 0 : index
    %5 = vector.load %arg3[%c0_4, %c0_5] : memref<48x1xf32, #tpu.memory_space<vmem>>, vector<48x1xf32>
    %6 = vector.broadcast %5 : vector<48x1xf32> to vector<48x512xf32>
    %7 = arith.addf %4, %6 : vector<48x512xf32>
    %cst_6 = arith.constant 1.000000e+00 : f32
    %8 = vector.broadcast %cst_6 : f32 to vector<1x512xf32>
    %9 = vector.extract_strided_slice %7 {offsets = [0, 0], sizes = [8, 512], strides = [1, 1]} : vector<48x512xf32> to vector<8x512xf32>
    %10 = vector.extract_strided_slice %7 {offsets = [8, 0], sizes = [8, 512], strides = [1, 1]} : vector<48x512xf32> to vector<8x512xf32>
    %11 = vector.extract_strided_slice %7 {offsets = [16, 0], sizes = [8, 512], strides = [1, 1]} : vector<48x512xf32> to vector<8x512xf32>
    %cst_7 = arith.constant dense<0.000000e+00> : vector<512x512xf32>
    %12 = tpu.matmul %9, %10, %cst_7 {dimension_numbers = #tpu.dot_dimension_numbers<[0], [0], [1], [1], [0, 1, 1, 1], [], []>} : vector<8x512xf32>, vector<8x512xf32>, vector<512x512xf32> -> vector<512x512xf32>
    %cst_8 = arith.constant dense<0xFF800000> : vector<512xf32>
    %13 = vector.multi_reduction <maximumf>, %12, %cst_8 [1] : vector<512x512xf32> to vector<512xf32>
    %14 = vector.shape_cast %13 : vector<512xf32> to vector<512x1xf32>
    %15 = vector.broadcast %14 : vector<512x1xf32> to vector<512x512xf32>
    %16 = arith.subf %12, %15 : vector<512x512xf32>
    %17 = math.exp %16 : vector<512x512xf32>
    %18 = tpu.concatenate %11, %8 in 0 : vector<8x512xf32>, vector<1x512xf32> -> vector<9x512xf32>
    %cst_9 = arith.constant dense<0.000000e+00> : vector<9x512xf32>
    %19 = tpu.matmul %18, %17, %cst_9 {dimension_numbers = #tpu.dot_dimension_numbers<[1], [1], [0], [0], [0, 0, 1, 0], [], []>} : vector<9x512xf32>, vector<512x512xf32>, vector<9x512xf32> -> vector<9x512xf32>
    %20 = vector.extract_strided_slice %19 {offsets = [8, 0], sizes = [1, 512], strides = [1, 1]} : vector<9x512xf32> to vector<1x512xf32>
    %21 = tpu.reciprocal %20 : vector<1x512xf32> -> vector<1x512xf32>
    %22 = vector.extract_strided_slice %19 {offsets = [0, 0], sizes = [8, 512], strides = [1, 1]} : vector<9x512xf32> to vector<8x512xf32>
    %23 = vector.broadcast %21 : vector<1x512xf32> to vector<8x512xf32>
    %24 = arith.mulf %22, %23 : vector<8x512xf32>
    %25 = vector.extract_strided_slice %7 {offsets = [24, 0], sizes = [8, 512], strides = [1, 1]} : vector<48x512xf32> to vector<8x512xf32>
    %26 = vector.extract_strided_slice %7 {offsets = [32, 0], sizes = [8, 512], strides = [1, 1]} : vector<48x512xf32> to vector<8x512xf32>
    %27 = vector.extract_strided_slice %7 {offsets = [40, 0], sizes = [8, 512], strides = [1, 1]} : vector<48x512xf32> to vector<8x512xf32>
    %cst_10 = arith.constant dense<0.000000e+00> : vector<512x512xf32>
    %28 = tpu.matmul %25, %26, %cst_10 {dimension_numbers = #tpu.dot_dimension_numbers<[0], [0], [1], [1], [0, 1, 1, 1], [], []>} : vector<8x512xf32>, vector<8x512xf32>, vector<512x512xf32> -> vector<512x512xf32>
    %cst_11 = arith.constant dense<0xFF800000> : vector<512xf32>
    %29 = vector.multi_reduction <maximumf>, %28, %cst_11 [1] : vector<512x512xf32> to vector<512xf32>
    %30 = vector.shape_cast %29 : vector<512xf32> to vector<512x1xf32>
    %31 = vector.broadcast %30 : vector<512x1xf32> to vector<512x512xf32>
    %32 = arith.subf %28, %31 : vector<512x512xf32>
    %33 = math.exp %32 : vector<512x512xf32>
    %34 = tpu.concatenate %27, %8 in 0 : vector<8x512xf32>, vector<1x512xf32> -> vector<9x512xf32>
    %cst_12 = arith.constant dense<0.000000e+00> : vector<9x512xf32>
    %35 = tpu.matmul %34, %33, %cst_12 {dimension_numbers = #tpu.dot_dimension_numbers<[1], [1], [0], [0], [0, 0, 1, 0], [], []>} : vector<9x512xf32>, vector<512x512xf32>, vector<9x512xf32> -> vector<9x512xf32>
    %36 = vector.extract_strided_slice %35 {offsets = [8, 0], sizes = [1, 512], strides = [1, 1]} : vector<9x512xf32> to vector<1x512xf32>
    %37 = tpu.reciprocal %36 : vector<1x512xf32> -> vector<1x512xf32>
    %38 = vector.extract_strided_slice %35 {offsets = [0, 0], sizes = [8, 512], strides = [1, 1]} : vector<9x512xf32> to vector<8x512xf32>
    %39 = vector.broadcast %37 : vector<1x512xf32> to vector<8x512xf32>
    %40 = arith.mulf %38, %39 : vector<8x512xf32>
    %41 = tpu.concatenate %24, %40 in 0 : vector<8x512xf32>, vector<8x512xf32> -> vector<16x512xf32>
    %c0_13 = arith.constant 0 : index
    %c0_14 = arith.constant 0 : index
    %42 = vector.load %arg4[%c0_13, %c0_14] : memref<16x8xf32, #tpu.memory_space<vmem>>, vector<16x8xf32>
    %c0_15 = arith.constant 0 : index
    %c0_16 = arith.constant 0 : index
    %43 = vector.load %arg5[%c0_15, %c0_16] : memref<16x1xf32, #tpu.memory_space<vmem>>, vector<16x1xf32>
    %cst_17 = arith.constant dense<0.000000e+00> : vector<16xf32>
    %44 = vector.multi_reduction <add>, %41, %cst_17 [1] : vector<16x512xf32> to vector<16xf32>
    %45 = vector.shape_cast %44 : vector<16xf32> to vector<16x1xf32>
    %46 = arith.mulf %41, %41 : vector<16x512xf32>
    %cst_18 = arith.constant dense<0.000000e+00> : vector<16xf32>
    %47 = vector.multi_reduction <add>, %46, %cst_18 [1] : vector<16x512xf32> to vector<16xf32>
    %48 = vector.shape_cast %47 : vector<16xf32> to vector<16x1xf32>
    %cst_19 = arith.constant dense<0.000000e+00> : vector<16xf32>
    %49 = vector.multi_reduction <add>, %42, %cst_19 [1] : vector<16x8xf32> to vector<16xf32>
    %50 = vector.shape_cast %49 : vector<16xf32> to vector<16x1xf32>
    %51 = arith.mulf %42, %42 : vector<16x8xf32>
    %cst_20 = arith.constant dense<0.000000e+00> : vector<16xf32>
    %52 = vector.multi_reduction <add>, %51, %cst_20 [1] : vector<16x8xf32> to vector<16xf32>
    %53 = vector.shape_cast %52 : vector<16xf32> to vector<16x1xf32>
    %54 = arith.mulf %45, %50 : vector<16x1xf32>
    %55 = vector.shape_cast %54 : vector<16x1xf32> to vector<1x16x1xf32>
    %cst_21 = arith.constant dense<0.000000e+00> : vector<1xf32>
    %56 = vector.multi_reduction <add>, %55, %cst_21 [1, 2] : vector<1x16x1xf32> to vector<1xf32>
    %57 = vector.shape_cast %56 : vector<1xf32> to vector<1x1x1xf32>
    %58 = vector.extract %57[0, 0, 0] : f32 from vector<1x1x1xf32>
    %59 = vector.shape_cast %43 : vector<16x1xf32> to vector<1x16x1xf32>
    %cst_22 = arith.constant dense<0.000000e+00> : vector<1xf32>
    %60 = vector.multi_reduction <add>, %59, %cst_22 [1, 2] : vector<1x16x1xf32> to vector<1xf32>
    %61 = vector.shape_cast %60 : vector<1xf32> to vector<1x1x1xf32>
    %62 = vector.extract %61[0, 0, 0] : f32 from vector<1x1x1xf32>
    %cst_23 = arith.constant 4.096000e+03 : f32
    %63 = arith.mulf %cst_23, %62 : f32
    %64 = arith.addf %58, %63 : f32
    %cst_24 = arith.constant 1.52587891E-5 : f32
    %65 = arith.mulf %64, %cst_24 : f32
    %66 = vector.broadcast %65 : f32 to vector<16x1xf32>
    %67 = arith.subf %43, %66 : vector<16x1xf32>
    %68 = arith.mulf %48, %53 : vector<16x1xf32>
    %69 = vector.shape_cast %68 : vector<16x1xf32> to vector<1x16x1xf32>
    %cst_25 = arith.constant dense<0.000000e+00> : vector<1xf32>
    %70 = vector.multi_reduction <add>, %69, %cst_25 [1, 2] : vector<1x16x1xf32> to vector<1xf32>
    %71 = vector.shape_cast %70 : vector<1xf32> to vector<1x1x1xf32>
    %72 = vector.extract %71[0, 0, 0] : f32 from vector<1x1x1xf32>
    %73 = arith.mulf %67, %45 : vector<16x1xf32>
    %74 = arith.mulf %73, %50 : vector<16x1xf32>
    %75 = vector.shape_cast %74 : vector<16x1xf32> to vector<1x16x1xf32>
    %cst_26 = arith.constant dense<0.000000e+00> : vector<1xf32>
    %76 = vector.multi_reduction <add>, %75, %cst_26 [1, 2] : vector<1x16x1xf32> to vector<1xf32>
    %77 = vector.shape_cast %76 : vector<1xf32> to vector<1x1x1xf32>
    %78 = vector.extract %77[0, 0, 0] : f32 from vector<1x1x1xf32>
    %cst_27 = arith.constant 2.000000e+00 : f32
    %79 = arith.mulf %cst_27, %78 : f32
    %80 = arith.addf %72, %79 : f32
    %81 = arith.mulf %67, %67 : vector<16x1xf32>
    %82 = vector.shape_cast %81 : vector<16x1xf32> to vector<1x16x1xf32>
    %cst_28 = arith.constant dense<0.000000e+00> : vector<1xf32>
    %83 = vector.multi_reduction <add>, %82, %cst_28 [1, 2] : vector<1x16x1xf32> to vector<1xf32>
    %84 = vector.shape_cast %83 : vector<1xf32> to vector<1x1x1xf32>
    %85 = vector.extract %84[0, 0, 0] : f32 from vector<1x1x1xf32>
    %cst_29 = arith.constant 4.096000e+03 : f32
    %86 = arith.mulf %cst_29, %85 : f32
    %87 = arith.addf %80, %86 : f32
    %cst_30 = arith.constant 1.52587891E-5 : f32
    %88 = arith.mulf %87, %cst_30 : f32
    %cst_31 = arith.constant 9.99999974E-6 : f32
    %89 = arith.addf %88, %cst_31 : f32
    %90 = math.rsqrt %89 : f32
    %c0_32 = arith.constant 0 : index
    %c0_33 = arith.constant 0 : index
    %91 = vector.load %arg6[%c0_32, %c0_33] : memref<16x1xf32, #tpu.memory_space<vmem>>, vector<16x1xf32>
    %92 = vector.broadcast %90 : f32 to vector<16x1xf32>
    %93 = arith.mulf %92, %91 : vector<16x1xf32>
    %94 = vector.broadcast %93 : vector<16x1xf32> to vector<16x8xf32>
    %95 = arith.mulf %42, %94 : vector<16x8xf32>
    %96 = arith.mulf %67, %93 : vector<16x1xf32>
    %c0_34 = arith.constant 0 : index
    %c0_35 = arith.constant 0 : index
    %97 = vector.load %arg7[%c0_34, %c0_35] : memref<16x1xf32, #tpu.memory_space<vmem>>, vector<16x1xf32>
    %98 = arith.addf %96, %97 : vector<16x1xf32>
    %c0_36 = arith.constant 0 : index
    %c0_37 = arith.constant 0 : index
    %99 = vector.load %arg8[%c0_36, %c0_37] : memref<8x16xf32, #tpu.memory_space<vmem>>, vector<8x16xf32>
    %100 = tpu.transpose %95, [1, 0] : vector<16x8xf32> -> vector<8x16xf32>
    %101 = vector.shape_cast %100 : vector<8x16xf32> to vector<8x1x16xf32>
    %102 = vector.shape_cast %99 : vector<8x16xf32> to vector<1x8x16xf32>
    %103 = vector.broadcast %101 : vector<8x1x16xf32> to vector<8x8x16xf32>
    %104 = vector.broadcast %102 : vector<1x8x16xf32> to vector<8x8x16xf32>
    %105 = arith.mulf %103, %104 : vector<8x8x16xf32>
    %106 = vector.shape_cast %105 : vector<8x8x16xf32> to vector<64x16xf32>
    %cst_38 = arith.constant dense<0.000000e+00> : vector<8x1xf32>
    %107 = tpu.matmul %99, %98, %cst_38 {dimension_numbers = #tpu.dot_dimension_numbers<[1], [0], [0], [1], [0, 0, 1, 1], [], []>} : vector<8x16xf32>, vector<16x1xf32>, vector<8x1xf32> -> vector<8x1xf32>
    %c0_39 = arith.constant 0 : index
    %c0_40 = arith.constant 0 : index
    %108 = vector.load %arg10[%c0_39, %c0_40] : memref<8x1xf32, #tpu.memory_space<vmem>>, vector<8x1xf32>
    %109 = arith.addf %108, %107 : vector<8x1xf32>
    %110 = tpu.concatenate %109, %109, %109, %109, %109, %109, %109, %109 in 0 : vector<8x1xf32>, vector<8x1xf32>, vector<8x1xf32>, vector<8x1xf32>, vector<8x1xf32>, vector<8x1xf32>, vector<8x1xf32>, vector<8x1xf32> -> vector<64x1xf32>
    %cst_41 = arith.constant dense<0.000000e+00> : vector<64x512xf32>
    %111 = tpu.matmul %106, %41, %cst_41 {dimension_numbers = #tpu.dot_dimension_numbers<[1], [0], [0], [1], [0, 0, 1, 1], [], []>} : vector<64x16xf32>, vector<16x512xf32>, vector<64x512xf32> -> vector<64x512xf32>
    %c0_42 = arith.constant 0 : index
    %c0_43 = arith.constant 0 : index
    %112 = vector.load %arg9[%c0_42, %c0_43] : memref<64x72xf32, #tpu.memory_space<vmem>>, vector<64x72xf32>
    %cst_44 = arith.constant dense<0.000000e+00> : vector<64x512xf32>
    %113 = tpu.matmul %112, %1, %cst_44 {dimension_numbers = #tpu.dot_dimension_numbers<[1], [0], [0], [1], [0, 0, 1, 1], [], []>} : vector<64x72xf32>, vector<72x512xf32>, vector<64x512xf32> -> vector<64x512xf32>
    %114 = arith.addf %111, %113 : vector<64x512xf32>
    %115 = vector.broadcast %110 : vector<64x1xf32> to vector<64x512xf32>
    %116 = arith.addf %114, %115 : vector<64x512xf32>
    %117 = vector.shape_cast %116 : vector<64x512xf32> to vector<1x64x512xf32>
    %cst_45 = arith.constant dense<0.000000e+00> : vector<1xf32>
    %118 = vector.multi_reduction <add>, %117, %cst_45 [1, 2] : vector<1x64x512xf32> to vector<1xf32>
    %119 = vector.shape_cast %118 : vector<1xf32> to vector<1x1x1xf32>
    %120 = vector.extract %119[0, 0, 0] : f32 from vector<1x1x1xf32>
    %cst_46 = arith.constant 3.05175781E-5 : f32
    %121 = arith.mulf %120, %cst_46 : f32
    %122 = vector.broadcast %121 : f32 to vector<64x512xf32>
    %123 = arith.subf %116, %122 : vector<64x512xf32>
    %124 = arith.mulf %123, %123 : vector<64x512xf32>
    %125 = vector.shape_cast %124 : vector<64x512xf32> to vector<1x64x512xf32>
    %cst_47 = arith.constant dense<0.000000e+00> : vector<1xf32>
    %126 = vector.multi_reduction <add>, %125, %cst_47 [1, 2] : vector<1x64x512xf32> to vector<1xf32>
    %127 = vector.shape_cast %126 : vector<1xf32> to vector<1x1x1xf32>
    %128 = vector.extract %127[0, 0, 0] : f32 from vector<1x1x1xf32>
    %cst_48 = arith.constant 3.05175781E-5 : f32
    %129 = arith.mulf %128, %cst_48 : f32
    %cst_49 = arith.constant 9.99999974E-6 : f32
    %130 = arith.addf %129, %cst_49 : f32
    %131 = math.rsqrt %130 : f32
    %c0_50 = arith.constant 0 : index
    %c0_51 = arith.constant 0 : index
    %132 = vector.load %arg11[%c0_50, %c0_51] : memref<64x1xf32, #tpu.memory_space<vmem>>, vector<64x1xf32>
    %133 = vector.broadcast %131 : f32 to vector<64x1xf32>
    %134 = arith.mulf %133, %132 : vector<64x1xf32>
    %135 = vector.broadcast %134 : vector<64x1xf32> to vector<64x512xf32>
    %136 = arith.mulf %123, %135 : vector<64x512xf32>
    %c0_52 = arith.constant 0 : index
    %c0_53 = arith.constant 0 : index
    %137 = vector.load %arg12[%c0_52, %c0_53] : memref<64x1xf32, #tpu.memory_space<vmem>>, vector<64x1xf32>
    %138 = vector.broadcast %137 : vector<64x1xf32> to vector<64x512xf32>
    %139 = arith.addf %136, %138 : vector<64x512xf32>
    %c0_54 = arith.constant 0 : index
    %c0_55 = arith.constant 0 : index
    %c0_56 = arith.constant 0 : index
    %140 = vector.load %arg13[%c0_54, %c0_55, %c0_56] : memref<1x64x512xf32, #tpu.memory_space<vmem>>, vector<1x64x512xf32>
    %141 = vector.shape_cast %140 : vector<1x64x512xf32> to vector<64x512xf32>
    %142 = vector.shape_cast %139 : vector<64x512xf32> to vector<1x64x512xf32>
    tpu.vector_store %arg13[%c0_54, %c0_55, %c0_56], %142 {strides = array<i32>} : memref<1x64x512xf32, #tpu.memory_space<vmem>>, vector<1x64x512xf32>,
    return
  }
  func.func @transform_0(%arg0: i32) -> (i32, i32, i32) {
    %c0_i32 = arith.constant 0 : i32
    %c0_i32_0 = arith.constant 0 : i32
    %c0_i32_1 = arith.constant 0 : i32
    return %arg0, %c0_i32, %c0_i32_0 : i32, i32, i32
  }
  func.func @transform_1(%arg0: i32) -> (i32, i32) {
    %c0_i32 = arith.constant 0 : i32
    %c0_i32_0 = arith.constant 0 : i32
    %c0_i32_1 = arith.constant 0 : i32
    return %c0_i32, %c0_i32_0 : i32, i32
  }
  func.func @transform_2(%arg0: i32) -> (i32, i32) {
    %c0_i32 = arith.constant 0 : i32
    %c0_i32_0 = arith.constant 0 : i32
    %c0_i32_1 = arith.constant 0 : i32
    return %c0_i32, %c0_i32_0 : i32, i32
  }
  func.func @transform_3(%arg0: i32) -> (i32, i32) {
    %c0_i32 = arith.constant 0 : i32
    %c0_i32_0 = arith.constant 0 : i32
    %c0_i32_1 = arith.constant 0 : i32
    return %c0_i32, %c0_i32_0 : i32, i32
  }
  func.func @transform_4(%arg0: i32) -> (i32, i32) {
    %c0_i32 = arith.constant 0 : i32
    %c0_i32_0 = arith.constant 0 : i32
    %c0_i32_1 = arith.constant 0 : i32
    return %c0_i32, %c0_i32_0 : i32, i32
  }
  func.func @transform_5(%arg0: i32) -> (i32, i32) {
    %c0_i32 = arith.constant 0 : i32
    %c0_i32_0 = arith.constant 0 : i32
    %c0_i32_1 = arith.constant 0 : i32
    return %c0_i32, %c0_i32_0 : i32, i32
  }
  func.func @transform_6(%arg0: i32) -> (i32, i32) {
    %c0_i32 = arith.constant 0 : i32
    %c0_i32_0 = arith.constant 0 : i32
    %c0_i32_1 = arith.constant 0 : i32
    return %c0_i32, %c0_i32_0 : i32, i32
  }
  func.func @transform_7(%arg0: i32) -> (i32, i32) {
    %c0_i32 = arith.constant 0 : i32
    %c0_i32_0 = arith.constant 0 : i32
    %c0_i32_1 = arith.constant 0 : i32
    return %c0_i32, %c0_i32_0 : i32, i32
  }
  func.func @transform_8(%arg0: i32) -> (i32, i32) {
    %c0_i32 = arith.constant 0 : i32
    %c0_i32_0 = arith.constant 0 : i32
    %c0_i32_1 = arith.constant 0 : i32
    return %c0_i32, %c0_i32_0 : i32, i32
  }
  func.func @transform_9(%arg0: i32) -> (i32, i32) {
    %c0_i32 = arith.constant 0 : i32
    %c0_i32_0 = arith.constant 0 : i32
    %c0_i32_1 = arith.constant 0 : i32
    return %c0_i32, %c0_i32_0 : i32, i32
  }
  func.func @transform_10(%arg0: i32) -> (i32, i32) {
    %c0_i32 = arith.constant 0 : i32
    %c0_i32_0 = arith.constant 0 : i32
    %c0_i32_1 = arith.constant 0 : i32
    return %c0_i32, %c0_i32_0 : i32, i32
  }
  func.func @transform_11(%arg0: i32) -> (i32, i32) {
    %c0_i32 = arith.constant 0 : i32
    %c0_i32_0 = arith.constant 0 : i32
    %c0_i32_1 = arith.constant 0 : i32
    return %c0_i32, %c0_i32_0 : i32, i32
  }
  func.func @transform_12(%arg0: i32) -> (i32, i32, i32) {
    %c0_i32 = arith.constant 0 : i32
    %c0_i32_0 = arith.constant 0 : i32
    %c0_i32_1 = arith.constant 0 : i32
    return %arg0, %c0_i32, %c0_i32_0 : i32, i32, i32
  }
}

</mosaic_0001>

<llo_original>
// kernel: tpu_custom_call.1
$region0: #{tpu_custom_call.1}
  #allocation0 [shape = 'u32[]', space=smem, size = 0x4, offset = 0x4, fixed_abs, tag = 'smem constant byte address 0x4 - core index']
  #allocation1 [shape = 'u32[144,128]{1,0:T(1,128)}', space=vmem, size = 0x12000, scoped, tag = 'internal scratch']
  %s0 = inlined_call_operand.hbm [shape: f32[2,72,512], index: 0, kind: input, shape index: {}]
  %s1 = inlined_call_operand.vmem [shape: f32[48,16], index: 1, kind: input, shape index: {}]
  %s2 = inlined_call_operand.vmem [shape: f32[48,1], index: 2, kind: input, shape index: {}]
  %s3 = inlined_call_operand.vmem [shape: f32[16,8], index: 3, kind: input, shape index: {}]
  %s4 = inlined_call_operand.vmem [shape: f32[16,1], index: 4, kind: input, shape index: {}]
  %s5 = inlined_call_operand.vmem [shape: f32[16,1], index: 5, kind: input, shape index: {}]
  %s6 = inlined_call_operand.vmem [shape: f32[16,1], index: 6, kind: input, shape index: {}]
  %s7 = inlined_call_operand.vmem [shape: f32[8,16], index: 7, kind: input, shape index: {}]
  %s8 = inlined_call_operand.vmem [shape: f32[64,72], index: 8, kind: input, shape index: {}]
  %s9 = inlined_call_operand.vmem [shape: f32[8,1], index: 9, kind: input, shape index: {}]
  %s10 = inlined_call_operand.vmem [shape: f32[64,1], index: 10, kind: input, shape index: {}]
  %s11 = inlined_call_operand.vmem [shape: f32[64,1], index: 11, kind: input, shape index: {}]
  %s12 = inlined_call_operand.hbm [shape: f32[2,64,512], index: 12, kind: output, shape index: {}]
  %s13 = sld [smem:[#allocation0]]
  $region85: #{tpu_custom_call.1} parent=0
    _
  %s15 = ssub.s32 1, %s13
  %s16 = scalar_select 0, %s15, %s13
  $region1: #{tpu_custom_call.1} parent=0
    #allocation2 [shape = 'u8[294912]{0}', space=vmem, size = 0x48000, scoped, tag = 'input window, operand 0']
    #allocation3 [shape = 's32[2]{0}', space=sflag, size = 0x8, scoped, tag = 'scoped memory for tpu_custom_call.1']
    #allocation4 [shape = 's32[2]{0}', space=sflag, size = 0x8, scoped, tag = 'scoped memory for tpu_custom_call.1']
    #allocation5 [shape = 'u8[262144]{0}', space=vmem, size = 0x40000, scoped, tag = 'output window, operand 0']
    %17 = vsyncpa [#allocation3], 0
    %s18 = scalar_lea.sflag [#allocation3], 1
    %19 = vsyncpa %s18, 0
    %20 = vsyncpa [#allocation4], 0
    %s21 = scalar_lea.sflag [#allocation4], 1
    %22 = vsyncpa %s21, 0
    loop: start=0, step=1, limit=4
    $region2: #{tpu_custom_call.1} parent=1 // loop_pre_header
      _
    $region3: #{tpu_custom_call.1} parent=1 // loop_header
      %s24 = sphi 0, %s28
      %p25 = scmp.ge.s32.totalorder %s24, 4
      %s34 = sphi 0, %s36
      %s37 = sphi 0, %s34
      %s38 = sphi 0, %s37
      %s54 = sphi 0, %s38
      %s58 = sphi 0, %s58
      %s60 = sphi 0, %s58
      %s61 = sphi 0, %s60
      %s75 = sphi 0, %s61
      %s79 = sphi 0, %s79
      %s81 = sphi 0, %s79
      %s82 = sphi 0, %s81
      %s96 = sphi 0, %s82
      %s100 = sphi 0, %s100
      %s102 = sphi 0, %s100
      %s103 = sphi 0, %s102
      %s117 = sphi 0, %s103
      %s121 = sphi 0, %s121
      %s123 = sphi 0, %s121
      %s124 = sphi 0, %s123
      %s138 = sphi 0, %s124
      %s142 = sphi 0, %s142
      %s144 = sphi 0, %s142
      %s145 = sphi 0, %s144
      %s159 = sphi 0, %s145
      %s163 = sphi 0, %s163
      %s165 = sphi 0, %s163
      %s166 = sphi 0, %s165
      %s180 = sphi 0, %s166
      %s184 = sphi 0, %s184
      %s186 = sphi 0, %s184
      %s187 = sphi 0, %s186
      %s201 = sphi 0, %s187
      %s205 = sphi 0, %s205
      %s207 = sphi 0, %s205
      %s208 = sphi 0, %s207
      %s222 = sphi 0, %s208
      %s226 = sphi 0, %s226
      %s228 = sphi 0, %s226
      %s229 = sphi 0, %s228
      %s243 = sphi 0, %s229
      %s247 = sphi 0, %s247
      %s249 = sphi 0, %s247
      %s250 = sphi 0, %s249
      %s264 = sphi 0, %s250
      %s268 = sphi 0, %s268
      %s270 = sphi 0, %s268
      %s271 = sphi 0, %s270
      %s285 = sphi 0, %s271
      %s291 = sphi 0, %s293
      %s294 = sphi 0, %s291
      %s295 = sphi 0, %s294
      %s311 = sphi 0, %s295
    $region4: #{tpu_custom_call.1} parent=1 // loop_header_branch
      %27 = sbr.rel (%p25) target = $region8
    $region5: #{tpu_custom_call.1} parent=1 // loop_body
      %s29 = ssub.s32 %s24, 1
      %s30 = ssub.s32 %s24, 2
      %s31 = sadd.s32 %s24, 1
      %s32 = ssub.s32 %s24, %s31
      %p33 = scmp.eq.s32.totalorder %s32, 0
      %s35 = sadd.s32 %s34, 1
      %s36 = scalar_select %p33, %s34, %s35
      %p39 = pneg %p33
      %p40 = scmp.eq.s32.totalorder %s24, 1
      %p41 = por %p39, %p40
      %p42 = scmp.ne.s32.totalorder %s34, %s37
      %p43 = scmp.eq.s32.totalorder %s24, 0
      %p44 = por %p42, %p43
      %p45 = scmp.ne.s32.totalorder %s34, %s37
      %p46 = scmp.eq.s32.totalorder %s29, 1
      %p47 = por %p45, %p46
      %p48 = scmp.ne.s32.totalorder %s37, %s38
      %p49 = scmp.eq.s32.totalorder %s29, 0
      %p50 = por %p48, %p49
      %p51 = scmp.ne.s32.totalorder %s37, %s38
      %p52 = scmp.eq.s32.totalorder %s30, 1
      %p53 = por %p51, %p52
      %p55 = scmp.ne.s32.totalorder %s38, %s54
      %p56 = scmp.eq.s32.totalorder %s30, 0
      %p57 = por %p55, %p56
      %s59 = sadd.s32 %s58, 1
      %p62 = scmp.eq.s32.totalorder %s24, 1
      %p63 = scmp.ne.s32.totalorder %s58, %s60
      %p64 = scmp.eq.s32.totalorder %s24, 0
      %p65 = por %p63, %p64
      %p66 = scmp.ne.s32.totalorder %s58, %s60
      %p67 = scmp.eq.s32.totalorder %s29, 1
      %p68 = por %p66, %p67
      %p69 = scmp.ne.s32.totalorder %s60, %s61
      %p70 = scmp.eq.s32.totalorder %s29, 0
      %p71 = por %p69, %p70
      %p72 = scmp.ne.s32.totalorder %s60, %s61
      %p73 = scmp.eq.s32.totalorder %s30, 1
      %p74 = por %p72, %p73
      %p76 = scmp.ne.s32.totalorder %s61, %s75
      %p77 = scmp.eq.s32.totalorder %s30, 0
      %p78 = por %p76, %p77
      %s80 = sadd.s32 %s79, 1
      %p83 = scmp.eq.s32.totalorder %s24, 1
      %p84 = scmp.ne.s32.totalorder %s79, %s81
      %p85 = scmp.eq.s32.totalorder %s24, 0
      %p86 = por %p84, %p85
      %p87 = scmp.ne.s32.totalorder %s79, %s81
      %p88 = scmp.eq.s32.totalorder %s29, 1
      %p89 = por %p87, %p88
      %p90 = scmp.ne.s32.totalorder %s81, %s82
      %p91 = scmp.eq.s32.totalorder %s29, 0
      %p92 = por %p90, %p91
      %p93 = scmp.ne.s32.totalorder %s81, %s82
      %p94 = scmp.eq.s32.totalorder %s30, 1
      %p95 = por %p93, %p94
      %p97 = scmp.ne.s32.totalorder %s82, %s96
      %p98 = scmp.eq.s32.totalorder %s30, 0
      %p99 = por %p97, %p98
      %s101 = sadd.s32 %s100, 1
      %p104 = scmp.eq.s32.totalorder %s24, 1
      %p105 = scmp.ne.s32.totalorder %s100, %s102
      %p106 = scmp.eq.s32.totalorder %s24, 0
      %p107 = por %p105, %p106
      %p108 = scmp.ne.s32.totalorder %s100, %s102
      %p109 = scmp.eq.s32.totalorder %s29, 1
      %p110 = por %p108, %p109
      %p111 = scmp.ne.s32.totalorder %s102, %s103
      %p112 = scmp.eq.s32.totalorder %s29, 0
      %p113 = por %p111, %p112
      %p114 = scmp.ne.s32.totalorder %s102, %s103
      %p115 = scmp.eq.s32.totalorder %s30, 1
      %p116 = por %p114, %p115
      %p118 = scmp.ne.s32.totalorder %s103, %s117
      %p119 = scmp.eq.s32.totalorder %s30, 0
      %p120 = por %p118, %p119
      %s122 = sadd.s32 %s121, 1
      %p125 = scmp.eq.s32.totalorder %s24, 1
      %p126 = scmp.ne.s32.totalorder %s121, %s123
      %p127 = scmp.eq.s32.totalorder %s24, 0
      %p128 = por %p126, %p127
      %p129 = scmp.ne.s32.totalorder %s121, %s123
      %p130 = scmp.eq.s32.totalorder %s29, 1
      %p131 = por %p129, %p130
      %p132 = scmp.ne.s32.totalorder %s123, %s124
      %p133 = scmp.eq.s32.totalorder %s29, 0
      %p134 = por %p132, %p133
      %p135 = scmp.ne.s32.totalorder %s123, %s124
      %p136 = scmp.eq.s32.totalorder %s30, 1
      %p137 = por %p135, %p136
      %p139 = scmp.ne.s32.totalorder %s124, %s138
      %p140 = scmp.eq.s32.totalorder %s30, 0
      %p141 = por %p139, %p140
      %s143 = sadd.s32 %s142, 1
      %p146 = scmp.eq.s32.totalorder %s24, 1
      %p147 = scmp.ne.s32.totalorder %s142, %s144
      %p148 = scmp.eq.s32.totalorder %s24, 0
      %p149 = por %p147, %p148
      %p150 = scmp.ne.s32.totalorder %s142, %s144
      %p151 = scmp.eq.s32.totalorder %s29, 1
      %p152 = por %p150, %p151
      %p153 = scmp.ne.s32.totalorder %s144, %s145
      %p154 = scmp.eq.s32.totalorder %s29, 0
      %p155 = por %p153, %p154
      %p156 = scmp.ne.s32.totalorder %s144, %s145
      %p157 = scmp.eq.s32.totalorder %s30, 1
      %p158 = por %p156, %p157
      %p160 = scmp.ne.s32.totalorder %s145, %s159
      %p161 = scmp.eq.s32.totalorder %s30, 0
      %p162 = por %p160, %p161
      %s164 = sadd.s32 %s163, 1
      %p167 = scmp.eq.s32.totalorder %s24, 1
      %p168 = scmp.ne.s32.totalorder %s163, %s165
      %p169 = scmp.eq.s32.totalorder %s24, 0
      %p170 = por %p168, %p169
      %p171 = scmp.ne.s32.totalorder %s163, %s165
      %p172 = scmp.eq.s32.totalorder %s29, 1
      %p173 = por %p171, %p172
      %p174 = scmp.ne.s32.totalorder %s165, %s166
      %p175 = scmp.eq.s32.totalorder %s29, 0
      %p176 = por %p174, %p175
      %p177 = scmp.ne.s32.totalorder %s165, %s166
      %p178 = scmp.eq.s32.totalorder %s30, 1
      %p179 = por %p177, %p178
      %p181 = scmp.ne.s32.totalorder %s166, %s180
      %p182 = scmp.eq.s32.totalorder %s30, 0
      %p183 = por %p181, %p182
      %s185 = sadd.s32 %s184, 1
      %p188 = scmp.eq.s32.totalorder %s24, 1
      %p189 = scmp.ne.s32.totalorder %s184, %s186
      %p190 = scmp.eq.s32.totalorder %s24, 0
      %p191 = por %p189, %p190
      %p192 = scmp.ne.s32.totalorder %s184, %s186
      %p193 = scmp.eq.s32.totalorder %s29, 1
      %p194 = por %p192, %p193
      %p195 = scmp.ne.s32.totalorder %s186, %s187
      %p196 = scmp.eq.s32.totalorder %s29, 0
      %p197 = por %p195, %p196
      %p198 = scmp.ne.s32.totalorder %s186, %s187
      %p199 = scmp.eq.s32.totalorder %s30, 1
      %p200 = por %p198, %p199
      %p202 = scmp.ne.s32.totalorder %s187, %s201
      %p203 = scmp.eq.s32.totalorder %s30, 0
      %p204 = por %p202, %p203
      %s206 = sadd.s32 %s205, 1
      %p209 = scmp.eq.s32.totalorder %s24, 1
      %p210 = scmp.ne.s32.totalorder %s205, %s207
      %p211 = scmp.eq.s32.totalorder %s24, 0
      %p212 = por %p210, %p211
      %p213 = scmp.ne.s32.totalorder %s205, %s207
      %p214 = scmp.eq.s32.totalorder %s29, 1
      %p215 = por %p213, %p214
      %p216 = scmp.ne.s32.totalorder %s207, %s208
      %p217 = scmp.eq.s32.totalorder %s29, 0
      %p218 = por %p216, %p217
      %p219 = scmp.ne.s32.totalorder %s207, %s208
      %p220 = scmp.eq.s32.totalorder %s30, 1
      %p221 = por %p219, %p220
      %p223 = scmp.ne.s32.totalorder %s208, %s222
      %p224 = scmp.eq.s32.totalorder %s30, 0
      %p225 = por %p223, %p224
      %s227 = sadd.s32 %s226, 1
      %p230 = scmp.eq.s32.totalorder %s24, 1
      %p231 = scmp.ne.s32.totalorder %s226, %s228
      %p232 = scmp.eq.s32.totalorder %s24, 0
      %p233 = por %p231, %p232
      %p234 = scmp.ne.s32.totalorder %s226, %s228
      %p235 = scmp.eq.s32.totalorder %s29, 1
      %p236 = por %p234, %p235
      %p237 = scmp.ne.s32.totalorder %s228, %s229
      %p238 = scmp.eq.s32.totalorder %s29, 0
      %p239 = por %p237, %p238
      %p240 = scmp.ne.s32.totalorder %s228, %s229
      %p241 = scmp.eq.s32.totalorder %s30, 1
      %p242 = por %p240, %p241
      %p244 = scmp.ne.s32.totalorder %s229, %s243
      %p245 = scmp.eq.s32.totalorder %s30, 0
      %p246 = por %p244, %p245
      %s248 = sadd.s32 %s247, 1
      %p251 = scmp.eq.s32.totalorder %s24, 1
      %p252 = scmp.ne.s32.totalorder %s247, %s249
      %p253 = scmp.eq.s32.totalorder %s24, 0
      %p254 = por %p252, %p253
      %p255 = scmp.ne.s32.totalorder %s247, %s249
      %p256 = scmp.eq.s32.totalorder %s29, 1
      %p257 = por %p255, %p256
      %p258 = scmp.ne.s32.totalorder %s249, %s250
      %p259 = scmp.eq.s32.totalorder %s29, 0
      %p260 = por %p258, %p259
      %p261 = scmp.ne.s32.totalorder %s249, %s250
      %p262 = scmp.eq.s32.totalorder %s30, 1
      %p263 = por %p261, %p262
      %p265 = scmp.ne.s32.totalorder %s250, %s264
      %p266 = scmp.eq.s32.totalorder %s30, 0
      %p267 = por %p265, %p266
      %s269 = sadd.s32 %s268, 1
      %p272 = scmp.eq.s32.totalorder %s24, 1
      %p273 = scmp.ne.s32.totalorder %s268, %s270
      %p274 = scmp.eq.s32.totalorder %s24, 0
      %p275 = por %p273, %p274
      %p276 = scmp.ne.s32.totalorder %s268, %s270
      %p277 = scmp.eq.s32.totalorder %s29, 1
      %p278 = por %p276, %p277
      %p279 = scmp.ne.s32.totalorder %s270, %s271
      %p280 = scmp.eq.s32.totalorder %s29, 0
      %p281 = por %p279, %p280
      %p282 = scmp.ne.s32.totalorder %s270, %s271
      %p283 = scmp.eq.s32.totalorder %s30, 1
      %p284 = por %p282, %p283
      %p286 = scmp.ne.s32.totalorder %s271, %s285
      %p287 = scmp.eq.s32.totalorder %s30, 0
      %p288 = por %p286, %p287
      %s289 = ssub.s32 %s24, %s31
      %p290 = scmp.eq.s32.totalorder %s289, 0
      %s292 = sadd.s32 %s291, 1
      %s293 = scalar_select %p290, %s291, %s292
      %p296 = pneg %p290
      %p297 = scmp.eq.s32.totalorder %s24, 1
      %p298 = por %p296, %p297
      %p299 = scmp.ne.s32.totalorder %s291, %s294
      %p300 = scmp.eq.s32.totalorder %s24, 0
      %p301 = por %p299, %p300
      %p302 = scmp.ne.s32.totalorder %s291, %s294
      %p303 = scmp.eq.s32.totalorder %s29, 1
      %p304 = por %p302, %p303
      %p305 = scmp.ne.s32.totalorder %s294, %s295
      %p306 = scmp.eq.s32.totalorder %s29, 0
      %p307 = por %p305, %p306
      %p308 = scmp.ne.s32.totalorder %s294, %s295
      %p309 = scmp.eq.s32.totalorder %s30, 1
      %p310 = por %p308, %p309
      %p312 = scmp.ne.s32.totalorder %s295, %s311
      %p313 = scmp.eq.s32.totalorder %s30, 0
      %p314 = por %p312, %p313
      %p315 = scmp.le.s32.totalorder 1, %s24
      %p316 = scmp.lt.s32.totalorder %s24, 3
      %p317 = pnand %p315, %p316
      %p318 = pneg %p317
      // Predicated region
      $region9: #{tpu_custom_call.1} parent=5 // pred_check
        _
      $region10: #{tpu_custom_call.1} parent=5 // pred_check_branch
        %320 = sbr.rel (%p317) target = $region12
      $region11: #{tpu_custom_call.1} parent=5 // pred_region
        %s321 = ssub.s32 %s24, 1
        // Predicated region
        $region13: #{tpu_custom_call.1} parent=11 // pred_check
          %p322 = pneg %p71
        $region14: #{tpu_custom_call.1} parent=11 // pred_check_branch
          %324 = sbr.rel (%p322) target = $region16
        $region15: #{tpu_custom_call.1} parent=11 // pred_region
          _
        $region16: #{tpu_custom_call.1} parent=11 // pred_fallthru
          _
        // Predicated region
        $region17: #{tpu_custom_call.1} parent=11 // pred_check
          %p325 = pneg %p92
        $region18: #{tpu_custom_call.1} parent=11 // pred_check_branch
          %327 = sbr.rel (%p325) target = $region20
        $region19: #{tpu_custom_call.1} parent=11 // pred_region
          _
        $region20: #{tpu_custom_call.1} parent=11 // pred_fallthru
          _
        // Predicated region
        $region21: #{tpu_custom_call.1} parent=11 // pred_check
          %p328 = pneg %p113
        $region22: #{tpu_custom_call.1} parent=11 // pred_check_branch
          %330 = sbr.rel (%p328) target = $region24
        $region23: #{tpu_custom_call.1} parent=11 // pred_region
          _
        $region24: #{tpu_custom_call.1} parent=11 // pred_fallthru
          _
        // Predicated region
        $region25: #{tpu_custom_call.1} parent=11 // pred_check
          %p331 = pneg %p134
        $region26: #{tpu_custom_call.1} parent=11 // pred_check_branch
          %333 = sbr.rel (%p331) target = $region28
        $region27: #{tpu_custom_call.1} parent=11 // pred_region
          _
        $region28: #{tpu_custom_call.1} parent=11 // pred_fallthru
          _
        // Predicated region
        $region29: #{tpu_custom_call.1} parent=11 // pred_check
          %p334 = pneg %p155
        $region30: #{tpu_custom_call.1} parent=11 // pred_check_branch
          %336 = sbr.rel (%p334) target = $region32
        $region31: #{tpu_custom_call.1} parent=11 // pred_region
          _
        $region32: #{tpu_custom_call.1} parent=11 // pred_fallthru
          _
        // Predicated region
        $region33: #{tpu_custom_call.1} parent=11 // pred_check
          %p337 = pneg %p176
        $region34: #{tpu_custom_call.1} parent=11 // pred_check_branch
          %339 = sbr.rel (%p337) target = $region36
        $region35: #{tpu_custom_call.1} parent=11 // pred_region
          _
        $region36: #{tpu_custom_call.1} parent=11 // pred_fallthru
          _
        // Predicated region
        $region37: #{tpu_custom_call.1} parent=11 // pred_check
          %p340 = pneg %p197
        $region38: #{tpu_custom_call.1} parent=11 // pred_check_branch
          %342 = sbr.rel (%p340) target = $region40
        $region39: #{tpu_custom_call.1} parent=11 // pred_region
          _
        $region40: #{tpu_custom_call.1} parent=11 // pred_fallthru
          _
        // Predicated region
        $region41: #{tpu_custom_call.1} parent=11 // pred_check
          %p343 = pneg %p218
        $region42: #{tpu_custom_call.1} parent=11 // pred_check_branch
          %345 = sbr.rel (%p343) target = $region44
        $region43: #{tpu_custom_call.1} parent=11 // pred_region
          _
        $region44: #{tpu_custom_call.1} parent=11 // pred_fallthru
          _
        // Predicated region
        $region45: #{tpu_custom_call.1} parent=11 // pred_check
          %p346 = pneg %p239
        $region46: #{tpu_custom_call.1} parent=11 // pred_check_branch
          %348 = sbr.rel (%p346) target = $region48
        $region47: #{tpu_custom_call.1} parent=11 // pred_region
          _
        $region48: #{tpu_custom_call.1} parent=11 // pred_fallthru
          _
        // Predicated region
        $region49: #{tpu_custom_call.1} parent=11 // pred_check
          %p349 = pneg %p260
        $region50: #{tpu_custom_call.1} parent=11 // pred_check_branch
          %351 = sbr.rel (%p349) target = $region52
        $region51: #{tpu_custom_call.1} parent=11 // pred_region
          _
        $region52: #{tpu_custom_call.1} parent=11 // pred_fallthru
          _
        // Predicated region
        $region53: #{tpu_custom_call.1} parent=11 // pred_check
          %p352 = pneg %p281
        $region54: #{tpu_custom_call.1} parent=11 // pred_check_branch
          %354 = sbr.rel (%p352) target = $region56
        $region55: #{tpu_custom_call.1} parent=11 // pred_region
          _
        $region56: #{tpu_custom_call.1} parent=11 // pred_fallthru
          _
      $region12: #{tpu_custom_call.1} parent=5 // pred_fallthru
        _
      %p355 = scmp.lt.s32.totalorder %s24, 2
      // Predicated region
      $region57: #{tpu_custom_call.1} parent=5 // pred_check
        %p356 = pneg %p355
      $region58: #{tpu_custom_call.1} parent=5 // pred_check_branch
        %358 = sbr.rel (%p356) target = $region60
      $region59: #{tpu_custom_call.1} parent=5 // pred_region
        // Predicated region
        $region61: #{tpu_custom_call.1} parent=59 // pred_check
          %p359 = pneg %p44
        $region62: #{tpu_custom_call.1} parent=59 // pred_check_branch
          %361 = sbr.rel (%p359) target = $region64
        $region63: #{tpu_custom_call.1} parent=59 // pred_region
          %s362 = sand.u32 %s34, 1
          %s363 = scalar_lea.sflag [#allocation3], %s362
          %s364 = sand.u32 %s34, 1
          %s365 = smul.addr %s364, 288
          %s366 = scalar_lea.vmem [#allocation2], %s365
          %s368 = ssub.s32 4608, 4608
          %369 = vsyncadd %s363, %s368
          %s370 = smul.addr %s24, 36
          %s371 = smul.addr %s370, 128
          %s372 = scalar_lea.hbm %s0, %s371
          %s373 = sshll.u32 %s366, 4
          %s374 = int_to_ptr.vmem [resolvable:$true] %s373
          %379 = dma.hbm_to_vmem [thread:$0]  %s372, 4608, %s374, %s363, 512, 512, 32
        $region64: #{tpu_custom_call.1} parent=59 // pred_fallthru
          _
      $region60: #{tpu_custom_call.1} parent=5 // pred_fallthru
        _
      %p380 = scmp.le.s32.totalorder 1, %s24
      %p381 = scmp.lt.s32.totalorder %s24, 3
      %p382 = pnand %p380, %p381
      %p383 = pneg %p382
      // Predicated region
      $region65: #{tpu_custom_call.1} parent=5 // pred_check
        _
      $region66: #{tpu_custom_call.1} parent=5 // pred_check_branch
        %385 = sbr.rel (%p382) target = $region68
      $region67: #{tpu_custom_call.1} parent=5 // pred_region
        %s386 = ssub.s32 %s24, 1
        %s387 = sand.u32 %s37, 1
        %s388 = scalar_lea.sflag [#allocation3], %s387
        %s389 = sand.u32 %s37, 1
        %s390 = smul.addr %s389, 288
        %s391 = scalar_lea.vmem [#allocation2], %s390
        // Predicated region
        $region69: #{tpu_custom_call.1} parent=67 // pred_check
          %p392 = pneg %p50
        $region70: #{tpu_custom_call.1} parent=67 // pred_check_branch
          %394 = sbr.rel (%p392) target = $region72
        $region71: #{tpu_custom_call.1} parent=67 // pred_region
          %395 = dma.done %s388, 4608
        $region72: #{tpu_custom_call.1} parent=67 // pred_fallthru
          _
        %s396 = sand.u32 %s37, 1
        %s397 = scalar_lea.sflag [#allocation3], %s396
        %s398 = sand.u32 %s37, 1
        %s399 = smul.addr %s398, 288
        %s400 = scalar_lea.vmem [#allocation2], %s399
        %p401 = pneg %p50
        %p402 = pneg %p47
        %p403 = pneg %p71
        %p404 = pneg %p68
        %p405 = pneg %p92
        %p406 = pneg %p89
        %p407 = pneg %p113
        %p408 = pneg %p110
        %p409 = pneg %p134
        %p410 = pneg %p131
        %p411 = pneg %p155
        %p412 = pneg %p152
        %p413 = pneg %p176
        %p414 = pneg %p173
        %p415 = pneg %p197
        %p416 = pneg %p194
        %p417 = pneg %p218
        %p418 = pneg %p215
        %p419 = pneg %p239
        %p420 = pneg %p236
        %p421 = pneg %p260
        %p422 = pneg %p257
        %p423 = pneg %p281
        %p424 = pneg %p278
        %p425 = pneg %p307
        %p426 = pneg %p304
        %s427 = sand.u32 %s294, 1
        %s428 = scalar_lea.sflag [#allocation4], %s427
        %s429 = sand.u32 %s294, 1
        %s430 = smul.addr %s429, 256
        %s431 = scalar_lea.vmem [#allocation5], %s430
        %v432 = vld [vmem:[%s391] sm:$0xff]
        %v433 = vld [vmem:[%s391 + $0x8] sm:$0xff]
        %v434 = vld [vmem:[%s391 + $0x10] sm:$0xff]
        %v435 = vld [vmem:[%s391 + $0x18] sm:$0xff]
        %v436 = vld [vmem:[%s391 + $0x20] sm:$0xff]
        %v437 = vld [vmem:[%s391 + $0x28] sm:$0xff]
        %v438 = vld [vmem:[%s391 + $0x30] sm:$0xff]
        %v439 = vld [vmem:[%s391 + $0x38] sm:$0xff]
        %v440 = vld [vmem:[%s391 + $0x40] sm:$0xff]
        %v441 = vld [vmem:[%s391 + $0x48] sm:$0xff]
        %v442 = vld [vmem:[%s391 + $0x50] sm:$0xff]
        %v443 = vld [vmem:[%s391 + $0x58] sm:$0xff]
        %v444 = vld [vmem:[%s391 + $0x60] sm:$0xff]
        %v445 = vld [vmem:[%s391 + $0x68] sm:$0xff]
        %v446 = vld [vmem:[%s391 + $0x70] sm:$0xff]
        %v447 = vld [vmem:[%s391 + $0x78] sm:$0xff]
        %v448 = vld [vmem:[%s391 + $0x80] sm:$0xff]
        %v449 = vld [vmem:[%s391 + $0x88] sm:$0xff]
        %v450 = vld [vmem:[%s391 + $0x90] sm:$0xff]
        %v451 = vld [vmem:[%s391 + $0x98] sm:$0xff]
        %v452 = vld [vmem:[%s391 + $0xa0] sm:$0xff]
        %v453 = vld [vmem:[%s391 + $0xa8] sm:$0xff]
        %v454 = vld [vmem:[%s391 + $0xb0] sm:$0xff]
        %v455 = vld [vmem:[%s391 + $0xb8] sm:$0xff]
        %v456 = vld [vmem:[%s391 + $0xc0] sm:$0xff]
        %v457 = vld [vmem:[%s391 + $0xc8] sm:$0xff]
        %v458 = vld [vmem:[%s391 + $0xd0] sm:$0xff]
        %v459 = vld [vmem:[%s391 + $0xd8] sm:$0xff]
        %v460 = vld [vmem:[%s391 + $0xe0] sm:$0xff]
        %v461 = vld [vmem:[%s391 + $0xe8] sm:$0xff]
        %v462 = vld [vmem:[%s391 + $0xf0] sm:$0xff]
        %v463 = vld [vmem:[%s391 + $0xf8] sm:$0xff]
        %v464 = vld [vmem:[%s391 + $0x100] sm:$0xff]
        %v465 = vld [vmem:[%s391 + $0x108] sm:$0xff]
        %v466 = vld [vmem:[%s391 + $0x110] sm:$0xff]
        %v467 = vld [vmem:[%s391 + $0x118] sm:$0xff]
        %v468 = vld [vmem:[%s1] sm:$0xff]
        %v469 = vld [vmem:[%s1 + $0x8] sm:$0xff]
        %v470 = vld [vmem:[%s1 + $0x10] sm:$0xff]
        %v471 = vld [vmem:[%s1 + $0x18] sm:$0xff]
        %v472 = vld [vmem:[%s1 + $0x20] sm:$0xff]
        %v473 = vld [vmem:[%s1 + $0x28] sm:$0xff]
        %v474 = vld [vmem:[%s2] sm:$0xff]
        %v475 = vld [vmem:[%s2 + $0x8] sm:$0xff]
        %v476 = vld [vmem:[%s2 + $0x10] sm:$0xff]
        %v477 = vld [vmem:[%s2 + $0x18] sm:$0xff]
        %v478 = vld [vmem:[%s2 + $0x20] sm:$0xff]
        %v479 = vld [vmem:[%s2 + $0x28] sm:$0xff]
        %481 = vset.pattern.permute.xlu0 0
        %482 = vperm.xlu0 %481, %v474
        %v483 = vpop.permute.xlu0 %482
        %486 = vset.pattern.permute.xlu0 0
        %487 = vperm.xlu0 %486, %v475
        %v488 = vpop.permute.xlu0 %487
        %491 = vset.pattern.permute.xlu0 0
        %492 = vperm.xlu0 %491, %v476
        %v493 = vpop.permute.xlu0 %492
        %496 = vset.pattern.permute.xlu0 0
        %497 = vperm.xlu0 %496, %v477
        %v498 = vpop.permute.xlu0 %497
        %501 = vset.pattern.permute.xlu0 0
        %502 = vperm.xlu0 %501, %v478
        %v503 = vpop.permute.xlu0 %502
        %506 = vset.pattern.permute.xlu0 0
        %507 = vperm.xlu0 %506, %v479
        %v508 = vpop.permute.xlu0 %507
        %vm510 = vcmask 130048
        %v512 = vsel %vm510, %v468, 0
        %v515 = vsel %vm510, %v469, 0
        %v518 = vsel %vm510, %v470, 0
        %v521 = vsel %vm510, %v471, 0
        %v524 = vsel %vm510, %v472, 0
        %v527 = vsel %vm510, %v473, 0
        %529 = vmatprep.subr.mxu0 0.0
        %530 = vmatpush1.msra.mxu0 0.0
        %531 = vmatprep.subr.mxu0 0.0
        %532 = vmatpush1.msra.mxu0 0.0
        %533 = vmatprep.subr.mxu0 0.0
        %534 = vmatpush1.msra.mxu0 0.0
        %535 = vmatprep.subr.mxu0 0.0
        %536 = vmatpush1.msra.mxu0 0.0
        %537 = vmatprep.subr.mxu0 0.0
        %538 = vmatpush1.msra.mxu0 0.0
        %539 = vmatprep.subr.mxu0 0.0
        %540 = vmatpush1.msra.mxu0 0.0
        %541 = vmatprep.subr.mxu0 0.0
        %542 = vmatpush1.msra.mxu0 0.0
        %543 = vmatprep.subr.mxu0 0.0
        %544 = vmatpush1.msra.mxu0 0.0
        %545 = vmatprep.subr.mxu0 0.0
        %546 = vmatpush1.msra.mxu0 0.0
        %547 = vmatprep.subr.mxu0 0.0
        %548 = vmatpush1.msra.mxu0 0.0
        %549 = vmatprep.subr.mxu0 0.0
        %550 = vmatpush1.msra.mxu0 0.0
        %551 = vmatprep.subr.mxu0 0.0
        %552 = vmatpush1.msra.mxu0 0.0
        %553 = vmatprep.subr.mxu0 0.0
        %554 = vmatpush1.msra.mxu0 0.0
        %555 = vmatprep.subr.mxu0 0.0
        %556 = vmatpush1.msra.mxu0 0.0
        %557 = vmatprep.subr.mxu0 %v437
        %558 = vmatpush1.msra.mxu0 %v436
        %559 = vmatprep.subr.mxu0 %v433
        %560 = vmatpush1.msra.mxu0 %v432
        %561 = vmatprep.subr.mxu0 0.0
        %562 = vmatpush2.msra.mxu0 0.0
        %563 = vmatprep.subr.mxu0 0.0
        %564 = vmatpush2.msra.mxu0 0.0
        %565 = vmatprep.subr.mxu0 0.0
        %566 = vmatpush2.msra.mxu0 0.0
        %567 = vmatprep.subr.mxu0 0.0
        %568 = vmatpush2.msra.mxu0 0.0
        %569 = vmatprep.subr.mxu0 0.0
        %570 = vmatpush2.msra.mxu0 0.0
        %571 = vmatprep.subr.mxu0 0.0
        %572 = vmatpush2.msra.mxu0 0.0
        %573 = vmatprep.subr.mxu0 0.0
        %574 = vmatpush2.msra.mxu0 0.0
        %575 = vmatprep.subr.mxu0 0.0
        %576 = vmatpush2.msra.mxu0 0.0
        %577 = vmatprep.subr.mxu0 0.0
        %578 = vmatpush2.msra.mxu0 0.0
        %579 = vmatprep.subr.mxu0 0.0
        %580 = vmatpush2.msra.mxu0 0.0
        %581 = vmatprep.subr.mxu0 0.0
        %582 = vmatpush2.msra.mxu0 0.0
        %583 = vmatprep.subr.mxu0 0.0
        %584 = vmatpush2.msra.mxu0 0.0
        %585 = vmatprep.subr.mxu0 0.0
        %586 = vmatpush2.msra.mxu0 0.0
        %587 = vmatprep.subr.mxu0 0.0
        %588 = vmatpush2.msra.mxu0 0.0
        %589 = vmatprep.subr.mxu0 0.0
        %590 = vmatpush2.msra.mxu0 0.0
        %591 = vmatprep.subr.mxu0 0.0
        %592 = vmatpush2.msra.mxu0 0.0
        %593 = vmatprep.mubr.f32.mxu0 0.0
        %594 = vmatmul.mubr.f32.gmra.mxu0 %v512
        %v595 = vpop.f32.mrf.mxu0
        %v596 = vadd.f32 %v483, %v595
        %v597 = vpop.f32.mrf.mxu0
        %v598 = vadd.f32 %v483, %v597
        %599 = vmatprep.mubr.f32.mxu0 0.0
        %600 = vmatmul.mubr.f32.gmra.mxu0 %v515
        %v601 = vpop.f32.mrf.mxu0
        %v602 = vadd.f32 %v488, %v601
        %v603 = vpop.f32.mrf.mxu0
        %v604 = vadd.f32 %v488, %v603
        %605 = vmatprep.mubr.f32.mxu0 0.0
        %606 = vmatmul.mubr.f32.gmra.mxu0 %v518
        %v607 = vpop.f32.mrf.mxu0
        %v608 = vadd.f32 %v493, %v607
        %v609 = vpop.f32.mrf.mxu0
        %v610 = vadd.f32 %v493, %v609
        %611 = vmatprep.mubr.f32.mxu0 0.0
        %612 = vmatmul.mubr.f32.gmra.mxu0 %v521
        %v613 = vpop.f32.mrf.mxu0
        %v614 = vadd.f32 %v498, %v613
        %v615 = vpop.f32.mrf.mxu0
        %v616 = vadd.f32 %v498, %v615
        %617 = vmatprep.mubr.f32.mxu0 0.0
        %618 = vmatmul.mubr.f32.gmra.mxu0 %v524
        %v619 = vpop.f32.mrf.mxu0
        %v620 = vadd.f32 %v503, %v619
        %v621 = vpop.f32.mrf.mxu0
        %v622 = vadd.f32 %v503, %v621
        %623 = vmatprep.mubr.f32.mxu0 0.0
        %624 = vmatmul.mubr.f32.gmra.mxu0 %v527
        %v625 = vpop.f32.mrf.mxu0
        %v626 = vadd.f32 %v508, %v625
        %v627 = vpop.f32.mrf.mxu0
        %v628 = vadd.f32 %v508, %v627
        %629 = vdwg.mxu0
        %630 = vmatprep.subr.mxu0 0.0
        %631 = vmatpush1.msra.mxu0 0.0
        %632 = vmatprep.subr.mxu0 0.0
        %633 = vmatpush1.msra.mxu0 0.0
        %634 = vmatprep.subr.mxu0 0.0
        %635 = vmatpush1.msra.mxu0 0.0
        %636 = vmatprep.subr.mxu0 0.0
        %637 = vmatpush1.msra.mxu0 0.0
        %638 = vmatprep.subr.mxu0 0.0
        %639 = vmatpush1.msra.mxu0 0.0
        %640 = vmatprep.subr.mxu0 0.0
        %641 = vmatpush1.msra.mxu0 0.0
        %642 = vmatprep.subr.mxu0 0.0
        %643 = vmatpush1.msra.mxu0 0.0
        %644 = vmatprep.subr.mxu0 0.0
        %645 = vmatpush1.msra.mxu0 0.0
        %646 = vmatprep.subr.mxu0 0.0
        %647 = vmatpush1.msra.mxu0 0.0
        %648 = vmatprep.subr.mxu0 0.0
        %649 = vmatpush1.msra.mxu0 0.0
        %650 = vmatprep.subr.mxu0 0.0
        %651 = vmatpush1.msra.mxu0 0.0
        %652 = vmatprep.subr.mxu0 0.0
        %653 = vmatpush1.msra.mxu0 0.0
        %654 = vmatprep.subr.mxu0 0.0
        %655 = vmatpush1.msra.mxu0 0.0
        %656 = vmatprep.subr.mxu0 0.0
        %657 = vmatpush1.msra.mxu0 0.0
        %658 = vmatprep.subr.mxu0 %v439
        %659 = vmatpush1.msra.mxu0 %v438
        %660 = vmatprep.subr.mxu0 %v435
        %661 = vmatpush1.msra.mxu0 %v434
        %662 = vmatprep.subr.mxu0 0.0
        %663 = vmatpush2.msra.mxu0 0.0
        %664 = vmatprep.subr.mxu0 0.0
        %665 = vmatpush2.msra.mxu0 0.0
        %666 = vmatprep.subr.mxu0 0.0
        %667 = vmatpush2.msra.mxu0 0.0
        %668 = vmatprep.subr.mxu0 0.0
        %669 = vmatpush2.msra.mxu0 0.0
        %670 = vmatprep.subr.mxu0 0.0
        %671 = vmatpush2.msra.mxu0 0.0
        %672 = vmatprep.subr.mxu0 0.0
        %673 = vmatpush2.msra.mxu0 0.0
        %674 = vmatprep.subr.mxu0 0.0
        %675 = vmatpush2.msra.mxu0 0.0
        %676 = vmatprep.subr.mxu0 0.0
        %677 = vmatpush2.msra.mxu0 0.0
        %678 = vmatprep.subr.mxu0 0.0
        %679 = vmatpush2.msra.mxu0 0.0
        %680 = vmatprep.subr.mxu0 0.0
        %681 = vmatpush2.msra.mxu0 0.0
        %682 = vmatprep.subr.mxu0 0.0
        %683 = vmatpush2.msra.mxu0 0.0
        %684 = vmatprep.subr.mxu0 0.0
        %685 = vmatpush2.msra.mxu0 0.0
        %686 = vmatprep.subr.mxu0 0.0
        %687 = vmatpush2.msra.mxu0 0.0
        %688 = vmatprep.subr.mxu0 0.0
        %689 = vmatpush2.msra.mxu0 0.0
        %690 = vmatprep.subr.mxu0 0.0
        %691 = vmatpush2.msra.mxu0 0.0
        %692 = vmatprep.subr.mxu0 0.0
        %693 = vmatpush2.msra.mxu0 0.0
        %694 = vmatprep.mubr.f32.mxu0 0.0
        %695 = vmatmul.mubr.f32.gmra.mxu0 %v512
        %v696 = vpop.f32.mrf.mxu0
        %v697 = vadd.f32 %v483, %v696
        %v698 = vpop.f32.mrf.mxu0
        %v699 = vadd.f32 %v483, %v698
        %700 = vmatprep.mubr.f32.mxu0 0.0
        %701 = vmatmul.mubr.f32.gmra.mxu0 %v515
        %v702 = vpop.f32.mrf.mxu0
        %v703 = vadd.f32 %v488, %v702
        %v704 = vpop.f32.mrf.mxu0
        %v705 = vadd.f32 %v488, %v704
        %706 = vmatprep.mubr.f32.mxu0 0.0
        %707 = vmatmul.mubr.f32.gmra.mxu0 %v518
        %v708 = vpop.f32.mrf.mxu0
        %v709 = vadd.f32 %v493, %v708
        %v710 = vpop.f32.mrf.mxu0
        %v711 = vadd.f32 %v493, %v710
        %712 = vmatprep.mubr.f32.mxu0 0.0
        %713 = vmatmul.mubr.f32.gmra.mxu0 %v521
        %v714 = vpop.f32.mrf.mxu0
        %v715 = vadd.f32 %v498, %v714
        %v716 = vpop.f32.mrf.mxu0
        %v717 = vadd.f32 %v498, %v716
        %718 = vmatprep.mubr.f32.mxu0 0.0
        %719 = vmatmul.mubr.f32.gmra.mxu0 %v524
        %v720 = vpop.f32.mrf.mxu0
        %v721 = vadd.f32 %v503, %v720
        %v722 = vpop.f32.mrf.mxu0
        %v723 = vadd.f32 %v503, %v722
        %724 = vmatprep.mubr.f32.mxu0 0.0
        %725 = vmatmul.mubr.f32.gmra.mxu0 %v527
        %v726 = vpop.f32.mrf.mxu0
        %v727 = vadd.f32 %v508, %v726
        %v728 = vpop.f32.mrf.mxu0
        %v729 = vadd.f32 %v508, %v728
        %730 = vdwg.mxu0
        %731 = vxpose.xlu0.b32.start [1/16] %v596, 128
        %732 = vxpose.xlu0.b32.cont [2/16] 0.0, 128
        %733 = vxpose.xlu0.b32.cont [3/16] 0.0, 128
        %734 = vxpose.xlu0.b32.cont [4/16] 0.0, 128
        %735 = vxpose.xlu0.b32.cont [5/16] 0.0, 128
        %736 = vxpose.xlu0.b32.cont [6/16] 0.0, 128
        %737 = vxpose.xlu0.b32.cont [7/16] 0.0, 128
        %738 = vxpose.xlu0.b32.cont [8/16] 0.0, 128
        %739 = vxpose.xlu0.b32.cont [9/16] 0.0, 128
        %740 = vxpose.xlu0.b32.cont [10/16] 0.0, 128
        %741 = vxpose.xlu0.b32.cont [11/16] 0.0, 128
        %742 = vxpose.xlu0.b32.cont [12/16] 0.0, 128
        %743 = vxpose.xlu0.b32.cont [13/16] 0.0, 128
        %744 = vxpose.xlu0.b32.cont [14/16] 0.0, 128
        %745 = vxpose.xlu0.b32.cont [15/16] 0.0, 128
        %746 = vxpose.xlu0.b32.end [16/16] 0.0, 128
        %v747 = vpop.trf.xlu0
        %v748 = vpop.trf.xlu0
        %v749 = vpop.trf.xlu0
        %v750 = vpop.trf.xlu0
        %v751 = vpop.trf.xlu0
        %v752 = vpop.trf.xlu0
        %v753 = vpop.trf.xlu0
        %v754 = vpop.trf.xlu0
        %v755 = vpop.trf.xlu0
        %v756 = vpop.trf.xlu0
        %v757 = vpop.trf.xlu0
        %v758 = vpop.trf.xlu0
        %v759 = vpop.trf.xlu0
        %v760 = vpop.trf.xlu0
        %v761 = vpop.trf.xlu0
        %v762 = vpop.trf.xlu0
        %763 = vxpose.xlu0.b32.start [1/16] %v598, 128
        %764 = vxpose.xlu0.b32.cont [2/16] 0.0, 128
        %765 = vxpose.xlu0.b32.cont [3/16] 0.0, 128
        %766 = vxpose.xlu0.b32.cont [4/16] 0.0, 128
        %767 = vxpose.xlu0.b32.cont [5/16] 0.0, 128
        %768 = vxpose.xlu0.b32.cont [6/16] 0.0, 128
        %769 = vxpose.xlu0.b32.cont [7/16] 0.0, 128
        %770 = vxpose.xlu0.b32.cont [8/16] 0.0, 128
        %771 = vxpose.xlu0.b32.cont [9/16] 0.0, 128
        %772 = vxpose.xlu0.b32.cont [10/16] 0.0, 128
        %773 = vxpose.xlu0.b32.cont [11/16] 0.0, 128
        %774 = vxpose.xlu0.b32.cont [12/16] 0.0, 128
        %775 = vxpose.xlu0.b32.cont [13/16] 0.0, 128
        %776 = vxpose.xlu0.b32.cont [14/16] 0.0, 128
        %777 = vxpose.xlu0.b32.cont [15/16] 0.0, 128
        %778 = vxpose.xlu0.b32.end [16/16] 0.0, 128
        %v779 = vpop.trf.xlu0
        %v780 = vpop.trf.xlu0
        %v781 = vpop.trf.xlu0
        %v782 = vpop.trf.xlu0
        %v783 = vpop.trf.xlu0
        %v784 = vpop.trf.xlu0
        %v785 = vpop.trf.xlu0
        %v786 = vpop.trf.xlu0
        %v787 = vpop.trf.xlu0
        %v788 = vpop.trf.xlu0
        %v789 = vpop.trf.xlu0
        %v790 = vpop.trf.xlu0
        %v791 = vpop.trf.xlu0
        %v792 = vpop.trf.xlu0
        %v793 = vpop.trf.xlu0
        %v794 = vpop.trf.xlu0
        %795 = vxpose.xlu0.b32.start [1/16] %v697, 128
        %796 = vxpose.xlu0.b32.cont [2/16] 0.0, 128
        %797 = vxpose.xlu0.b32.cont [3/16] 0.0, 128
        %798 = vxpose.xlu0.b32.cont [4/16] 0.0, 128
        %799 = vxpose.xlu0.b32.cont [5/16] 0.0, 128
        %800 = vxpose.xlu0.b32.cont [6/16] 0.0, 128
        %801 = vxpose.xlu0.b32.cont [7/16] 0.0, 128
        %802 = vxpose.xlu0.b32.cont [8/16] 0.0, 128
        %803 = vxpose.xlu0.b32.cont [9/16] 0.0, 128
        %804 = vxpose.xlu0.b32.cont [10/16] 0.0, 128
        %805 = vxpose.xlu0.b32.cont [11/16] 0.0, 128
        %806 = vxpose.xlu0.b32.cont [12/16] 0.0, 128
        %807 = vxpose.xlu0.b32.cont [13/16] 0.0, 128
        %808 = vxpose.xlu0.b32.cont [14/16] 0.0, 128
        %809 = vxpose.xlu0.b32.cont [15/16] 0.0, 128
        %810 = vxpose.xlu0.b32.end [16/16] 0.0, 128
        %v811 = vpop.trf.xlu0
        %v812 = vpop.trf.xlu0
        %v813 = vpop.trf.xlu0
        %v814 = vpop.trf.xlu0
        %v815 = vpop.trf.xlu0
        %v816 = vpop.trf.xlu0
        %v817 = vpop.trf.xlu0
        %v818 = vpop.trf.xlu0
        %v819 = vpop.trf.xlu0
        %v820 = vpop.trf.xlu0
        %v821 = vpop.trf.xlu0
        %v822 = vpop.trf.xlu0
        %v823 = vpop.trf.xlu0
        %v824 = vpop.trf.xlu0
        %v825 = vpop.trf.xlu0
        %v826 = vpop.trf.xlu0
        %827 = vxpose.xlu0.b32.start [1/16] %v699, 128
        %828 = vxpose.xlu0.b32.cont [2/16] 0.0, 128
        %829 = vxpose.xlu0.b32.cont [3/16] 0.0, 128
        %830 = vxpose.xlu0.b32.cont [4/16] 0.0, 128
        %831 = vxpose.xlu0.b32.cont [5/16] 0.0, 128
        %832 = vxpose.xlu0.b32.cont [6/16] 0.0, 128
        %833 = vxpose.xlu0.b32.cont [7/16] 0.0, 128
        %834 = vxpose.xlu0.b32.cont [8/16] 0.0, 128
        %835 = vxpose.xlu0.b32.cont [9/16] 0.0, 128
        %836 = vxpose.xlu0.b32.cont [10/16] 0.0, 128
        %837 = vxpose.xlu0.b32.cont [11/16] 0.0, 128
        %838 = vxpose.xlu0.b32.cont [12/16] 0.0, 128
        %839 = vxpose.xlu0.b32.cont [13/16] 0.0, 128
        %840 = vxpose.xlu0.b32.cont [14/16] 0.0, 128
        %841 = vxpose.xlu0.b32.cont [15/16] 0.0, 128
        %842 = vxpose.xlu0.b32.end [16/16] 0.0, 128
        %v843 = vpop.trf.xlu0
        %v844 = vpop.trf.xlu0
        %v845 = vpop.trf.xlu0
        %v846 = vpop.trf.xlu0
        %v847 = vpop.trf.xlu0
        %v848 = vpop.trf.xlu0
        %v849 = vpop.trf.xlu0
        %v850 = vpop.trf.xlu0
        %v851 = vpop.trf.xlu0
        %v852 = vpop.trf.xlu0
        %v853 = vpop.trf.xlu0
        %v854 = vpop.trf.xlu0
        %v855 = vpop.trf.xlu0
        %v856 = vpop.trf.xlu0
        %v857 = vpop.trf.xlu0
        %v858 = vpop.trf.xlu0
        %vm859 = vcmask 64512
        %v861 = vsel %vm859, %v747, 0
        %v864 = vsel %vm859, %v748, 0
        %v867 = vsel %vm859, %v749, 0
        %v870 = vsel %vm859, %v750, 0
        %v873 = vsel %vm859, %v751, 0
        %v876 = vsel %vm859, %v752, 0
        %v879 = vsel %vm859, %v753, 0
        %v882 = vsel %vm859, %v754, 0
        %v885 = vsel %vm859, %v755, 0
        %v888 = vsel %vm859, %v756, 0
        %v891 = vsel %vm859, %v757, 0
        %v894 = vsel %vm859, %v758, 0
        %v897 = vsel %vm859, %v759, 0
        %v900 = vsel %vm859, %v760, 0
        %v903 = vsel %vm859, %v761, 0
        %v906 = vsel %vm859, %v762, 0
        %v909 = vsel %vm859, %v779, 0
        %v912 = vsel %vm859, %v780, 0
        %v915 = vsel %vm859, %v781, 0
        %v918 = vsel %vm859, %v782, 0
        %v921 = vsel %vm859, %v783, 0
        %v924 = vsel %vm859, %v784, 0
        %v927 = vsel %vm859, %v785, 0
        %v930 = vsel %vm859, %v786, 0
        %v933 = vsel %vm859, %v787, 0
        %v936 = vsel %vm859, %v788, 0
        %v939 = vsel %vm859, %v789, 0
        %v942 = vsel %vm859, %v790, 0
        %v945 = vsel %vm859, %v791, 0
        %v948 = vsel %vm859, %v792, 0
        %v951 = vsel %vm859, %v793, 0
        %v954 = vsel %vm859, %v794, 0
        %v957 = vsel %vm859, %v811, 0
        %v960 = vsel %vm859, %v812, 0
        %v963 = vsel %vm859, %v813, 0
        %v966 = vsel %vm859, %v814, 0
        %v969 = vsel %vm859, %v815, 0
        %v972 = vsel %vm859, %v816, 0
        %v975 = vsel %vm859, %v817, 0
        %v978 = vsel %vm859, %v818, 0
        %v981 = vsel %vm859, %v819, 0
        %v984 = vsel %vm859, %v820, 0
        %v987 = vsel %vm859, %v821, 0
        %v990 = vsel %vm859, %v822, 0
        %v993 = vsel %vm859, %v823, 0
        %v996 = vsel %vm859, %v824, 0
        %v999 = vsel %vm859, %v825, 0
        %v1002 = vsel %vm859, %v826, 0
        %v1005 = vsel %vm859, %v843, 0
        %v1008 = vsel %vm859, %v844, 0
        %v1011 = vsel %vm859, %v845, 0
        %v1014 = vsel %vm859, %v846, 0
        %v1017 = vsel %vm859, %v847, 0
        %v1020 = vsel %vm859, %v848, 0
        %v1023 = vsel %vm859, %v849, 0
        %v1026 = vsel %vm859, %v850, 0
        %v1029 = vsel %vm859, %v851, 0
        %v1032 = vsel %vm859, %v852, 0
        %v1035 = vsel %vm859, %v853, 0
        %v1038 = vsel %vm859, %v854, 0
        %v1041 = vsel %vm859, %v855, 0
        %v1044 = vsel %vm859, %v856, 0
        %v1047 = vsel %vm859, %v857, 0
        %v1050 = vsel %vm859, %v858, 0
        %1052 = vmatprep.subr.mxu0 0.0
        %1053 = vmatpush1.msra.mxu0 0.0
        %1054 = vmatprep.subr.mxu0 0.0
        %1055 = vmatpush1.msra.mxu0 0.0
        %1056 = vmatprep.subr.mxu0 0.0
        %1057 = vmatpush1.msra.mxu0 0.0
        %1058 = vmatprep.subr.mxu0 0.0
        %1059 = vmatpush1.msra.mxu0 0.0
        %1060 = vmatprep.subr.mxu0 0.0
        %1061 = vmatpush1.msra.mxu0 0.0
        %1062 = vmatprep.subr.mxu0 0.0
        %1063 = vmatpush1.msra.mxu0 0.0
        %1064 = vmatprep.subr.mxu0 0.0
        %1065 = vmatpush1.msra.mxu0 0.0
        %1066 = vmatprep.subr.mxu0 0.0
        %1067 = vmatpush1.msra.mxu0 0.0
        %1068 = vmatprep.subr.mxu0 0.0
        %1069 = vmatpush1.msra.mxu0 0.0
        %1070 = vmatprep.subr.mxu0 0.0
        %1071 = vmatpush1.msra.mxu0 0.0
        %1072 = vmatprep.subr.mxu0 0.0
        %1073 = vmatpush1.msra.mxu0 0.0
        %1074 = vmatprep.subr.mxu0 0.0
        %1075 = vmatpush1.msra.mxu0 0.0
        %1076 = vmatprep.subr.mxu0 0.0
        %1077 = vmatpush1.msra.mxu0 0.0
        %1078 = vmatprep.subr.mxu0 0.0
        %1079 = vmatpush1.msra.mxu0 0.0
        %1080 = vmatprep.subr.mxu0 0.0
        %1081 = vmatpush1.msra.mxu0 0.0
        %1082 = vmatprep.subr.mxu0 %v604
        %1083 = vmatpush1.msra.mxu0 %v602
        %1084 = vmatprep.subr.mxu0 0.0
        %1085 = vmatpush2.msra.mxu0 0.0
        %1086 = vmatprep.subr.mxu0 0.0
        %1087 = vmatpush2.msra.mxu0 0.0
        %1088 = vmatprep.subr.mxu0 0.0
        %1089 = vmatpush2.msra.mxu0 0.0
        %1090 = vmatprep.subr.mxu0 0.0
        %1091 = vmatpush2.msra.mxu0 0.0
        %1092 = vmatprep.subr.mxu0 0.0
        %1093 = vmatpush2.msra.mxu0 0.0
        %1094 = vmatprep.subr.mxu0 0.0
        %1095 = vmatpush2.msra.mxu0 0.0
        %1096 = vmatprep.subr.mxu0 0.0
        %1097 = vmatpush2.msra.mxu0 0.0
        %1098 = vmatprep.subr.mxu0 0.0
        %1099 = vmatpush2.msra.mxu0 0.0
        %1100 = vmatprep.subr.mxu0 0.0
        %1101 = vmatpush2.msra.mxu0 0.0
        %1102 = vmatprep.subr.mxu0 0.0
        %1103 = vmatpush2.msra.mxu0 0.0
        %1104 = vmatprep.subr.mxu0 0.0
        %1105 = vmatpush2.msra.mxu0 0.0
        %1106 = vmatprep.subr.mxu0 0.0
        %1107 = vmatpush2.msra.mxu0 0.0
        %1108 = vmatprep.subr.mxu0 0.0
        %1109 = vmatpush2.msra.mxu0 0.0
        %1110 = vmatprep.subr.mxu0 0.0
        %1111 = vmatpush2.msra.mxu0 0.0
        %1112 = vmatprep.subr.mxu0 0.0
        %1113 = vmatpush2.msra.mxu0 0.0
        %1114 = vmatprep.subr.mxu0 0.0
        %1115 = vmatpush2.msra.mxu0 0.0
        %1116 = vmatprep.mubr.f32.mxu0 0.0
        %1117 = vmatmul.mubr.f32.gmra.mxu0 %v861
        %v1118 = vpop.f32.mrf.mxu0
        %v1119 = vadd.f32 0.0, %v1118
        %v1120 = vpop.f32.mrf.mxu0
        %v1121 = vadd.f32 0.0, %v1120
        %1122 = vmatprep.mubr.f32.mxu0 0.0
        %1123 = vmatmul.mubr.f32.gmra.mxu0 %v864
        %v1124 = vpop.f32.mrf.mxu0
        %v1125 = vadd.f32 0.0, %v1124
        %v1126 = vpop.f32.mrf.mxu0
        %v1127 = vadd.f32 0.0, %v1126
        %1128 = vmatprep.mubr.f32.mxu0 0.0
        %1129 = vmatmul.mubr.f32.gmra.mxu0 %v867
        %v1130 = vpop.f32.mrf.mxu0
        %v1131 = vadd.f32 0.0, %v1130
        %v1132 = vpop.f32.mrf.mxu0
        %v1133 = vadd.f32 0.0, %v1132
        %1134 = vmatprep.mubr.f32.mxu0 0.0
        %1135 = vmatmul.mubr.f32.gmra.mxu0 %v870
        %v1136 = vpop.f32.mrf.mxu0
        %v1137 = vadd.f32 0.0, %v1136
        %v1138 = vpop.f32.mrf.mxu0
        %v1139 = vadd.f32 0.0, %v1138
        %1140 = vmatprep.mubr.f32.mxu0 0.0
        %1141 = vmatmul.mubr.f32.gmra.mxu0 %v873
        %v1142 = vpop.f32.mrf.mxu0
        %v1143 = vadd.f32 0.0, %v1142
        %v1144 = vpop.f32.mrf.mxu0
        %v1145 = vadd.f32 0.0, %v1144
        %1146 = vmatprep.mubr.f32.mxu0 0.0
        %1147 = vmatmul.mubr.f32.gmra.mxu0 %v876
        %v1148 = vpop.f32.mrf.mxu0
        %v1149 = vadd.f32 0.0, %v1148
        %v1150 = vpop.f32.mrf.mxu0
        %v1151 = vadd.f32 0.0, %v1150
        %1152 = vmatprep.mubr.f32.mxu0 0.0
        %1153 = vmatmul.mubr.f32.gmra.mxu0 %v879
        %v1154 = vpop.f32.mrf.mxu0
        %v1155 = vadd.f32 0.0, %v1154
        %v1156 = vpop.f32.mrf.mxu0
        %v1157 = vadd.f32 0.0, %v1156
        %1158 = vmatprep.mubr.f32.mxu0 0.0
        %1159 = vmatmul.mubr.f32.gmra.mxu0 %v882
        %v1160 = vpop.f32.mrf.mxu0
        %v1161 = vadd.f32 0.0, %v1160
        %v1162 = vpop.f32.mrf.mxu0
        %v1163 = vadd.f32 0.0, %v1162
        %1164 = vmatprep.mubr.f32.mxu0 0.0
        %1165 = vmatmul.mubr.f32.gmra.mxu0 %v885
        %v1166 = vpop.f32.mrf.mxu0
        %v1167 = vadd.f32 0.0, %v1166
        %v1168 = vpop.f32.mrf.mxu0
        %v1169 = vadd.f32 0.0, %v1168
        %1170 = vmatprep.mubr.f32.mxu0 0.0
        %1171 = vmatmul.mubr.f32.gmra.mxu0 %v888
        %v1172 = vpop.f32.mrf.mxu0
        %v1173 = vadd.f32 0.0, %v1172
        %v1174 = vpop.f32.mrf.mxu0
        %v1175 = vadd.f32 0.0, %v1174
        %1176 = vmatprep.mubr.f32.mxu0 0.0
        %1177 = vmatmul.mubr.f32.gmra.mxu0 %v891
        %v1178 = vpop.f32.mrf.mxu0
        %v1179 = vadd.f32 0.0, %v1178
        %v1180 = vpop.f32.mrf.mxu0
        %v1181 = vadd.f32 0.0, %v1180
        %1182 = vmatprep.mubr.f32.mxu0 0.0
        %1183 = vmatmul.mubr.f32.gmra.mxu0 %v894
        %v1184 = vpop.f32.mrf.mxu0
        %v1185 = vadd.f32 0.0, %v1184
        %v1186 = vpop.f32.mrf.mxu0
        %v1187 = vadd.f32 0.0, %v1186
        %1188 = vmatprep.mubr.f32.mxu0 0.0
        %1189 = vmatmul.mubr.f32.gmra.mxu0 %v897
        %v1190 = vpop.f32.mrf.mxu0
        %v1191 = vadd.f32 0.0, %v1190
        %v1192 = vpop.f32.mrf.mxu0
        %v1193 = vadd.f32 0.0, %v1192
        %1194 = vmatprep.mubr.f32.mxu0 0.0
        %1195 = vmatmul.mubr.f32.gmra.mxu0 %v900
        %v1196 = vpop.f32.mrf.mxu0
        %v1197 = vadd.f32 0.0, %v1196
        %v1198 = vpop.f32.mrf.mxu0
        %v1199 = vadd.f32 0.0, %v1198
        %1200 = vmatprep.mubr.f32.mxu0 0.0
        %1201 = vmatmul.mubr.f32.gmra.mxu0 %v903
        %v1202 = vpop.f32.mrf.mxu0
        %v1203 = vadd.f32 0.0, %v1202
        %v1204 = vpop.f32.mrf.mxu0
        %v1205 = vadd.f32 0.0, %v1204
        %1206 = vmatprep.mubr.f32.mxu0 0.0
        %1207 = vmatmul.mubr.f32.gmra.mxu0 %v906
        %v1208 = vpop.f32.mrf.mxu0
        %v1209 = vadd.f32 0.0, %v1208
        %v1210 = vpop.f32.mrf.mxu0
        %v1211 = vadd.f32 0.0, %v1210
        %1212 = vmatprep.mubr.f32.mxu0 0.0
        %1213 = vmatmul.mubr.f32.gmra.mxu0 %v909
        %v1214 = vpop.f32.mrf.mxu0
        %v1215 = vadd.f32 0.0, %v1214
        %v1216 = vpop.f32.mrf.mxu0
        %v1217 = vadd.f32 0.0, %v1216
        %1218 = vmatprep.mubr.f32.mxu0 0.0
        %1219 = vmatmul.mubr.f32.gmra.mxu0 %v912
        %v1220 = vpop.f32.mrf.mxu0
        %v1221 = vadd.f32 0.0, %v1220
        %v1222 = vpop.f32.mrf.mxu0
        %v1223 = vadd.f32 0.0, %v1222
        %1224 = vmatprep.mubr.f32.mxu0 0.0
        %1225 = vmatmul.mubr.f32.gmra.mxu0 %v915
        %v1226 = vpop.f32.mrf.mxu0
        %v1227 = vadd.f32 0.0, %v1226
        %v1228 = vpop.f32.mrf.mxu0
        %v1229 = vadd.f32 0.0, %v1228
        %1230 = vmatprep.mubr.f32.mxu0 0.0
        %1231 = vmatmul.mubr.f32.gmra.mxu0 %v918
        %v1232 = vpop.f32.mrf.mxu0
        %v1233 = vadd.f32 0.0, %v1232
        %v1234 = vpop.f32.mrf.mxu0
        %v1235 = vadd.f32 0.0, %v1234
        %1236 = vmatprep.mubr.f32.mxu0 0.0
        %1237 = vmatmul.mubr.f32.gmra.mxu0 %v921
        %v1238 = vpop.f32.mrf.mxu0
        %v1239 = vadd.f32 0.0, %v1238
        %v1240 = vpop.f32.mrf.mxu0
        %v1241 = vadd.f32 0.0, %v1240
        %1242 = vmatprep.mubr.f32.mxu0 0.0
        %1243 = vmatmul.mubr.f32.gmra.mxu0 %v924
        %v1244 = vpop.f32.mrf.mxu0
        %v1245 = vadd.f32 0.0, %v1244
        %v1246 = vpop.f32.mrf.mxu0
        %v1247 = vadd.f32 0.0, %v1246
        %1248 = vmatprep.mubr.f32.mxu0 0.0
        %1249 = vmatmul.mubr.f32.gmra.mxu0 %v927
        %v1250 = vpop.f32.mrf.mxu0
        %v1251 = vadd.f32 0.0, %v1250
        %v1252 = vpop.f32.mrf.mxu0
        %v1253 = vadd.f32 0.0, %v1252
        %1254 = vmatprep.mubr.f32.mxu0 0.0
        %1255 = vmatmul.mubr.f32.gmra.mxu0 %v930
        %v1256 = vpop.f32.mrf.mxu0
        %v1257 = vadd.f32 0.0, %v1256
        %v1258 = vpop.f32.mrf.mxu0
        %v1259 = vadd.f32 0.0, %v1258
        %1260 = vmatprep.mubr.f32.mxu0 0.0
        %1261 = vmatmul.mubr.f32.gmra.mxu0 %v933
        %v1262 = vpop.f32.mrf.mxu0
        %v1263 = vadd.f32 0.0, %v1262
        %v1264 = vpop.f32.mrf.mxu0
        %v1265 = vadd.f32 0.0, %v1264
        %1266 = vmatprep.mubr.f32.mxu0 0.0
        %1267 = vmatmul.mubr.f32.gmra.mxu0 %v936
        %v1268 = vpop.f32.mrf.mxu0
        %v1269 = vadd.f32 0.0, %v1268
        %v1270 = vpop.f32.mrf.mxu0
        %v1271 = vadd.f32 0.0, %v1270
        %1272 = vmatprep.mubr.f32.mxu0 0.0
        %1273 = vmatmul.mubr.f32.gmra.mxu0 %v939
        %v1274 = vpop.f32.mrf.mxu0
        %v1275 = vadd.f32 0.0, %v1274
        %v1276 = vpop.f32.mrf.mxu0
        %v1277 = vadd.f32 0.0, %v1276
        %1278 = vmatprep.mubr.f32.mxu0 0.0
        %1279 = vmatmul.mubr.f32.gmra.mxu0 %v942
        %v1280 = vpop.f32.mrf.mxu0
        %v1281 = vadd.f32 0.0, %v1280
        %v1282 = vpop.f32.mrf.mxu0
        %v1283 = vadd.f32 0.0, %v1282
        %1284 = vmatprep.mubr.f32.mxu0 0.0
        %1285 = vmatmul.mubr.f32.gmra.mxu0 %v945
        %v1286 = vpop.f32.mrf.mxu0
        %v1287 = vadd.f32 0.0, %v1286
        %v1288 = vpop.f32.mrf.mxu0
        %v1289 = vadd.f32 0.0, %v1288
        %1290 = vmatprep.mubr.f32.mxu0 0.0
        %1291 = vmatmul.mubr.f32.gmra.mxu0 %v948
        %v1292 = vpop.f32.mrf.mxu0
        %v1293 = vadd.f32 0.0, %v1292
        %v1294 = vpop.f32.mrf.mxu0
        %v1295 = vadd.f32 0.0, %v1294
        %1296 = vmatprep.mubr.f32.mxu0 0.0
        %1297 = vmatmul.mubr.f32.gmra.mxu0 %v951
        %v1298 = vpop.f32.mrf.mxu0
        %v1299 = vadd.f32 0.0, %v1298
        %v1300 = vpop.f32.mrf.mxu0
        %v1301 = vadd.f32 0.0, %v1300
        %1302 = vmatprep.mubr.f32.mxu0 0.0
        %1303 = vmatmul.mubr.f32.gmra.mxu0 %v954
        %v1304 = vpop.f32.mrf.mxu0
        %v1305 = vadd.f32 0.0, %v1304
        %v1306 = vpop.f32.mrf.mxu0
        %v1307 = vadd.f32 0.0, %v1306
        %1308 = vmatprep.mubr.f32.mxu0 0.0
        %1309 = vmatmul.mubr.f32.gmra.mxu0 %v957
        %v1310 = vpop.f32.mrf.mxu0
        %v1311 = vadd.f32 0.0, %v1310
        %v1312 = vpop.f32.mrf.mxu0
        %v1313 = vadd.f32 0.0, %v1312
        %1314 = vmatprep.mubr.f32.mxu0 0.0
        %1315 = vmatmul.mubr.f32.gmra.mxu0 %v960
        %v1316 = vpop.f32.mrf.mxu0
        %v1317 = vadd.f32 0.0, %v1316
        %v1318 = vpop.f32.mrf.mxu0
        %v1319 = vadd.f32 0.0, %v1318
        %1320 = vmatprep.mubr.f32.mxu0 0.0
        %1321 = vmatmul.mubr.f32.gmra.mxu0 %v963
        %v1322 = vpop.f32.mrf.mxu0
        %v1323 = vadd.f32 0.0, %v1322
        %v1324 = vpop.f32.mrf.mxu0
        %v1325 = vadd.f32 0.0, %v1324
        %1326 = vmatprep.mubr.f32.mxu0 0.0
        %1327 = vmatmul.mubr.f32.gmra.mxu0 %v966
        %v1328 = vpop.f32.mrf.mxu0
        %v1329 = vadd.f32 0.0, %v1328
        %v1330 = vpop.f32.mrf.mxu0
        %v1331 = vadd.f32 0.0, %v1330
        %1332 = vmatprep.mubr.f32.mxu0 0.0
        %1333 = vmatmul.mubr.f32.gmra.mxu0 %v969
        %v1334 = vpop.f32.mrf.mxu0
        %v1335 = vadd.f32 0.0, %v1334
        %v1336 = vpop.f32.mrf.mxu0
        %v1337 = vadd.f32 0.0, %v1336
        %1338 = vmatprep.mubr.f32.mxu0 0.0
        %1339 = vmatmul.mubr.f32.gmra.mxu0 %v972
        %v1340 = vpop.f32.mrf.mxu0
        %v1341 = vadd.f32 0.0, %v1340
        %v1342 = vpop.f32.mrf.mxu0
        %v1343 = vadd.f32 0.0, %v1342
        %1344 = vmatprep.mubr.f32.mxu0 0.0
        %1345 = vmatmul.mubr.f32.gmra.mxu0 %v975
        %v1346 = vpop.f32.mrf.mxu0
        %v1347 = vadd.f32 0.0, %v1346
        %v1348 = vpop.f32.mrf.mxu0
        %v1349 = vadd.f32 0.0, %v1348
        %1350 = vmatprep.mubr.f32.mxu0 0.0
        %1351 = vmatmul.mubr.f32.gmra.mxu0 %v978
        %v1352 = vpop.f32.mrf.mxu0
        %v1353 = vadd.f32 0.0, %v1352
        %v1354 = vpop.f32.mrf.mxu0
        %v1355 = vadd.f32 0.0, %v1354
        %1356 = vmatprep.mubr.f32.mxu0 0.0
        %1357 = vmatmul.mubr.f32.gmra.mxu0 %v981
        %v1358 = vpop.f32.mrf.mxu0
        %v1359 = vadd.f32 0.0, %v1358
        %v1360 = vpop.f32.mrf.mxu0
        %v1361 = vadd.f32 0.0, %v1360
        %1362 = vmatprep.mubr.f32.mxu0 0.0
        %1363 = vmatmul.mubr.f32.gmra.mxu0 %v984
        %v1364 = vpop.f32.mrf.mxu0
        %v1365 = vadd.f32 0.0, %v1364
        %v1366 = vpop.f32.mrf.mxu0
        %v1367 = vadd.f32 0.0, %v1366
        %1368 = vmatprep.mubr.f32.mxu0 0.0
        %1369 = vmatmul.mubr.f32.gmra.mxu0 %v987
        %v1370 = vpop.f32.mrf.mxu0
        %v1371 = vadd.f32 0.0, %v1370
        %v1372 = vpop.f32.mrf.mxu0
        %v1373 = vadd.f32 0.0, %v1372
        %1374 = vmatprep.mubr.f32.mxu0 0.0
        %1375 = vmatmul.mubr.f32.gmra.mxu0 %v990
        %v1376 = vpop.f32.mrf.mxu0
        %v1377 = vadd.f32 0.0, %v1376
        %v1378 = vpop.f32.mrf.mxu0
        %v1379 = vadd.f32 0.0, %v1378
        %1380 = vmatprep.mubr.f32.mxu0 0.0
        %1381 = vmatmul.mubr.f32.gmra.mxu0 %v993
        %v1382 = vpop.f32.mrf.mxu0
        %v1383 = vadd.f32 0.0, %v1382
        %v1384 = vpop.f32.mrf.mxu0
        %v1385 = vadd.f32 0.0, %v1384
        %1386 = vmatprep.mubr.f32.mxu0 0.0
        %1387 = vmatmul.mubr.f32.gmra.mxu0 %v996
        %v1388 = vpop.f32.mrf.mxu0
        %v1389 = vadd.f32 0.0, %v1388
        %v1390 = vpop.f32.mrf.mxu0
        %v1391 = vadd.f32 0.0, %v1390
        %1392 = vmatprep.mubr.f32.mxu0 0.0
        %1393 = vmatmul.mubr.f32.gmra.mxu0 %v999
        %v1394 = vpop.f32.mrf.mxu0
        %v1395 = vadd.f32 0.0, %v1394
        %v1396 = vpop.f32.mrf.mxu0
        %v1397 = vadd.f32 0.0, %v1396
        %1398 = vmatprep.mubr.f32.mxu0 0.0
        %1399 = vmatmul.mubr.f32.gmra.mxu0 %v1002
        %v1400 = vpop.f32.mrf.mxu0
        %v1401 = vadd.f32 0.0, %v1400
        %v1402 = vpop.f32.mrf.mxu0
        %v1403 = vadd.f32 0.0, %v1402
        %1404 = vmatprep.mubr.f32.mxu0 0.0
        %1405 = vmatmul.mubr.f32.gmra.mxu0 %v1005
        %v1406 = vpop.f32.mrf.mxu0
        %v1407 = vadd.f32 0.0, %v1406
        %v1408 = vpop.f32.mrf.mxu0
        %v1409 = vadd.f32 0.0, %v1408
        %1410 = vmatprep.mubr.f32.mxu0 0.0
        %1411 = vmatmul.mubr.f32.gmra.mxu0 %v1008
        %v1412 = vpop.f32.mrf.mxu0
        %v1413 = vadd.f32 0.0, %v1412
        %v1414 = vpop.f32.mrf.mxu0
        %v1415 = vadd.f32 0.0, %v1414
        %1416 = vmatprep.mubr.f32.mxu0 0.0
        %1417 = vmatmul.mubr.f32.gmra.mxu0 %v1011
        %v1418 = vpop.f32.mrf.mxu0
        %v1419 = vadd.f32 0.0, %v1418
        %v1420 = vpop.f32.mrf.mxu0
        %v1421 = vadd.f32 0.0, %v1420
        %1422 = vmatprep.mubr.f32.mxu0 0.0
        %1423 = vmatmul.mubr.f32.gmra.mxu0 %v1014
        %v1424 = vpop.f32.mrf.mxu0
        %v1425 = vadd.f32 0.0, %v1424
        %v1426 = vpop.f32.mrf.mxu0
        %v1427 = vadd.f32 0.0, %v1426
        %1428 = vmatprep.mubr.f32.mxu0 0.0
        %1429 = vmatmul.mubr.f32.gmra.mxu0 %v1017
        %v1430 = vpop.f32.mrf.mxu0
        %v1431 = vadd.f32 0.0, %v1430
        %v1432 = vpop.f32.mrf.mxu0
        %v1433 = vadd.f32 0.0, %v1432
        %1434 = vmatprep.mubr.f32.mxu0 0.0
        %1435 = vmatmul.mubr.f32.gmra.mxu0 %v1020
        %v1436 = vpop.f32.mrf.mxu0
        %v1437 = vadd.f32 0.0, %v1436
        %v1438 = vpop.f32.mrf.mxu0
        %v1439 = vadd.f32 0.0, %v1438
        %1440 = vmatprep.mubr.f32.mxu0 0.0
        %1441 = vmatmul.mubr.f32.gmra.mxu0 %v1023
        %v1442 = vpop.f32.mrf.mxu0
        %v1443 = vadd.f32 0.0, %v1442
        %v1444 = vpop.f32.mrf.mxu0
        %v1445 = vadd.f32 0.0, %v1444
        %1446 = vmatprep.mubr.f32.mxu0 0.0
        %1447 = vmatmul.mubr.f32.gmra.mxu0 %v1026
        %v1448 = vpop.f32.mrf.mxu0
        %v1449 = vadd.f32 0.0, %v1448
        %v1450 = vpop.f32.mrf.mxu0
        %v1451 = vadd.f32 0.0, %v1450
        %1452 = vmatprep.mubr.f32.mxu0 0.0
        %1453 = vmatmul.mubr.f32.gmra.mxu0 %v1029
        %v1454 = vpop.f32.mrf.mxu0
        %v1455 = vadd.f32 0.0, %v1454
        %v1456 = vpop.f32.mrf.mxu0
        %v1457 = vadd.f32 0.0, %v1456
        %1458 = vmatprep.mubr.f32.mxu0 0.0
        %1459 = vmatmul.mubr.f32.gmra.mxu0 %v1032
        %v1460 = vpop.f32.mrf.mxu0
        %v1461 = vadd.f32 0.0, %v1460
        %v1462 = vpop.f32.mrf.mxu0
        %v1463 = vadd.f32 0.0, %v1462
        %1464 = vmatprep.mubr.f32.mxu0 0.0
        %1465 = vmatmul.mubr.f32.gmra.mxu0 %v1035
        %v1466 = vpop.f32.mrf.mxu0
        %v1467 = vadd.f32 0.0, %v1466
        %v1468 = vpop.f32.mrf.mxu0
        %v1469 = vadd.f32 0.0, %v1468
        %1470 = vmatprep.mubr.f32.mxu0 0.0
        %1471 = vmatmul.mubr.f32.gmra.mxu0 %v1038
        %v1472 = vpop.f32.mrf.mxu0
        %v1473 = vadd.f32 0.0, %v1472
        %v1474 = vpop.f32.mrf.mxu0
        %v1475 = vadd.f32 0.0, %v1474
        %1476 = vmatprep.mubr.f32.mxu0 0.0
        %1477 = vmatmul.mubr.f32.gmra.mxu0 %v1041
        %v1478 = vpop.f32.mrf.mxu0
        %v1479 = vadd.f32 0.0, %v1478
        %v1480 = vpop.f32.mrf.mxu0
        %v1481 = vadd.f32 0.0, %v1480
        %1482 = vmatprep.mubr.f32.mxu0 0.0
        %1483 = vmatmul.mubr.f32.gmra.mxu0 %v1044
        %v1484 = vpop.f32.mrf.mxu0
        %v1485 = vadd.f32 0.0, %v1484
        %v1486 = vpop.f32.mrf.mxu0
        %v1487 = vadd.f32 0.0, %v1486
        %1488 = vmatprep.mubr.f32.mxu0 0.0
        %1489 = vmatmul.mubr.f32.gmra.mxu0 %v1047
        %v1490 = vpop.f32.mrf.mxu0
        %v1491 = vadd.f32 0.0, %v1490
        %v1492 = vpop.f32.mrf.mxu0
        %v1493 = vadd.f32 0.0, %v1492
        %1494 = vmatprep.mubr.f32.mxu0 0.0
        %1495 = vmatmul.mubr.f32.gmra.mxu0 %v1050
        %v1496 = vpop.f32.mrf.mxu0
        %v1497 = vadd.f32 0.0, %v1496
        %v1498 = vpop.f32.mrf.mxu0
        %v1499 = vadd.f32 0.0, %v1498
        %1500 = vdwg.mxu0
        %1501 = vmatprep.subr.mxu0 0.0
        %1502 = vmatpush1.msra.mxu0 0.0
        %1503 = vmatprep.subr.mxu0 0.0
        %1504 = vmatpush1.msra.mxu0 0.0
        %1505 = vmatprep.subr.mxu0 0.0
        %1506 = vmatpush1.msra.mxu0 0.0
        %1507 = vmatprep.subr.mxu0 0.0
        %1508 = vmatpush1.msra.mxu0 0.0
        %1509 = vmatprep.subr.mxu0 0.0
        %1510 = vmatpush1.msra.mxu0 0.0
        %1511 = vmatprep.subr.mxu0 0.0
        %1512 = vmatpush1.msra.mxu0 0.0
        %1513 = vmatprep.subr.mxu0 0.0
        %1514 = vmatpush1.msra.mxu0 0.0
        %1515 = vmatprep.subr.mxu0 0.0
        %1516 = vmatpush1.msra.mxu0 0.0
        %1517 = vmatprep.subr.mxu0 0.0
        %1518 = vmatpush1.msra.mxu0 0.0
        %1519 = vmatprep.subr.mxu0 0.0
        %1520 = vmatpush1.msra.mxu0 0.0
        %1521 = vmatprep.subr.mxu0 0.0
        %1522 = vmatpush1.msra.mxu0 0.0
        %1523 = vmatprep.subr.mxu0 0.0
        %1524 = vmatpush1.msra.mxu0 0.0
        %1525 = vmatprep.subr.mxu0 0.0
        %1526 = vmatpush1.msra.mxu0 0.0
        %1527 = vmatprep.subr.mxu0 0.0
        %1528 = vmatpush1.msra.mxu0 0.0
        %1529 = vmatprep.subr.mxu0 0.0
        %1530 = vmatpush1.msra.mxu0 0.0
        %1531 = vmatprep.subr.mxu0 %v705
        %1532 = vmatpush1.msra.mxu0 %v703
        %1533 = vmatprep.subr.mxu0 0.0
        %1534 = vmatpush2.msra.mxu0 0.0
        %1535 = vmatprep.subr.mxu0 0.0
        %1536 = vmatpush2.msra.mxu0 0.0
        %1537 = vmatprep.subr.mxu0 0.0
        %1538 = vmatpush2.msra.mxu0 0.0
        %1539 = vmatprep.subr.mxu0 0.0
        %1540 = vmatpush2.msra.mxu0 0.0
        %1541 = vmatprep.subr.mxu0 0.0
        %1542 = vmatpush2.msra.mxu0 0.0
        %1543 = vmatprep.subr.mxu0 0.0
        %1544 = vmatpush2.msra.mxu0 0.0
        %1545 = vmatprep.subr.mxu0 0.0
        %1546 = vmatpush2.msra.mxu0 0.0
        %1547 = vmatprep.subr.mxu0 0.0
        %1548 = vmatpush2.msra.mxu0 0.0
        %1549 = vmatprep.subr.mxu0 0.0
        %1550 = vmatpush2.msra.mxu0 0.0
        %1551 = vmatprep.subr.mxu0 0.0
        %1552 = vmatpush2.msra.mxu0 0.0
        %1553 = vmatprep.subr.mxu0 0.0
        %1554 = vmatpush2.msra.mxu0 0.0
        %1555 = vmatprep.subr.mxu0 0.0
        %1556 = vmatpush2.msra.mxu0 0.0
        %1557 = vmatprep.subr.mxu0 0.0
        %1558 = vmatpush2.msra.mxu0 0.0
        %1559 = vmatprep.subr.mxu0 0.0
        %1560 = vmatpush2.msra.mxu0 0.0
        %1561 = vmatprep.subr.mxu0 0.0
        %1562 = vmatpush2.msra.mxu0 0.0
        %1563 = vmatprep.subr.mxu0 0.0
        %1564 = vmatpush2.msra.mxu0 0.0
        %1565 = vmatprep.mubr.f32.mxu0 0.0
        %1566 = vmatmul.mubr.f32.gmra.mxu0 %v861
        %v1567 = vpop.f32.mrf.mxu0
        %v1568 = vadd.f32 0.0, %v1567
        %v1569 = vpop.f32.mrf.mxu0
        %v1570 = vadd.f32 0.0, %v1569
        %1571 = vmatprep.mubr.f32.mxu0 0.0
        %1572 = vmatmul.mubr.f32.gmra.mxu0 %v864
        %v1573 = vpop.f32.mrf.mxu0
        %v1574 = vadd.f32 0.0, %v1573
        %v1575 = vpop.f32.mrf.mxu0
        %v1576 = vadd.f32 0.0, %v1575
        %1577 = vmatprep.mubr.f32.mxu0 0.0
        %1578 = vmatmul.mubr.f32.gmra.mxu0 %v867
        %v1579 = vpop.f32.mrf.mxu0
        %v1580 = vadd.f32 0.0, %v1579
        %v1581 = vpop.f32.mrf.mxu0
        %v1582 = vadd.f32 0.0, %v1581
        %1583 = vmatprep.mubr.f32.mxu0 0.0
        %1584 = vmatmul.mubr.f32.gmra.mxu0 %v870
        %v1585 = vpop.f32.mrf.mxu0
        %v1586 = vadd.f32 0.0, %v1585
        %v1587 = vpop.f32.mrf.mxu0
        %v1588 = vadd.f32 0.0, %v1587
        %1589 = vmatprep.mubr.f32.mxu0 0.0
        %1590 = vmatmul.mubr.f32.gmra.mxu0 %v873
        %v1591 = vpop.f32.mrf.mxu0
        %v1592 = vadd.f32 0.0, %v1591
        %v1593 = vpop.f32.mrf.mxu0
        %v1594 = vadd.f32 0.0, %v1593
        %1595 = vmatprep.mubr.f32.mxu0 0.0
        %1596 = vmatmul.mubr.f32.gmra.mxu0 %v876
        %v1597 = vpop.f32.mrf.mxu0
        %v1598 = vadd.f32 0.0, %v1597
        %v1599 = vpop.f32.mrf.mxu0
        %v1600 = vadd.f32 0.0, %v1599
        %1601 = vmatprep.mubr.f32.mxu0 0.0
        %1602 = vmatmul.mubr.f32.gmra.mxu0 %v879
        %v1603 = vpop.f32.mrf.mxu0
        %v1604 = vadd.f32 0.0, %v1603
        %v1605 = vpop.f32.mrf.mxu0
        %v1606 = vadd.f32 0.0, %v1605
        %1607 = vmatprep.mubr.f32.mxu0 0.0
        %1608 = vmatmul.mubr.f32.gmra.mxu0 %v882
        %v1609 = vpop.f32.mrf.mxu0
        %v1610 = vadd.f32 0.0, %v1609
        %v1611 = vpop.f32.mrf.mxu0
        %v1612 = vadd.f32 0.0, %v1611
        %1613 = vmatprep.mubr.f32.mxu0 0.0
        %1614 = vmatmul.mubr.f32.gmra.mxu0 %v885
        %v1615 = vpop.f32.mrf.mxu0
        %v1616 = vadd.f32 0.0, %v1615
        %v1617 = vpop.f32.mrf.mxu0
        %v1618 = vadd.f32 0.0, %v1617
        %1619 = vmatprep.mubr.f32.mxu0 0.0
        %1620 = vmatmul.mubr.f32.gmra.mxu0 %v888
        %v1621 = vpop.f32.mrf.mxu0
        %v1622 = vadd.f32 0.0, %v1621
        %v1623 = vpop.f32.mrf.mxu0
        %v1624 = vadd.f32 0.0, %v1623
        %1625 = vmatprep.mubr.f32.mxu0 0.0
        %1626 = vmatmul.mubr.f32.gmra.mxu0 %v891
        %v1627 = vpop.f32.mrf.mxu0
        %v1628 = vadd.f32 0.0, %v1627
        %v1629 = vpop.f32.mrf.mxu0
        %v1630 = vadd.f32 0.0, %v1629
        %1631 = vmatprep.mubr.f32.mxu0 0.0
        %1632 = vmatmul.mubr.f32.gmra.mxu0 %v894
        %v1633 = vpop.f32.mrf.mxu0
        %v1634 = vadd.f32 0.0, %v1633
        %v1635 = vpop.f32.mrf.mxu0
        %v1636 = vadd.f32 0.0, %v1635
        %1637 = vmatprep.mubr.f32.mxu0 0.0
        %1638 = vmatmul.mubr.f32.gmra.mxu0 %v897
        %v1639 = vpop.f32.mrf.mxu0
        %v1640 = vadd.f32 0.0, %v1639
        %v1641 = vpop.f32.mrf.mxu0
        %v1642 = vadd.f32 0.0, %v1641
        %1643 = vmatprep.mubr.f32.mxu0 0.0
        %1644 = vmatmul.mubr.f32.gmra.mxu0 %v900
        %v1645 = vpop.f32.mrf.mxu0
        %v1646 = vadd.f32 0.0, %v1645
        %v1647 = vpop.f32.mrf.mxu0
        %v1648 = vadd.f32 0.0, %v1647
        %1649 = vmatprep.mubr.f32.mxu0 0.0
        %1650 = vmatmul.mubr.f32.gmra.mxu0 %v903
        %v1651 = vpop.f32.mrf.mxu0
        %v1652 = vadd.f32 0.0, %v1651
        %v1653 = vpop.f32.mrf.mxu0
        %v1654 = vadd.f32 0.0, %v1653
        %1655 = vmatprep.mubr.f32.mxu0 0.0
        %1656 = vmatmul.mubr.f32.gmra.mxu0 %v906
        %v1657 = vpop.f32.mrf.mxu0
        %v1658 = vadd.f32 0.0, %v1657
        %v1659 = vpop.f32.mrf.mxu0
        %v1660 = vadd.f32 0.0, %v1659
        %1661 = vmatprep.mubr.f32.mxu0 0.0
        %1662 = vmatmul.mubr.f32.gmra.mxu0 %v909
        %v1663 = vpop.f32.mrf.mxu0
        %v1664 = vadd.f32 0.0, %v1663
        %v1665 = vpop.f32.mrf.mxu0
        %v1666 = vadd.f32 0.0, %v1665
        %1667 = vmatprep.mubr.f32.mxu0 0.0
        %1668 = vmatmul.mubr.f32.gmra.mxu0 %v912
        %v1669 = vpop.f32.mrf.mxu0
        %v1670 = vadd.f32 0.0, %v1669
        %v1671 = vpop.f32.mrf.mxu0
        %v1672 = vadd.f32 0.0, %v1671
        %1673 = vmatprep.mubr.f32.mxu0 0.0
        %1674 = vmatmul.mubr.f32.gmra.mxu0 %v915
        %v1675 = vpop.f32.mrf.mxu0
        %v1676 = vadd.f32 0.0, %v1675
        %v1677 = vpop.f32.mrf.mxu0
        %v1678 = vadd.f32 0.0, %v1677
        %1679 = vmatprep.mubr.f32.mxu0 0.0
        %1680 = vmatmul.mubr.f32.gmra.mxu0 %v918
        %v1681 = vpop.f32.mrf.mxu0
        %v1682 = vadd.f32 0.0, %v1681
        %v1683 = vpop.f32.mrf.mxu0
        %v1684 = vadd.f32 0.0, %v1683
        %1685 = vmatprep.mubr.f32.mxu0 0.0
        %1686 = vmatmul.mubr.f32.gmra.mxu0 %v921
        %v1687 = vpop.f32.mrf.mxu0
        %v1688 = vadd.f32 0.0, %v1687
        %v1689 = vpop.f32.mrf.mxu0
        %v1690 = vadd.f32 0.0, %v1689
        %1691 = vmatprep.mubr.f32.mxu0 0.0
        %1692 = vmatmul.mubr.f32.gmra.mxu0 %v924
        %v1693 = vpop.f32.mrf.mxu0
        %v1694 = vadd.f32 0.0, %v1693
        %v1695 = vpop.f32.mrf.mxu0
        %v1696 = vadd.f32 0.0, %v1695
        %1697 = vmatprep.mubr.f32.mxu0 0.0
        %1698 = vmatmul.mubr.f32.gmra.mxu0 %v927
        %v1699 = vpop.f32.mrf.mxu0
        %v1700 = vadd.f32 0.0, %v1699
        %v1701 = vpop.f32.mrf.mxu0
        %v1702 = vadd.f32 0.0, %v1701
        %1703 = vmatprep.mubr.f32.mxu0 0.0
        %1704 = vmatmul.mubr.f32.gmra.mxu0 %v930
        %v1705 = vpop.f32.mrf.mxu0
        %v1706 = vadd.f32 0.0, %v1705
        %v1707 = vpop.f32.mrf.mxu0
        %v1708 = vadd.f32 0.0, %v1707
        %1709 = vmatprep.mubr.f32.mxu0 0.0
        %1710 = vmatmul.mubr.f32.gmra.mxu0 %v933
        %v1711 = vpop.f32.mrf.mxu0
        %v1712 = vadd.f32 0.0, %v1711
        %v1713 = vpop.f32.mrf.mxu0
        %v1714 = vadd.f32 0.0, %v1713
        %1715 = vmatprep.mubr.f32.mxu0 0.0
        %1716 = vmatmul.mubr.f32.gmra.mxu0 %v936
        %v1717 = vpop.f32.mrf.mxu0
        %v1718 = vadd.f32 0.0, %v1717
        %v1719 = vpop.f32.mrf.mxu0
        %v1720 = vadd.f32 0.0, %v1719
        %1721 = vmatprep.mubr.f32.mxu0 0.0
        %1722 = vmatmul.mubr.f32.gmra.mxu0 %v939
        %v1723 = vpop.f32.mrf.mxu0
        %v1724 = vadd.f32 0.0, %v1723
        %v1725 = vpop.f32.mrf.mxu0
        %v1726 = vadd.f32 0.0, %v1725
        %1727 = vmatprep.mubr.f32.mxu0 0.0
        %1728 = vmatmul.mubr.f32.gmra.mxu0 %v942
        %v1729 = vpop.f32.mrf.mxu0
        %v1730 = vadd.f32 0.0, %v1729
        %v1731 = vpop.f32.mrf.mxu0
        %v1732 = vadd.f32 0.0, %v1731
        %1733 = vmatprep.mubr.f32.mxu0 0.0
        %1734 = vmatmul.mubr.f32.gmra.mxu0 %v945
        %v1735 = vpop.f32.mrf.mxu0
        %v1736 = vadd.f32 0.0, %v1735
        %v1737 = vpop.f32.mrf.mxu0
        %v1738 = vadd.f32 0.0, %v1737
        %1739 = vmatprep.mubr.f32.mxu0 0.0
        %1740 = vmatmul.mubr.f32.gmra.mxu0 %v948
        %v1741 = vpop.f32.mrf.mxu0
        %v1742 = vadd.f32 0.0, %v1741
        %v1743 = vpop.f32.mrf.mxu0
        %v1744 = vadd.f32 0.0, %v1743
        %1745 = vmatprep.mubr.f32.mxu0 0.0
        %1746 = vmatmul.mubr.f32.gmra.mxu0 %v951
        %v1747 = vpop.f32.mrf.mxu0
        %v1748 = vadd.f32 0.0, %v1747
        %v1749 = vpop.f32.mrf.mxu0
        %v1750 = vadd.f32 0.0, %v1749
        %1751 = vmatprep.mubr.f32.mxu0 0.0
        %1752 = vmatmul.mubr.f32.gmra.mxu0 %v954
        %v1753 = vpop.f32.mrf.mxu0
        %v1754 = vadd.f32 0.0, %v1753
        %v1755 = vpop.f32.mrf.mxu0
        %v1756 = vadd.f32 0.0, %v1755
        %1757 = vmatprep.mubr.f32.mxu0 0.0
        %1758 = vmatmul.mubr.f32.gmra.mxu0 %v957
        %v1759 = vpop.f32.mrf.mxu0
        %v1760 = vadd.f32 0.0, %v1759
        %v1761 = vpop.f32.mrf.mxu0
        %v1762 = vadd.f32 0.0, %v1761
        %1763 = vmatprep.mubr.f32.mxu0 0.0
        %1764 = vmatmul.mubr.f32.gmra.mxu0 %v960
        %v1765 = vpop.f32.mrf.mxu0
        %v1766 = vadd.f32 0.0, %v1765
        %v1767 = vpop.f32.mrf.mxu0
        %v1768 = vadd.f32 0.0, %v1767
        %1769 = vmatprep.mubr.f32.mxu0 0.0
        %1770 = vmatmul.mubr.f32.gmra.mxu0 %v963
        %v1771 = vpop.f32.mrf.mxu0
        %v1772 = vadd.f32 0.0, %v1771
        %v1773 = vpop.f32.mrf.mxu0
        %v1774 = vadd.f32 0.0, %v1773
        %1775 = vmatprep.mubr.f32.mxu0 0.0
        %1776 = vmatmul.mubr.f32.gmra.mxu0 %v966
        %v1777 = vpop.f32.mrf.mxu0
        %v1778 = vadd.f32 0.0, %v1777
        %v1779 = vpop.f32.mrf.mxu0
        %v1780 = vadd.f32 0.0, %v1779
        %1781 = vmatprep.mubr.f32.mxu0 0.0
        %1782 = vmatmul.mubr.f32.gmra.mxu0 %v969
        %v1783 = vpop.f32.mrf.mxu0
        %v1784 = vadd.f32 0.0, %v1783
        %v1785 = vpop.f32.mrf.mxu0
        %v1786 = vadd.f32 0.0, %v1785
        %1787 = vmatprep.mubr.f32.mxu0 0.0
        %1788 = vmatmul.mubr.f32.gmra.mxu0 %v972
        %v1789 = vpop.f32.mrf.mxu0
        %v1790 = vadd.f32 0.0, %v1789
        %v1791 = vpop.f32.mrf.mxu0
        %v1792 = vadd.f32 0.0, %v1791
        %1793 = vmatprep.mubr.f32.mxu0 0.0
        %1794 = vmatmul.mubr.f32.gmra.mxu0 %v975
        %v1795 = vpop.f32.mrf.mxu0
        %v1796 = vadd.f32 0.0, %v1795
        %v1797 = vpop.f32.mrf.mxu0
        %v1798 = vadd.f32 0.0, %v1797
        %1799 = vmatprep.mubr.f32.mxu0 0.0
        %1800 = vmatmul.mubr.f32.gmra.mxu0 %v978
        %v1801 = vpop.f32.mrf.mxu0
        %v1802 = vadd.f32 0.0, %v1801
        %v1803 = vpop.f32.mrf.mxu0
        %v1804 = vadd.f32 0.0, %v1803
        %1805 = vmatprep.mubr.f32.mxu0 0.0
        %1806 = vmatmul.mubr.f32.gmra.mxu0 %v981
        %v1807 = vpop.f32.mrf.mxu0
        %v1808 = vadd.f32 0.0, %v1807
        %v1809 = vpop.f32.mrf.mxu0
        %v1810 = vadd.f32 0.0, %v1809
        %1811 = vmatprep.mubr.f32.mxu0 0.0
        %1812 = vmatmul.mubr.f32.gmra.mxu0 %v984
        %v1813 = vpop.f32.mrf.mxu0
        %v1814 = vadd.f32 0.0, %v1813
        %v1815 = vpop.f32.mrf.mxu0
        %v1816 = vadd.f32 0.0, %v1815
        %1817 = vmatprep.mubr.f32.mxu0 0.0
        %1818 = vmatmul.mubr.f32.gmra.mxu0 %v987
        %v1819 = vpop.f32.mrf.mxu0
        %v1820 = vadd.f32 0.0, %v1819
        %v1821 = vpop.f32.mrf.mxu0
        %v1822 = vadd.f32 0.0, %v1821
        %1823 = vmatprep.mubr.f32.mxu0 0.0
        %1824 = vmatmul.mubr.f32.gmra.mxu0 %v990
        %v1825 = vpop.f32.mrf.mxu0
        %v1826 = vadd.f32 0.0, %v1825
        %v1827 = vpop.f32.mrf.mxu0
        %v1828 = vadd.f32 0.0, %v1827
        %1829 = vmatprep.mubr.f32.mxu0 0.0
        %1830 = vmatmul.mubr.f32.gmra.mxu0 %v993
        %v1831 = vpop.f32.mrf.mxu0
        %v1832 = vadd.f32 0.0, %v1831
        %v1833 = vpop.f32.mrf.mxu0
        %v1834 = vadd.f32 0.0, %v1833
        %1835 = vmatprep.mubr.f32.mxu0 0.0
        %1836 = vmatmul.mubr.f32.gmra.mxu0 %v996
        %v1837 = vpop.f32.mrf.mxu0
        %v1838 = vadd.f32 0.0, %v1837
        %v1839 = vpop.f32.mrf.mxu0
        %v1840 = vadd.f32 0.0, %v1839
        %1841 = vmatprep.mubr.f32.mxu0 0.0
        %1842 = vmatmul.mubr.f32.gmra.mxu0 %v999
        %v1843 = vpop.f32.mrf.mxu0
        %v1844 = vadd.f32 0.0, %v1843
        %v1845 = vpop.f32.mrf.mxu0
        %v1846 = vadd.f32 0.0, %v1845
        %1847 = vmatprep.mubr.f32.mxu0 0.0
        %1848 = vmatmul.mubr.f32.gmra.mxu0 %v1002
        %v1849 = vpop.f32.mrf.mxu0
        %v1850 = vadd.f32 0.0, %v1849
        %v1851 = vpop.f32.mrf.mxu0
        %v1852 = vadd.f32 0.0, %v1851
        %1853 = vmatprep.mubr.f32.mxu0 0.0
        %1854 = vmatmul.mubr.f32.gmra.mxu0 %v1005
        %v1855 = vpop.f32.mrf.mxu0
        %v1856 = vadd.f32 0.0, %v1855
        %v1857 = vpop.f32.mrf.mxu0
        %v1858 = vadd.f32 0.0, %v1857
        %1859 = vmatprep.mubr.f32.mxu0 0.0
        %1860 = vmatmul.mubr.f32.gmra.mxu0 %v1008
        %v1861 = vpop.f32.mrf.mxu0
        %v1862 = vadd.f32 0.0, %v1861
        %v1863 = vpop.f32.mrf.mxu0
        %v1864 = vadd.f32 0.0, %v1863
        %1865 = vmatprep.mubr.f32.mxu0 0.0
        %1866 = vmatmul.mubr.f32.gmra.mxu0 %v1011
        %v1867 = vpop.f32.mrf.mxu0
        %v1868 = vadd.f32 0.0, %v1867
        %v1869 = vpop.f32.mrf.mxu0
        %v1870 = vadd.f32 0.0, %v1869
        %1871 = vmatprep.mubr.f32.mxu0 0.0
        %1872 = vmatmul.mubr.f32.gmra.mxu0 %v1014
        %v1873 = vpop.f32.mrf.mxu0
        %v1874 = vadd.f32 0.0, %v1873
        %v1875 = vpop.f32.mrf.mxu0
        %v1876 = vadd.f32 0.0, %v1875
        %1877 = vmatprep.mubr.f32.mxu0 0.0
        %1878 = vmatmul.mubr.f32.gmra.mxu0 %v1017
        %v1879 = vpop.f32.mrf.mxu0
        %v1880 = vadd.f32 0.0, %v1879
        %v1881 = vpop.f32.mrf.mxu0
        %v1882 = vadd.f32 0.0, %v1881
        %1883 = vmatprep.mubr.f32.mxu0 0.0
        %1884 = vmatmul.mubr.f32.gmra.mxu0 %v1020
        %v1885 = vpop.f32.mrf.mxu0
        %v1886 = vadd.f32 0.0, %v1885
        %v1887 = vpop.f32.mrf.mxu0
        %v1888 = vadd.f32 0.0, %v1887
        %1889 = vmatprep.mubr.f32.mxu0 0.0
        %1890 = vmatmul.mubr.f32.gmra.mxu0 %v1023
        %v1891 = vpop.f32.mrf.mxu0
        %v1892 = vadd.f32 0.0, %v1891
        %v1893 = vpop.f32.mrf.mxu0
        %v1894 = vadd.f32 0.0, %v1893
        %1895 = vmatprep.mubr.f32.mxu0 0.0
        %1896 = vmatmul.mubr.f32.gmra.mxu0 %v1026
        %v1897 = vpop.f32.mrf.mxu0
        %v1898 = vadd.f32 0.0, %v1897
        %v1899 = vpop.f32.mrf.mxu0
        %v1900 = vadd.f32 0.0, %v1899
        %1901 = vmatprep.mubr.f32.mxu0 0.0
        %1902 = vmatmul.mubr.f32.gmra.mxu0 %v1029
        %v1903 = vpop.f32.mrf.mxu0
        %v1904 = vadd.f32 0.0, %v1903
        %v1905 = vpop.f32.mrf.mxu0
        %v1906 = vadd.f32 0.0, %v1905
        %1907 = vmatprep.mubr.f32.mxu0 0.0
        %1908 = vmatmul.mubr.f32.gmra.mxu0 %v1032
        %v1909 = vpop.f32.mrf.mxu0
        %v1910 = vadd.f32 0.0, %v1909
        %v1911 = vpop.f32.mrf.mxu0
        %v1912 = vadd.f32 0.0, %v1911
        %1913 = vmatprep.mubr.f32.mxu0 0.0
        %1914 = vmatmul.mubr.f32.gmra.mxu0 %v1035
        %v1915 = vpop.f32.mrf.mxu0
        %v1916 = vadd.f32 0.0, %v1915
        %v1917 = vpop.f32.mrf.mxu0
        %v1918 = vadd.f32 0.0, %v1917
        %1919 = vmatprep.mubr.f32.mxu0 0.0
        %1920 = vmatmul.mubr.f32.gmra.mxu0 %v1038
        %v1921 = vpop.f32.mrf.mxu0
        %v1922 = vadd.f32 0.0, %v1921
        %v1923 = vpop.f32.mrf.mxu0
        %v1924 = vadd.f32 0.0, %v1923
        %1925 = vmatprep.mubr.f32.mxu0 0.0
        %1926 = vmatmul.mubr.f32.gmra.mxu0 %v1041
        %v1927 = vpop.f32.mrf.mxu0
        %v1928 = vadd.f32 0.0, %v1927
        %v1929 = vpop.f32.mrf.mxu0
        %v1930 = vadd.f32 0.0, %v1929
        %1931 = vmatprep.mubr.f32.mxu0 0.0
        %1932 = vmatmul.mubr.f32.gmra.mxu0 %v1044
        %v1933 = vpop.f32.mrf.mxu0
        %v1934 = vadd.f32 0.0, %v1933
        %v1935 = vpop.f32.mrf.mxu0
        %v1936 = vadd.f32 0.0, %v1935
        %1937 = vmatprep.mubr.f32.mxu0 0.0
        %1938 = vmatmul.mubr.f32.gmra.mxu0 %v1047
        %v1939 = vpop.f32.mrf.mxu0
        %v1940 = vadd.f32 0.0, %v1939
        %v1941 = vpop.f32.mrf.mxu0
        %v1942 = vadd.f32 0.0, %v1941
        %1943 = vmatprep.mubr.f32.mxu0 0.0
        %1944 = vmatmul.mubr.f32.gmra.mxu0 %v1050
        %v1945 = vpop.f32.mrf.mxu0
        %v1946 = vadd.f32 0.0, %v1945
        %v1947 = vpop.f32.mrf.mxu0
        %v1948 = vadd.f32 0.0, %v1947
        %1949 = vdwg.mxu0
        %v1950 = vmax.f32 %v1119, %v1121
        %v1951 = vmax.f32 %v1950, %v1568
        %v1952 = vmax.f32 %v1951, %v1570
        %1953 = vmax.xlane.f32.xlu0 %v1952
        %v1954 = vpop.xlane.xlu0 %1953
        %v1955 = vmax.f32 %v1125, %v1127
        %v1956 = vmax.f32 %v1955, %v1574
        %v1957 = vmax.f32 %v1956, %v1576
        %1958 = vmax.xlane.f32.xlu0 %v1957
        %v1959 = vpop.xlane.xlu0 %1958
        %v1960 = vmax.f32 %v1131, %v1133
        %v1961 = vmax.f32 %v1960, %v1580
        %v1962 = vmax.f32 %v1961, %v1582
        %1963 = vmax.xlane.f32.xlu0 %v1962
        %v1964 = vpop.xlane.xlu0 %1963
        %v1965 = vmax.f32 %v1137, %v1139
        %v1966 = vmax.f32 %v1965, %v1586
        %v1967 = vmax.f32 %v1966, %v1588
        %1968 = vmax.xlane.f32.xlu0 %v1967
        %v1969 = vpop.xlane.xlu0 %1968
        %v1970 = vmax.f32 %v1143, %v1145
        %v1971 = vmax.f32 %v1970, %v1592
        %v1972 = vmax.f32 %v1971, %v1594
        %1973 = vmax.xlane.f32.xlu0 %v1972
        %v1974 = vpop.xlane.xlu0 %1973
        %v1975 = vmax.f32 %v1149, %v1151
        %v1976 = vmax.f32 %v1975, %v1598
        %v1977 = vmax.f32 %v1976, %v1600
        %1978 = vmax.xlane.f32.xlu0 %v1977
        %v1979 = vpop.xlane.xlu0 %1978
        %v1980 = vmax.f32 %v1155, %v1157
        %v1981 = vmax.f32 %v1980, %v1604
        %v1982 = vmax.f32 %v1981, %v1606
        %1983 = vmax.xlane.f32.xlu0 %v1982
        %v1984 = vpop.xlane.xlu0 %1983
        %v1985 = vmax.f32 %v1161, %v1163
        %v1986 = vmax.f32 %v1985, %v1610
        %v1987 = vmax.f32 %v1986, %v1612
        %1988 = vmax.xlane.f32.xlu0 %v1987
        %v1989 = vpop.xlane.xlu0 %1988
        %v1990 = vmax.f32 %v1167, %v1169
        %v1991 = vmax.f32 %v1990, %v1616
        %v1992 = vmax.f32 %v1991, %v1618
        %1993 = vmax.xlane.f32.xlu0 %v1992
        %v1994 = vpop.xlane.xlu0 %1993
        %v1995 = vmax.f32 %v1173, %v1175
        %v1996 = vmax.f32 %v1995, %v1622
        %v1997 = vmax.f32 %v1996, %v1624
        %1998 = vmax.xlane.f32.xlu0 %v1997
        %v1999 = vpop.xlane.xlu0 %1998
        %v2000 = vmax.f32 %v1179, %v1181
        %v2001 = vmax.f32 %v2000, %v1628
        %v2002 = vmax.f32 %v2001, %v1630
        %2003 = vmax.xlane.f32.xlu0 %v2002
        %v2004 = vpop.xlane.xlu0 %2003
        %v2005 = vmax.f32 %v1185, %v1187
        %v2006 = vmax.f32 %v2005, %v1634
        %v2007 = vmax.f32 %v2006, %v1636
        %2008 = vmax.xlane.f32.xlu0 %v2007
        %v2009 = vpop.xlane.xlu0 %2008
        %v2010 = vmax.f32 %v1191, %v1193
        %v2011 = vmax.f32 %v2010, %v1640
        %v2012 = vmax.f32 %v2011, %v1642
        %2013 = vmax.xlane.f32.xlu0 %v2012
        %v2014 = vpop.xlane.xlu0 %2013
        %v2015 = vmax.f32 %v1197, %v1199
        %v2016 = vmax.f32 %v2015, %v1646
        %v2017 = vmax.f32 %v2016, %v1648
        %2018 = vmax.xlane.f32.xlu0 %v2017
        %v2019 = vpop.xlane.xlu0 %2018
        %v2020 = vmax.f32 %v1203, %v1205
        %v2021 = vmax.f32 %v2020, %v1652
        %v2022 = vmax.f32 %v2021, %v1654
        %2023 = vmax.xlane.f32.xlu0 %v2022
        %v2024 = vpop.xlane.xlu0 %2023
        %v2025 = vmax.f32 %v1209, %v1211
        %v2026 = vmax.f32 %v2025, %v1658
        %v2027 = vmax.f32 %v2026, %v1660
        %2028 = vmax.xlane.f32.xlu0 %v2027
        %v2029 = vpop.xlane.xlu0 %2028
        %v2030 = vmax.f32 %v1215, %v1217
        %v2031 = vmax.f32 %v2030, %v1664
        %v2032 = vmax.f32 %v2031, %v1666
        %2033 = vmax.xlane.f32.xlu0 %v2032
        %v2034 = vpop.xlane.xlu0 %2033
        %v2035 = vmax.f32 %v1221, %v1223
        %v2036 = vmax.f32 %v2035, %v1670
        %v2037 = vmax.f32 %v2036, %v1672
        %2038 = vmax.xlane.f32.xlu0 %v2037
        %v2039 = vpop.xlane.xlu0 %2038
        %v2040 = vmax.f32 %v1227, %v1229
        %v2041 = vmax.f32 %v2040, %v1676
        %v2042 = vmax.f32 %v2041, %v1678
        %2043 = vmax.xlane.f32.xlu0 %v2042
        %v2044 = vpop.xlane.xlu0 %2043
        %v2045 = vmax.f32 %v1233, %v1235
        %v2046 = vmax.f32 %v2045, %v1682
        %v2047 = vmax.f32 %v2046, %v1684
        %2048 = vmax.xlane.f32.xlu0 %v2047
        %v2049 = vpop.xlane.xlu0 %2048
        %v2050 = vmax.f32 %v1239, %v1241
        %v2051 = vmax.f32 %v2050, %v1688
        %v2052 = vmax.f32 %v2051, %v1690
        %2053 = vmax.xlane.f32.xlu0 %v2052
        %v2054 = vpop.xlane.xlu0 %2053
        %v2055 = vmax.f32 %v1245, %v1247
        %v2056 = vmax.f32 %v2055, %v1694
        %v2057 = vmax.f32 %v2056, %v1696
        %2058 = vmax.xlane.f32.xlu0 %v2057
        %v2059 = vpop.xlane.xlu0 %2058
        %v2060 = vmax.f32 %v1251, %v1253
        %v2061 = vmax.f32 %v2060, %v1700
        %v2062 = vmax.f32 %v2061, %v1702
        %2063 = vmax.xlane.f32.xlu0 %v2062
        %v2064 = vpop.xlane.xlu0 %2063
        %v2065 = vmax.f32 %v1257, %v1259
        %v2066 = vmax.f32 %v2065, %v1706
        %v2067 = vmax.f32 %v2066, %v1708
        %2068 = vmax.xlane.f32.xlu0 %v2067
        %v2069 = vpop.xlane.xlu0 %2068
        %v2070 = vmax.f32 %v1263, %v1265
        %v2071 = vmax.f32 %v2070, %v1712
        %v2072 = vmax.f32 %v2071, %v1714
        %2073 = vmax.xlane.f32.xlu0 %v2072
        %v2074 = vpop.xlane.xlu0 %2073
        %v2075 = vmax.f32 %v1269, %v1271
        %v2076 = vmax.f32 %v2075, %v1718
        %v2077 = vmax.f32 %v2076, %v1720
        %2078 = vmax.xlane.f32.xlu0 %v2077
        %v2079 = vpop.xlane.xlu0 %2078
        %v2080 = vmax.f32 %v1275, %v1277
        %v2081 = vmax.f32 %v2080, %v1724
        %v2082 = vmax.f32 %v2081, %v1726
        %2083 = vmax.xlane.f32.xlu0 %v2082
        %v2084 = vpop.xlane.xlu0 %2083
        %v2085 = vmax.f32 %v1281, %v1283
        %v2086 = vmax.f32 %v2085, %v1730
        %v2087 = vmax.f32 %v2086, %v1732
        %2088 = vmax.xlane.f32.xlu0 %v2087
        %v2089 = vpop.xlane.xlu0 %2088
        %v2090 = vmax.f32 %v1287, %v1289
        %v2091 = vmax.f32 %v2090, %v1736
        %v2092 = vmax.f32 %v2091, %v1738
        %2093 = vmax.xlane.f32.xlu0 %v2092
        %v2094 = vpop.xlane.xlu0 %2093
        %v2095 = vmax.f32 %v1293, %v1295
        %v2096 = vmax.f32 %v2095, %v1742
        %v2097 = vmax.f32 %v2096, %v1744
        %2098 = vmax.xlane.f32.xlu0 %v2097
        %v2099 = vpop.xlane.xlu0 %2098
        %v2100 = vmax.f32 %v1299, %v1301
        %v2101 = vmax.f32 %v2100, %v1748
        %v2102 = vmax.f32 %v2101, %v1750
        %2103 = vmax.xlane.f32.xlu0 %v2102
        %v2104 = vpop.xlane.xlu0 %2103
        %v2105 = vmax.f32 %v1305, %v1307
        %v2106 = vmax.f32 %v2105, %v1754
        %v2107 = vmax.f32 %v2106, %v1756
        %2108 = vmax.xlane.f32.xlu0 %v2107
        %v2109 = vpop.xlane.xlu0 %2108
        %v2110 = vmax.f32 %v1311, %v1313
        %v2111 = vmax.f32 %v2110, %v1760
        %v2112 = vmax.f32 %v2111, %v1762
        %2113 = vmax.xlane.f32.xlu0 %v2112
        %v2114 = vpop.xlane.xlu0 %2113
        %v2115 = vmax.f32 %v1317, %v1319
        %v2116 = vmax.f32 %v2115, %v1766
        %v2117 = vmax.f32 %v2116, %v1768
        %2118 = vmax.xlane.f32.xlu0 %v2117
        %v2119 = vpop.xlane.xlu0 %2118
        %v2120 = vmax.f32 %v1323, %v1325
        %v2121 = vmax.f32 %v2120, %v1772
        %v2122 = vmax.f32 %v2121, %v1774
        %2123 = vmax.xlane.f32.xlu0 %v2122
        %v2124 = vpop.xlane.xlu0 %2123
        %v2125 = vmax.f32 %v1329, %v1331
        %v2126 = vmax.f32 %v2125, %v1778
        %v2127 = vmax.f32 %v2126, %v1780
        %2128 = vmax.xlane.f32.xlu0 %v2127
        %v2129 = vpop.xlane.xlu0 %2128
        %v2130 = vmax.f32 %v1335, %v1337
        %v2131 = vmax.f32 %v2130, %v1784
        %v2132 = vmax.f32 %v2131, %v1786
        %2133 = vmax.xlane.f32.xlu0 %v2132
        %v2134 = vpop.xlane.xlu0 %2133
        %v2135 = vmax.f32 %v1341, %v1343
        %v2136 = vmax.f32 %v2135, %v1790
        %v2137 = vmax.f32 %v2136, %v1792
        %2138 = vmax.xlane.f32.xlu0 %v2137
        %v2139 = vpop.xlane.xlu0 %2138
        %v2140 = vmax.f32 %v1347, %v1349
        %v2141 = vmax.f32 %v2140, %v1796
        %v2142 = vmax.f32 %v2141, %v1798
        %2143 = vmax.xlane.f32.xlu0 %v2142
        %v2144 = vpop.xlane.xlu0 %2143
        %v2145 = vmax.f32 %v1353, %v1355
        %v2146 = vmax.f32 %v2145, %v1802
        %v2147 = vmax.f32 %v2146, %v1804
        %2148 = vmax.xlane.f32.xlu0 %v2147
        %v2149 = vpop.xlane.xlu0 %2148
        %v2150 = vmax.f32 %v1359, %v1361
        %v2151 = vmax.f32 %v2150, %v1808
        %v2152 = vmax.f32 %v2151, %v1810
        %2153 = vmax.xlane.f32.xlu0 %v2152
        %v2154 = vpop.xlane.xlu0 %2153
        %v2155 = vmax.f32 %v1365, %v1367
        %v2156 = vmax.f32 %v2155, %v1814
        %v2157 = vmax.f32 %v2156, %v1816
        %2158 = vmax.xlane.f32.xlu0 %v2157
        %v2159 = vpop.xlane.xlu0 %2158
        %v2160 = vmax.f32 %v1371, %v1373
        %v2161 = vmax.f32 %v2160, %v1820
        %v2162 = vmax.f32 %v2161, %v1822
        %2163 = vmax.xlane.f32.xlu0 %v2162
        %v2164 = vpop.xlane.xlu0 %2163
        %v2165 = vmax.f32 %v1377, %v1379
        %v2166 = vmax.f32 %v2165, %v1826
        %v2167 = vmax.f32 %v2166, %v1828
        %2168 = vmax.xlane.f32.xlu0 %v2167
        %v2169 = vpop.xlane.xlu0 %2168
        %v2170 = vmax.f32 %v1383, %v1385
        %v2171 = vmax.f32 %v2170, %v1832
        %v2172 = vmax.f32 %v2171, %v1834
        %2173 = vmax.xlane.f32.xlu0 %v2172
        %v2174 = vpop.xlane.xlu0 %2173
        %v2175 = vmax.f32 %v1389, %v1391
        %v2176 = vmax.f32 %v2175, %v1838
        %v2177 = vmax.f32 %v2176, %v1840
        %2178 = vmax.xlane.f32.xlu0 %v2177
        %v2179 = vpop.xlane.xlu0 %2178
        %v2180 = vmax.f32 %v1395, %v1397
        %v2181 = vmax.f32 %v2180, %v1844
        %v2182 = vmax.f32 %v2181, %v1846
        %2183 = vmax.xlane.f32.xlu0 %v2182
        %v2184 = vpop.xlane.xlu0 %2183
        %v2185 = vmax.f32 %v1401, %v1403
        %v2186 = vmax.f32 %v2185, %v1850
        %v2187 = vmax.f32 %v2186, %v1852
        %2188 = vmax.xlane.f32.xlu0 %v2187
        %v2189 = vpop.xlane.xlu0 %2188
        %v2190 = vmax.f32 %v1407, %v1409
        %v2191 = vmax.f32 %v2190, %v1856
        %v2192 = vmax.f32 %v2191, %v1858
        %2193 = vmax.xlane.f32.xlu0 %v2192
        %v2194 = vpop.xlane.xlu0 %2193
        %v2195 = vmax.f32 %v1413, %v1415
        %v2196 = vmax.f32 %v2195, %v1862
        %v2197 = vmax.f32 %v2196, %v1864
        %2198 = vmax.xlane.f32.xlu0 %v2197
        %v2199 = vpop.xlane.xlu0 %2198
        %v2200 = vmax.f32 %v1419, %v1421
        %v2201 = vmax.f32 %v2200, %v1868
        %v2202 = vmax.f32 %v2201, %v1870
        %2203 = vmax.xlane.f32.xlu0 %v2202
        %v2204 = vpop.xlane.xlu0 %2203
        %v2205 = vmax.f32 %v1425, %v1427
        %v2206 = vmax.f32 %v2205, %v1874
        %v2207 = vmax.f32 %v2206, %v1876
        %2208 = vmax.xlane.f32.xlu0 %v2207
        %v2209 = vpop.xlane.xlu0 %2208
        %v2210 = vmax.f32 %v1431, %v1433
        %v2211 = vmax.f32 %v2210, %v1880
        %v2212 = vmax.f32 %v2211, %v1882
        %2213 = vmax.xlane.f32.xlu0 %v2212
        %v2214 = vpop.xlane.xlu0 %2213
        %v2215 = vmax.f32 %v1437, %v1439
        %v2216 = vmax.f32 %v2215, %v1886
        %v2217 = vmax.f32 %v2216, %v1888
        %2218 = vmax.xlane.f32.xlu0 %v2217
        %v2219 = vpop.xlane.xlu0 %2218
        %v2220 = vmax.f32 %v1443, %v1445
        %v2221 = vmax.f32 %v2220, %v1892
        %v2222 = vmax.f32 %v2221, %v1894
        %2223 = vmax.xlane.f32.xlu0 %v2222
        %v2224 = vpop.xlane.xlu0 %2223
        %v2225 = vmax.f32 %v1449, %v1451
        %v2226 = vmax.f32 %v2225, %v1898
        %v2227 = vmax.f32 %v2226, %v1900
        %2228 = vmax.xlane.f32.xlu0 %v2227
        %v2229 = vpop.xlane.xlu0 %2228
        %v2230 = vmax.f32 %v1455, %v1457
        %v2231 = vmax.f32 %v2230, %v1904
        %v2232 = vmax.f32 %v2231, %v1906
        %2233 = vmax.xlane.f32.xlu0 %v2232
        %v2234 = vpop.xlane.xlu0 %2233
        %v2235 = vmax.f32 %v1461, %v1463
        %v2236 = vmax.f32 %v2235, %v1910
        %v2237 = vmax.f32 %v2236, %v1912
        %2238 = vmax.xlane.f32.xlu0 %v2237
        %v2239 = vpop.xlane.xlu0 %2238
        %v2240 = vmax.f32 %v1467, %v1469
        %v2241 = vmax.f32 %v2240, %v1916
        %v2242 = vmax.f32 %v2241, %v1918
        %2243 = vmax.xlane.f32.xlu0 %v2242
        %v2244 = vpop.xlane.xlu0 %2243
        %v2245 = vmax.f32 %v1473, %v1475
        %v2246 = vmax.f32 %v2245, %v1922
        %v2247 = vmax.f32 %v2246, %v1924
        %2248 = vmax.xlane.f32.xlu0 %v2247
        %v2249 = vpop.xlane.xlu0 %2248
        %v2250 = vmax.f32 %v1479, %v1481
        %v2251 = vmax.f32 %v2250, %v1928
        %v2252 = vmax.f32 %v2251, %v1930
        %2253 = vmax.xlane.f32.xlu0 %v2252
        %v2254 = vpop.xlane.xlu0 %2253
        %v2255 = vmax.f32 %v1485, %v1487
        %v2256 = vmax.f32 %v2255, %v1934
        %v2257 = vmax.f32 %v2256, %v1936
        %2258 = vmax.xlane.f32.xlu0 %v2257
        %v2259 = vpop.xlane.xlu0 %2258
        %v2260 = vmax.f32 %v1491, %v1493
        %v2261 = vmax.f32 %v2260, %v1940
        %v2262 = vmax.f32 %v2261, %v1942
        %2263 = vmax.xlane.f32.xlu0 %v2262
        %v2264 = vpop.xlane.xlu0 %2263
        %v2265 = vmax.f32 %v1497, %v1499
        %v2266 = vmax.f32 %v2265, %v1946
        %v2267 = vmax.f32 %v2266, %v1948
        %2268 = vmax.xlane.f32.xlu0 %v2267
        %v2269 = vpop.xlane.xlu0 %2268
        %v2270 = vsub.f32 %v1119, %v1954
        %v2271 = vsub.f32 %v1121, %v1954
        %v2272 = vsub.f32 %v1568, %v1954
        %v2273 = vsub.f32 %v1570, %v1954
        %v2274 = vsub.f32 %v1125, %v1959
        %v2275 = vsub.f32 %v1127, %v1959
        %v2276 = vsub.f32 %v1574, %v1959
        %v2277 = vsub.f32 %v1576, %v1959
        %v2278 = vsub.f32 %v1131, %v1964
        %v2279 = vsub.f32 %v1133, %v1964
        %v2280 = vsub.f32 %v1580, %v1964
        %v2281 = vsub.f32 %v1582, %v1964
        %v2282 = vsub.f32 %v1137, %v1969
        %v2283 = vsub.f32 %v1139, %v1969
        %v2284 = vsub.f32 %v1586, %v1969
        %v2285 = vsub.f32 %v1588, %v1969
        %v2286 = vsub.f32 %v1143, %v1974
        %v2287 = vsub.f32 %v1145, %v1974
        %v2288 = vsub.f32 %v1592, %v1974
        %v2289 = vsub.f32 %v1594, %v1974
        %v2290 = vsub.f32 %v1149, %v1979
        %v2291 = vsub.f32 %v1151, %v1979
        %v2292 = vsub.f32 %v1598, %v1979
        %v2293 = vsub.f32 %v1600, %v1979
        %v2294 = vsub.f32 %v1155, %v1984
        %v2295 = vsub.f32 %v1157, %v1984
        %v2296 = vsub.f32 %v1604, %v1984
        %v2297 = vsub.f32 %v1606, %v1984
        %v2298 = vsub.f32 %v1161, %v1989
        %v2299 = vsub.f32 %v1163, %v1989
        %v2300 = vsub.f32 %v1610, %v1989
        %v2301 = vsub.f32 %v1612, %v1989
        %v2302 = vsub.f32 %v1167, %v1994
        %v2303 = vsub.f32 %v1169, %v1994
        %v2304 = vsub.f32 %v1616, %v1994
        %v2305 = vsub.f32 %v1618, %v1994
        %v2306 = vsub.f32 %v1173, %v1999
        %v2307 = vsub.f32 %v1175, %v1999
        %v2308 = vsub.f32 %v1622, %v1999
        %v2309 = vsub.f32 %v1624, %v1999
        %v2310 = vsub.f32 %v1179, %v2004
        %v2311 = vsub.f32 %v1181, %v2004
        %v2312 = vsub.f32 %v1628, %v2004
        %v2313 = vsub.f32 %v1630, %v2004
        %v2314 = vsub.f32 %v1185, %v2009
        %v2315 = vsub.f32 %v1187, %v2009
        %v2316 = vsub.f32 %v1634, %v2009
        %v2317 = vsub.f32 %v1636, %v2009
        %v2318 = vsub.f32 %v1191, %v2014
        %v2319 = vsub.f32 %v1193, %v2014
        %v2320 = vsub.f32 %v1640, %v2014
        %v2321 = vsub.f32 %v1642, %v2014
        %v2322 = vsub.f32 %v1197, %v2019
        %v2323 = vsub.f32 %v1199, %v2019
        %v2324 = vsub.f32 %v1646, %v2019
        %v2325 = vsub.f32 %v1648, %v2019
        %v2326 = vsub.f32 %v1203, %v2024
        %v2327 = vsub.f32 %v1205, %v2024
        %v2328 = vsub.f32 %v1652, %v2024
        %v2329 = vsub.f32 %v1654, %v2024
        %v2330 = vsub.f32 %v1209, %v2029
        %v2331 = vsub.f32 %v1211, %v2029
        %v2332 = vsub.f32 %v1658, %v2029
        %v2333 = vsub.f32 %v1660, %v2029
        %v2334 = vsub.f32 %v1215, %v2034
        %v2335 = vsub.f32 %v1217, %v2034
        %v2336 = vsub.f32 %v1664, %v2034
        %v2337 = vsub.f32 %v1666, %v2034
        %v2338 = vsub.f32 %v1221, %v2039
        %v2339 = vsub.f32 %v1223, %v2039
        %v2340 = vsub.f32 %v1670, %v2039
        %v2341 = vsub.f32 %v1672, %v2039
        %v2342 = vsub.f32 %v1227, %v2044
        %v2343 = vsub.f32 %v1229, %v2044
        %v2344 = vsub.f32 %v1676, %v2044
        %v2345 = vsub.f32 %v1678, %v2044
        %v2346 = vsub.f32 %v1233, %v2049
        %v2347 = vsub.f32 %v1235, %v2049
        %v2348 = vsub.f32 %v1682, %v2049
        %v2349 = vsub.f32 %v1684, %v2049
        %v2350 = vsub.f32 %v1239, %v2054
        %v2351 = vsub.f32 %v1241, %v2054
        %v2352 = vsub.f32 %v1688, %v2054
        %v2353 = vsub.f32 %v1690, %v2054
        %v2354 = vsub.f32 %v1245, %v2059
        %v2355 = vsub.f32 %v1247, %v2059
        %v2356 = vsub.f32 %v1694, %v2059
        %v2357 = vsub.f32 %v1696, %v2059
        %v2358 = vsub.f32 %v1251, %v2064
        %v2359 = vsub.f32 %v1253, %v2064
        %v2360 = vsub.f32 %v1700, %v2064
        %v2361 = vsub.f32 %v1702, %v2064
        %v2362 = vsub.f32 %v1257, %v2069
        %v2363 = vsub.f32 %v1259, %v2069
        %v2364 = vsub.f32 %v1706, %v2069
        %v2365 = vsub.f32 %v1708, %v2069
        %v2366 = vsub.f32 %v1263, %v2074
        %v2367 = vsub.f32 %v1265, %v2074
        %v2368 = vsub.f32 %v1712, %v2074
        %v2369 = vsub.f32 %v1714, %v2074
        %v2370 = vsub.f32 %v1269, %v2079
        %v2371 = vsub.f32 %v1271, %v2079
        %v2372 = vsub.f32 %v1718, %v2079
        %v2373 = vsub.f32 %v1720, %v2079
        %v2374 = vsub.f32 %v1275, %v2084
        %v2375 = vsub.f32 %v1277, %v2084
        %v2376 = vsub.f32 %v1724, %v2084
        %v2377 = vsub.f32 %v1726, %v2084
        %v2378 = vsub.f32 %v1281, %v2089
        %v2379 = vsub.f32 %v1283, %v2089
        %v2380 = vsub.f32 %v1730, %v2089
        %v2381 = vsub.f32 %v1732, %v2089
        %v2382 = vsub.f32 %v1287, %v2094
        %v2383 = vsub.f32 %v1289, %v2094
        %v2384 = vsub.f32 %v1736, %v2094
        %v2385 = vsub.f32 %v1738, %v2094
        %v2386 = vsub.f32 %v1293, %v2099
        %v2387 = vsub.f32 %v1295, %v2099
        %v2388 = vsub.f32 %v1742, %v2099
        %v2389 = vsub.f32 %v1744, %v2099
        %v2390 = vsub.f32 %v1299, %v2104
        %v2391 = vsub.f32 %v1301, %v2104
        %v2392 = vsub.f32 %v1748, %v2104
        %v2393 = vsub.f32 %v1750, %v2104
        %v2394 = vsub.f32 %v1305, %v2109
        %v2395 = vsub.f32 %v1307, %v2109
        %v2396 = vsub.f32 %v1754, %v2109
        %v2397 = vsub.f32 %v1756, %v2109
        %v2398 = vsub.f32 %v1311, %v2114
        %v2399 = vsub.f32 %v1313, %v2114
        %v2400 = vsub.f32 %v1760, %v2114
        %v2401 = vsub.f32 %v1762, %v2114
        %v2402 = vsub.f32 %v1317, %v2119
        %v2403 = vsub.f32 %v1319, %v2119
        %v2404 = vsub.f32 %v1766, %v2119
        %v2405 = vsub.f32 %v1768, %v2119
        %v2406 = vsub.f32 %v1323, %v2124
        %v2407 = vsub.f32 %v1325, %v2124
        %v2408 = vsub.f32 %v1772, %v2124
        %v2409 = vsub.f32 %v1774, %v2124
        %v2410 = vsub.f32 %v1329, %v2129
        %v2411 = vsub.f32 %v1331, %v2129
        %v2412 = vsub.f32 %v1778, %v2129
        %v2413 = vsub.f32 %v1780, %v2129
        %v2414 = vsub.f32 %v1335, %v2134
        %v2415 = vsub.f32 %v1337, %v2134
        %v2416 = vsub.f32 %v1784, %v2134
        %v2417 = vsub.f32 %v1786, %v2134
        %v2418 = vsub.f32 %v1341, %v2139
        %v2419 = vsub.f32 %v1343, %v2139
        %v2420 = vsub.f32 %v1790, %v2139
        %v2421 = vsub.f32 %v1792, %v2139
        %v2422 = vsub.f32 %v1347, %v2144
        %v2423 = vsub.f32 %v1349, %v2144
        %v2424 = vsub.f32 %v1796, %v2144
        %v2425 = vsub.f32 %v1798, %v2144
        %v2426 = vsub.f32 %v1353, %v2149
        %v2427 = vsub.f32 %v1355, %v2149
        %v2428 = vsub.f32 %v1802, %v2149
        %v2429 = vsub.f32 %v1804, %v2149
        %v2430 = vsub.f32 %v1359, %v2154
        %v2431 = vsub.f32 %v1361, %v2154
        %v2432 = vsub.f32 %v1808, %v2154
        %v2433 = vsub.f32 %v1810, %v2154
        %v2434 = vsub.f32 %v1365, %v2159
        %v2435 = vsub.f32 %v1367, %v2159
        %v2436 = vsub.f32 %v1814, %v2159
        %v2437 = vsub.f32 %v1816, %v2159
        %v2438 = vsub.f32 %v1371, %v2164
        %v2439 = vsub.f32 %v1373, %v2164
        %v2440 = vsub.f32 %v1820, %v2164
        %v2441 = vsub.f32 %v1822, %v2164
        %v2442 = vsub.f32 %v1377, %v2169
        %v2443 = vsub.f32 %v1379, %v2169
        %v2444 = vsub.f32 %v1826, %v2169
        %v2445 = vsub.f32 %v1828, %v2169
        %v2446 = vsub.f32 %v1383, %v2174
        %v2447 = vsub.f32 %v1385, %v2174
        %v2448 = vsub.f32 %v1832, %v2174
        %v2449 = vsub.f32 %v1834, %v2174
        %v2450 = vsub.f32 %v1389, %v2179
        %v2451 = vsub.f32 %v1391, %v2179
        %v2452 = vsub.f32 %v1838, %v2179
        %v2453 = vsub.f32 %v1840, %v2179
        %v2454 = vsub.f32 %v1395, %v2184
        %v2455 = vsub.f32 %v1397, %v2184
        %v2456 = vsub.f32 %v1844, %v2184
        %v2457 = vsub.f32 %v1846, %v2184
        %v2458 = vsub.f32 %v1401, %v2189
        %v2459 = vsub.f32 %v1403, %v2189
        %v2460 = vsub.f32 %v1850, %v2189
        %v2461 = vsub.f32 %v1852, %v2189
        %v2462 = vsub.f32 %v1407, %v2194
        %v2463 = vsub.f32 %v1409, %v2194
        %v2464 = vsub.f32 %v1856, %v2194
        %v2465 = vsub.f32 %v1858, %v2194
        %v2466 = vsub.f32 %v1413, %v2199
        %v2467 = vsub.f32 %v1415, %v2199
        %v2468 = vsub.f32 %v1862, %v2199
        %v2469 = vsub.f32 %v1864, %v2199
        %v2470 = vsub.f32 %v1419, %v2204
        %v2471 = vsub.f32 %v1421, %v2204
        %v2472 = vsub.f32 %v1868, %v2204
        %v2473 = vsub.f32 %v1870, %v2204
        %v2474 = vsub.f32 %v1425, %v2209
        %v2475 = vsub.f32 %v1427, %v2209
        %v2476 = vsub.f32 %v1874, %v2209
        %v2477 = vsub.f32 %v1876, %v2209
        %v2478 = vsub.f32 %v1431, %v2214
        %v2479 = vsub.f32 %v1433, %v2214
        %v2480 = vsub.f32 %v1880, %v2214
        %v2481 = vsub.f32 %v1882, %v2214
        %v2482 = vsub.f32 %v1437, %v2219
        %v2483 = vsub.f32 %v1439, %v2219
        %v2484 = vsub.f32 %v1886, %v2219
        %v2485 = vsub.f32 %v1888, %v2219
        %v2486 = vsub.f32 %v1443, %v2224
        %v2487 = vsub.f32 %v1445, %v2224
        %v2488 = vsub.f32 %v1892, %v2224
        %v2489 = vsub.f32 %v1894, %v2224
        %v2490 = vsub.f32 %v1449, %v2229
        %v2491 = vsub.f32 %v1451, %v2229
        %v2492 = vsub.f32 %v1898, %v2229
        %v2493 = vsub.f32 %v1900, %v2229
        %v2494 = vsub.f32 %v1455, %v2234
        %v2495 = vsub.f32 %v1457, %v2234
        %v2496 = vsub.f32 %v1904, %v2234
        %v2497 = vsub.f32 %v1906, %v2234
        %v2498 = vsub.f32 %v1461, %v2239
        %v2499 = vsub.f32 %v1463, %v2239
        %v2500 = vsub.f32 %v1910, %v2239
        %v2501 = vsub.f32 %v1912, %v2239
        %v2502 = vsub.f32 %v1467, %v2244
        %v2503 = vsub.f32 %v1469, %v2244
        %v2504 = vsub.f32 %v1916, %v2244
        %v2505 = vsub.f32 %v1918, %v2244
        %v2506 = vsub.f32 %v1473, %v2249
        %v2507 = vsub.f32 %v1475, %v2249
        %v2508 = vsub.f32 %v1922, %v2249
        %v2509 = vsub.f32 %v1924, %v2249
        %v2510 = vsub.f32 %v1479, %v2254
        %v2511 = vsub.f32 %v1481, %v2254
        %v2512 = vsub.f32 %v1928, %v2254
        %v2513 = vsub.f32 %v1930, %v2254
        %v2514 = vsub.f32 %v1485, %v2259
        %v2515 = vsub.f32 %v1487, %v2259
        %v2516 = vsub.f32 %v1934, %v2259
        %v2517 = vsub.f32 %v1936, %v2259
        %v2518 = vsub.f32 %v1491, %v2264
        %v2519 = vsub.f32 %v1493, %v2264
        %v2520 = vsub.f32 %v1940, %v2264
        %v2521 = vsub.f32 %v1942, %v2264
        %v2522 = vsub.f32 %v1497, %v2269
        %v2523 = vsub.f32 %v1499, %v2269
        %v2524 = vsub.f32 %v1946, %v2269
        %v2525 = vsub.f32 %v1948, %v2269
        %v2526 = vmul.f32 %v2270, 1.442695
        %v2527 = vpow.pop %v2526
        %v2528 = vmul.f32 %v2271, 1.442695
        %v2529 = vpow.pop %v2528
        %v2530 = vmul.f32 %v2272, 1.442695
        %v2531 = vpow.pop %v2530
        %v2532 = vmul.f32 %v2273, 1.442695
        %v2533 = vpow.pop %v2532
        %v2534 = vmul.f32 %v2274, 1.442695
        %v2535 = vpow.pop %v2534
        %v2536 = vmul.f32 %v2275, 1.442695
        %v2537 = vpow.pop %v2536
        %v2538 = vmul.f32 %v2276, 1.442695
        %v2539 = vpow.pop %v2538
        %v2540 = vmul.f32 %v2277, 1.442695
        %v2541 = vpow.pop %v2540
        %v2542 = vmul.f32 %v2278, 1.442695
        %v2543 = vpow.pop %v2542
        %v2544 = vmul.f32 %v2279, 1.442695
        %v2545 = vpow.pop %v2544
        %v2546 = vmul.f32 %v2280, 1.442695
        %v2547 = vpow.pop %v2546
        %v2548 = vmul.f32 %v2281, 1.442695
        %v2549 = vpow.pop %v2548
        %v2550 = vmul.f32 %v2282, 1.442695
        %v2551 = vpow.pop %v2550
        %v2552 = vmul.f32 %v2283, 1.442695
        %v2553 = vpow.pop %v2552
        %v2554 = vmul.f32 %v2284, 1.442695
        %v2555 = vpow.pop %v2554
        %v2556 = vmul.f32 %v2285, 1.442695
        %v2557 = vpow.pop %v2556
        %v2558 = vmul.f32 %v2286, 1.442695
        %v2559 = vpow.pop %v2558
        %v2560 = vmul.f32 %v2287, 1.442695
        %v2561 = vpow.pop %v2560
        %v2562 = vmul.f32 %v2288, 1.442695
        %v2563 = vpow.pop %v2562
        %v2564 = vmul.f32 %v2289, 1.442695
        %v2565 = vpow.pop %v2564
        %v2566 = vmul.f32 %v2290, 1.442695
        %v2567 = vpow.pop %v2566
        %v2568 = vmul.f32 %v2291, 1.442695
        %v2569 = vpow.pop %v2568
        %v2570 = vmul.f32 %v2292, 1.442695
        %v2571 = vpow.pop %v2570
        %v2572 = vmul.f32 %v2293, 1.442695
        %v2573 = vpow.pop %v2572
        %v2574 = vmul.f32 %v2294, 1.442695
        %v2575 = vpow.pop %v2574
        %v2576 = vmul.f32 %v2295, 1.442695
        %v2577 = vpow.pop %v2576
        %v2578 = vmul.f32 %v2296, 1.442695
        %v2579 = vpow.pop %v2578
        %v2580 = vmul.f32 %v2297, 1.442695
        %v2581 = vpow.pop %v2580
        %v2582 = vmul.f32 %v2298, 1.442695
        %v2583 = vpow.pop %v2582
        %v2584 = vmul.f32 %v2299, 1.442695
        %v2585 = vpow.pop %v2584
        %v2586 = vmul.f32 %v2300, 1.442695
        %v2587 = vpow.pop %v2586
        %v2588 = vmul.f32 %v2301, 1.442695
        %v2589 = vpow.pop %v2588
        %v2590 = vmul.f32 %v2302, 1.442695
        %v2591 = vpow.pop %v2590
        %v2592 = vmul.f32 %v2303, 1.442695
        %v2593 = vpow.pop %v2592
        %v2594 = vmul.f32 %v2304, 1.442695
        %v2595 = vpow.pop %v2594
        %v2596 = vmul.f32 %v2305, 1.442695
        %v2597 = vpow.pop %v2596
        %v2598 = vmul.f32 %v2306, 1.442695
        %v2599 = vpow.pop %v2598
        %v2600 = vmul.f32 %v2307, 1.442695
        %v2601 = vpow.pop %v2600
        %v2602 = vmul.f32 %v2308, 1.442695
        %v2603 = vpow.pop %v2602
        %v2604 = vmul.f32 %v2309, 1.442695
        %v2605 = vpow.pop %v2604
        %v2606 = vmul.f32 %v2310, 1.442695
        %v2607 = vpow.pop %v2606
        %v2608 = vmul.f32 %v2311, 1.442695
        %v2609 = vpow.pop %v2608
        %v2610 = vmul.f32 %v2312, 1.442695
        %v2611 = vpow.pop %v2610
        %v2612 = vmul.f32 %v2313, 1.442695
        %v2613 = vpow.pop %v2612
        %v2614 = vmul.f32 %v2314, 1.442695
        %v2615 = vpow.pop %v2614
        %v2616 = vmul.f32 %v2315, 1.442695
        %v2617 = vpow.pop %v2616
        %v2618 = vmul.f32 %v2316, 1.442695
        %v2619 = vpow.pop %v2618
        %v2620 = vmul.f32 %v2317, 1.442695
        %v2621 = vpow.pop %v2620
        %v2622 = vmul.f32 %v2318, 1.442695
        %v2623 = vpow.pop %v2622
        %v2624 = vmul.f32 %v2319, 1.442695
        %v2625 = vpow.pop %v2624
        %v2626 = vmul.f32 %v2320, 1.442695
        %v2627 = vpow.pop %v2626
        %v2628 = vmul.f32 %v2321, 1.442695
        %v2629 = vpow.pop %v2628
        %v2630 = vmul.f32 %v2322, 1.442695
        %v2631 = vpow.pop %v2630
        %v2632 = vmul.f32 %v2323, 1.442695
        %v2633 = vpow.pop %v2632
        %v2634 = vmul.f32 %v2324, 1.442695
        %v2635 = vpow.pop %v2634
        %v2636 = vmul.f32 %v2325, 1.442695
        %v2637 = vpow.pop %v2636
        %v2638 = vmul.f32 %v2326, 1.442695
        %v2639 = vpow.pop %v2638
        %v2640 = vmul.f32 %v2327, 1.442695
        %v2641 = vpow.pop %v2640
        %v2642 = vmul.f32 %v2328, 1.442695
        %v2643 = vpow.pop %v2642
        %v2644 = vmul.f32 %v2329, 1.442695
        %v2645 = vpow.pop %v2644
        %v2646 = vmul.f32 %v2330, 1.442695
        %v2647 = vpow.pop %v2646
        %v2648 = vmul.f32 %v2331, 1.442695
        %v2649 = vpow.pop %v2648
        %v2650 = vmul.f32 %v2332, 1.442695
        %v2651 = vpow.pop %v2650
        %v2652 = vmul.f32 %v2333, 1.442695
        %v2653 = vpow.pop %v2652
        %v2654 = vmul.f32 %v2334, 1.442695
        %v2655 = vpow.pop %v2654
        %v2656 = vmul.f32 %v2335, 1.442695
        %v2657 = vpow.pop %v2656
        %v2658 = vmul.f32 %v2336, 1.442695
        %v2659 = vpow.pop %v2658
        %v2660 = vmul.f32 %v2337, 1.442695
        %v2661 = vpow.pop %v2660
        %v2662 = vmul.f32 %v2338, 1.442695
        %v2663 = vpow.pop %v2662
        %v2664 = vmul.f32 %v2339, 1.442695
        %v2665 = vpow.pop %v2664
        %v2666 = vmul.f32 %v2340, 1.442695
        %v2667 = vpow.pop %v2666
        %v2668 = vmul.f32 %v2341, 1.442695
        %v2669 = vpow.pop %v2668
        %v2670 = vmul.f32 %v2342, 1.442695
        %v2671 = vpow.pop %v2670
        %v2672 = vmul.f32 %v2343, 1.442695
        %v2673 = vpow.pop %v2672
        %v2674 = vmul.f32 %v2344, 1.442695
        %v2675 = vpow.pop %v2674
        %v2676 = vmul.f32 %v2345, 1.442695
        %v2677 = vpow.pop %v2676
        %v2678 = vmul.f32 %v2346, 1.442695
        %v2679 = vpow.pop %v2678
        %v2680 = vmul.f32 %v2347, 1.442695
        %v2681 = vpow.pop %v2680
        %v2682 = vmul.f32 %v2348, 1.442695
        %v2683 = vpow.pop %v2682
        %v2684 = vmul.f32 %v2349, 1.442695
        %v2685 = vpow.pop %v2684
        %v2686 = vmul.f32 %v2350, 1.442695
        %v2687 = vpow.pop %v2686
        %v2688 = vmul.f32 %v2351, 1.442695
        %v2689 = vpow.pop %v2688
        %v2690 = vmul.f32 %v2352, 1.442695
        %v2691 = vpow.pop %v2690
        %v2692 = vmul.f32 %v2353, 1.442695
        %v2693 = vpow.pop %v2692
        %v2694 = vmul.f32 %v2354, 1.442695
        %v2695 = vpow.pop %v2694
        %v2696 = vmul.f32 %v2355, 1.442695
        %v2697 = vpow.pop %v2696
        %v2698 = vmul.f32 %v2356, 1.442695
        %v2699 = vpow.pop %v2698
        %v2700 = vmul.f32 %v2357, 1.442695
        %v2701 = vpow.pop %v2700
        %v2702 = vmul.f32 %v2358, 1.442695
        %v2703 = vpow.pop %v2702
        %v2704 = vmul.f32 %v2359, 1.442695
        %v2705 = vpow.pop %v2704
        %v2706 = vmul.f32 %v2360, 1.442695
        %v2707 = vpow.pop %v2706
        %v2708 = vmul.f32 %v2361, 1.442695
        %v2709 = vpow.pop %v2708
        %v2710 = vmul.f32 %v2362, 1.442695
        %v2711 = vpow.pop %v2710
        %v2712 = vmul.f32 %v2363, 1.442695
        %v2713 = vpow.pop %v2712
        %v2714 = vmul.f32 %v2364, 1.442695
        %v2715 = vpow.pop %v2714
        %v2716 = vmul.f32 %v2365, 1.442695
        %v2717 = vpow.pop %v2716
        %v2718 = vmul.f32 %v2366, 1.442695
        %v2719 = vpow.pop %v2718
        %v2720 = vmul.f32 %v2367, 1.442695
        %v2721 = vpow.pop %v2720
        %v2722 = vmul.f32 %v2368, 1.442695
        %v2723 = vpow.pop %v2722
        %v2724 = vmul.f32 %v2369, 1.442695
        %v2725 = vpow.pop %v2724
        %v2726 = vmul.f32 %v2370, 1.442695
        %v2727 = vpow.pop %v2726
        %v2728 = vmul.f32 %v2371, 1.442695
        %v2729 = vpow.pop %v2728
        %v2730 = vmul.f32 %v2372, 1.442695
        %v2731 = vpow.pop %v2730
        %v2732 = vmul.f32 %v2373, 1.442695
        %v2733 = vpow.pop %v2732
        %v2734 = vmul.f32 %v2374, 1.442695
        %v2735 = vpow.pop %v2734
        %v2736 = vmul.f32 %v2375, 1.442695
        %v2737 = vpow.pop %v2736
        %v2738 = vmul.f32 %v2376, 1.442695
        %v2739 = vpow.pop %v2738
        %v2740 = vmul.f32 %v2377, 1.442695
        %v2741 = vpow.pop %v2740
        %v2742 = vmul.f32 %v2378, 1.442695
        %v2743 = vpow.pop %v2742
        %v2744 = vmul.f32 %v2379, 1.442695
        %v2745 = vpow.pop %v2744
        %v2746 = vmul.f32 %v2380, 1.442695
        %v2747 = vpow.pop %v2746
        %v2748 = vmul.f32 %v2381, 1.442695
        %v2749 = vpow.pop %v2748
        %v2750 = vmul.f32 %v2382, 1.442695
        %v2751 = vpow.pop %v2750
        %v2752 = vmul.f32 %v2383, 1.442695
        %v2753 = vpow.pop %v2752
        %v2754 = vmul.f32 %v2384, 1.442695
        %v2755 = vpow.pop %v2754
        %v2756 = vmul.f32 %v2385, 1.442695
        %v2757 = vpow.pop %v2756
        %v2758 = vmul.f32 %v2386, 1.442695
        %v2759 = vpow.pop %v2758
        %v2760 = vmul.f32 %v2387, 1.442695
        %v2761 = vpow.pop %v2760
        %v2762 = vmul.f32 %v2388, 1.442695
        %v2763 = vpow.pop %v2762
        %v2764 = vmul.f32 %v2389, 1.442695
        %v2765 = vpow.pop %v2764
        %v2766 = vmul.f32 %v2390, 1.442695
        %v2767 = vpow.pop %v2766
        %v2768 = vmul.f32 %v2391, 1.442695
        %v2769 = vpow.pop %v2768
        %v2770 = vmul.f32 %v2392, 1.442695
        %v2771 = vpow.pop %v2770
        %v2772 = vmul.f32 %v2393, 1.442695
        %v2773 = vpow.pop %v2772
        %v2774 = vmul.f32 %v2394, 1.442695
        %v2775 = vpow.pop %v2774
        %v2776 = vmul.f32 %v2395, 1.442695
        %v2777 = vpow.pop %v2776
        %v2778 = vmul.f32 %v2396, 1.442695
        %v2779 = vpow.pop %v2778
        %v2780 = vmul.f32 %v2397, 1.442695
        %v2781 = vpow.pop %v2780
        %v2782 = vmul.f32 %v2398, 1.442695
        %v2783 = vpow.pop %v2782
        %v2784 = vmul.f32 %v2399, 1.442695
        %v2785 = vpow.pop %v2784
        %v2786 = vmul.f32 %v2400, 1.442695
        %v2787 = vpow.pop %v2786
        %v2788 = vmul.f32 %v2401, 1.442695
        %v2789 = vpow.pop %v2788
        %v2790 = vmul.f32 %v2402, 1.442695
        %v2791 = vpow.pop %v2790
        %v2792 = vmul.f32 %v2403, 1.442695
        %v2793 = vpow.pop %v2792
        %v2794 = vmul.f32 %v2404, 1.442695
        %v2795 = vpow.pop %v2794
        %v2796 = vmul.f32 %v2405, 1.442695
        %v2797 = vpow.pop %v2796
        %v2798 = vmul.f32 %v2406, 1.442695
        %v2799 = vpow.pop %v2798
        %v2800 = vmul.f32 %v2407, 1.442695
        %v2801 = vpow.pop %v2800
        %v2802 = vmul.f32 %v2408, 1.442695
        %v2803 = vpow.pop %v2802
        %v2804 = vmul.f32 %v2409, 1.442695
        %v2805 = vpow.pop %v2804
        %v2806 = vmul.f32 %v2410, 1.442695
        %v2807 = vpow.pop %v2806
        %v2808 = vmul.f32 %v2411, 1.442695
        %v2809 = vpow.pop %v2808
        %v2810 = vmul.f32 %v2412, 1.442695
        %v2811 = vpow.pop %v2810
        %v2812 = vmul.f32 %v2413, 1.442695
        %v2813 = vpow.pop %v2812
        %v2814 = vmul.f32 %v2414, 1.442695
        %v2815 = vpow.pop %v2814
        %v2816 = vmul.f32 %v2415, 1.442695
        %v2817 = vpow.pop %v2816
        %v2818 = vmul.f32 %v2416, 1.442695
        %v2819 = vpow.pop %v2818
        %v2820 = vmul.f32 %v2417, 1.442695
        %v2821 = vpow.pop %v2820
        %v2822 = vmul.f32 %v2418, 1.442695
        %v2823 = vpow.pop %v2822
        %v2824 = vmul.f32 %v2419, 1.442695
        %v2825 = vpow.pop %v2824
        %v2826 = vmul.f32 %v2420, 1.442695
        %v2827 = vpow.pop %v2826
        %v2828 = vmul.f32 %v2421, 1.442695
        %v2829 = vpow.pop %v2828
        %v2830 = vmul.f32 %v2422, 1.442695
        %v2831 = vpow.pop %v2830
        %v2832 = vmul.f32 %v2423, 1.442695
        %v2833 = vpow.pop %v2832
        %v2834 = vmul.f32 %v2424, 1.442695
        %v2835 = vpow.pop %v2834
        %v2836 = vmul.f32 %v2425, 1.442695
        %v2837 = vpow.pop %v2836
        %v2838 = vmul.f32 %v2426, 1.442695
        %v2839 = vpow.pop %v2838
        %v2840 = vmul.f32 %v2427, 1.442695
        %v2841 = vpow.pop %v2840
        %v2842 = vmul.f32 %v2428, 1.442695
        %v2843 = vpow.pop %v2842
        %v2844 = vmul.f32 %v2429, 1.442695
        %v2845 = vpow.pop %v2844
        %v2846 = vmul.f32 %v2430, 1.442695
        %v2847 = vpow.pop %v2846
        %v2848 = vmul.f32 %v2431, 1.442695
        %v2849 = vpow.pop %v2848
        %v2850 = vmul.f32 %v2432, 1.442695
        %v2851 = vpow.pop %v2850
        %v2852 = vmul.f32 %v2433, 1.442695
        %v2853 = vpow.pop %v2852
        %v2854 = vmul.f32 %v2434, 1.442695
        %v2855 = vpow.pop %v2854
        %v2856 = vmul.f32 %v2435, 1.442695
        %v2857 = vpow.pop %v2856
        %v2858 = vmul.f32 %v2436, 1.442695
        %v2859 = vpow.pop %v2858
        %v2860 = vmul.f32 %v2437, 1.442695
        %v2861 = vpow.pop %v2860
        %v2862 = vmul.f32 %v2438, 1.442695
        %v2863 = vpow.pop %v2862
        %v2864 = vmul.f32 %v2439, 1.442695
        %v2865 = vpow.pop %v2864
        %v2866 = vmul.f32 %v2440, 1.442695
        %v2867 = vpow.pop %v2866
        %v2868 = vmul.f32 %v2441, 1.442695
        %v2869 = vpow.pop %v2868
        %v2870 = vmul.f32 %v2442, 1.442695
        %v2871 = vpow.pop %v2870
        %v2872 = vmul.f32 %v2443, 1.442695
        %v2873 = vpow.pop %v2872
        %v2874 = vmul.f32 %v2444, 1.442695
        %v2875 = vpow.pop %v2874
        %v2876 = vmul.f32 %v2445, 1.442695
        %v2877 = vpow.pop %v2876
        %v2878 = vmul.f32 %v2446, 1.442695
        %v2879 = vpow.pop %v2878
        %v2880 = vmul.f32 %v2447, 1.442695
        %v2881 = vpow.pop %v2880
        %v2882 = vmul.f32 %v2448, 1.442695
        %v2883 = vpow.pop %v2882
        %v2884 = vmul.f32 %v2449, 1.442695
        %v2885 = vpow.pop %v2884
        %v2886 = vmul.f32 %v2450, 1.442695
        %v2887 = vpow.pop %v2886
        %v2888 = vmul.f32 %v2451, 1.442695
        %v2889 = vpow.pop %v2888
        %v2890 = vmul.f32 %v2452, 1.442695
        %v2891 = vpow.pop %v2890
        %v2892 = vmul.f32 %v2453, 1.442695
        %v2893 = vpow.pop %v2892
        %v2894 = vmul.f32 %v2454, 1.442695
        %v2895 = vpow.pop %v2894
        %v2896 = vmul.f32 %v2455, 1.442695
        %v2897 = vpow.pop %v2896
        %v2898 = vmul.f32 %v2456, 1.442695
        %v2899 = vpow.pop %v2898
        %v2900 = vmul.f32 %v2457, 1.442695
        %v2901 = vpow.pop %v2900
        %v2902 = vmul.f32 %v2458, 1.442695
        %v2903 = vpow.pop %v2902
        %v2904 = vmul.f32 %v2459, 1.442695
        %v2905 = vpow.pop %v2904
        %v2906 = vmul.f32 %v2460, 1.442695
        %v2907 = vpow.pop %v2906
        %v2908 = vmul.f32 %v2461, 1.442695
        %v2909 = vpow.pop %v2908
        %v2910 = vmul.f32 %v2462, 1.442695
        %v2911 = vpow.pop %v2910
        %v2912 = vmul.f32 %v2463, 1.442695
        %v2913 = vpow.pop %v2912
        %v2914 = vmul.f32 %v2464, 1.442695
        %v2915 = vpow.pop %v2914
        %v2916 = vmul.f32 %v2465, 1.442695
        %v2917 = vpow.pop %v2916
        %v2918 = vmul.f32 %v2466, 1.442695
        %v2919 = vpow.pop %v2918
        %v2920 = vmul.f32 %v2467, 1.442695
        %v2921 = vpow.pop %v2920
        %v2922 = vmul.f32 %v2468, 1.442695
        %v2923 = vpow.pop %v2922
        %v2924 = vmul.f32 %v2469, 1.442695
        %v2925 = vpow.pop %v2924
        %v2926 = vmul.f32 %v2470, 1.442695
        %v2927 = vpow.pop %v2926
        %v2928 = vmul.f32 %v2471, 1.442695
        %v2929 = vpow.pop %v2928
        %v2930 = vmul.f32 %v2472, 1.442695
        %v2931 = vpow.pop %v2930
        %v2932 = vmul.f32 %v2473, 1.442695
        %v2933 = vpow.pop %v2932
        %v2934 = vmul.f32 %v2474, 1.442695
        %v2935 = vpow.pop %v2934
        %v2936 = vmul.f32 %v2475, 1.442695
        %v2937 = vpow.pop %v2936
        %v2938 = vmul.f32 %v2476, 1.442695
        %v2939 = vpow.pop %v2938
        %v2940 = vmul.f32 %v2477, 1.442695
        %v2941 = vpow.pop %v2940
        %v2942 = vmul.f32 %v2478, 1.442695
        %v2943 = vpow.pop %v2942
        %v2944 = vmul.f32 %v2479, 1.442695
        %v2945 = vpow.pop %v2944
        %v2946 = vmul.f32 %v2480, 1.442695
        %v2947 = vpow.pop %v2946
        %v2948 = vmul.f32 %v2481, 1.442695
        %v2949 = vpow.pop %v2948
        %v2950 = vmul.f32 %v2482, 1.442695
        %v2951 = vpow.pop %v2950
        %v2952 = vmul.f32 %v2483, 1.442695
        %v2953 = vpow.pop %v2952
        %v2954 = vmul.f32 %v2484, 1.442695
        %v2955 = vpow.pop %v2954
        %v2956 = vmul.f32 %v2485, 1.442695
        %v2957 = vpow.pop %v2956
        %v2958 = vmul.f32 %v2486, 1.442695
        %v2959 = vpow.pop %v2958
        %v2960 = vmul.f32 %v2487, 1.442695
        %v2961 = vpow.pop %v2960
        %v2962 = vmul.f32 %v2488, 1.442695
        %v2963 = vpow.pop %v2962
        %v2964 = vmul.f32 %v2489, 1.442695
        %v2965 = vpow.pop %v2964
        %v2966 = vmul.f32 %v2490, 1.442695
        %v2967 = vpow.pop %v2966
        %v2968 = vmul.f32 %v2491, 1.442695
        %v2969 = vpow.pop %v2968
        %v2970 = vmul.f32 %v2492, 1.442695
        %v2971 = vpow.pop %v2970
        %v2972 = vmul.f32 %v2493, 1.442695
        %v2973 = vpow.pop %v2972
        %v2974 = vmul.f32 %v2494, 1.442695
        %v2975 = vpow.pop %v2974
        %v2976 = vmul.f32 %v2495, 1.442695
        %v2977 = vpow.pop %v2976
        %v2978 = vmul.f32 %v2496, 1.442695
        %v2979 = vpow.pop %v2978
        %v2980 = vmul.f32 %v2497, 1.442695
        %v2981 = vpow.pop %v2980
        %v2982 = vmul.f32 %v2498, 1.442695
        %v2983 = vpow.pop %v2982
        %v2984 = vmul.f32 %v2499, 1.442695
        %v2985 = vpow.pop %v2984
        %v2986 = vmul.f32 %v2500, 1.442695
        %v2987 = vpow.pop %v2986
        %v2988 = vmul.f32 %v2501, 1.442695
        %v2989 = vpow.pop %v2988
        %v2990 = vmul.f32 %v2502, 1.442695
        %v2991 = vpow.pop %v2990
        %v2992 = vmul.f32 %v2503, 1.442695
        %v2993 = vpow.pop %v2992
        %v2994 = vmul.f32 %v2504, 1.442695
        %v2995 = vpow.pop %v2994
        %v2996 = vmul.f32 %v2505, 1.442695
        %v2997 = vpow.pop %v2996
        %v2998 = vmul.f32 %v2506, 1.442695
        %v2999 = vpow.pop %v2998
        %v3000 = vmul.f32 %v2507, 1.442695
        %v3001 = vpow.pop %v3000
        %v3002 = vmul.f32 %v2508, 1.442695
        %v3003 = vpow.pop %v3002
        %v3004 = vmul.f32 %v2509, 1.442695
        %v3005 = vpow.pop %v3004
        %v3006 = vmul.f32 %v2510, 1.442695
        %v3007 = vpow.pop %v3006
        %v3008 = vmul.f32 %v2511, 1.442695
        %v3009 = vpow.pop %v3008
        %v3010 = vmul.f32 %v2512, 1.442695
        %v3011 = vpow.pop %v3010
        %v3012 = vmul.f32 %v2513, 1.442695
        %v3013 = vpow.pop %v3012
        %v3014 = vmul.f32 %v2514, 1.442695
        %v3015 = vpow.pop %v3014
        %v3016 = vmul.f32 %v2515, 1.442695
        %v3017 = vpow.pop %v3016
        %v3018 = vmul.f32 %v2516, 1.442695
        %v3019 = vpow.pop %v3018
        %v3020 = vmul.f32 %v2517, 1.442695
        %v3021 = vpow.pop %v3020
        %v3022 = vmul.f32 %v2518, 1.442695
        %v3023 = vpow.pop %v3022
        %v3024 = vmul.f32 %v2519, 1.442695
        %v3025 = vpow.pop %v3024
        %v3026 = vmul.f32 %v2520, 1.442695
        %v3027 = vpow.pop %v3026
        %v3028 = vmul.f32 %v2521, 1.442695
        %v3029 = vpow.pop %v3028
        %v3030 = vmul.f32 %v2522, 1.442695
        %v3031 = vpow.pop %v3030
        %v3032 = vmul.f32 %v2523, 1.442695
        %v3033 = vpow.pop %v3032
        %v3034 = vmul.f32 %v2524, 1.442695
        %v3035 = vpow.pop %v3034
        %v3036 = vmul.f32 %v2525, 1.442695
        %v3037 = vpow.pop %v3036
        %3038 = vmatprep.subr.mxu0 %v2649
        %3039 = vmatpush1.xpose.msra.mxu0 %v2647
        %3040 = vmatprep.subr.mxu0 %v2641
        %3041 = vmatpush1.xpose.msra.mxu0 %v2639
        %3042 = vmatprep.subr.mxu0 %v2633
        %3043 = vmatpush1.xpose.msra.mxu0 %v2631
        %3044 = vmatprep.subr.mxu0 %v2625
        %3045 = vmatpush1.xpose.msra.mxu0 %v2623
        %3046 = vmatprep.subr.mxu0 %v2617
        %3047 = vmatpush1.xpose.msra.mxu0 %v2615
        %3048 = vmatprep.subr.mxu0 %v2609
        %3049 = vmatpush1.xpose.msra.mxu0 %v2607
        %3050 = vmatprep.subr.mxu0 %v2601
        %3051 = vmatpush1.xpose.msra.mxu0 %v2599
        %3052 = vmatprep.subr.mxu0 %v2593
        %3053 = vmatpush1.xpose.msra.mxu0 %v2591
        %3054 = vmatprep.subr.mxu0 %v2585
        %3055 = vmatpush1.xpose.msra.mxu0 %v2583
        %3056 = vmatprep.subr.mxu0 %v2577
        %3057 = vmatpush1.xpose.msra.mxu0 %v2575
        %3058 = vmatprep.subr.mxu0 %v2569
        %3059 = vmatpush1.xpose.msra.mxu0 %v2567
        %3060 = vmatprep.subr.mxu0 %v2561
        %3061 = vmatpush1.xpose.msra.mxu0 %v2559
        %3062 = vmatprep.subr.mxu0 %v2553
        %3063 = vmatpush1.xpose.msra.mxu0 %v2551
        %3064 = vmatprep.subr.mxu0 %v2545
        %3065 = vmatpush1.xpose.msra.mxu0 %v2543
        %3066 = vmatprep.subr.mxu0 %v2537
        %3067 = vmatpush1.xpose.msra.mxu0 %v2535
        %3068 = vmatprep.subr.mxu0 %v2529
        %3069 = vmatpush1.xpose.msra.mxu0 %v2527
        %3070 = vmatprep.subr.mxu0 %v2777
        %3071 = vmatpush2.xpose.msra.mxu0 %v2775
        %3072 = vmatprep.subr.mxu0 %v2769
        %3073 = vmatpush2.xpose.msra.mxu0 %v2767
        %3074 = vmatprep.subr.mxu0 %v2761
        %3075 = vmatpush2.xpose.msra.mxu0 %v2759
        %3076 = vmatprep.subr.mxu0 %v2753
        %3077 = vmatpush2.xpose.msra.mxu0 %v2751
        %3078 = vmatprep.subr.mxu0 %v2745
        %3079 = vmatpush2.xpose.msra.mxu0 %v2743
        %3080 = vmatprep.subr.mxu0 %v2737
        %3081 = vmatpush2.xpose.msra.mxu0 %v2735
        %3082 = vmatprep.subr.mxu0 %v2729
        %3083 = vmatpush2.xpose.msra.mxu0 %v2727
        %3084 = vmatprep.subr.mxu0 %v2721
        %3085 = vmatpush2.xpose.msra.mxu0 %v2719
        %3086 = vmatprep.subr.mxu0 %v2713
        %3087 = vmatpush2.xpose.msra.mxu0 %v2711
        %3088 = vmatprep.subr.mxu0 %v2705
        %3089 = vmatpush2.xpose.msra.mxu0 %v2703
        %3090 = vmatprep.subr.mxu0 %v2697
        %3091 = vmatpush2.xpose.msra.mxu0 %v2695
        %3092 = vmatprep.subr.mxu0 %v2689
        %3093 = vmatpush2.xpose.msra.mxu0 %v2687
        %3094 = vmatprep.subr.mxu0 %v2681
        %3095 = vmatpush2.xpose.msra.mxu0 %v2679
        %3096 = vmatprep.subr.mxu0 %v2673
        %3097 = vmatpush2.xpose.msra.mxu0 %v2671
        %3098 = vmatprep.subr.mxu0 %v2665
        %3099 = vmatpush2.xpose.msra.mxu0 %v2663
        %3100 = vmatprep.subr.mxu0 %v2657
        %3101 = vmatpush2.xpose.msra.mxu0 %v2655
        %3102 = vmatprep.mubr.f32.mxu0 %v610
        %3103 = vmatmul.mubr.f32.gmra.mxu0 %v608
        %v3104 = vpop.f32.mrf.mxu0
        %v3105 = vadd.f32 0.0, %v3104
        %v3106 = vpop.f32.mrf.mxu0
        %v3107 = vadd.f32 0.0, %v3106
        %3108 = vmatprep.mubr.f32.mxu0 1.0
        %3109 = vmatmul.mubr.f32.gmra.mxu0 1.0
        %v3110 = vpop.f32.mrf.mxu0
        %v3111 = vadd.f32 0.0, %v3110
        %v3112 = vpop.f32.mrf.mxu0
        %v3113 = vadd.f32 0.0, %v3112
        %3114 = vdwg.mxu0
        %3115 = vmatprep.subr.mxu0 %v2653
        %3116 = vmatpush1.xpose.msra.mxu0 %v2651
        %3117 = vmatprep.subr.mxu0 %v2645
        %3118 = vmatpush1.xpose.msra.mxu0 %v2643
        %3119 = vmatprep.subr.mxu0 %v2637
        %3120 = vmatpush1.xpose.msra.mxu0 %v2635
        %3121 = vmatprep.subr.mxu0 %v2629
        %3122 = vmatpush1.xpose.msra.mxu0 %v2627
        %3123 = vmatprep.subr.mxu0 %v2621
        %3124 = vmatpush1.xpose.msra.mxu0 %v2619
        %3125 = vmatprep.subr.mxu0 %v2613
        %3126 = vmatpush1.xpose.msra.mxu0 %v2611
        %3127 = vmatprep.subr.mxu0 %v2605
        %3128 = vmatpush1.xpose.msra.mxu0 %v2603
        %3129 = vmatprep.subr.mxu0 %v2597
        %3130 = vmatpush1.xpose.msra.mxu0 %v2595
        %3131 = vmatprep.subr.mxu0 %v2589
        %3132 = vmatpush1.xpose.msra.mxu0 %v2587
        %3133 = vmatprep.subr.mxu0 %v2581
        %3134 = vmatpush1.xpose.msra.mxu0 %v2579
        %3135 = vmatprep.subr.mxu0 %v2573
        %3136 = vmatpush1.xpose.msra.mxu0 %v2571
        %3137 = vmatprep.subr.mxu0 %v2565
        %3138 = vmatpush1.xpose.msra.mxu0 %v2563
        %3139 = vmatprep.subr.mxu0 %v2557
        %3140 = vmatpush1.xpose.msra.mxu0 %v2555
        %3141 = vmatprep.subr.mxu0 %v2549
        %3142 = vmatpush1.xpose.msra.mxu0 %v2547
        %3143 = vmatprep.subr.mxu0 %v2541
        %3144 = vmatpush1.xpose.msra.mxu0 %v2539
        %3145 = vmatprep.subr.mxu0 %v2533
        %3146 = vmatpush1.xpose.msra.mxu0 %v2531
        %3147 = vmatprep.subr.mxu0 %v2781
        %3148 = vmatpush2.xpose.msra.mxu0 %v2779
        %3149 = vmatprep.subr.mxu0 %v2773
        %3150 = vmatpush2.xpose.msra.mxu0 %v2771
        %3151 = vmatprep.subr.mxu0 %v2765
        %3152 = vmatpush2.xpose.msra.mxu0 %v2763
        %3153 = vmatprep.subr.mxu0 %v2757
        %3154 = vmatpush2.xpose.msra.mxu0 %v2755
        %3155 = vmatprep.subr.mxu0 %v2749
        %3156 = vmatpush2.xpose.msra.mxu0 %v2747
        %3157 = vmatprep.subr.mxu0 %v2741
        %3158 = vmatpush2.xpose.msra.mxu0 %v2739
        %3159 = vmatprep.subr.mxu0 %v2733
        %3160 = vmatpush2.xpose.msra.mxu0 %v2731
        %3161 = vmatprep.subr.mxu0 %v2725
        %3162 = vmatpush2.xpose.msra.mxu0 %v2723
        %3163 = vmatprep.subr.mxu0 %v2717
        %3164 = vmatpush2.xpose.msra.mxu0 %v2715
        %3165 = vmatprep.subr.mxu0 %v2709
        %3166 = vmatpush2.xpose.msra.mxu0 %v2707
        %3167 = vmatprep.subr.mxu0 %v2701
        %3168 = vmatpush2.xpose.msra.mxu0 %v2699
        %3169 = vmatprep.subr.mxu0 %v2693
        %3170 = vmatpush2.xpose.msra.mxu0 %v2691
        %3171 = vmatprep.subr.mxu0 %v2685
        %3172 = vmatpush2.xpose.msra.mxu0 %v2683
        %3173 = vmatprep.subr.mxu0 %v2677
        %3174 = vmatpush2.xpose.msra.mxu0 %v2675
        %3175 = vmatprep.subr.mxu0 %v2669
        %3176 = vmatpush2.xpose.msra.mxu0 %v2667
        %3177 = vmatprep.subr.mxu0 %v2661
        %3178 = vmatpush2.xpose.msra.mxu0 %v2659
        %3179 = vmatprep.mubr.f32.mxu0 %v711
        %3180 = vmatmul.mubr.f32.gmra.mxu0 %v709
        %v3181 = vpop.f32.mrf.mxu0
        %v3182 = vadd.f32 %v3105, %v3181
        %v3183 = vpop.f32.mrf.mxu0
        %v3184 = vadd.f32 %v3107, %v3183
        %3185 = vmatprep.mubr.f32.mxu0 1.0
        %3186 = vmatmul.mubr.f32.gmra.mxu0 1.0
        %v3187 = vpop.f32.mrf.mxu0
        %v3188 = vadd.f32 %v3111, %v3187
        %v3189 = vpop.f32.mrf.mxu0
        %v3190 = vadd.f32 %v3113, %v3189
        %3191 = vdwg.mxu0
        %3192 = vmatprep.subr.mxu0 %v2905
        %3193 = vmatpush1.xpose.msra.mxu0 %v2903
        %3194 = vmatprep.subr.mxu0 %v2897
        %3195 = vmatpush1.xpose.msra.mxu0 %v2895
        %3196 = vmatprep.subr.mxu0 %v2889
        %3197 = vmatpush1.xpose.msra.mxu0 %v2887
        %3198 = vmatprep.subr.mxu0 %v2881
        %3199 = vmatpush1.xpose.msra.mxu0 %v2879
        %3200 = vmatprep.subr.mxu0 %v2873
        %3201 = vmatpush1.xpose.msra.mxu0 %v2871
        %3202 = vmatprep.subr.mxu0 %v2865
        %3203 = vmatpush1.xpose.msra.mxu0 %v2863
        %3204 = vmatprep.subr.mxu0 %v2857
        %3205 = vmatpush1.xpose.msra.mxu0 %v2855
        %3206 = vmatprep.subr.mxu0 %v2849
        %3207 = vmatpush1.xpose.msra.mxu0 %v2847
        %3208 = vmatprep.subr.mxu0 %v2841
        %3209 = vmatpush1.xpose.msra.mxu0 %v2839
        %3210 = vmatprep.subr.mxu0 %v2833
        %3211 = vmatpush1.xpose.msra.mxu0 %v2831
        %3212 = vmatprep.subr.mxu0 %v2825
        %3213 = vmatpush1.xpose.msra.mxu0 %v2823
        %3214 = vmatprep.subr.mxu0 %v2817
        %3215 = vmatpush1.xpose.msra.mxu0 %v2815
        %3216 = vmatprep.subr.mxu0 %v2809
        %3217 = vmatpush1.xpose.msra.mxu0 %v2807
        %3218 = vmatprep.subr.mxu0 %v2801
        %3219 = vmatpush1.xpose.msra.mxu0 %v2799
        %3220 = vmatprep.subr.mxu0 %v2793
        %3221 = vmatpush1.xpose.msra.mxu0 %v2791
        %3222 = vmatprep.subr.mxu0 %v2785
        %3223 = vmatpush1.xpose.msra.mxu0 %v2783
        %3224 = vmatprep.subr.mxu0 %v3033
        %3225 = vmatpush2.xpose.msra.mxu0 %v3031
        %3226 = vmatprep.subr.mxu0 %v3025
        %3227 = vmatpush2.xpose.msra.mxu0 %v3023
        %3228 = vmatprep.subr.mxu0 %v3017
        %3229 = vmatpush2.xpose.msra.mxu0 %v3015
        %3230 = vmatprep.subr.mxu0 %v3009
        %3231 = vmatpush2.xpose.msra.mxu0 %v3007
        %3232 = vmatprep.subr.mxu0 %v3001
        %3233 = vmatpush2.xpose.msra.mxu0 %v2999
        %3234 = vmatprep.subr.mxu0 %v2993
        %3235 = vmatpush2.xpose.msra.mxu0 %v2991
        %3236 = vmatprep.subr.mxu0 %v2985
        %3237 = vmatpush2.xpose.msra.mxu0 %v2983
        %3238 = vmatprep.subr.mxu0 %v2977
        %3239 = vmatpush2.xpose.msra.mxu0 %v2975
        %3240 = vmatprep.subr.mxu0 %v2969
        %3241 = vmatpush2.xpose.msra.mxu0 %v2967
        %3242 = vmatprep.subr.mxu0 %v2961
        %3243 = vmatpush2.xpose.msra.mxu0 %v2959
        %3244 = vmatprep.subr.mxu0 %v2953
        %3245 = vmatpush2.xpose.msra.mxu0 %v2951
        %3246 = vmatprep.subr.mxu0 %v2945
        %3247 = vmatpush2.xpose.msra.mxu0 %v2943
        %3248 = vmatprep.subr.mxu0 %v2937
        %3249 = vmatpush2.xpose.msra.mxu0 %v2935
        %3250 = vmatprep.subr.mxu0 %v2929
        %3251 = vmatpush2.xpose.msra.mxu0 %v2927
        %3252 = vmatprep.subr.mxu0 %v2921
        %3253 = vmatpush2.xpose.msra.mxu0 %v2919
        %3254 = vmatprep.subr.mxu0 %v2913
        %3255 = vmatpush2.xpose.msra.mxu0 %v2911
        %3256 = vmatprep.mubr.f32.mxu0 %v610
        %3257 = vmatmul.mubr.f32.gmra.mxu0 %v608
        %v3258 = vpop.f32.mrf.mxu0
        %v3259 = vadd.f32 0.0, %v3258
        %v3260 = vpop.f32.mrf.mxu0
        %v3261 = vadd.f32 0.0, %v3260
        %3262 = vmatprep.mubr.f32.mxu0 1.0
        %3263 = vmatmul.mubr.f32.gmra.mxu0 1.0
        %v3264 = vpop.f32.mrf.mxu0
        %v3265 = vadd.f32 0.0, %v3264
        %v3266 = vpop.f32.mrf.mxu0
        %v3267 = vadd.f32 0.0, %v3266
        %3268 = vdwg.mxu0
        %3269 = vmatprep.subr.mxu0 %v2909
        %3270 = vmatpush1.xpose.msra.mxu0 %v2907
        %3271 = vmatprep.subr.mxu0 %v2901
        %3272 = vmatpush1.xpose.msra.mxu0 %v2899
        %3273 = vmatprep.subr.mxu0 %v2893
        %3274 = vmatpush1.xpose.msra.mxu0 %v2891
        %3275 = vmatprep.subr.mxu0 %v2885
        %3276 = vmatpush1.xpose.msra.mxu0 %v2883
        %3277 = vmatprep.subr.mxu0 %v2877
        %3278 = vmatpush1.xpose.msra.mxu0 %v2875
        %3279 = vmatprep.subr.mxu0 %v2869
        %3280 = vmatpush1.xpose.msra.mxu0 %v2867
        %3281 = vmatprep.subr.mxu0 %v2861
        %3282 = vmatpush1.xpose.msra.mxu0 %v2859
        %3283 = vmatprep.subr.mxu0 %v2853
        %3284 = vmatpush1.xpose.msra.mxu0 %v2851
        %3285 = vmatprep.subr.mxu0 %v2845
        %3286 = vmatpush1.xpose.msra.mxu0 %v2843
        %3287 = vmatprep.subr.mxu0 %v2837
        %3288 = vmatpush1.xpose.msra.mxu0 %v2835
        %3289 = vmatprep.subr.mxu0 %v2829
        %3290 = vmatpush1.xpose.msra.mxu0 %v2827
        %3291 = vmatprep.subr.mxu0 %v2821
        %3292 = vmatpush1.xpose.msra.mxu0 %v2819
        %3293 = vmatprep.subr.mxu0 %v2813
        %3294 = vmatpush1.xpose.msra.mxu0 %v2811
        %3295 = vmatprep.subr.mxu0 %v2805
        %3296 = vmatpush1.xpose.msra.mxu0 %v2803
        %3297 = vmatprep.subr.mxu0 %v2797
        %3298 = vmatpush1.xpose.msra.mxu0 %v2795
        %3299 = vmatprep.subr.mxu0 %v2789
        %3300 = vmatpush1.xpose.msra.mxu0 %v2787
        %3301 = vmatprep.subr.mxu0 %v3037
        %3302 = vmatpush2.xpose.msra.mxu0 %v3035
        %3303 = vmatprep.subr.mxu0 %v3029
        %3304 = vmatpush2.xpose.msra.mxu0 %v3027
        %3305 = vmatprep.subr.mxu0 %v3021
        %3306 = vmatpush2.xpose.msra.mxu0 %v3019
        %3307 = vmatprep.subr.mxu0 %v3013
        %3308 = vmatpush2.xpose.msra.mxu0 %v3011
        %3309 = vmatprep.subr.mxu0 %v3005
        %3310 = vmatpush2.xpose.msra.mxu0 %v3003
        %3311 = vmatprep.subr.mxu0 %v2997
        %3312 = vmatpush2.xpose.msra.mxu0 %v2995
        %3313 = vmatprep.subr.mxu0 %v2989
        %3314 = vmatpush2.xpose.msra.mxu0 %v2987
        %3315 = vmatprep.subr.mxu0 %v2981
        %3316 = vmatpush2.xpose.msra.mxu0 %v2979
        %3317 = vmatprep.subr.mxu0 %v2973
        %3318 = vmatpush2.xpose.msra.mxu0 %v2971
        %3319 = vmatprep.subr.mxu0 %v2965
        %3320 = vmatpush2.xpose.msra.mxu0 %v2963
        %3321 = vmatprep.subr.mxu0 %v2957
        %3322 = vmatpush2.xpose.msra.mxu0 %v2955
        %3323 = vmatprep.subr.mxu0 %v2949
        %3324 = vmatpush2.xpose.msra.mxu0 %v2947
        %3325 = vmatprep.subr.mxu0 %v2941
        %3326 = vmatpush2.xpose.msra.mxu0 %v2939
        %3327 = vmatprep.subr.mxu0 %v2933
        %3328 = vmatpush2.xpose.msra.mxu0 %v2931
        %3329 = vmatprep.subr.mxu0 %v2925
        %3330 = vmatpush2.xpose.msra.mxu0 %v2923
        %3331 = vmatprep.subr.mxu0 %v2917
        %3332 = vmatpush2.xpose.msra.mxu0 %v2915
        %3333 = vmatprep.mubr.f32.mxu0 %v711
        %3334 = vmatmul.mubr.f32.gmra.mxu0 %v709
        %v3335 = vpop.f32.mrf.mxu0
        %v3336 = vadd.f32 %v3259, %v3335
        %v3337 = vpop.f32.mrf.mxu0
        %v3338 = vadd.f32 %v3261, %v3337
        %3339 = vmatprep.mubr.f32.mxu0 1.0
        %3340 = vmatmul.mubr.f32.gmra.mxu0 1.0
        %v3341 = vpop.f32.mrf.mxu0
        %v3342 = vadd.f32 %v3265, %v3341
        %v3343 = vpop.f32.mrf.mxu0
        %v3344 = vadd.f32 %v3267, %v3343
        %3345 = vdwg.mxu0
        %v3346 = vrcp.pop %v3188
        %v3347 = vrcp.pop %v3190
        %v3348 = vrcp.pop %v3342
        %v3349 = vrcp.pop %v3344
        %v3350 = vlaneseq
        %v3351 = vshrl.u32 %v3350, 7
        %v3352 = vsub.s32 0, %v3351
        %v3353 = vrot.slane %v3346, %v3352
        %v3354 = vlaneseq
        %v3355 = vshrl.u32 %v3354, 7
        %v3356 = vsub.s32 0, %v3355
        %v3357 = vrot.slane %v3347, %v3356
        %v3358 = vlaneseq
        %v3359 = vshrl.u32 %v3358, 7
        %v3360 = vsub.s32 0, %v3359
        %v3361 = vrot.slane %v3348, %v3360
        %v3362 = vlaneseq
        %v3363 = vshrl.u32 %v3362, 7
        %v3364 = vsub.s32 0, %v3363
        %v3365 = vrot.slane %v3349, %v3364
        %v3366 = vmul.f32 %v3182, %v3353
        %v3367 = vmul.f32 %v3184, %v3357
        %v3368 = vmul.f32 %v3336, %v3361
        %v3369 = vmul.f32 %v3338, %v3365
        %3370 = vxpose.xlu0.b32.start [1/16] %v614, 128
        %3371 = vxpose.xlu0.b32.cont [2/16] 0.0, 128
        %3372 = vxpose.xlu0.b32.cont [3/16] 0.0, 128
        %3373 = vxpose.xlu0.b32.cont [4/16] 0.0, 128
        %3374 = vxpose.xlu0.b32.cont [5/16] 0.0, 128
        %3375 = vxpose.xlu0.b32.cont [6/16] 0.0, 128
        %3376 = vxpose.xlu0.b32.cont [7/16] 0.0, 128
        %3377 = vxpose.xlu0.b32.cont [8/16] 0.0, 128
        %3378 = vxpose.xlu0.b32.cont [9/16] 0.0, 128
        %3379 = vxpose.xlu0.b32.cont [10/16] 0.0, 128
        %3380 = vxpose.xlu0.b32.cont [11/16] 0.0, 128
        %3381 = vxpose.xlu0.b32.cont [12/16] 0.0, 128
        %3382 = vxpose.xlu0.b32.cont [13/16] 0.0, 128
        %3383 = vxpose.xlu0.b32.cont [14/16] 0.0, 128
        %3384 = vxpose.xlu0.b32.cont [15/16] 0.0, 128
        %3385 = vxpose.xlu0.b32.end [16/16] 0.0, 128
        %v3386 = vpop.trf.xlu0
        %v3387 = vpop.trf.xlu0
        %v3388 = vpop.trf.xlu0
        %v3389 = vpop.trf.xlu0
        %v3390 = vpop.trf.xlu0
        %v3391 = vpop.trf.xlu0
        %v3392 = vpop.trf.xlu0
        %v3393 = vpop.trf.xlu0
        %v3394 = vpop.trf.xlu0
        %v3395 = vpop.trf.xlu0
        %v3396 = vpop.trf.xlu0
        %v3397 = vpop.trf.xlu0
        %v3398 = vpop.trf.xlu0
        %v3399 = vpop.trf.xlu0
        %v3400 = vpop.trf.xlu0
        %v3401 = vpop.trf.xlu0
        %3402 = vxpose.xlu0.b32.start [1/16] %v616, 128
        %3403 = vxpose.xlu0.b32.cont [2/16] 0.0, 128
        %3404 = vxpose.xlu0.b32.cont [3/16] 0.0, 128
        %3405 = vxpose.xlu0.b32.cont [4/16] 0.0, 128
        %3406 = vxpose.xlu0.b32.cont [5/16] 0.0, 128
        %3407 = vxpose.xlu0.b32.cont [6/16] 0.0, 128
        %3408 = vxpose.xlu0.b32.cont [7/16] 0.0, 128
        %3409 = vxpose.xlu0.b32.cont [8/16] 0.0, 128
        %3410 = vxpose.xlu0.b32.cont [9/16] 0.0, 128
        %3411 = vxpose.xlu0.b32.cont [10/16] 0.0, 128
        %3412 = vxpose.xlu0.b32.cont [11/16] 0.0, 128
        %3413 = vxpose.xlu0.b32.cont [12/16] 0.0, 128
        %3414 = vxpose.xlu0.b32.cont [13/16] 0.0, 128
        %3415 = vxpose.xlu0.b32.cont [14/16] 0.0, 128
        %3416 = vxpose.xlu0.b32.cont [15/16] 0.0, 128
        %3417 = vxpose.xlu0.b32.end [16/16] 0.0, 128
        %v3418 = vpop.trf.xlu0
        %v3419 = vpop.trf.xlu0
        %v3420 = vpop.trf.xlu0
        %v3421 = vpop.trf.xlu0
        %v3422 = vpop.trf.xlu0
        %v3423 = vpop.trf.xlu0
        %v3424 = vpop.trf.xlu0
        %v3425 = vpop.trf.xlu0
        %v3426 = vpop.trf.xlu0
        %v3427 = vpop.trf.xlu0
        %v3428 = vpop.trf.xlu0
        %v3429 = vpop.trf.xlu0
        %v3430 = vpop.trf.xlu0
        %v3431 = vpop.trf.xlu0
        %v3432 = vpop.trf.xlu0
        %v3433 = vpop.trf.xlu0
        %3434 = vxpose.xlu0.b32.start [1/16] %v715, 128
        %3435 = vxpose.xlu0.b32.cont [2/16] 0.0, 128
        %3436 = vxpose.xlu0.b32.cont [3/16] 0.0, 128
        %3437 = vxpose.xlu0.b32.cont [4/16] 0.0, 128
        %3438 = vxpose.xlu0.b32.cont [5/16] 0.0, 128
        %3439 = vxpose.xlu0.b32.cont [6/16] 0.0, 128
        %3440 = vxpose.xlu0.b32.cont [7/16] 0.0, 128
        %3441 = vxpose.xlu0.b32.cont [8/16] 0.0, 128
        %3442 = vxpose.xlu0.b32.cont [9/16] 0.0, 128
        %3443 = vxpose.xlu0.b32.cont [10/16] 0.0, 128
        %3444 = vxpose.xlu0.b32.cont [11/16] 0.0, 128
        %3445 = vxpose.xlu0.b32.cont [12/16] 0.0, 128
        %3446 = vxpose.xlu0.b32.cont [13/16] 0.0, 128
        %3447 = vxpose.xlu0.b32.cont [14/16] 0.0, 128
        %3448 = vxpose.xlu0.b32.cont [15/16] 0.0, 128
        %3449 = vxpose.xlu0.b32.end [16/16] 0.0, 128
        %v3450 = vpop.trf.xlu0
        %v3451 = vpop.trf.xlu0
        %v3452 = vpop.trf.xlu0
        %v3453 = vpop.trf.xlu0
        %v3454 = vpop.trf.xlu0
        %v3455 = vpop.trf.xlu0
        %v3456 = vpop.trf.xlu0
        %v3457 = vpop.trf.xlu0
        %v3458 = vpop.trf.xlu0
        %v3459 = vpop.trf.xlu0
        %v3460 = vpop.trf.xlu0
        %v3461 = vpop.trf.xlu0
        %v3462 = vpop.trf.xlu0
        %v3463 = vpop.trf.xlu0
        %v3464 = vpop.trf.xlu0
        %v3465 = vpop.trf.xlu0
        %3466 = vxpose.xlu0.b32.start [1/16] %v717, 128
        %3467 = vxpose.xlu0.b32.cont [2/16] 0.0, 128
        %3468 = vxpose.xlu0.b32.cont [3/16] 0.0, 128
        %3469 = vxpose.xlu0.b32.cont [4/16] 0.0, 128
        %3470 = vxpose.xlu0.b32.cont [5/16] 0.0, 128
        %3471 = vxpose.xlu0.b32.cont [6/16] 0.0, 128
        %3472 = vxpose.xlu0.b32.cont [7/16] 0.0, 128
        %3473 = vxpose.xlu0.b32.cont [8/16] 0.0, 128
        %3474 = vxpose.xlu0.b32.cont [9/16] 0.0, 128
        %3475 = vxpose.xlu0.b32.cont [10/16] 0.0, 128
        %3476 = vxpose.xlu0.b32.cont [11/16] 0.0, 128
        %3477 = vxpose.xlu0.b32.cont [12/16] 0.0, 128
        %3478 = vxpose.xlu0.b32.cont [13/16] 0.0, 128
        %3479 = vxpose.xlu0.b32.cont [14/16] 0.0, 128
        %3480 = vxpose.xlu0.b32.cont [15/16] 0.0, 128
        %3481 = vxpose.xlu0.b32.end [16/16] 0.0, 128
        %v3482 = vpop.trf.xlu0
        %v3483 = vpop.trf.xlu0
        %v3484 = vpop.trf.xlu0
        %v3485 = vpop.trf.xlu0
        %v3486 = vpop.trf.xlu0
        %v3487 = vpop.trf.xlu0
        %v3488 = vpop.trf.xlu0
        %v3489 = vpop.trf.xlu0
        %v3490 = vpop.trf.xlu0
        %v3491 = vpop.trf.xlu0
        %v3492 = vpop.trf.xlu0
        %v3493 = vpop.trf.xlu0
        %v3494 = vpop.trf.xlu0
        %v3495 = vpop.trf.xlu0
        %v3496 = vpop.trf.xlu0
        %v3497 = vpop.trf.xlu0
        %v3499 = vsel %vm859, %v3386, 0
        %v3502 = vsel %vm859, %v3387, 0
        %v3505 = vsel %vm859, %v3388, 0
        %v3508 = vsel %vm859, %v3389, 0
        %v3511 = vsel %vm859, %v3390, 0
        %v3514 = vsel %vm859, %v3391, 0
        %v3517 = vsel %vm859, %v3392, 0
        %v3520 = vsel %vm859, %v3393, 0
        %v3523 = vsel %vm859, %v3394, 0
        %v3526 = vsel %vm859, %v3395, 0
        %v3529 = vsel %vm859, %v3396, 0
        %v3532 = vsel %vm859, %v3397, 0
        %v3535 = vsel %vm859, %v3398, 0
        %v3538 = vsel %vm859, %v3399, 0
        %v3541 = vsel %vm859, %v3400, 0
        %v3544 = vsel %vm859, %v3401, 0
        %v3547 = vsel %vm859, %v3418, 0
        %v3550 = vsel %vm859, %v3419, 0
        %v3553 = vsel %vm859, %v3420, 0
        %v3556 = vsel %vm859, %v3421, 0
        %v3559 = vsel %vm859, %v3422, 0
        %v3562 = vsel %vm859, %v3423, 0
        %v3565 = vsel %vm859, %v3424, 0
        %v3568 = vsel %vm859, %v3425, 0
        %v3571 = vsel %vm859, %v3426, 0
        %v3574 = vsel %vm859, %v3427, 0
        %v3577 = vsel %vm859, %v3428, 0
        %v3580 = vsel %vm859, %v3429, 0
        %v3583 = vsel %vm859, %v3430, 0
        %v3586 = vsel %vm859, %v3431, 0
        %v3589 = vsel %vm859, %v3432, 0
        %v3592 = vsel %vm859, %v3433, 0
        %v3595 = vsel %vm859, %v3450, 0
        %v3598 = vsel %vm859, %v3451, 0
        %v3601 = vsel %vm859, %v3452, 0
        %v3604 = vsel %vm859, %v3453, 0
        %v3607 = vsel %vm859, %v3454, 0
        %v3610 = vsel %vm859, %v3455, 0
        %v3613 = vsel %vm859, %v3456, 0
        %v3616 = vsel %vm859, %v3457, 0
        %v3619 = vsel %vm859, %v3458, 0
        %v3622 = vsel %vm859, %v3459, 0
        %v3625 = vsel %vm859, %v3460, 0
        %v3628 = vsel %vm859, %v3461, 0
        %v3631 = vsel %vm859, %v3462, 0
        %v3634 = vsel %vm859, %v3463, 0
        %v3637 = vsel %vm859, %v3464, 0
        %v3640 = vsel %vm859, %v3465, 0
        %v3643 = vsel %vm859, %v3482, 0
        %v3646 = vsel %vm859, %v3483, 0
        %v3649 = vsel %vm859, %v3484, 0
        %v3652 = vsel %vm859, %v3485, 0
        %v3655 = vsel %vm859, %v3486, 0
        %v3658 = vsel %vm859, %v3487, 0
        %v3661 = vsel %vm859, %v3488, 0
        %v3664 = vsel %vm859, %v3489, 0
        %v3667 = vsel %vm859, %v3490, 0
        %v3670 = vsel %vm859, %v3491, 0
        %v3673 = vsel %vm859, %v3492, 0
        %v3676 = vsel %vm859, %v3493, 0
        %v3679 = vsel %vm859, %v3494, 0
        %v3682 = vsel %vm859, %v3495, 0
        %v3685 = vsel %vm859, %v3496, 0
        %v3688 = vsel %vm859, %v3497, 0
        %3690 = vmatprep.subr.mxu0 0.0
        %3691 = vmatpush1.msra.mxu0 0.0
        %3692 = vmatprep.subr.mxu0 0.0
        %3693 = vmatpush1.msra.mxu0 0.0
        %3694 = vmatprep.subr.mxu0 0.0
        %3695 = vmatpush1.msra.mxu0 0.0
        %3696 = vmatprep.subr.mxu0 0.0
        %3697 = vmatpush1.msra.mxu0 0.0
        %3698 = vmatprep.subr.mxu0 0.0
        %3699 = vmatpush1.msra.mxu0 0.0
        %3700 = vmatprep.subr.mxu0 0.0
        %3701 = vmatpush1.msra.mxu0 0.0
        %3702 = vmatprep.subr.mxu0 0.0
        %3703 = vmatpush1.msra.mxu0 0.0
        %3704 = vmatprep.subr.mxu0 0.0
        %3705 = vmatpush1.msra.mxu0 0.0
        %3706 = vmatprep.subr.mxu0 0.0
        %3707 = vmatpush1.msra.mxu0 0.0
        %3708 = vmatprep.subr.mxu0 0.0
        %3709 = vmatpush1.msra.mxu0 0.0
        %3710 = vmatprep.subr.mxu0 0.0
        %3711 = vmatpush1.msra.mxu0 0.0
        %3712 = vmatprep.subr.mxu0 0.0
        %3713 = vmatpush1.msra.mxu0 0.0
        %3714 = vmatprep.subr.mxu0 0.0
        %3715 = vmatpush1.msra.mxu0 0.0
        %3716 = vmatprep.subr.mxu0 0.0
        %3717 = vmatpush1.msra.mxu0 0.0
        %3718 = vmatprep.subr.mxu0 0.0
        %3719 = vmatpush1.msra.mxu0 0.0
        %3720 = vmatprep.subr.mxu0 %v622
        %3721 = vmatpush1.msra.mxu0 %v620
        %3722 = vmatprep.subr.mxu0 0.0
        %3723 = vmatpush2.msra.mxu0 0.0
        %3724 = vmatprep.subr.mxu0 0.0
        %3725 = vmatpush2.msra.mxu0 0.0
        %3726 = vmatprep.subr.mxu0 0.0
        %3727 = vmatpush2.msra.mxu0 0.0
        %3728 = vmatprep.subr.mxu0 0.0
        %3729 = vmatpush2.msra.mxu0 0.0
        %3730 = vmatprep.subr.mxu0 0.0
        %3731 = vmatpush2.msra.mxu0 0.0
        %3732 = vmatprep.subr.mxu0 0.0
        %3733 = vmatpush2.msra.mxu0 0.0
        %3734 = vmatprep.subr.mxu0 0.0
        %3735 = vmatpush2.msra.mxu0 0.0
        %3736 = vmatprep.subr.mxu0 0.0
        %3737 = vmatpush2.msra.mxu0 0.0
        %3738 = vmatprep.subr.mxu0 0.0
        %3739 = vmatpush2.msra.mxu0 0.0
        %3740 = vmatprep.subr.mxu0 0.0
        %3741 = vmatpush2.msra.mxu0 0.0
        %3742 = vmatprep.subr.mxu0 0.0
        %3743 = vmatpush2.msra.mxu0 0.0
        %3744 = vmatprep.subr.mxu0 0.0
        %3745 = vmatpush2.msra.mxu0 0.0
        %3746 = vmatprep.subr.mxu0 0.0
        %3747 = vmatpush2.msra.mxu0 0.0
        %3748 = vmatprep.subr.mxu0 0.0
        %3749 = vmatpush2.msra.mxu0 0.0
        %3750 = vmatprep.subr.mxu0 0.0
        %3751 = vmatpush2.msra.mxu0 0.0
        %3752 = vmatprep.subr.mxu0 0.0
        %3753 = vmatpush2.msra.mxu0 0.0
        %3754 = vmatprep.mubr.f32.mxu0 0.0
        %3755 = vmatmul.mubr.f32.gmra.mxu0 %v3499
        %v3756 = vpop.f32.mrf.mxu0
        %v3757 = vadd.f32 0.0, %v3756
        %v3758 = vpop.f32.mrf.mxu0
        %v3759 = vadd.f32 0.0, %v3758
        %3760 = vmatprep.mubr.f32.mxu0 0.0
        %3761 = vmatmul.mubr.f32.gmra.mxu0 %v3502
        %v3762 = vpop.f32.mrf.mxu0
        %v3763 = vadd.f32 0.0, %v3762
        %v3764 = vpop.f32.mrf.mxu0
        %v3765 = vadd.f32 0.0, %v3764
        %3766 = vmatprep.mubr.f32.mxu0 0.0
        %3767 = vmatmul.mubr.f32.gmra.mxu0 %v3505
        %v3768 = vpop.f32.mrf.mxu0
        %v3769 = vadd.f32 0.0, %v3768
        %v3770 = vpop.f32.mrf.mxu0
        %v3771 = vadd.f32 0.0, %v3770
        %3772 = vmatprep.mubr.f32.mxu0 0.0
        %3773 = vmatmul.mubr.f32.gmra.mxu0 %v3508
        %v3774 = vpop.f32.mrf.mxu0
        %v3775 = vadd.f32 0.0, %v3774
        %v3776 = vpop.f32.mrf.mxu0
        %v3777 = vadd.f32 0.0, %v3776
        %3778 = vmatprep.mubr.f32.mxu0 0.0
        %3779 = vmatmul.mubr.f32.gmra.mxu0 %v3511
        %v3780 = vpop.f32.mrf.mxu0
        %v3781 = vadd.f32 0.0, %v3780
        %v3782 = vpop.f32.mrf.mxu0
        %v3783 = vadd.f32 0.0, %v3782
        %3784 = vmatprep.mubr.f32.mxu0 0.0
        %3785 = vmatmul.mubr.f32.gmra.mxu0 %v3514
        %v3786 = vpop.f32.mrf.mxu0
        %v3787 = vadd.f32 0.0, %v3786
        %v3788 = vpop.f32.mrf.mxu0
        %v3789 = vadd.f32 0.0, %v3788
        %3790 = vmatprep.mubr.f32.mxu0 0.0
        %3791 = vmatmul.mubr.f32.gmra.mxu0 %v3517
        %v3792 = vpop.f32.mrf.mxu0
        %v3793 = vadd.f32 0.0, %v3792
        %v3794 = vpop.f32.mrf.mxu0
        %v3795 = vadd.f32 0.0, %v3794
        %3796 = vmatprep.mubr.f32.mxu0 0.0
        %3797 = vmatmul.mubr.f32.gmra.mxu0 %v3520
        %v3798 = vpop.f32.mrf.mxu0
        %v3799 = vadd.f32 0.0, %v3798
        %v3800 = vpop.f32.mrf.mxu0
        %v3801 = vadd.f32 0.0, %v3800
        %3802 = vmatprep.mubr.f32.mxu0 0.0
        %3803 = vmatmul.mubr.f32.gmra.mxu0 %v3523
        %v3804 = vpop.f32.mrf.mxu0
        %v3805 = vadd.f32 0.0, %v3804
        %v3806 = vpop.f32.mrf.mxu0
        %v3807 = vadd.f32 0.0, %v3806
        %3808 = vmatprep.mubr.f32.mxu0 0.0
        %3809 = vmatmul.mubr.f32.gmra.mxu0 %v3526
        %v3810 = vpop.f32.mrf.mxu0
        %v3811 = vadd.f32 0.0, %v3810
        %v3812 = vpop.f32.mrf.mxu0
        %v3813 = vadd.f32 0.0, %v3812
        %3814 = vmatprep.mubr.f32.mxu0 0.0
        %3815 = vmatmul.mubr.f32.gmra.mxu0 %v3529
        %v3816 = vpop.f32.mrf.mxu0
        %v3817 = vadd.f32 0.0, %v3816
        %v3818 = vpop.f32.mrf.mxu0
        %v3819 = vadd.f32 0.0, %v3818
        %3820 = vmatprep.mubr.f32.mxu0 0.0
        %3821 = vmatmul.mubr.f32.gmra.mxu0 %v3532
        %v3822 = vpop.f32.mrf.mxu0
        %v3823 = vadd.f32 0.0, %v3822
        %v3824 = vpop.f32.mrf.mxu0
        %v3825 = vadd.f32 0.0, %v3824
        %3826 = vmatprep.mubr.f32.mxu0 0.0
        %3827 = vmatmul.mubr.f32.gmra.mxu0 %v3535
        %v3828 = vpop.f32.mrf.mxu0
        %v3829 = vadd.f32 0.0, %v3828
        %v3830 = vpop.f32.mrf.mxu0
        %v3831 = vadd.f32 0.0, %v3830
        %3832 = vmatprep.mubr.f32.mxu0 0.0
        %3833 = vmatmul.mubr.f32.gmra.mxu0 %v3538
        %v3834 = vpop.f32.mrf.mxu0
        %v3835 = vadd.f32 0.0, %v3834
        %v3836 = vpop.f32.mrf.mxu0
        %v3837 = vadd.f32 0.0, %v3836
        %3838 = vmatprep.mubr.f32.mxu0 0.0
        %3839 = vmatmul.mubr.f32.gmra.mxu0 %v3541
        %v3840 = vpop.f32.mrf.mxu0
        %v3841 = vadd.f32 0.0, %v3840
        %v3842 = vpop.f32.mrf.mxu0
        %v3843 = vadd.f32 0.0, %v3842
        %3844 = vmatprep.mubr.f32.mxu0 0.0
        %3845 = vmatmul.mubr.f32.gmra.mxu0 %v3544
        %v3846 = vpop.f32.mrf.mxu0
        %v3847 = vadd.f32 0.0, %v3846
        %v3848 = vpop.f32.mrf.mxu0
        %v3849 = vadd.f32 0.0, %v3848
        %3850 = vmatprep.mubr.f32.mxu0 0.0
        %3851 = vmatmul.mubr.f32.gmra.mxu0 %v3547
        %v3852 = vpop.f32.mrf.mxu0
        %v3853 = vadd.f32 0.0, %v3852
        %v3854 = vpop.f32.mrf.mxu0
        %v3855 = vadd.f32 0.0, %v3854
        %3856 = vmatprep.mubr.f32.mxu0 0.0
        %3857 = vmatmul.mubr.f32.gmra.mxu0 %v3550
        %v3858 = vpop.f32.mrf.mxu0
        %v3859 = vadd.f32 0.0, %v3858
        %v3860 = vpop.f32.mrf.mxu0
        %v3861 = vadd.f32 0.0, %v3860
        %3862 = vmatprep.mubr.f32.mxu0 0.0
        %3863 = vmatmul.mubr.f32.gmra.mxu0 %v3553
        %v3864 = vpop.f32.mrf.mxu0
        %v3865 = vadd.f32 0.0, %v3864
        %v3866 = vpop.f32.mrf.mxu0
        %v3867 = vadd.f32 0.0, %v3866
        %3868 = vmatprep.mubr.f32.mxu0 0.0
        %3869 = vmatmul.mubr.f32.gmra.mxu0 %v3556
        %v3870 = vpop.f32.mrf.mxu0
        %v3871 = vadd.f32 0.0, %v3870
        %v3872 = vpop.f32.mrf.mxu0
        %v3873 = vadd.f32 0.0, %v3872
        %3874 = vmatprep.mubr.f32.mxu0 0.0
        %3875 = vmatmul.mubr.f32.gmra.mxu0 %v3559
        %v3876 = vpop.f32.mrf.mxu0
        %v3877 = vadd.f32 0.0, %v3876
        %v3878 = vpop.f32.mrf.mxu0
        %v3879 = vadd.f32 0.0, %v3878
        %3880 = vmatprep.mubr.f32.mxu0 0.0
        %3881 = vmatmul.mubr.f32.gmra.mxu0 %v3562
        %v3882 = vpop.f32.mrf.mxu0
        %v3883 = vadd.f32 0.0, %v3882
        %v3884 = vpop.f32.mrf.mxu0
        %v3885 = vadd.f32 0.0, %v3884
        %3886 = vmatprep.mubr.f32.mxu0 0.0
        %3887 = vmatmul.mubr.f32.gmra.mxu0 %v3565
        %v3888 = vpop.f32.mrf.mxu0
        %v3889 = vadd.f32 0.0, %v3888
        %v3890 = vpop.f32.mrf.mxu0
        %v3891 = vadd.f32 0.0, %v3890
        %3892 = vmatprep.mubr.f32.mxu0 0.0
        %3893 = vmatmul.mubr.f32.gmra.mxu0 %v3568
        %v3894 = vpop.f32.mrf.mxu0
        %v3895 = vadd.f32 0.0, %v3894
        %v3896 = vpop.f32.mrf.mxu0
        %v3897 = vadd.f32 0.0, %v3896
        %3898 = vmatprep.mubr.f32.mxu0 0.0
        %3899 = vmatmul.mubr.f32.gmra.mxu0 %v3571
        %v3900 = vpop.f32.mrf.mxu0
        %v3901 = vadd.f32 0.0, %v3900
        %v3902 = vpop.f32.mrf.mxu0
        %v3903 = vadd.f32 0.0, %v3902
        %3904 = vmatprep.mubr.f32.mxu0 0.0
        %3905 = vmatmul.mubr.f32.gmra.mxu0 %v3574
        %v3906 = vpop.f32.mrf.mxu0
        %v3907 = vadd.f32 0.0, %v3906
        %v3908 = vpop.f32.mrf.mxu0
        %v3909 = vadd.f32 0.0, %v3908
        %3910 = vmatprep.mubr.f32.mxu0 0.0
        %3911 = vmatmul.mubr.f32.gmra.mxu0 %v3577
        %v3912 = vpop.f32.mrf.mxu0
        %v3913 = vadd.f32 0.0, %v3912
        %v3914 = vpop.f32.mrf.mxu0
        %v3915 = vadd.f32 0.0, %v3914
        %3916 = vmatprep.mubr.f32.mxu0 0.0
        %3917 = vmatmul.mubr.f32.gmra.mxu0 %v3580
        %v3918 = vpop.f32.mrf.mxu0
        %v3919 = vadd.f32 0.0, %v3918
        %v3920 = vpop.f32.mrf.mxu0
        %v3921 = vadd.f32 0.0, %v3920
        %3922 = vmatprep.mubr.f32.mxu0 0.0
        %3923 = vmatmul.mubr.f32.gmra.mxu0 %v3583
        %v3924 = vpop.f32.mrf.mxu0
        %v3925 = vadd.f32 0.0, %v3924
        %v3926 = vpop.f32.mrf.mxu0
        %v3927 = vadd.f32 0.0, %v3926
        %3928 = vmatprep.mubr.f32.mxu0 0.0
        %3929 = vmatmul.mubr.f32.gmra.mxu0 %v3586
        %v3930 = vpop.f32.mrf.mxu0
        %v3931 = vadd.f32 0.0, %v3930
        %v3932 = vpop.f32.mrf.mxu0
        %v3933 = vadd.f32 0.0, %v3932
        %3934 = vmatprep.mubr.f32.mxu0 0.0
        %3935 = vmatmul.mubr.f32.gmra.mxu0 %v3589
        %v3936 = vpop.f32.mrf.mxu0
        %v3937 = vadd.f32 0.0, %v3936
        %v3938 = vpop.f32.mrf.mxu0
        %v3939 = vadd.f32 0.0, %v3938
        %3940 = vmatprep.mubr.f32.mxu0 0.0
        %3941 = vmatmul.mubr.f32.gmra.mxu0 %v3592
        %v3942 = vpop.f32.mrf.mxu0
        %v3943 = vadd.f32 0.0, %v3942
        %v3944 = vpop.f32.mrf.mxu0
        %v3945 = vadd.f32 0.0, %v3944
        %3946 = vmatprep.mubr.f32.mxu0 0.0
        %3947 = vmatmul.mubr.f32.gmra.mxu0 %v3595
        %v3948 = vpop.f32.mrf.mxu0
        %v3949 = vadd.f32 0.0, %v3948
        %v3950 = vpop.f32.mrf.mxu0
        %v3951 = vadd.f32 0.0, %v3950
        %3952 = vmatprep.mubr.f32.mxu0 0.0
        %3953 = vmatmul.mubr.f32.gmra.mxu0 %v3598
        %v3954 = vpop.f32.mrf.mxu0
        %v3955 = vadd.f32 0.0, %v3954
        %v3956 = vpop.f32.mrf.mxu0
        %v3957 = vadd.f32 0.0, %v3956
        %3958 = vmatprep.mubr.f32.mxu0 0.0
        %3959 = vmatmul.mubr.f32.gmra.mxu0 %v3601
        %v3960 = vpop.f32.mrf.mxu0
        %v3961 = vadd.f32 0.0, %v3960
        %v3962 = vpop.f32.mrf.mxu0
        %v3963 = vadd.f32 0.0, %v3962
        %3964 = vmatprep.mubr.f32.mxu0 0.0
        %3965 = vmatmul.mubr.f32.gmra.mxu0 %v3604
        %v3966 = vpop.f32.mrf.mxu0
        %v3967 = vadd.f32 0.0, %v3966
        %v3968 = vpop.f32.mrf.mxu0
        %v3969 = vadd.f32 0.0, %v3968
        %3970 = vmatprep.mubr.f32.mxu0 0.0
        %3971 = vmatmul.mubr.f32.gmra.mxu0 %v3607
        %v3972 = vpop.f32.mrf.mxu0
        %v3973 = vadd.f32 0.0, %v3972
        %v3974 = vpop.f32.mrf.mxu0
        %v3975 = vadd.f32 0.0, %v3974
        %3976 = vmatprep.mubr.f32.mxu0 0.0
        %3977 = vmatmul.mubr.f32.gmra.mxu0 %v3610
        %v3978 = vpop.f32.mrf.mxu0
        %v3979 = vadd.f32 0.0, %v3978
        %v3980 = vpop.f32.mrf.mxu0
        %v3981 = vadd.f32 0.0, %v3980
        %3982 = vmatprep.mubr.f32.mxu0 0.0
        %3983 = vmatmul.mubr.f32.gmra.mxu0 %v3613
        %v3984 = vpop.f32.mrf.mxu0
        %v3985 = vadd.f32 0.0, %v3984
        %v3986 = vpop.f32.mrf.mxu0
        %v3987 = vadd.f32 0.0, %v3986
        %3988 = vmatprep.mubr.f32.mxu0 0.0
        %3989 = vmatmul.mubr.f32.gmra.mxu0 %v3616
        %v3990 = vpop.f32.mrf.mxu0
        %v3991 = vadd.f32 0.0, %v3990
        %v3992 = vpop.f32.mrf.mxu0
        %v3993 = vadd.f32 0.0, %v3992
        %3994 = vmatprep.mubr.f32.mxu0 0.0
        %3995 = vmatmul.mubr.f32.gmra.mxu0 %v3619
        %v3996 = vpop.f32.mrf.mxu0
        %v3997 = vadd.f32 0.0, %v3996
        %v3998 = vpop.f32.mrf.mxu0
        %v3999 = vadd.f32 0.0, %v3998
        %4000 = vmatprep.mubr.f32.mxu0 0.0
        %4001 = vmatmul.mubr.f32.gmra.mxu0 %v3622
        %v4002 = vpop.f32.mrf.mxu0
        %v4003 = vadd.f32 0.0, %v4002
        %v4004 = vpop.f32.mrf.mxu0
        %v4005 = vadd.f32 0.0, %v4004
        %4006 = vmatprep.mubr.f32.mxu0 0.0
        %4007 = vmatmul.mubr.f32.gmra.mxu0 %v3625
        %v4008 = vpop.f32.mrf.mxu0
        %v4009 = vadd.f32 0.0, %v4008
        %v4010 = vpop.f32.mrf.mxu0
        %v4011 = vadd.f32 0.0, %v4010
        %4012 = vmatprep.mubr.f32.mxu0 0.0
        %4013 = vmatmul.mubr.f32.gmra.mxu0 %v3628
        %v4014 = vpop.f32.mrf.mxu0
        %v4015 = vadd.f32 0.0, %v4014
        %v4016 = vpop.f32.mrf.mxu0
        %v4017 = vadd.f32 0.0, %v4016
        %4018 = vmatprep.mubr.f32.mxu0 0.0
        %4019 = vmatmul.mubr.f32.gmra.mxu0 %v3631
        %v4020 = vpop.f32.mrf.mxu0
        %v4021 = vadd.f32 0.0, %v4020
        %v4022 = vpop.f32.mrf.mxu0
        %v4023 = vadd.f32 0.0, %v4022
        %4024 = vmatprep.mubr.f32.mxu0 0.0
        %4025 = vmatmul.mubr.f32.gmra.mxu0 %v3634
        %v4026 = vpop.f32.mrf.mxu0
        %v4027 = vadd.f32 0.0, %v4026
        %v4028 = vpop.f32.mrf.mxu0
        %v4029 = vadd.f32 0.0, %v4028
        %4030 = vmatprep.mubr.f32.mxu0 0.0
        %4031 = vmatmul.mubr.f32.gmra.mxu0 %v3637
        %v4032 = vpop.f32.mrf.mxu0
        %v4033 = vadd.f32 0.0, %v4032
        %v4034 = vpop.f32.mrf.mxu0
        %v4035 = vadd.f32 0.0, %v4034
        %4036 = vmatprep.mubr.f32.mxu0 0.0
        %4037 = vmatmul.mubr.f32.gmra.mxu0 %v3640
        %v4038 = vpop.f32.mrf.mxu0
        %v4039 = vadd.f32 0.0, %v4038
        %v4040 = vpop.f32.mrf.mxu0
        %v4041 = vadd.f32 0.0, %v4040
        %4042 = vmatprep.mubr.f32.mxu0 0.0
        %4043 = vmatmul.mubr.f32.gmra.mxu0 %v3643
        %v4044 = vpop.f32.mrf.mxu0
        %v4045 = vadd.f32 0.0, %v4044
        %v4046 = vpop.f32.mrf.mxu0
        %v4047 = vadd.f32 0.0, %v4046
        %4048 = vmatprep.mubr.f32.mxu0 0.0
        %4049 = vmatmul.mubr.f32.gmra.mxu0 %v3646
        %v4050 = vpop.f32.mrf.mxu0
        %v4051 = vadd.f32 0.0, %v4050
        %v4052 = vpop.f32.mrf.mxu0
        %v4053 = vadd.f32 0.0, %v4052
        %4054 = vmatprep.mubr.f32.mxu0 0.0
        %4055 = vmatmul.mubr.f32.gmra.mxu0 %v3649
        %v4056 = vpop.f32.mrf.mxu0
        %v4057 = vadd.f32 0.0, %v4056
        %v4058 = vpop.f32.mrf.mxu0
        %v4059 = vadd.f32 0.0, %v4058
        %4060 = vmatprep.mubr.f32.mxu0 0.0
        %4061 = vmatmul.mubr.f32.gmra.mxu0 %v3652
        %v4062 = vpop.f32.mrf.mxu0
        %v4063 = vadd.f32 0.0, %v4062
        %v4064 = vpop.f32.mrf.mxu0
        %v4065 = vadd.f32 0.0, %v4064
        %4066 = vmatprep.mubr.f32.mxu0 0.0
        %4067 = vmatmul.mubr.f32.gmra.mxu0 %v3655
        %v4068 = vpop.f32.mrf.mxu0
        %v4069 = vadd.f32 0.0, %v4068
        %v4070 = vpop.f32.mrf.mxu0
        %v4071 = vadd.f32 0.0, %v4070
        %4072 = vmatprep.mubr.f32.mxu0 0.0
        %4073 = vmatmul.mubr.f32.gmra.mxu0 %v3658
        %v4074 = vpop.f32.mrf.mxu0
        %v4075 = vadd.f32 0.0, %v4074
        %v4076 = vpop.f32.mrf.mxu0
        %v4077 = vadd.f32 0.0, %v4076
        %4078 = vmatprep.mubr.f32.mxu0 0.0
        %4079 = vmatmul.mubr.f32.gmra.mxu0 %v3661
        %v4080 = vpop.f32.mrf.mxu0
        %v4081 = vadd.f32 0.0, %v4080
        %v4082 = vpop.f32.mrf.mxu0
        %v4083 = vadd.f32 0.0, %v4082
        %4084 = vmatprep.mubr.f32.mxu0 0.0
        %4085 = vmatmul.mubr.f32.gmra.mxu0 %v3664
        %v4086 = vpop.f32.mrf.mxu0
        %v4087 = vadd.f32 0.0, %v4086
        %v4088 = vpop.f32.mrf.mxu0
        %v4089 = vadd.f32 0.0, %v4088
        %4090 = vmatprep.mubr.f32.mxu0 0.0
        %4091 = vmatmul.mubr.f32.gmra.mxu0 %v3667
        %v4092 = vpop.f32.mrf.mxu0
        %v4093 = vadd.f32 0.0, %v4092
        %v4094 = vpop.f32.mrf.mxu0
        %v4095 = vadd.f32 0.0, %v4094
        %4096 = vmatprep.mubr.f32.mxu0 0.0
        %4097 = vmatmul.mubr.f32.gmra.mxu0 %v3670
        %v4098 = vpop.f32.mrf.mxu0
        %v4099 = vadd.f32 0.0, %v4098
        %v4100 = vpop.f32.mrf.mxu0
        %v4101 = vadd.f32 0.0, %v4100
        %4102 = vmatprep.mubr.f32.mxu0 0.0
        %4103 = vmatmul.mubr.f32.gmra.mxu0 %v3673
        %v4104 = vpop.f32.mrf.mxu0
        %v4105 = vadd.f32 0.0, %v4104
        %v4106 = vpop.f32.mrf.mxu0
        %v4107 = vadd.f32 0.0, %v4106
        %4108 = vmatprep.mubr.f32.mxu0 0.0
        %4109 = vmatmul.mubr.f32.gmra.mxu0 %v3676
        %v4110 = vpop.f32.mrf.mxu0
        %v4111 = vadd.f32 0.0, %v4110
        %v4112 = vpop.f32.mrf.mxu0
        %v4113 = vadd.f32 0.0, %v4112
        %4114 = vmatprep.mubr.f32.mxu0 0.0
        %4115 = vmatmul.mubr.f32.gmra.mxu0 %v3679
        %v4116 = vpop.f32.mrf.mxu0
        %v4117 = vadd.f32 0.0, %v4116
        %v4118 = vpop.f32.mrf.mxu0
        %v4119 = vadd.f32 0.0, %v4118
        %4120 = vmatprep.mubr.f32.mxu0 0.0
        %4121 = vmatmul.mubr.f32.gmra.mxu0 %v3682
        %v4122 = vpop.f32.mrf.mxu0
        %v4123 = vadd.f32 0.0, %v4122
        %v4124 = vpop.f32.mrf.mxu0
        %v4125 = vadd.f32 0.0, %v4124
        %4126 = vmatprep.mubr.f32.mxu0 0.0
        %4127 = vmatmul.mubr.f32.gmra.mxu0 %v3685
        %v4128 = vpop.f32.mrf.mxu0
        %v4129 = vadd.f32 0.0, %v4128
        %v4130 = vpop.f32.mrf.mxu0
        %v4131 = vadd.f32 0.0, %v4130
        %4132 = vmatprep.mubr.f32.mxu0 0.0
        %4133 = vmatmul.mubr.f32.gmra.mxu0 %v3688
        %v4134 = vpop.f32.mrf.mxu0
        %v4135 = vadd.f32 0.0, %v4134
        %v4136 = vpop.f32.mrf.mxu0
        %v4137 = vadd.f32 0.0, %v4136
        %4138 = vdwg.mxu0
        %4139 = vmatprep.subr.mxu0 0.0
        %4140 = vmatpush1.msra.mxu0 0.0
        %4141 = vmatprep.subr.mxu0 0.0
        %4142 = vmatpush1.msra.mxu0 0.0
        %4143 = vmatprep.subr.mxu0 0.0
        %4144 = vmatpush1.msra.mxu0 0.0
        %4145 = vmatprep.subr.mxu0 0.0
        %4146 = vmatpush1.msra.mxu0 0.0
        %4147 = vmatprep.subr.mxu0 0.0
        %4148 = vmatpush1.msra.mxu0 0.0
        %4149 = vmatprep.subr.mxu0 0.0
        %4150 = vmatpush1.msra.mxu0 0.0
        %4151 = vmatprep.subr.mxu0 0.0
        %4152 = vmatpush1.msra.mxu0 0.0
        %4153 = vmatprep.subr.mxu0 0.0
        %4154 = vmatpush1.msra.mxu0 0.0
        %4155 = vmatprep.subr.mxu0 0.0
        %4156 = vmatpush1.msra.mxu0 0.0
        %4157 = vmatprep.subr.mxu0 0.0
        %4158 = vmatpush1.msra.mxu0 0.0
        %4159 = vmatprep.subr.mxu0 0.0
        %4160 = vmatpush1.msra.mxu0 0.0
        %4161 = vmatprep.subr.mxu0 0.0
        %4162 = vmatpush1.msra.mxu0 0.0
        %4163 = vmatprep.subr.mxu0 0.0
        %4164 = vmatpush1.msra.mxu0 0.0
        %4165 = vmatprep.subr.mxu0 0.0
        %4166 = vmatpush1.msra.mxu0 0.0
        %4167 = vmatprep.subr.mxu0 0.0
        %4168 = vmatpush1.msra.mxu0 0.0
        %4169 = vmatprep.subr.mxu0 %v723
        %4170 = vmatpush1.msra.mxu0 %v721
        %4171 = vmatprep.subr.mxu0 0.0
        %4172 = vmatpush2.msra.mxu0 0.0
        %4173 = vmatprep.subr.mxu0 0.0
        %4174 = vmatpush2.msra.mxu0 0.0
        %4175 = vmatprep.subr.mxu0 0.0
        %4176 = vmatpush2.msra.mxu0 0.0
        %4177 = vmatprep.subr.mxu0 0.0
        %4178 = vmatpush2.msra.mxu0 0.0
        %4179 = vmatprep.subr.mxu0 0.0
        %4180 = vmatpush2.msra.mxu0 0.0
        %4181 = vmatprep.subr.mxu0 0.0
        %4182 = vmatpush2.msra.mxu0 0.0
        %4183 = vmatprep.subr.mxu0 0.0
        %4184 = vmatpush2.msra.mxu0 0.0
        %4185 = vmatprep.subr.mxu0 0.0
        %4186 = vmatpush2.msra.mxu0 0.0
        %4187 = vmatprep.subr.mxu0 0.0
        %4188 = vmatpush2.msra.mxu0 0.0
        %4189 = vmatprep.subr.mxu0 0.0
        %4190 = vmatpush2.msra.mxu0 0.0
        %4191 = vmatprep.subr.mxu0 0.0
        %4192 = vmatpush2.msra.mxu0 0.0
        %4193 = vmatprep.subr.mxu0 0.0
        %4194 = vmatpush2.msra.mxu0 0.0
        %4195 = vmatprep.subr.mxu0 0.0
        %4196 = vmatpush2.msra.mxu0 0.0
        %4197 = vmatprep.subr.mxu0 0.0
        %4198 = vmatpush2.msra.mxu0 0.0
        %4199 = vmatprep.subr.mxu0 0.0
        %4200 = vmatpush2.msra.mxu0 0.0
        %4201 = vmatprep.subr.mxu0 0.0
        %4202 = vmatpush2.msra.mxu0 0.0
        %4203 = vmatprep.mubr.f32.mxu0 0.0
        %4204 = vmatmul.mubr.f32.gmra.mxu0 %v3499
        %v4205 = vpop.f32.mrf.mxu0
        %v4206 = vadd.f32 0.0, %v4205
        %v4207 = vpop.f32.mrf.mxu0
        %v4208 = vadd.f32 0.0, %v4207
        %4209 = vmatprep.mubr.f32.mxu0 0.0
        %4210 = vmatmul.mubr.f32.gmra.mxu0 %v3502
        %v4211 = vpop.f32.mrf.mxu0
        %v4212 = vadd.f32 0.0, %v4211
        %v4213 = vpop.f32.mrf.mxu0
        %v4214 = vadd.f32 0.0, %v4213
        %4215 = vmatprep.mubr.f32.mxu0 0.0
        %4216 = vmatmul.mubr.f32.gmra.mxu0 %v3505
        %v4217 = vpop.f32.mrf.mxu0
        %v4218 = vadd.f32 0.0, %v4217
        %v4219 = vpop.f32.mrf.mxu0
        %v4220 = vadd.f32 0.0, %v4219
        %4221 = vmatprep.mubr.f32.mxu0 0.0
        %4222 = vmatmul.mubr.f32.gmra.mxu0 %v3508
        %v4223 = vpop.f32.mrf.mxu0
        %v4224 = vadd.f32 0.0, %v4223
        %v4225 = vpop.f32.mrf.mxu0
        %v4226 = vadd.f32 0.0, %v4225
        %4227 = vmatprep.mubr.f32.mxu0 0.0
        %4228 = vmatmul.mubr.f32.gmra.mxu0 %v3511
        %v4229 = vpop.f32.mrf.mxu0
        %v4230 = vadd.f32 0.0, %v4229
        %v4231 = vpop.f32.mrf.mxu0
        %v4232 = vadd.f32 0.0, %v4231
        %4233 = vmatprep.mubr.f32.mxu0 0.0
        %4234 = vmatmul.mubr.f32.gmra.mxu0 %v3514
        %v4235 = vpop.f32.mrf.mxu0
        %v4236 = vadd.f32 0.0, %v4235
        %v4237 = vpop.f32.mrf.mxu0
        %v4238 = vadd.f32 0.0, %v4237
        %4239 = vmatprep.mubr.f32.mxu0 0.0
        %4240 = vmatmul.mubr.f32.gmra.mxu0 %v3517
        %v4241 = vpop.f32.mrf.mxu0
        %v4242 = vadd.f32 0.0, %v4241
        %v4243 = vpop.f32.mrf.mxu0
        %v4244 = vadd.f32 0.0, %v4243
        %4245 = vmatprep.mubr.f32.mxu0 0.0
        %4246 = vmatmul.mubr.f32.gmra.mxu0 %v3520
        %v4247 = vpop.f32.mrf.mxu0
        %v4248 = vadd.f32 0.0, %v4247
        %v4249 = vpop.f32.mrf.mxu0
        %v4250 = vadd.f32 0.0, %v4249
        %4251 = vmatprep.mubr.f32.mxu0 0.0
        %4252 = vmatmul.mubr.f32.gmra.mxu0 %v3523
        %v4253 = vpop.f32.mrf.mxu0
        %v4254 = vadd.f32 0.0, %v4253
        %v4255 = vpop.f32.mrf.mxu0
        %v4256 = vadd.f32 0.0, %v4255
        %4257 = vmatprep.mubr.f32.mxu0 0.0
        %4258 = vmatmul.mubr.f32.gmra.mxu0 %v3526
        %v4259 = vpop.f32.mrf.mxu0
        %v4260 = vadd.f32 0.0, %v4259
        %v4261 = vpop.f32.mrf.mxu0
        %v4262 = vadd.f32 0.0, %v4261
        %4263 = vmatprep.mubr.f32.mxu0 0.0
        %4264 = vmatmul.mubr.f32.gmra.mxu0 %v3529
        %v4265 = vpop.f32.mrf.mxu0
        %v4266 = vadd.f32 0.0, %v4265
        %v4267 = vpop.f32.mrf.mxu0
        %v4268 = vadd.f32 0.0, %v4267
        %4269 = vmatprep.mubr.f32.mxu0 0.0
        %4270 = vmatmul.mubr.f32.gmra.mxu0 %v3532
        %v4271 = vpop.f32.mrf.mxu0
        %v4272 = vadd.f32 0.0, %v4271
        %v4273 = vpop.f32.mrf.mxu0
        %v4274 = vadd.f32 0.0, %v4273
        %4275 = vmatprep.mubr.f32.mxu0 0.0
        %4276 = vmatmul.mubr.f32.gmra.mxu0 %v3535
        %v4277 = vpop.f32.mrf.mxu0
        %v4278 = vadd.f32 0.0, %v4277
        %v4279 = vpop.f32.mrf.mxu0
        %v4280 = vadd.f32 0.0, %v4279
        %4281 = vmatprep.mubr.f32.mxu0 0.0
        %4282 = vmatmul.mubr.f32.gmra.mxu0 %v3538
        %v4283 = vpop.f32.mrf.mxu0
        %v4284 = vadd.f32 0.0, %v4283
        %v4285 = vpop.f32.mrf.mxu0
        %v4286 = vadd.f32 0.0, %v4285
        %4287 = vmatprep.mubr.f32.mxu0 0.0
        %4288 = vmatmul.mubr.f32.gmra.mxu0 %v3541
        %v4289 = vpop.f32.mrf.mxu0
        %v4290 = vadd.f32 0.0, %v4289
        %v4291 = vpop.f32.mrf.mxu0
        %v4292 = vadd.f32 0.0, %v4291
        %4293 = vmatprep.mubr.f32.mxu0 0.0
        %4294 = vmatmul.mubr.f32.gmra.mxu0 %v3544
        %v4295 = vpop.f32.mrf.mxu0
        %v4296 = vadd.f32 0.0, %v4295
        %v4297 = vpop.f32.mrf.mxu0
        %v4298 = vadd.f32 0.0, %v4297
        %4299 = vmatprep.mubr.f32.mxu0 0.0
        %4300 = vmatmul.mubr.f32.gmra.mxu0 %v3547
        %v4301 = vpop.f32.mrf.mxu0
        %v4302 = vadd.f32 0.0, %v4301
        %v4303 = vpop.f32.mrf.mxu0
        %v4304 = vadd.f32 0.0, %v4303
        %4305 = vmatprep.mubr.f32.mxu0 0.0
        %4306 = vmatmul.mubr.f32.gmra.mxu0 %v3550
        %v4307 = vpop.f32.mrf.mxu0
        %v4308 = vadd.f32 0.0, %v4307
        %v4309 = vpop.f32.mrf.mxu0
        %v4310 = vadd.f32 0.0, %v4309
        %4311 = vmatprep.mubr.f32.mxu0 0.0
        %4312 = vmatmul.mubr.f32.gmra.mxu0 %v3553
        %v4313 = vpop.f32.mrf.mxu0
        %v4314 = vadd.f32 0.0, %v4313
        %v4315 = vpop.f32.mrf.mxu0
        %v4316 = vadd.f32 0.0, %v4315
        %4317 = vmatprep.mubr.f32.mxu0 0.0
        %4318 = vmatmul.mubr.f32.gmra.mxu0 %v3556
        %v4319 = vpop.f32.mrf.mxu0
        %v4320 = vadd.f32 0.0, %v4319
        %v4321 = vpop.f32.mrf.mxu0
        %v4322 = vadd.f32 0.0, %v4321
        %4323 = vmatprep.mubr.f32.mxu0 0.0
        %4324 = vmatmul.mubr.f32.gmra.mxu0 %v3559
        %v4325 = vpop.f32.mrf.mxu0
        %v4326 = vadd.f32 0.0, %v4325
        %v4327 = vpop.f32.mrf.mxu0
        %v4328 = vadd.f32 0.0, %v4327
        %4329 = vmatprep.mubr.f32.mxu0 0.0
        %4330 = vmatmul.mubr.f32.gmra.mxu0 %v3562
        %v4331 = vpop.f32.mrf.mxu0
        %v4332 = vadd.f32 0.0, %v4331
        %v4333 = vpop.f32.mrf.mxu0
        %v4334 = vadd.f32 0.0, %v4333
        %4335 = vmatprep.mubr.f32.mxu0 0.0
        %4336 = vmatmul.mubr.f32.gmra.mxu0 %v3565
        %v4337 = vpop.f32.mrf.mxu0
        %v4338 = vadd.f32 0.0, %v4337
        %v4339 = vpop.f32.mrf.mxu0
        %v4340 = vadd.f32 0.0, %v4339
        %4341 = vmatprep.mubr.f32.mxu0 0.0
        %4342 = vmatmul.mubr.f32.gmra.mxu0 %v3568
        %v4343 = vpop.f32.mrf.mxu0
        %v4344 = vadd.f32 0.0, %v4343
        %v4345 = vpop.f32.mrf.mxu0
        %v4346 = vadd.f32 0.0, %v4345
        %4347 = vmatprep.mubr.f32.mxu0 0.0
        %4348 = vmatmul.mubr.f32.gmra.mxu0 %v3571
        %v4349 = vpop.f32.mrf.mxu0
        %v4350 = vadd.f32 0.0, %v4349
        %v4351 = vpop.f32.mrf.mxu0
        %v4352 = vadd.f32 0.0, %v4351
        %4353 = vmatprep.mubr.f32.mxu0 0.0
        %4354 = vmatmul.mubr.f32.gmra.mxu0 %v3574
        %v4355 = vpop.f32.mrf.mxu0
        %v4356 = vadd.f32 0.0, %v4355
        %v4357 = vpop.f32.mrf.mxu0
        %v4358 = vadd.f32 0.0, %v4357
        %4359 = vmatprep.mubr.f32.mxu0 0.0
        %4360 = vmatmul.mubr.f32.gmra.mxu0 %v3577
        %v4361 = vpop.f32.mrf.mxu0
        %v4362 = vadd.f32 0.0, %v4361
        %v4363 = vpop.f32.mrf.mxu0
        %v4364 = vadd.f32 0.0, %v4363
        %4365 = vmatprep.mubr.f32.mxu0 0.0
        %4366 = vmatmul.mubr.f32.gmra.mxu0 %v3580
        %v4367 = vpop.f32.mrf.mxu0
        %v4368 = vadd.f32 0.0, %v4367
        %v4369 = vpop.f32.mrf.mxu0
        %v4370 = vadd.f32 0.0, %v4369
        %4371 = vmatprep.mubr.f32.mxu0 0.0
        %4372 = vmatmul.mubr.f32.gmra.mxu0 %v3583
        %v4373 = vpop.f32.mrf.mxu0
        %v4374 = vadd.f32 0.0, %v4373
        %v4375 = vpop.f32.mrf.mxu0
        %v4376 = vadd.f32 0.0, %v4375
        %4377 = vmatprep.mubr.f32.mxu0 0.0
        %4378 = vmatmul.mubr.f32.gmra.mxu0 %v3586
        %v4379 = vpop.f32.mrf.mxu0
        %v4380 = vadd.f32 0.0, %v4379
        %v4381 = vpop.f32.mrf.mxu0
        %v4382 = vadd.f32 0.0, %v4381
        %4383 = vmatprep.mubr.f32.mxu0 0.0
        %4384 = vmatmul.mubr.f32.gmra.mxu0 %v3589
        %v4385 = vpop.f32.mrf.mxu0
        %v4386 = vadd.f32 0.0, %v4385
        %v4387 = vpop.f32.mrf.mxu0
        %v4388 = vadd.f32 0.0, %v4387
        %4389 = vmatprep.mubr.f32.mxu0 0.0
        %4390 = vmatmul.mubr.f32.gmra.mxu0 %v3592
        %v4391 = vpop.f32.mrf.mxu0
        %v4392 = vadd.f32 0.0, %v4391
        %v4393 = vpop.f32.mrf.mxu0
        %v4394 = vadd.f32 0.0, %v4393
        %4395 = vmatprep.mubr.f32.mxu0 0.0
        %4396 = vmatmul.mubr.f32.gmra.mxu0 %v3595
        %v4397 = vpop.f32.mrf.mxu0
        %v4398 = vadd.f32 0.0, %v4397
        %v4399 = vpop.f32.mrf.mxu0
        %v4400 = vadd.f32 0.0, %v4399
        %4401 = vmatprep.mubr.f32.mxu0 0.0
        %4402 = vmatmul.mubr.f32.gmra.mxu0 %v3598
        %v4403 = vpop.f32.mrf.mxu0
        %v4404 = vadd.f32 0.0, %v4403
        %v4405 = vpop.f32.mrf.mxu0
        %v4406 = vadd.f32 0.0, %v4405
        %4407 = vmatprep.mubr.f32.mxu0 0.0
        %4408 = vmatmul.mubr.f32.gmra.mxu0 %v3601
        %v4409 = vpop.f32.mrf.mxu0
        %v4410 = vadd.f32 0.0, %v4409
        %v4411 = vpop.f32.mrf.mxu0
        %v4412 = vadd.f32 0.0, %v4411
        %4413 = vmatprep.mubr.f32.mxu0 0.0
        %4414 = vmatmul.mubr.f32.gmra.mxu0 %v3604
        %v4415 = vpop.f32.mrf.mxu0
        %v4416 = vadd.f32 0.0, %v4415
        %v4417 = vpop.f32.mrf.mxu0
        %v4418 = vadd.f32 0.0, %v4417
        %4419 = vmatprep.mubr.f32.mxu0 0.0
        %4420 = vmatmul.mubr.f32.gmra.mxu0 %v3607
        %v4421 = vpop.f32.mrf.mxu0
        %v4422 = vadd.f32 0.0, %v4421
        %v4423 = vpop.f32.mrf.mxu0
        %v4424 = vadd.f32 0.0, %v4423
        %4425 = vmatprep.mubr.f32.mxu0 0.0
        %4426 = vmatmul.mubr.f32.gmra.mxu0 %v3610
        %v4427 = vpop.f32.mrf.mxu0
        %v4428 = vadd.f32 0.0, %v4427
        %v4429 = vpop.f32.mrf.mxu0
        %v4430 = vadd.f32 0.0, %v4429
        %4431 = vmatprep.mubr.f32.mxu0 0.0
        %4432 = vmatmul.mubr.f32.gmra.mxu0 %v3613
        %v4433 = vpop.f32.mrf.mxu0
        %v4434 = vadd.f32 0.0, %v4433
        %v4435 = vpop.f32.mrf.mxu0
        %v4436 = vadd.f32 0.0, %v4435
        %4437 = vmatprep.mubr.f32.mxu0 0.0
        %4438 = vmatmul.mubr.f32.gmra.mxu0 %v3616
        %v4439 = vpop.f32.mrf.mxu0
        %v4440 = vadd.f32 0.0, %v4439
        %v4441 = vpop.f32.mrf.mxu0
        %v4442 = vadd.f32 0.0, %v4441
        %4443 = vmatprep.mubr.f32.mxu0 0.0
        %4444 = vmatmul.mubr.f32.gmra.mxu0 %v3619
        %v4445 = vpop.f32.mrf.mxu0
        %v4446 = vadd.f32 0.0, %v4445
        %v4447 = vpop.f32.mrf.mxu0
        %v4448 = vadd.f32 0.0, %v4447
        %4449 = vmatprep.mubr.f32.mxu0 0.0
        %4450 = vmatmul.mubr.f32.gmra.mxu0 %v3622
        %v4451 = vpop.f32.mrf.mxu0
        %v4452 = vadd.f32 0.0, %v4451
        %v4453 = vpop.f32.mrf.mxu0
        %v4454 = vadd.f32 0.0, %v4453
        %4455 = vmatprep.mubr.f32.mxu0 0.0
        %4456 = vmatmul.mubr.f32.gmra.mxu0 %v3625
        %v4457 = vpop.f32.mrf.mxu0
        %v4458 = vadd.f32 0.0, %v4457
        %v4459 = vpop.f32.mrf.mxu0
        %v4460 = vadd.f32 0.0, %v4459
        %4461 = vmatprep.mubr.f32.mxu0 0.0
        %4462 = vmatmul.mubr.f32.gmra.mxu0 %v3628
        %v4463 = vpop.f32.mrf.mxu0
        %v4464 = vadd.f32 0.0, %v4463
        %v4465 = vpop.f32.mrf.mxu0
        %v4466 = vadd.f32 0.0, %v4465
        %4467 = vmatprep.mubr.f32.mxu0 0.0
        %4468 = vmatmul.mubr.f32.gmra.mxu0 %v3631
        %v4469 = vpop.f32.mrf.mxu0
        %v4470 = vadd.f32 0.0, %v4469
        %v4471 = vpop.f32.mrf.mxu0
        %v4472 = vadd.f32 0.0, %v4471
        %4473 = vmatprep.mubr.f32.mxu0 0.0
        %4474 = vmatmul.mubr.f32.gmra.mxu0 %v3634
        %v4475 = vpop.f32.mrf.mxu0
        %v4476 = vadd.f32 0.0, %v4475
        %v4477 = vpop.f32.mrf.mxu0
        %v4478 = vadd.f32 0.0, %v4477
        %4479 = vmatprep.mubr.f32.mxu0 0.0
        %4480 = vmatmul.mubr.f32.gmra.mxu0 %v3637
        %v4481 = vpop.f32.mrf.mxu0
        %v4482 = vadd.f32 0.0, %v4481
        %v4483 = vpop.f32.mrf.mxu0
        %v4484 = vadd.f32 0.0, %v4483
        %4485 = vmatprep.mubr.f32.mxu0 0.0
        %4486 = vmatmul.mubr.f32.gmra.mxu0 %v3640
        %v4487 = vpop.f32.mrf.mxu0
        %v4488 = vadd.f32 0.0, %v4487
        %v4489 = vpop.f32.mrf.mxu0
        %v4490 = vadd.f32 0.0, %v4489
        %4491 = vmatprep.mubr.f32.mxu0 0.0
        %4492 = vmatmul.mubr.f32.gmra.mxu0 %v3643
        %v4493 = vpop.f32.mrf.mxu0
        %v4494 = vadd.f32 0.0, %v4493
        %v4495 = vpop.f32.mrf.mxu0
        %v4496 = vadd.f32 0.0, %v4495
        %4497 = vmatprep.mubr.f32.mxu0 0.0
        %4498 = vmatmul.mubr.f32.gmra.mxu0 %v3646
        %v4499 = vpop.f32.mrf.mxu0
        %v4500 = vadd.f32 0.0, %v4499
        %v4501 = vpop.f32.mrf.mxu0
        %v4502 = vadd.f32 0.0, %v4501
        %4503 = vmatprep.mubr.f32.mxu0 0.0
        %4504 = vmatmul.mubr.f32.gmra.mxu0 %v3649
        %v4505 = vpop.f32.mrf.mxu0
        %v4506 = vadd.f32 0.0, %v4505
        %v4507 = vpop.f32.mrf.mxu0
        %v4508 = vadd.f32 0.0, %v4507
        %4509 = vmatprep.mubr.f32.mxu0 0.0
        %4510 = vmatmul.mubr.f32.gmra.mxu0 %v3652
        %v4511 = vpop.f32.mrf.mxu0
        %v4512 = vadd.f32 0.0, %v4511
        %v4513 = vpop.f32.mrf.mxu0
        %v4514 = vadd.f32 0.0, %v4513
        %4515 = vmatprep.mubr.f32.mxu0 0.0
        %4516 = vmatmul.mubr.f32.gmra.mxu0 %v3655
        %v4517 = vpop.f32.mrf.mxu0
        %v4518 = vadd.f32 0.0, %v4517
        %v4519 = vpop.f32.mrf.mxu0
        %v4520 = vadd.f32 0.0, %v4519
        %4521 = vmatprep.mubr.f32.mxu0 0.0
        %4522 = vmatmul.mubr.f32.gmra.mxu0 %v3658
        %v4523 = vpop.f32.mrf.mxu0
        %v4524 = vadd.f32 0.0, %v4523
        %v4525 = vpop.f32.mrf.mxu0
        %v4526 = vadd.f32 0.0, %v4525
        %4527 = vmatprep.mubr.f32.mxu0 0.0
        %4528 = vmatmul.mubr.f32.gmra.mxu0 %v3661
        %v4529 = vpop.f32.mrf.mxu0
        %v4530 = vadd.f32 0.0, %v4529
        %v4531 = vpop.f32.mrf.mxu0
        %v4532 = vadd.f32 0.0, %v4531
        %4533 = vmatprep.mubr.f32.mxu0 0.0
        %4534 = vmatmul.mubr.f32.gmra.mxu0 %v3664
        %v4535 = vpop.f32.mrf.mxu0
        %v4536 = vadd.f32 0.0, %v4535
        %v4537 = vpop.f32.mrf.mxu0
        %v4538 = vadd.f32 0.0, %v4537
        %4539 = vmatprep.mubr.f32.mxu0 0.0
        %4540 = vmatmul.mubr.f32.gmra.mxu0 %v3667
        %v4541 = vpop.f32.mrf.mxu0
        %v4542 = vadd.f32 0.0, %v4541
        %v4543 = vpop.f32.mrf.mxu0
        %v4544 = vadd.f32 0.0, %v4543
        %4545 = vmatprep.mubr.f32.mxu0 0.0
        %4546 = vmatmul.mubr.f32.gmra.mxu0 %v3670
        %v4547 = vpop.f32.mrf.mxu0
        %v4548 = vadd.f32 0.0, %v4547
        %v4549 = vpop.f32.mrf.mxu0
        %v4550 = vadd.f32 0.0, %v4549
        %4551 = vmatprep.mubr.f32.mxu0 0.0
        %4552 = vmatmul.mubr.f32.gmra.mxu0 %v3673
        %v4553 = vpop.f32.mrf.mxu0
        %v4554 = vadd.f32 0.0, %v4553
        %v4555 = vpop.f32.mrf.mxu0
        %v4556 = vadd.f32 0.0, %v4555
        %4557 = vmatprep.mubr.f32.mxu0 0.0
        %4558 = vmatmul.mubr.f32.gmra.mxu0 %v3676
        %v4559 = vpop.f32.mrf.mxu0
        %v4560 = vadd.f32 0.0, %v4559
        %v4561 = vpop.f32.mrf.mxu0
        %v4562 = vadd.f32 0.0, %v4561
        %4563 = vmatprep.mubr.f32.mxu0 0.0
        %4564 = vmatmul.mubr.f32.gmra.mxu0 %v3679
        %v4565 = vpop.f32.mrf.mxu0
        %v4566 = vadd.f32 0.0, %v4565
        %v4567 = vpop.f32.mrf.mxu0
        %v4568 = vadd.f32 0.0, %v4567
        %4569 = vmatprep.mubr.f32.mxu0 0.0
        %4570 = vmatmul.mubr.f32.gmra.mxu0 %v3682
        %v4571 = vpop.f32.mrf.mxu0
        %v4572 = vadd.f32 0.0, %v4571
        %v4573 = vpop.f32.mrf.mxu0
        %v4574 = vadd.f32 0.0, %v4573
        %4575 = vmatprep.mubr.f32.mxu0 0.0
        %4576 = vmatmul.mubr.f32.gmra.mxu0 %v3685
        %v4577 = vpop.f32.mrf.mxu0
        %v4578 = vadd.f32 0.0, %v4577
        %v4579 = vpop.f32.mrf.mxu0
        %v4580 = vadd.f32 0.0, %v4579
        %4581 = vmatprep.mubr.f32.mxu0 0.0
        %4582 = vmatmul.mubr.f32.gmra.mxu0 %v3688
        %v4583 = vpop.f32.mrf.mxu0
        %v4584 = vadd.f32 0.0, %v4583
        %v4585 = vpop.f32.mrf.mxu0
        %v4586 = vadd.f32 0.0, %v4585
        %4587 = vdwg.mxu0
        %v4588 = vmax.f32 %v3757, %v3759
        %v4589 = vmax.f32 %v4588, %v4206
        %v4590 = vmax.f32 %v4589, %v4208
        %4591 = vmax.xlane.f32.xlu0 %v4590
        %v4592 = vpop.xlane.xlu0 %4591
        %v4593 = vmax.f32 %v3763, %v3765
        %v4594 = vmax.f32 %v4593, %v4212
        %v4595 = vmax.f32 %v4594, %v4214
        %4596 = vmax.xlane.f32.xlu0 %v4595
        %v4597 = vpop.xlane.xlu0 %4596
        %v4598 = vmax.f32 %v3769, %v3771
        %v4599 = vmax.f32 %v4598, %v4218
        %v4600 = vmax.f32 %v4599, %v4220
        %4601 = vmax.xlane.f32.xlu0 %v4600
        %v4602 = vpop.xlane.xlu0 %4601
        %v4603 = vmax.f32 %v3775, %v3777
        %v4604 = vmax.f32 %v4603, %v4224
        %v4605 = vmax.f32 %v4604, %v4226
        %4606 = vmax.xlane.f32.xlu0 %v4605
        %v4607 = vpop.xlane.xlu0 %4606
        %v4608 = vmax.f32 %v3781, %v3783
        %v4609 = vmax.f32 %v4608, %v4230
        %v4610 = vmax.f32 %v4609, %v4232
        %4611 = vmax.xlane.f32.xlu0 %v4610
        %v4612 = vpop.xlane.xlu0 %4611
        %v4613 = vmax.f32 %v3787, %v3789
        %v4614 = vmax.f32 %v4613, %v4236
        %v4615 = vmax.f32 %v4614, %v4238
        %4616 = vmax.xlane.f32.xlu0 %v4615
        %v4617 = vpop.xlane.xlu0 %4616
        %v4618 = vmax.f32 %v3793, %v3795
        %v4619 = vmax.f32 %v4618, %v4242
        %v4620 = vmax.f32 %v4619, %v4244
        %4621 = vmax.xlane.f32.xlu0 %v4620
        %v4622 = vpop.xlane.xlu0 %4621
        %v4623 = vmax.f32 %v3799, %v3801
        %v4624 = vmax.f32 %v4623, %v4248
        %v4625 = vmax.f32 %v4624, %v4250
        %4626 = vmax.xlane.f32.xlu0 %v4625
        %v4627 = vpop.xlane.xlu0 %4626
        %v4628 = vmax.f32 %v3805, %v3807
        %v4629 = vmax.f32 %v4628, %v4254
        %v4630 = vmax.f32 %v4629, %v4256
        %4631 = vmax.xlane.f32.xlu0 %v4630
        %v4632 = vpop.xlane.xlu0 %4631
        %v4633 = vmax.f32 %v3811, %v3813
        %v4634 = vmax.f32 %v4633, %v4260
        %v4635 = vmax.f32 %v4634, %v4262
        %4636 = vmax.xlane.f32.xlu0 %v4635
        %v4637 = vpop.xlane.xlu0 %4636
        %v4638 = vmax.f32 %v3817, %v3819
        %v4639 = vmax.f32 %v4638, %v4266
        %v4640 = vmax.f32 %v4639, %v4268
        %4641 = vmax.xlane.f32.xlu0 %v4640
        %v4642 = vpop.xlane.xlu0 %4641
        %v4643 = vmax.f32 %v3823, %v3825
        %v4644 = vmax.f32 %v4643, %v4272
        %v4645 = vmax.f32 %v4644, %v4274
        %4646 = vmax.xlane.f32.xlu0 %v4645
        %v4647 = vpop.xlane.xlu0 %4646
        %v4648 = vmax.f32 %v3829, %v3831
        %v4649 = vmax.f32 %v4648, %v4278
        %v4650 = vmax.f32 %v4649, %v4280
        %4651 = vmax.xlane.f32.xlu0 %v4650
        %v4652 = vpop.xlane.xlu0 %4651
        %v4653 = vmax.f32 %v3835, %v3837
        %v4654 = vmax.f32 %v4653, %v4284
        %v4655 = vmax.f32 %v4654, %v4286
        %4656 = vmax.xlane.f32.xlu0 %v4655
        %v4657 = vpop.xlane.xlu0 %4656
        %v4658 = vmax.f32 %v3841, %v3843
        %v4659 = vmax.f32 %v4658, %v4290
        %v4660 = vmax.f32 %v4659, %v4292
        %4661 = vmax.xlane.f32.xlu0 %v4660
        %v4662 = vpop.xlane.xlu0 %4661
        %v4663 = vmax.f32 %v3847, %v3849
        %v4664 = vmax.f32 %v4663, %v4296
        %v4665 = vmax.f32 %v4664, %v4298
        %4666 = vmax.xlane.f32.xlu0 %v4665
        %v4667 = vpop.xlane.xlu0 %4666
        %v4668 = vmax.f32 %v3853, %v3855
        %v4669 = vmax.f32 %v4668, %v4302
        %v4670 = vmax.f32 %v4669, %v4304
        %4671 = vmax.xlane.f32.xlu0 %v4670
        %v4672 = vpop.xlane.xlu0 %4671
        %v4673 = vmax.f32 %v3859, %v3861
        %v4674 = vmax.f32 %v4673, %v4308
        %v4675 = vmax.f32 %v4674, %v4310
        %4676 = vmax.xlane.f32.xlu0 %v4675
        %v4677 = vpop.xlane.xlu0 %4676
        %v4678 = vmax.f32 %v3865, %v3867
        %v4679 = vmax.f32 %v4678, %v4314
        %v4680 = vmax.f32 %v4679, %v4316
        %4681 = vmax.xlane.f32.xlu0 %v4680
        %v4682 = vpop.xlane.xlu0 %4681
        %v4683 = vmax.f32 %v3871, %v3873
        %v4684 = vmax.f32 %v4683, %v4320
        %v4685 = vmax.f32 %v4684, %v4322
        %4686 = vmax.xlane.f32.xlu0 %v4685
        %v4687 = vpop.xlane.xlu0 %4686
        %v4688 = vmax.f32 %v3877, %v3879
        %v4689 = vmax.f32 %v4688, %v4326
        %v4690 = vmax.f32 %v4689, %v4328
        %4691 = vmax.xlane.f32.xlu0 %v4690
        %v4692 = vpop.xlane.xlu0 %4691
        %v4693 = vmax.f32 %v3883, %v3885
        %v4694 = vmax.f32 %v4693, %v4332
        %v4695 = vmax.f32 %v4694, %v4334
        %4696 = vmax.xlane.f32.xlu0 %v4695
        %v4697 = vpop.xlane.xlu0 %4696
        %v4698 = vmax.f32 %v3889, %v3891
        %v4699 = vmax.f32 %v4698, %v4338
        %v4700 = vmax.f32 %v4699, %v4340
        %4701 = vmax.xlane.f32.xlu0 %v4700
        %v4702 = vpop.xlane.xlu0 %4701
        %v4703 = vmax.f32 %v3895, %v3897
        %v4704 = vmax.f32 %v4703, %v4344
        %v4705 = vmax.f32 %v4704, %v4346
        %4706 = vmax.xlane.f32.xlu0 %v4705
        %v4707 = vpop.xlane.xlu0 %4706
        %v4708 = vmax.f32 %v3901, %v3903
        %v4709 = vmax.f32 %v4708, %v4350
        %v4710 = vmax.f32 %v4709, %v4352
        %4711 = vmax.xlane.f32.xlu0 %v4710
        %v4712 = vpop.xlane.xlu0 %4711
        %v4713 = vmax.f32 %v3907, %v3909
        %v4714 = vmax.f32 %v4713, %v4356
        %v4715 = vmax.f32 %v4714, %v4358
        %4716 = vmax.xlane.f32.xlu0 %v4715
        %v4717 = vpop.xlane.xlu0 %4716
        %v4718 = vmax.f32 %v3913, %v3915
        %v4719 = vmax.f32 %v4718, %v4362
        %v4720 = vmax.f32 %v4719, %v4364
        %4721 = vmax.xlane.f32.xlu0 %v4720
        %v4722 = vpop.xlane.xlu0 %4721
        %v4723 = vmax.f32 %v3919, %v3921
        %v4724 = vmax.f32 %v4723, %v4368
        %v4725 = vmax.f32 %v4724, %v4370
        %4726 = vmax.xlane.f32.xlu0 %v4725
        %v4727 = vpop.xlane.xlu0 %4726
        %v4728 = vmax.f32 %v3925, %v3927
        %v4729 = vmax.f32 %v4728, %v4374
        %v4730 = vmax.f32 %v4729, %v4376
        %4731 = vmax.xlane.f32.xlu0 %v4730
        %v4732 = vpop.xlane.xlu0 %4731
        %v4733 = vmax.f32 %v3931, %v3933
        %v4734 = vmax.f32 %v4733, %v4380
        %v4735 = vmax.f32 %v4734, %v4382
        %4736 = vmax.xlane.f32.xlu0 %v4735
        %v4737 = vpop.xlane.xlu0 %4736
        %v4738 = vmax.f32 %v3937, %v3939
        %v4739 = vmax.f32 %v4738, %v4386
        %v4740 = vmax.f32 %v4739, %v4388
        %4741 = vmax.xlane.f32.xlu0 %v4740
        %v4742 = vpop.xlane.xlu0 %4741
        %v4743 = vmax.f32 %v3943, %v3945
        %v4744 = vmax.f32 %v4743, %v4392
        %v4745 = vmax.f32 %v4744, %v4394
        %4746 = vmax.xlane.f32.xlu0 %v4745
        %v4747 = vpop.xlane.xlu0 %4746
        %v4748 = vmax.f32 %v3949, %v3951
        %v4749 = vmax.f32 %v4748, %v4398
        %v4750 = vmax.f32 %v4749, %v4400
        %4751 = vmax.xlane.f32.xlu0 %v4750
        %v4752 = vpop.xlane.xlu0 %4751
        %v4753 = vmax.f32 %v3955, %v3957
        %v4754 = vmax.f32 %v4753, %v4404
        %v4755 = vmax.f32 %v4754, %v4406
        %4756 = vmax.xlane.f32.xlu0 %v4755
        %v4757 = vpop.xlane.xlu0 %4756
        %v4758 = vmax.f32 %v3961, %v3963
        %v4759 = vmax.f32 %v4758, %v4410
        %v4760 = vmax.f32 %v4759, %v4412
        %4761 = vmax.xlane.f32.xlu0 %v4760
        %v4762 = vpop.xlane.xlu0 %4761
        %v4763 = vmax.f32 %v3967, %v3969
        %v4764 = vmax.f32 %v4763, %v4416
        %v4765 = vmax.f32 %v4764, %v4418
        %4766 = vmax.xlane.f32.xlu0 %v4765
        %v4767 = vpop.xlane.xlu0 %4766
        %v4768 = vmax.f32 %v3973, %v3975
        %v4769 = vmax.f32 %v4768, %v4422
        %v4770 = vmax.f32 %v4769, %v4424
        %4771 = vmax.xlane.f32.xlu0 %v4770
        %v4772 = vpop.xlane.xlu0 %4771
        %v4773 = vmax.f32 %v3979, %v3981
        %v4774 = vmax.f32 %v4773, %v4428
        %v4775 = vmax.f32 %v4774, %v4430
        %4776 = vmax.xlane.f32.xlu0 %v4775
        %v4777 = vpop.xlane.xlu0 %4776
        %v4778 = vmax.f32 %v3985, %v3987
        %v4779 = vmax.f32 %v4778, %v4434
        %v4780 = vmax.f32 %v4779, %v4436
        %4781 = vmax.xlane.f32.xlu0 %v4780
        %v4782 = vpop.xlane.xlu0 %4781
        %v4783 = vmax.f32 %v3991, %v3993
        %v4784 = vmax.f32 %v4783, %v4440
        %v4785 = vmax.f32 %v4784, %v4442
        %4786 = vmax.xlane.f32.xlu0 %v4785
        %v4787 = vpop.xlane.xlu0 %4786
        %v4788 = vmax.f32 %v3997, %v3999
        %v4789 = vmax.f32 %v4788, %v4446
        %v4790 = vmax.f32 %v4789, %v4448
        %4791 = vmax.xlane.f32.xlu0 %v4790
        %v4792 = vpop.xlane.xlu0 %4791
        %v4793 = vmax.f32 %v4003, %v4005
        %v4794 = vmax.f32 %v4793, %v4452
        %v4795 = vmax.f32 %v4794, %v4454
        %4796 = vmax.xlane.f32.xlu0 %v4795
        %v4797 = vpop.xlane.xlu0 %4796
        %v4798 = vmax.f32 %v4009, %v4011
        %v4799 = vmax.f32 %v4798, %v4458
        %v4800 = vmax.f32 %v4799, %v4460
        %4801 = vmax.xlane.f32.xlu0 %v4800
        %v4802 = vpop.xlane.xlu0 %4801
        %v4803 = vmax.f32 %v4015, %v4017
        %v4804 = vmax.f32 %v4803, %v4464
        %v4805 = vmax.f32 %v4804, %v4466
        %4806 = vmax.xlane.f32.xlu0 %v4805
        %v4807 = vpop.xlane.xlu0 %4806
        %v4808 = vmax.f32 %v4021, %v4023
        %v4809 = vmax.f32 %v4808, %v4470
        %v4810 = vmax.f32 %v4809, %v4472
        %4811 = vmax.xlane.f32.xlu0 %v4810
        %v4812 = vpop.xlane.xlu0 %4811
        %v4813 = vmax.f32 %v4027, %v4029
        %v4814 = vmax.f32 %v4813, %v4476
        %v4815 = vmax.f32 %v4814, %v4478
        %4816 = vmax.xlane.f32.xlu0 %v4815
        %v4817 = vpop.xlane.xlu0 %4816
        %v4818 = vmax.f32 %v4033, %v4035
        %v4819 = vmax.f32 %v4818, %v4482
        %v4820 = vmax.f32 %v4819, %v4484
        %4821 = vmax.xlane.f32.xlu0 %v4820
        %v4822 = vpop.xlane.xlu0 %4821
        %v4823 = vmax.f32 %v4039, %v4041
        %v4824 = vmax.f32 %v4823, %v4488
        %v4825 = vmax.f32 %v4824, %v4490
        %4826 = vmax.xlane.f32.xlu0 %v4825
        %v4827 = vpop.xlane.xlu0 %4826
        %v4828 = vmax.f32 %v4045, %v4047
        %v4829 = vmax.f32 %v4828, %v4494
        %v4830 = vmax.f32 %v4829, %v4496
        %4831 = vmax.xlane.f32.xlu0 %v4830
        %v4832 = vpop.xlane.xlu0 %4831
        %v4833 = vmax.f32 %v4051, %v4053
        %v4834 = vmax.f32 %v4833, %v4500
        %v4835 = vmax.f32 %v4834, %v4502
        %4836 = vmax.xlane.f32.xlu0 %v4835
        %v4837 = vpop.xlane.xlu0 %4836
        %v4838 = vmax.f32 %v4057, %v4059
        %v4839 = vmax.f32 %v4838, %v4506
        %v4840 = vmax.f32 %v4839, %v4508
        %4841 = vmax.xlane.f32.xlu0 %v4840
        %v4842 = vpop.xlane.xlu0 %4841
        %v4843 = vmax.f32 %v4063, %v4065
        %v4844 = vmax.f32 %v4843, %v4512
        %v4845 = vmax.f32 %v4844, %v4514
        %4846 = vmax.xlane.f32.xlu0 %v4845
        %v4847 = vpop.xlane.xlu0 %4846
        %v4848 = vmax.f32 %v4069, %v4071
        %v4849 = vmax.f32 %v4848, %v4518
        %v4850 = vmax.f32 %v4849, %v4520
        %4851 = vmax.xlane.f32.xlu0 %v4850
        %v4852 = vpop.xlane.xlu0 %4851
        %v4853 = vmax.f32 %v4075, %v4077
        %v4854 = vmax.f32 %v4853, %v4524
        %v4855 = vmax.f32 %v4854, %v4526
        %4856 = vmax.xlane.f32.xlu0 %v4855
        %v4857 = vpop.xlane.xlu0 %4856
        %v4858 = vmax.f32 %v4081, %v4083
        %v4859 = vmax.f32 %v4858, %v4530
        %v4860 = vmax.f32 %v4859, %v4532
        %4861 = vmax.xlane.f32.xlu0 %v4860
        %v4862 = vpop.xlane.xlu0 %4861
        %v4863 = vmax.f32 %v4087, %v4089
        %v4864 = vmax.f32 %v4863, %v4536
        %v4865 = vmax.f32 %v4864, %v4538
        %4866 = vmax.xlane.f32.xlu0 %v4865
        %v4867 = vpop.xlane.xlu0 %4866
        %v4868 = vmax.f32 %v4093, %v4095
        %v4869 = vmax.f32 %v4868, %v4542
        %v4870 = vmax.f32 %v4869, %v4544
        %4871 = vmax.xlane.f32.xlu0 %v4870
        %v4872 = vpop.xlane.xlu0 %4871
        %v4873 = vmax.f32 %v4099, %v4101
        %v4874 = vmax.f32 %v4873, %v4548
        %v4875 = vmax.f32 %v4874, %v4550
        %4876 = vmax.xlane.f32.xlu0 %v4875
        %v4877 = vpop.xlane.xlu0 %4876
        %v4878 = vmax.f32 %v4105, %v4107
        %v4879 = vmax.f32 %v4878, %v4554
        %v4880 = vmax.f32 %v4879, %v4556
        %4881 = vmax.xlane.f32.xlu0 %v4880
        %v4882 = vpop.xlane.xlu0 %4881
        %v4883 = vmax.f32 %v4111, %v4113
        %v4884 = vmax.f32 %v4883, %v4560
        %v4885 = vmax.f32 %v4884, %v4562
        %4886 = vmax.xlane.f32.xlu0 %v4885
        %v4887 = vpop.xlane.xlu0 %4886
        %v4888 = vmax.f32 %v4117, %v4119
        %v4889 = vmax.f32 %v4888, %v4566
        %v4890 = vmax.f32 %v4889, %v4568
        %4891 = vmax.xlane.f32.xlu0 %v4890
        %v4892 = vpop.xlane.xlu0 %4891
        %v4893 = vmax.f32 %v4123, %v4125
        %v4894 = vmax.f32 %v4893, %v4572
        %v4895 = vmax.f32 %v4894, %v4574
        %4896 = vmax.xlane.f32.xlu0 %v4895
        %v4897 = vpop.xlane.xlu0 %4896
        %v4898 = vmax.f32 %v4129, %v4131
        %v4899 = vmax.f32 %v4898, %v4578
        %v4900 = vmax.f32 %v4899, %v4580
        %4901 = vmax.xlane.f32.xlu0 %v4900
        %v4902 = vpop.xlane.xlu0 %4901
        %v4903 = vmax.f32 %v4135, %v4137
        %v4904 = vmax.f32 %v4903, %v4584
        %v4905 = vmax.f32 %v4904, %v4586
        %4906 = vmax.xlane.f32.xlu0 %v4905
        %v4907 = vpop.xlane.xlu0 %4906
        %v4908 = vsub.f32 %v3757, %v4592
        %v4909 = vsub.f32 %v3759, %v4592
        %v4910 = vsub.f32 %v4206, %v4592
        %v4911 = vsub.f32 %v4208, %v4592
        %v4912 = vsub.f32 %v3763, %v4597
        %v4913 = vsub.f32 %v3765, %v4597
        %v4914 = vsub.f32 %v4212, %v4597
        %v4915 = vsub.f32 %v4214, %v4597
        %v4916 = vsub.f32 %v3769, %v4602
        %v4917 = vsub.f32 %v3771, %v4602
        %v4918 = vsub.f32 %v4218, %v4602
        %v4919 = vsub.f32 %v4220, %v4602
        %v4920 = vsub.f32 %v3775, %v4607
        %v4921 = vsub.f32 %v3777, %v4607
        %v4922 = vsub.f32 %v4224, %v4607
        %v4923 = vsub.f32 %v4226, %v4607
        %v4924 = vsub.f32 %v3781, %v4612
        %v4925 = vsub.f32 %v3783, %v4612
        %v4926 = vsub.f32 %v4230, %v4612
        %v4927 = vsub.f32 %v4232, %v4612
        %v4928 = vsub.f32 %v3787, %v4617
        %v4929 = vsub.f32 %v3789, %v4617
        %v4930 = vsub.f32 %v4236, %v4617
        %v4931 = vsub.f32 %v4238, %v4617
        %v4932 = vsub.f32 %v3793, %v4622
        %v4933 = vsub.f32 %v3795, %v4622
        %v4934 = vsub.f32 %v4242, %v4622
        %v4935 = vsub.f32 %v4244, %v4622
        %v4936 = vsub.f32 %v3799, %v4627
        %v4937 = vsub.f32 %v3801, %v4627
        %v4938 = vsub.f32 %v4248, %v4627
        %v4939 = vsub.f32 %v4250, %v4627
        %v4940 = vsub.f32 %v3805, %v4632
        %v4941 = vsub.f32 %v3807, %v4632
        %v4942 = vsub.f32 %v4254, %v4632
        %v4943 = vsub.f32 %v4256, %v4632
        %v4944 = vsub.f32 %v3811, %v4637
        %v4945 = vsub.f32 %v3813, %v4637
        %v4946 = vsub.f32 %v4260, %v4637
        %v4947 = vsub.f32 %v4262, %v4637
        %v4948 = vsub.f32 %v3817, %v4642
        %v4949 = vsub.f32 %v3819, %v4642
        %v4950 = vsub.f32 %v4266, %v4642
        %v4951 = vsub.f32 %v4268, %v4642
        %v4952 = vsub.f32 %v3823, %v4647
        %v4953 = vsub.f32 %v3825, %v4647
        %v4954 = vsub.f32 %v4272, %v4647
        %v4955 = vsub.f32 %v4274, %v4647
        %v4956 = vsub.f32 %v3829, %v4652
        %v4957 = vsub.f32 %v3831, %v4652
        %v4958 = vsub.f32 %v4278, %v4652
        %v4959 = vsub.f32 %v4280, %v4652
        %v4960 = vsub.f32 %v3835, %v4657
        %v4961 = vsub.f32 %v3837, %v4657
        %v4962 = vsub.f32 %v4284, %v4657
        %v4963 = vsub.f32 %v4286, %v4657
        %v4964 = vsub.f32 %v3841, %v4662
        %v4965 = vsub.f32 %v3843, %v4662
        %v4966 = vsub.f32 %v4290, %v4662
        %v4967 = vsub.f32 %v4292, %v4662
        %v4968 = vsub.f32 %v3847, %v4667
        %v4969 = vsub.f32 %v3849, %v4667
        %v4970 = vsub.f32 %v4296, %v4667
        %v4971 = vsub.f32 %v4298, %v4667
        %v4972 = vsub.f32 %v3853, %v4672
        %v4973 = vsub.f32 %v3855, %v4672
        %v4974 = vsub.f32 %v4302, %v4672
        %v4975 = vsub.f32 %v4304, %v4672
        %v4976 = vsub.f32 %v3859, %v4677
        %v4977 = vsub.f32 %v3861, %v4677
        %v4978 = vsub.f32 %v4308, %v4677
        %v4979 = vsub.f32 %v4310, %v4677
        %v4980 = vsub.f32 %v3865, %v4682
        %v4981 = vsub.f32 %v3867, %v4682
        %v4982 = vsub.f32 %v4314, %v4682
        %v4983 = vsub.f32 %v4316, %v4682
        %v4984 = vsub.f32 %v3871, %v4687
        %v4985 = vsub.f32 %v3873, %v4687
        %v4986 = vsub.f32 %v4320, %v4687
        %v4987 = vsub.f32 %v4322, %v4687
        %v4988 = vsub.f32 %v3877, %v4692
        %v4989 = vsub.f32 %v3879, %v4692
        %v4990 = vsub.f32 %v4326, %v4692
        %v4991 = vsub.f32 %v4328, %v4692
        %v4992 = vsub.f32 %v3883, %v4697
        %v4993 = vsub.f32 %v3885, %v4697
        %v4994 = vsub.f32 %v4332, %v4697
        %v4995 = vsub.f32 %v4334, %v4697
        %v4996 = vsub.f32 %v3889, %v4702
        %v4997 = vsub.f32 %v3891, %v4702
        %v4998 = vsub.f32 %v4338, %v4702
        %v4999 = vsub.f32 %v4340, %v4702
        %v5000 = vsub.f32 %v3895, %v4707
        %v5001 = vsub.f32 %v3897, %v4707
        %v5002 = vsub.f32 %v4344, %v4707
        %v5003 = vsub.f32 %v4346, %v4707
        %v5004 = vsub.f32 %v3901, %v4712
        %v5005 = vsub.f32 %v3903, %v4712
        %v5006 = vsub.f32 %v4350, %v4712
        %v5007 = vsub.f32 %v4352, %v4712
        %v5008 = vsub.f32 %v3907, %v4717
        %v5009 = vsub.f32 %v3909, %v4717
        %v5010 = vsub.f32 %v4356, %v4717
        %v5011 = vsub.f32 %v4358, %v4717
        %v5012 = vsub.f32 %v3913, %v4722
        %v5013 = vsub.f32 %v3915, %v4722
        %v5014 = vsub.f32 %v4362, %v4722
        %v5015 = vsub.f32 %v4364, %v4722
        %v5016 = vsub.f32 %v3919, %v4727
        %v5017 = vsub.f32 %v3921, %v4727
        %v5018 = vsub.f32 %v4368, %v4727
        %v5019 = vsub.f32 %v4370, %v4727
        %v5020 = vsub.f32 %v3925, %v4732
        %v5021 = vsub.f32 %v3927, %v4732
        %v5022 = vsub.f32 %v4374, %v4732
        %v5023 = vsub.f32 %v4376, %v4732
        %v5024 = vsub.f32 %v3931, %v4737
        %v5025 = vsub.f32 %v3933, %v4737
        %v5026 = vsub.f32 %v4380, %v4737
        %v5027 = vsub.f32 %v4382, %v4737
        %v5028 = vsub.f32 %v3937, %v4742
        %v5029 = vsub.f32 %v3939, %v4742
        %v5030 = vsub.f32 %v4386, %v4742
        %v5031 = vsub.f32 %v4388, %v4742
        %v5032 = vsub.f32 %v3943, %v4747
        %v5033 = vsub.f32 %v3945, %v4747
        %v5034 = vsub.f32 %v4392, %v4747
        %v5035 = vsub.f32 %v4394, %v4747
        %v5036 = vsub.f32 %v3949, %v4752
        %v5037 = vsub.f32 %v3951, %v4752
        %v5038 = vsub.f32 %v4398, %v4752
        %v5039 = vsub.f32 %v4400, %v4752
        %v5040 = vsub.f32 %v3955, %v4757
        %v5041 = vsub.f32 %v3957, %v4757
        %v5042 = vsub.f32 %v4404, %v4757
        %v5043 = vsub.f32 %v4406, %v4757
        %v5044 = vsub.f32 %v3961, %v4762
        %v5045 = vsub.f32 %v3963, %v4762
        %v5046 = vsub.f32 %v4410, %v4762
        %v5047 = vsub.f32 %v4412, %v4762
        %v5048 = vsub.f32 %v3967, %v4767
        %v5049 = vsub.f32 %v3969, %v4767
        %v5050 = vsub.f32 %v4416, %v4767
        %v5051 = vsub.f32 %v4418, %v4767
        %v5052 = vsub.f32 %v3973, %v4772
        %v5053 = vsub.f32 %v3975, %v4772
        %v5054 = vsub.f32 %v4422, %v4772
        %v5055 = vsub.f32 %v4424, %v4772
        %v5056 = vsub.f32 %v3979, %v4777
        %v5057 = vsub.f32 %v3981, %v4777
        %v5058 = vsub.f32 %v4428, %v4777
        %v5059 = vsub.f32 %v4430, %v4777
        %v5060 = vsub.f32 %v3985, %v4782
        %v5061 = vsub.f32 %v3987, %v4782
        %v5062 = vsub.f32 %v4434, %v4782
        %v5063 = vsub.f32 %v4436, %v4782
        %v5064 = vsub.f32 %v3991, %v4787
        %v5065 = vsub.f32 %v3993, %v4787
        %v5066 = vsub.f32 %v4440, %v4787
        %v5067 = vsub.f32 %v4442, %v4787
        %v5068 = vsub.f32 %v3997, %v4792
        %v5069 = vsub.f32 %v3999, %v4792
        %v5070 = vsub.f32 %v4446, %v4792
        %v5071 = vsub.f32 %v4448, %v4792
        %v5072 = vsub.f32 %v4003, %v4797
        %v5073 = vsub.f32 %v4005, %v4797
        %v5074 = vsub.f32 %v4452, %v4797
        %v5075 = vsub.f32 %v4454, %v4797
        %v5076 = vsub.f32 %v4009, %v4802
        %v5077 = vsub.f32 %v4011, %v4802
        %v5078 = vsub.f32 %v4458, %v4802
        %v5079 = vsub.f32 %v4460, %v4802
        %v5080 = vsub.f32 %v4015, %v4807
        %v5081 = vsub.f32 %v4017, %v4807
        %v5082 = vsub.f32 %v4464, %v4807
        %v5083 = vsub.f32 %v4466, %v4807
        %v5084 = vsub.f32 %v4021, %v4812
        %v5085 = vsub.f32 %v4023, %v4812
        %v5086 = vsub.f32 %v4470, %v4812
        %v5087 = vsub.f32 %v4472, %v4812
        %v5088 = vsub.f32 %v4027, %v4817
        %v5089 = vsub.f32 %v4029, %v4817
        %v5090 = vsub.f32 %v4476, %v4817
        %v5091 = vsub.f32 %v4478, %v4817
        %v5092 = vsub.f32 %v4033, %v4822
        %v5093 = vsub.f32 %v4035, %v4822
        %v5094 = vsub.f32 %v4482, %v4822
        %v5095 = vsub.f32 %v4484, %v4822
        %v5096 = vsub.f32 %v4039, %v4827
        %v5097 = vsub.f32 %v4041, %v4827
        %v5098 = vsub.f32 %v4488, %v4827
        %v5099 = vsub.f32 %v4490, %v4827
        %v5100 = vsub.f32 %v4045, %v4832
        %v5101 = vsub.f32 %v4047, %v4832
        %v5102 = vsub.f32 %v4494, %v4832
        %v5103 = vsub.f32 %v4496, %v4832
        %v5104 = vsub.f32 %v4051, %v4837
        %v5105 = vsub.f32 %v4053, %v4837
        %v5106 = vsub.f32 %v4500, %v4837
        %v5107 = vsub.f32 %v4502, %v4837
        %v5108 = vsub.f32 %v4057, %v4842
        %v5109 = vsub.f32 %v4059, %v4842
        %v5110 = vsub.f32 %v4506, %v4842
        %v5111 = vsub.f32 %v4508, %v4842
        %v5112 = vsub.f32 %v4063, %v4847
        %v5113 = vsub.f32 %v4065, %v4847
        %v5114 = vsub.f32 %v4512, %v4847
        %v5115 = vsub.f32 %v4514, %v4847
        %v5116 = vsub.f32 %v4069, %v4852
        %v5117 = vsub.f32 %v4071, %v4852
        %v5118 = vsub.f32 %v4518, %v4852
        %v5119 = vsub.f32 %v4520, %v4852
        %v5120 = vsub.f32 %v4075, %v4857
        %v5121 = vsub.f32 %v4077, %v4857
        %v5122 = vsub.f32 %v4524, %v4857
        %v5123 = vsub.f32 %v4526, %v4857
        %v5124 = vsub.f32 %v4081, %v4862
        %v5125 = vsub.f32 %v4083, %v4862
        %v5126 = vsub.f32 %v4530, %v4862
        %v5127 = vsub.f32 %v4532, %v4862
        %v5128 = vsub.f32 %v4087, %v4867
        %v5129 = vsub.f32 %v4089, %v4867
        %v5130 = vsub.f32 %v4536, %v4867
        %v5131 = vsub.f32 %v4538, %v4867
        %v5132 = vsub.f32 %v4093, %v4872
        %v5133 = vsub.f32 %v4095, %v4872
        %v5134 = vsub.f32 %v4542, %v4872
        %v5135 = vsub.f32 %v4544, %v4872
        %v5136 = vsub.f32 %v4099, %v4877
        %v5137 = vsub.f32 %v4101, %v4877
        %v5138 = vsub.f32 %v4548, %v4877
        %v5139 = vsub.f32 %v4550, %v4877
        %v5140 = vsub.f32 %v4105, %v4882
        %v5141 = vsub.f32 %v4107, %v4882
        %v5142 = vsub.f32 %v4554, %v4882
        %v5143 = vsub.f32 %v4556, %v4882
        %v5144 = vsub.f32 %v4111, %v4887
        %v5145 = vsub.f32 %v4113, %v4887
        %v5146 = vsub.f32 %v4560, %v4887
        %v5147 = vsub.f32 %v4562, %v4887
        %v5148 = vsub.f32 %v4117, %v4892
        %v5149 = vsub.f32 %v4119, %v4892
        %v5150 = vsub.f32 %v4566, %v4892
        %v5151 = vsub.f32 %v4568, %v4892
        %v5152 = vsub.f32 %v4123, %v4897
        %v5153 = vsub.f32 %v4125, %v4897
        %v5154 = vsub.f32 %v4572, %v4897
        %v5155 = vsub.f32 %v4574, %v4897
        %v5156 = vsub.f32 %v4129, %v4902
        %v5157 = vsub.f32 %v4131, %v4902
        %v5158 = vsub.f32 %v4578, %v4902
        %v5159 = vsub.f32 %v4580, %v4902
        %v5160 = vsub.f32 %v4135, %v4907
        %v5161 = vsub.f32 %v4137, %v4907
        %v5162 = vsub.f32 %v4584, %v4907
        %v5163 = vsub.f32 %v4586, %v4907
        %v5164 = vmul.f32 %v4908, 1.442695
        %v5165 = vpow.pop %v5164
        %v5166 = vmul.f32 %v4909, 1.442695
        %v5167 = vpow.pop %v5166
        %v5168 = vmul.f32 %v4910, 1.442695
        %v5169 = vpow.pop %v5168
        %v5170 = vmul.f32 %v4911, 1.442695
        %v5171 = vpow.pop %v5170
        %v5172 = vmul.f32 %v4912, 1.442695
        %v5173 = vpow.pop %v5172
        %v5174 = vmul.f32 %v4913, 1.442695
        %v5175 = vpow.pop %v5174
        %v5176 = vmul.f32 %v4914, 1.442695
        %v5177 = vpow.pop %v5176
        %v5178 = vmul.f32 %v4915, 1.442695
        %v5179 = vpow.pop %v5178
        %v5180 = vmul.f32 %v4916, 1.442695
        %v5181 = vpow.pop %v5180
        %v5182 = vmul.f32 %v4917, 1.442695
        %v5183 = vpow.pop %v5182
        %v5184 = vmul.f32 %v4918, 1.442695
        %v5185 = vpow.pop %v5184
        %v5186 = vmul.f32 %v4919, 1.442695
        %v5187 = vpow.pop %v5186
        %v5188 = vmul.f32 %v4920, 1.442695
        %v5189 = vpow.pop %v5188
        %v5190 = vmul.f32 %v4921, 1.442695
        %v5191 = vpow.pop %v5190
        %v5192 = vmul.f32 %v4922, 1.442695
        %v5193 = vpow.pop %v5192
        %v5194 = vmul.f32 %v4923, 1.442695
        %v5195 = vpow.pop %v5194
        %v5196 = vmul.f32 %v4924, 1.442695
        %v5197 = vpow.pop %v5196
        %v5198 = vmul.f32 %v4925, 1.442695
        %v5199 = vpow.pop %v5198
        %v5200 = vmul.f32 %v4926, 1.442695
        %v5201 = vpow.pop %v5200
        %v5202 = vmul.f32 %v4927, 1.442695
        %v5203 = vpow.pop %v5202
        %v5204 = vmul.f32 %v4928, 1.442695
        %v5205 = vpow.pop %v5204
        %v5206 = vmul.f32 %v4929, 1.442695
        %v5207 = vpow.pop %v5206
        %v5208 = vmul.f32 %v4930, 1.442695
        %v5209 = vpow.pop %v5208
        %v5210 = vmul.f32 %v4931, 1.442695
        %v5211 = vpow.pop %v5210
        %v5212 = vmul.f32 %v4932, 1.442695
        %v5213 = vpow.pop %v5212
        %v5214 = vmul.f32 %v4933, 1.442695
        %v5215 = vpow.pop %v5214
        %v5216 = vmul.f32 %v4934, 1.442695
        %v5217 = vpow.pop %v5216
        %v5218 = vmul.f32 %v4935, 1.442695
        %v5219 = vpow.pop %v5218
        %v5220 = vmul.f32 %v4936, 1.442695
        %v5221 = vpow.pop %v5220
        %v5222 = vmul.f32 %v4937, 1.442695
        %v5223 = vpow.pop %v5222
        %v5224 = vmul.f32 %v4938, 1.442695
        %v5225 = vpow.pop %v5224
        %v5226 = vmul.f32 %v4939, 1.442695
        %v5227 = vpow.pop %v5226
        %v5228 = vmul.f32 %v4940, 1.442695
        %v5229 = vpow.pop %v5228
        %v5230 = vmul.f32 %v4941, 1.442695
        %v5231 = vpow.pop %v5230
        %v5232 = vmul.f32 %v4942, 1.442695
        %v5233 = vpow.pop %v5232
        %v5234 = vmul.f32 %v4943, 1.442695
        %v5235 = vpow.pop %v5234
        %v5236 = vmul.f32 %v4944, 1.442695
        %v5237 = vpow.pop %v5236
        %v5238 = vmul.f32 %v4945, 1.442695
        %v5239 = vpow.pop %v5238
        %v5240 = vmul.f32 %v4946, 1.442695
        %v5241 = vpow.pop %v5240
        %v5242 = vmul.f32 %v4947, 1.442695
        %v5243 = vpow.pop %v5242
        %v5244 = vmul.f32 %v4948, 1.442695
        %v5245 = vpow.pop %v5244
        %v5246 = vmul.f32 %v4949, 1.442695
        %v5247 = vpow.pop %v5246
        %v5248 = vmul.f32 %v4950, 1.442695
        %v5249 = vpow.pop %v5248
        %v5250 = vmul.f32 %v4951, 1.442695
        %v5251 = vpow.pop %v5250
        %v5252 = vmul.f32 %v4952, 1.442695
        %v5253 = vpow.pop %v5252
        %v5254 = vmul.f32 %v4953, 1.442695
        %v5255 = vpow.pop %v5254
        %v5256 = vmul.f32 %v4954, 1.442695
        %v5257 = vpow.pop %v5256
        %v5258 = vmul.f32 %v4955, 1.442695
        %v5259 = vpow.pop %v5258
        %v5260 = vmul.f32 %v4956, 1.442695
        %v5261 = vpow.pop %v5260
        %v5262 = vmul.f32 %v4957, 1.442695
        %v5263 = vpow.pop %v5262
        %v5264 = vmul.f32 %v4958, 1.442695
        %v5265 = vpow.pop %v5264
        %v5266 = vmul.f32 %v4959, 1.442695
        %v5267 = vpow.pop %v5266
        %v5268 = vmul.f32 %v4960, 1.442695
        %v5269 = vpow.pop %v5268
        %v5270 = vmul.f32 %v4961, 1.442695
        %v5271 = vpow.pop %v5270
        %v5272 = vmul.f32 %v4962, 1.442695
        %v5273 = vpow.pop %v5272
        %v5274 = vmul.f32 %v4963, 1.442695
        %v5275 = vpow.pop %v5274
        %v5276 = vmul.f32 %v4964, 1.442695
        %v5277 = vpow.pop %v5276
        %v5278 = vmul.f32 %v4965, 1.442695
        %v5279 = vpow.pop %v5278
        %v5280 = vmul.f32 %v4966, 1.442695
        %v5281 = vpow.pop %v5280
        %v5282 = vmul.f32 %v4967, 1.442695
        %v5283 = vpow.pop %v5282
        %v5284 = vmul.f32 %v4968, 1.442695
        %v5285 = vpow.pop %v5284
        %v5286 = vmul.f32 %v4969, 1.442695
        %v5287 = vpow.pop %v5286
        %v5288 = vmul.f32 %v4970, 1.442695
        %v5289 = vpow.pop %v5288
        %v5290 = vmul.f32 %v4971, 1.442695
        %v5291 = vpow.pop %v5290
        %v5292 = vmul.f32 %v4972, 1.442695
        %v5293 = vpow.pop %v5292
        %v5294 = vmul.f32 %v4973, 1.442695
        %v5295 = vpow.pop %v5294
        %v5296 = vmul.f32 %v4974, 1.442695
        %v5297 = vpow.pop %v5296
        %v5298 = vmul.f32 %v4975, 1.442695
        %v5299 = vpow.pop %v5298
        %v5300 = vmul.f32 %v4976, 1.442695
        %v5301 = vpow.pop %v5300
        %v5302 = vmul.f32 %v4977, 1.442695
        %v5303 = vpow.pop %v5302
        %v5304 = vmul.f32 %v4978, 1.442695
        %v5305 = vpow.pop %v5304
        %v5306 = vmul.f32 %v4979, 1.442695
        %v5307 = vpow.pop %v5306
        %v5308 = vmul.f32 %v4980, 1.442695
        %v5309 = vpow.pop %v5308
        %v5310 = vmul.f32 %v4981, 1.442695
        %v5311 = vpow.pop %v5310
        %v5312 = vmul.f32 %v4982, 1.442695
        %v5313 = vpow.pop %v5312
        %v5314 = vmul.f32 %v4983, 1.442695
        %v5315 = vpow.pop %v5314
        %v5316 = vmul.f32 %v4984, 1.442695
        %v5317 = vpow.pop %v5316
        %v5318 = vmul.f32 %v4985, 1.442695
        %v5319 = vpow.pop %v5318
        %v5320 = vmul.f32 %v4986, 1.442695
        %v5321 = vpow.pop %v5320
        %v5322 = vmul.f32 %v4987, 1.442695
        %v5323 = vpow.pop %v5322
        %v5324 = vmul.f32 %v4988, 1.442695
        %v5325 = vpow.pop %v5324
        %v5326 = vmul.f32 %v4989, 1.442695
        %v5327 = vpow.pop %v5326
        %v5328 = vmul.f32 %v4990, 1.442695
        %v5329 = vpow.pop %v5328
        %v5330 = vmul.f32 %v4991, 1.442695
        %v5331 = vpow.pop %v5330
        %v5332 = vmul.f32 %v4992, 1.442695
        %v5333 = vpow.pop %v5332
        %v5334 = vmul.f32 %v4993, 1.442695
        %v5335 = vpow.pop %v5334
        %v5336 = vmul.f32 %v4994, 1.442695
        %v5337 = vpow.pop %v5336
        %v5338 = vmul.f32 %v4995, 1.442695
        %v5339 = vpow.pop %v5338
        %v5340 = vmul.f32 %v4996, 1.442695
        %v5341 = vpow.pop %v5340
        %v5342 = vmul.f32 %v4997, 1.442695
        %v5343 = vpow.pop %v5342
        %v5344 = vmul.f32 %v4998, 1.442695
        %v5345 = vpow.pop %v5344
        %v5346 = vmul.f32 %v4999, 1.442695
        %v5347 = vpow.pop %v5346
        %v5348 = vmul.f32 %v5000, 1.442695
        %v5349 = vpow.pop %v5348
        %v5350 = vmul.f32 %v5001, 1.442695
        %v5351 = vpow.pop %v5350
        %v5352 = vmul.f32 %v5002, 1.442695
        %v5353 = vpow.pop %v5352
        %v5354 = vmul.f32 %v5003, 1.442695
        %v5355 = vpow.pop %v5354
        %v5356 = vmul.f32 %v5004, 1.442695
        %v5357 = vpow.pop %v5356
        %v5358 = vmul.f32 %v5005, 1.442695
        %v5359 = vpow.pop %v5358
        %v5360 = vmul.f32 %v5006, 1.442695
        %v5361 = vpow.pop %v5360
        %v5362 = vmul.f32 %v5007, 1.442695
        %v5363 = vpow.pop %v5362
        %v5364 = vmul.f32 %v5008, 1.442695
        %v5365 = vpow.pop %v5364
        %v5366 = vmul.f32 %v5009, 1.442695
        %v5367 = vpow.pop %v5366
        %v5368 = vmul.f32 %v5010, 1.442695
        %v5369 = vpow.pop %v5368
        %v5370 = vmul.f32 %v5011, 1.442695
        %v5371 = vpow.pop %v5370
        %v5372 = vmul.f32 %v5012, 1.442695
        %v5373 = vpow.pop %v5372
        %v5374 = vmul.f32 %v5013, 1.442695
        %v5375 = vpow.pop %v5374
        %v5376 = vmul.f32 %v5014, 1.442695
        %v5377 = vpow.pop %v5376
        %v5378 = vmul.f32 %v5015, 1.442695
        %v5379 = vpow.pop %v5378
        %v5380 = vmul.f32 %v5016, 1.442695
        %v5381 = vpow.pop %v5380
        %v5382 = vmul.f32 %v5017, 1.442695
        %v5383 = vpow.pop %v5382
        %v5384 = vmul.f32 %v5018, 1.442695
        %v5385 = vpow.pop %v5384
        %v5386 = vmul.f32 %v5019, 1.442695
        %v5387 = vpow.pop %v5386
        %v5388 = vmul.f32 %v5020, 1.442695
        %v5389 = vpow.pop %v5388
        %v5390 = vmul.f32 %v5021, 1.442695
        %v5391 = vpow.pop %v5390
        %v5392 = vmul.f32 %v5022, 1.442695
        %v5393 = vpow.pop %v5392
        %v5394 = vmul.f32 %v5023, 1.442695
        %v5395 = vpow.pop %v5394
        %v5396 = vmul.f32 %v5024, 1.442695
        %v5397 = vpow.pop %v5396
        %v5398 = vmul.f32 %v5025, 1.442695
        %v5399 = vpow.pop %v5398
        %v5400 = vmul.f32 %v5026, 1.442695
        %v5401 = vpow.pop %v5400
        %v5402 = vmul.f32 %v5027, 1.442695
        %v5403 = vpow.pop %v5402
        %v5404 = vmul.f32 %v5028, 1.442695
        %v5405 = vpow.pop %v5404
        %v5406 = vmul.f32 %v5029, 1.442695
        %v5407 = vpow.pop %v5406
        %v5408 = vmul.f32 %v5030, 1.442695
        %v5409 = vpow.pop %v5408
        %v5410 = vmul.f32 %v5031, 1.442695
        %v5411 = vpow.pop %v5410
        %v5412 = vmul.f32 %v5032, 1.442695
        %v5413 = vpow.pop %v5412
        %v5414 = vmul.f32 %v5033, 1.442695
        %v5415 = vpow.pop %v5414
        %v5416 = vmul.f32 %v5034, 1.442695
        %v5417 = vpow.pop %v5416
        %v5418 = vmul.f32 %v5035, 1.442695
        %v5419 = vpow.pop %v5418
        %v5420 = vmul.f32 %v5036, 1.442695
        %v5421 = vpow.pop %v5420
        %v5422 = vmul.f32 %v5037, 1.442695
        %v5423 = vpow.pop %v5422
        %v5424 = vmul.f32 %v5038, 1.442695
        %v5425 = vpow.pop %v5424
        %v5426 = vmul.f32 %v5039, 1.442695
        %v5427 = vpow.pop %v5426
        %v5428 = vmul.f32 %v5040, 1.442695
        %v5429 = vpow.pop %v5428
        %v5430 = vmul.f32 %v5041, 1.442695
        %v5431 = vpow.pop %v5430
        %v5432 = vmul.f32 %v5042, 1.442695
        %v5433 = vpow.pop %v5432
        %v5434 = vmul.f32 %v5043, 1.442695
        %v5435 = vpow.pop %v5434
        %v5436 = vmul.f32 %v5044, 1.442695
        %v5437 = vpow.pop %v5436
        %v5438 = vmul.f32 %v5045, 1.442695
        %v5439 = vpow.pop %v5438
        %v5440 = vmul.f32 %v5046, 1.442695
        %v5441 = vpow.pop %v5440
        %v5442 = vmul.f32 %v5047, 1.442695
        %v5443 = vpow.pop %v5442
        %v5444 = vmul.f32 %v5048, 1.442695
        %v5445 = vpow.pop %v5444
        %v5446 = vmul.f32 %v5049, 1.442695
        %v5447 = vpow.pop %v5446
        %v5448 = vmul.f32 %v5050, 1.442695
        %v5449 = vpow.pop %v5448
        %v5450 = vmul.f32 %v5051, 1.442695
        %v5451 = vpow.pop %v5450
        %v5452 = vmul.f32 %v5052, 1.442695
        %v5453 = vpow.pop %v5452
        %v5454 = vmul.f32 %v5053, 1.442695
        %v5455 = vpow.pop %v5454
        %v5456 = vmul.f32 %v5054, 1.442695
        %v5457 = vpow.pop %v5456
        %v5458 = vmul.f32 %v5055, 1.442695
        %v5459 = vpow.pop %v5458
        %v5460 = vmul.f32 %v5056, 1.442695
        %v5461 = vpow.pop %v5460
        %v5462 = vmul.f32 %v5057, 1.442695
        %v5463 = vpow.pop %v5462
        %v5464 = vmul.f32 %v5058, 1.442695
        %v5465 = vpow.pop %v5464
        %v5466 = vmul.f32 %v5059, 1.442695
        %v5467 = vpow.pop %v5466
        %v5468 = vmul.f32 %v5060, 1.442695
        %v5469 = vpow.pop %v5468
        %v5470 = vmul.f32 %v5061, 1.442695
        %v5471 = vpow.pop %v5470
        %v5472 = vmul.f32 %v5062, 1.442695
        %v5473 = vpow.pop %v5472
        %v5474 = vmul.f32 %v5063, 1.442695
        %v5475 = vpow.pop %v5474
        %v5476 = vmul.f32 %v5064, 1.442695
        %v5477 = vpow.pop %v5476
        %v5478 = vmul.f32 %v5065, 1.442695
        %v5479 = vpow.pop %v5478
        %v5480 = vmul.f32 %v5066, 1.442695
        %v5481 = vpow.pop %v5480
        %v5482 = vmul.f32 %v5067, 1.442695
        %v5483 = vpow.pop %v5482
        %v5484 = vmul.f32 %v5068, 1.442695
        %v5485 = vpow.pop %v5484
        %v5486 = vmul.f32 %v5069, 1.442695
        %v5487 = vpow.pop %v5486
        %v5488 = vmul.f32 %v5070, 1.442695
        %v5489 = vpow.pop %v5488
        %v5490 = vmul.f32 %v5071, 1.442695
        %v5491 = vpow.pop %v5490
        %v5492 = vmul.f32 %v5072, 1.442695
        %v5493 = vpow.pop %v5492
        %v5494 = vmul.f32 %v5073, 1.442695
        %v5495 = vpow.pop %v5494
        %v5496 = vmul.f32 %v5074, 1.442695
        %v5497 = vpow.pop %v5496
        %v5498 = vmul.f32 %v5075, 1.442695
        %v5499 = vpow.pop %v5498
        %v5500 = vmul.f32 %v5076, 1.442695
        %v5501 = vpow.pop %v5500
        %v5502 = vmul.f32 %v5077, 1.442695
        %v5503 = vpow.pop %v5502
        %v5504 = vmul.f32 %v5078, 1.442695
        %v5505 = vpow.pop %v5504
        %v5506 = vmul.f32 %v5079, 1.442695
        %v5507 = vpow.pop %v5506
        %v5508 = vmul.f32 %v5080, 1.442695
        %v5509 = vpow.pop %v5508
        %v5510 = vmul.f32 %v5081, 1.442695
        %v5511 = vpow.pop %v5510
        %v5512 = vmul.f32 %v5082, 1.442695
        %v5513 = vpow.pop %v5512
        %v5514 = vmul.f32 %v5083, 1.442695
        %v5515 = vpow.pop %v5514
        %v5516 = vmul.f32 %v5084, 1.442695
        %v5517 = vpow.pop %v5516
        %v5518 = vmul.f32 %v5085, 1.442695
        %v5519 = vpow.pop %v5518
        %v5520 = vmul.f32 %v5086, 1.442695
        %v5521 = vpow.pop %v5520
        %v5522 = vmul.f32 %v5087, 1.442695
        %v5523 = vpow.pop %v5522
        %v5524 = vmul.f32 %v5088, 1.442695
        %v5525 = vpow.pop %v5524
        %v5526 = vmul.f32 %v5089, 1.442695
        %v5527 = vpow.pop %v5526
        %v5528 = vmul.f32 %v5090, 1.442695
        %v5529 = vpow.pop %v5528
        %v5530 = vmul.f32 %v5091, 1.442695
        %v5531 = vpow.pop %v5530
        %v5532 = vmul.f32 %v5092, 1.442695
        %v5533 = vpow.pop %v5532
        %v5534 = vmul.f32 %v5093, 1.442695
        %v5535 = vpow.pop %v5534
        %v5536 = vmul.f32 %v5094, 1.442695
        %v5537 = vpow.pop %v5536
        %v5538 = vmul.f32 %v5095, 1.442695
        %v5539 = vpow.pop %v5538
        %v5540 = vmul.f32 %v5096, 1.442695
        %v5541 = vpow.pop %v5540
        %v5542 = vmul.f32 %v5097, 1.442695
        %v5543 = vpow.pop %v5542
        %v5544 = vmul.f32 %v5098, 1.442695
        %v5545 = vpow.pop %v5544
        %v5546 = vmul.f32 %v5099, 1.442695
        %v5547 = vpow.pop %v5546
        %v5548 = vmul.f32 %v5100, 1.442695
        %v5549 = vpow.pop %v5548
        %v5550 = vmul.f32 %v5101, 1.442695
        %v5551 = vpow.pop %v5550
        %v5552 = vmul.f32 %v5102, 1.442695
        %v5553 = vpow.pop %v5552
        %v5554 = vmul.f32 %v5103, 1.442695
        %v5555 = vpow.pop %v5554
        %v5556 = vmul.f32 %v5104, 1.442695
        %v5557 = vpow.pop %v5556
        %v5558 = vmul.f32 %v5105, 1.442695
        %v5559 = vpow.pop %v5558
        %v5560 = vmul.f32 %v5106, 1.442695
        %v5561 = vpow.pop %v5560
        %v5562 = vmul.f32 %v5107, 1.442695
        %v5563 = vpow.pop %v5562
        %v5564 = vmul.f32 %v5108, 1.442695
        %v5565 = vpow.pop %v5564
        %v5566 = vmul.f32 %v5109, 1.442695
        %v5567 = vpow.pop %v5566
        %v5568 = vmul.f32 %v5110, 1.442695
        %v5569 = vpow.pop %v5568
        %v5570 = vmul.f32 %v5111, 1.442695
        %v5571 = vpow.pop %v5570
        %v5572 = vmul.f32 %v5112, 1.442695
        %v5573 = vpow.pop %v5572
        %v5574 = vmul.f32 %v5113, 1.442695
        %v5575 = vpow.pop %v5574
        %v5576 = vmul.f32 %v5114, 1.442695
        %v5577 = vpow.pop %v5576
        %v5578 = vmul.f32 %v5115, 1.442695
        %v5579 = vpow.pop %v5578
        %v5580 = vmul.f32 %v5116, 1.442695
        %v5581 = vpow.pop %v5580
        %v5582 = vmul.f32 %v5117, 1.442695
        %v5583 = vpow.pop %v5582
        %v5584 = vmul.f32 %v5118, 1.442695
        %v5585 = vpow.pop %v5584
        %v5586 = vmul.f32 %v5119, 1.442695
        %v5587 = vpow.pop %v5586
        %v5588 = vmul.f32 %v5120, 1.442695
        %v5589 = vpow.pop %v5588
        %v5590 = vmul.f32 %v5121, 1.442695
        %v5591 = vpow.pop %v5590
        %v5592 = vmul.f32 %v5122, 1.442695
        %v5593 = vpow.pop %v5592
        %v5594 = vmul.f32 %v5123, 1.442695
        %v5595 = vpow.pop %v5594
        %v5596 = vmul.f32 %v5124, 1.442695
        %v5597 = vpow.pop %v5596
        %v5598 = vmul.f32 %v5125, 1.442695
        %v5599 = vpow.pop %v5598
        %v5600 = vmul.f32 %v5126, 1.442695
        %v5601 = vpow.pop %v5600
        %v5602 = vmul.f32 %v5127, 1.442695
        %v5603 = vpow.pop %v5602
        %v5604 = vmul.f32 %v5128, 1.442695
        %v5605 = vpow.pop %v5604
        %v5606 = vmul.f32 %v5129, 1.442695
        %v5607 = vpow.pop %v5606
        %v5608 = vmul.f32 %v5130, 1.442695
        %v5609 = vpow.pop %v5608
        %v5610 = vmul.f32 %v5131, 1.442695
        %v5611 = vpow.pop %v5610
        %v5612 = vmul.f32 %v5132, 1.442695
        %v5613 = vpow.pop %v5612
        %v5614 = vmul.f32 %v5133, 1.442695
        %v5615 = vpow.pop %v5614
        %v5616 = vmul.f32 %v5134, 1.442695
        %v5617 = vpow.pop %v5616
        %v5618 = vmul.f32 %v5135, 1.442695
        %v5619 = vpow.pop %v5618
        %v5620 = vmul.f32 %v5136, 1.442695
        %v5621 = vpow.pop %v5620
        %v5622 = vmul.f32 %v5137, 1.442695
        %v5623 = vpow.pop %v5622
        %v5624 = vmul.f32 %v5138, 1.442695
        %v5625 = vpow.pop %v5624
        %v5626 = vmul.f32 %v5139, 1.442695
        %v5627 = vpow.pop %v5626
        %v5628 = vmul.f32 %v5140, 1.442695
        %v5629 = vpow.pop %v5628
        %v5630 = vmul.f32 %v5141, 1.442695
        %v5631 = vpow.pop %v5630
        %v5632 = vmul.f32 %v5142, 1.442695
        %v5633 = vpow.pop %v5632
        %v5634 = vmul.f32 %v5143, 1.442695
        %v5635 = vpow.pop %v5634
        %v5636 = vmul.f32 %v5144, 1.442695
        %v5637 = vpow.pop %v5636
        %v5638 = vmul.f32 %v5145, 1.442695
        %v5639 = vpow.pop %v5638
        %v5640 = vmul.f32 %v5146, 1.442695
        %v5641 = vpow.pop %v5640
        %v5642 = vmul.f32 %v5147, 1.442695
        %v5643 = vpow.pop %v5642
        %v5644 = vmul.f32 %v5148, 1.442695
        %v5645 = vpow.pop %v5644
        %v5646 = vmul.f32 %v5149, 1.442695
        %v5647 = vpow.pop %v5646
        %v5648 = vmul.f32 %v5150, 1.442695
        %v5649 = vpow.pop %v5648
        %v5650 = vmul.f32 %v5151, 1.442695
        %v5651 = vpow.pop %v5650
        %v5652 = vmul.f32 %v5152, 1.442695
        %v5653 = vpow.pop %v5652
        %v5654 = vmul.f32 %v5153, 1.442695
        %v5655 = vpow.pop %v5654
        %v5656 = vmul.f32 %v5154, 1.442695
        %v5657 = vpow.pop %v5656
        %v5658 = vmul.f32 %v5155, 1.442695
        %v5659 = vpow.pop %v5658
        %v5660 = vmul.f32 %v5156, 1.442695
        %v5661 = vpow.pop %v5660
        %v5662 = vmul.f32 %v5157, 1.442695
        %v5663 = vpow.pop %v5662
        %v5664 = vmul.f32 %v5158, 1.442695
        %v5665 = vpow.pop %v5664
        %v5666 = vmul.f32 %v5159, 1.442695
        %v5667 = vpow.pop %v5666
        %v5668 = vmul.f32 %v5160, 1.442695
        %v5669 = vpow.pop %v5668
        %v5670 = vmul.f32 %v5161, 1.442695
        %v5671 = vpow.pop %v5670
        %v5672 = vmul.f32 %v5162, 1.442695
        %v5673 = vpow.pop %v5672
        %v5674 = vmul.f32 %v5163, 1.442695
        %v5675 = vpow.pop %v5674
        %5676 = vmatprep.subr.mxu0 %v5287
        %5677 = vmatpush1.xpose.msra.mxu0 %v5285
        %5678 = vmatprep.subr.mxu0 %v5279
        %5679 = vmatpush1.xpose.msra.mxu0 %v5277
        %5680 = vmatprep.subr.mxu0 %v5271
        %5681 = vmatpush1.xpose.msra.mxu0 %v5269
        %5682 = vmatprep.subr.mxu0 %v5263
        %5683 = vmatpush1.xpose.msra.mxu0 %v5261
        %5684 = vmatprep.subr.mxu0 %v5255
        %5685 = vmatpush1.xpose.msra.mxu0 %v5253
        %5686 = vmatprep.subr.mxu0 %v5247
        %5687 = vmatpush1.xpose.msra.mxu0 %v5245
        %5688 = vmatprep.subr.mxu0 %v5239
        %5689 = vmatpush1.xpose.msra.mxu0 %v5237
        %5690 = vmatprep.subr.mxu0 %v5231
        %5691 = vmatpush1.xpose.msra.mxu0 %v5229
        %5692 = vmatprep.subr.mxu0 %v5223
        %5693 = vmatpush1.xpose.msra.mxu0 %v5221
        %5694 = vmatprep.subr.mxu0 %v5215
        %5695 = vmatpush1.xpose.msra.mxu0 %v5213
        %5696 = vmatprep.subr.mxu0 %v5207
        %5697 = vmatpush1.xpose.msra.mxu0 %v5205
        %5698 = vmatprep.subr.mxu0 %v5199
        %5699 = vmatpush1.xpose.msra.mxu0 %v5197
        %5700 = vmatprep.subr.mxu0 %v5191
        %5701 = vmatpush1.xpose.msra.mxu0 %v5189
        %5702 = vmatprep.subr.mxu0 %v5183
        %5703 = vmatpush1.xpose.msra.mxu0 %v5181
        %5704 = vmatprep.subr.mxu0 %v5175
        %5705 = vmatpush1.xpose.msra.mxu0 %v5173
        %5706 = vmatprep.subr.mxu0 %v5167
        %5707 = vmatpush1.xpose.msra.mxu0 %v5165
        %5708 = vmatprep.subr.mxu0 %v5415
        %5709 = vmatpush2.xpose.msra.mxu0 %v5413
        %5710 = vmatprep.subr.mxu0 %v5407
        %5711 = vmatpush2.xpose.msra.mxu0 %v5405
        %5712 = vmatprep.subr.mxu0 %v5399
        %5713 = vmatpush2.xpose.msra.mxu0 %v5397
        %5714 = vmatprep.subr.mxu0 %v5391
        %5715 = vmatpush2.xpose.msra.mxu0 %v5389
        %5716 = vmatprep.subr.mxu0 %v5383
        %5717 = vmatpush2.xpose.msra.mxu0 %v5381
        %5718 = vmatprep.subr.mxu0 %v5375
        %5719 = vmatpush2.xpose.msra.mxu0 %v5373
        %5720 = vmatprep.subr.mxu0 %v5367
        %5721 = vmatpush2.xpose.msra.mxu0 %v5365
        %5722 = vmatprep.subr.mxu0 %v5359
        %5723 = vmatpush2.xpose.msra.mxu0 %v5357
        %5724 = vmatprep.subr.mxu0 %v5351
        %5725 = vmatpush2.xpose.msra.mxu0 %v5349
        %5726 = vmatprep.subr.mxu0 %v5343
        %5727 = vmatpush2.xpose.msra.mxu0 %v5341
        %5728 = vmatprep.subr.mxu0 %v5335
        %5729 = vmatpush2.xpose.msra.mxu0 %v5333
        %5730 = vmatprep.subr.mxu0 %v5327
        %5731 = vmatpush2.xpose.msra.mxu0 %v5325
        %5732 = vmatprep.subr.mxu0 %v5319
        %5733 = vmatpush2.xpose.msra.mxu0 %v5317
        %5734 = vmatprep.subr.mxu0 %v5311
        %5735 = vmatpush2.xpose.msra.mxu0 %v5309
        %5736 = vmatprep.subr.mxu0 %v5303
        %5737 = vmatpush2.xpose.msra.mxu0 %v5301
        %5738 = vmatprep.subr.mxu0 %v5295
        %5739 = vmatpush2.xpose.msra.mxu0 %v5293
        %5740 = vmatprep.mubr.f32.mxu0 %v628
        %5741 = vmatmul.mubr.f32.gmra.mxu0 %v626
        %v5742 = vpop.f32.mrf.mxu0
        %v5743 = vadd.f32 0.0, %v5742
        %v5744 = vpop.f32.mrf.mxu0
        %v5745 = vadd.f32 0.0, %v5744
        %5746 = vmatprep.mubr.f32.mxu0 1.0
        %5747 = vmatmul.mubr.f32.gmra.mxu0 1.0
        %v5748 = vpop.f32.mrf.mxu0
        %v5749 = vadd.f32 0.0, %v5748
        %v5750 = vpop.f32.mrf.mxu0
        %v5751 = vadd.f32 0.0, %v5750
        %5752 = vdwg.mxu0
        %5753 = vmatprep.subr.mxu0 %v5291
        %5754 = vmatpush1.xpose.msra.mxu0 %v5289
        %5755 = vmatprep.subr.mxu0 %v5283
        %5756 = vmatpush1.xpose.msra.mxu0 %v5281
        %5757 = vmatprep.subr.mxu0 %v5275
        %5758 = vmatpush1.xpose.msra.mxu0 %v5273
        %5759 = vmatprep.subr.mxu0 %v5267
        %5760 = vmatpush1.xpose.msra.mxu0 %v5265
        %5761 = vmatprep.subr.mxu0 %v5259
        %5762 = vmatpush1.xpose.msra.mxu0 %v5257
        %5763 = vmatprep.subr.mxu0 %v5251
        %5764 = vmatpush1.xpose.msra.mxu0 %v5249
        %5765 = vmatprep.subr.mxu0 %v5243
        %5766 = vmatpush1.xpose.msra.mxu0 %v5241
        %5767 = vmatprep.subr.mxu0 %v5235
        %5768 = vmatpush1.xpose.msra.mxu0 %v5233
        %5769 = vmatprep.subr.mxu0 %v5227
        %5770 = vmatpush1.xpose.msra.mxu0 %v5225
        %5771 = vmatprep.subr.mxu0 %v5219
        %5772 = vmatpush1.xpose.msra.mxu0 %v5217
        %5773 = vmatprep.subr.mxu0 %v5211
        %5774 = vmatpush1.xpose.msra.mxu0 %v5209
        %5775 = vmatprep.subr.mxu0 %v5203
        %5776 = vmatpush1.xpose.msra.mxu0 %v5201
        %5777 = vmatprep.subr.mxu0 %v5195
        %5778 = vmatpush1.xpose.msra.mxu0 %v5193
        %5779 = vmatprep.subr.mxu0 %v5187
        %5780 = vmatpush1.xpose.msra.mxu0 %v5185
        %5781 = vmatprep.subr.mxu0 %v5179
        %5782 = vmatpush1.xpose.msra.mxu0 %v5177
        %5783 = vmatprep.subr.mxu0 %v5171
        %5784 = vmatpush1.xpose.msra.mxu0 %v5169
        %5785 = vmatprep.subr.mxu0 %v5419
        %5786 = vmatpush2.xpose.msra.mxu0 %v5417
        %5787 = vmatprep.subr.mxu0 %v5411
        %5788 = vmatpush2.xpose.msra.mxu0 %v5409
        %5789 = vmatprep.subr.mxu0 %v5403
        %5790 = vmatpush2.xpose.msra.mxu0 %v5401
        %5791 = vmatprep.subr.mxu0 %v5395
        %5792 = vmatpush2.xpose.msra.mxu0 %v5393
        %5793 = vmatprep.subr.mxu0 %v5387
        %5794 = vmatpush2.xpose.msra.mxu0 %v5385
        %5795 = vmatprep.subr.mxu0 %v5379
        %5796 = vmatpush2.xpose.msra.mxu0 %v5377
        %5797 = vmatprep.subr.mxu0 %v5371
        %5798 = vmatpush2.xpose.msra.mxu0 %v5369
        %5799 = vmatprep.subr.mxu0 %v5363
        %5800 = vmatpush2.xpose.msra.mxu0 %v5361
        %5801 = vmatprep.subr.mxu0 %v5355
        %5802 = vmatpush2.xpose.msra.mxu0 %v5353
        %5803 = vmatprep.subr.mxu0 %v5347
        %5804 = vmatpush2.xpose.msra.mxu0 %v5345
        %5805 = vmatprep.subr.mxu0 %v5339
        %5806 = vmatpush2.xpose.msra.mxu0 %v5337
        %5807 = vmatprep.subr.mxu0 %v5331
        %5808 = vmatpush2.xpose.msra.mxu0 %v5329
        %5809 = vmatprep.subr.mxu0 %v5323
        %5810 = vmatpush2.xpose.msra.mxu0 %v5321
        %5811 = vmatprep.subr.mxu0 %v5315
        %5812 = vmatpush2.xpose.msra.mxu0 %v5313
        %5813 = vmatprep.subr.mxu0 %v5307
        %5814 = vmatpush2.xpose.msra.mxu0 %v5305
        %5815 = vmatprep.subr.mxu0 %v5299
        %5816 = vmatpush2.xpose.msra.mxu0 %v5297
        %5817 = vmatprep.mubr.f32.mxu0 %v729
        %5818 = vmatmul.mubr.f32.gmra.mxu0 %v727
        %v5819 = vpop.f32.mrf.mxu0
        %v5820 = vadd.f32 %v5743, %v5819
        %v5821 = vpop.f32.mrf.mxu0
        %v5822 = vadd.f32 %v5745, %v5821
        %5823 = vmatprep.mubr.f32.mxu0 1.0
        %5824 = vmatmul.mubr.f32.gmra.mxu0 1.0
        %v5825 = vpop.f32.mrf.mxu0
        %v5826 = vadd.f32 %v5749, %v5825
        %v5827 = vpop.f32.mrf.mxu0
        %v5828 = vadd.f32 %v5751, %v5827
        %5829 = vdwg.mxu0
        %5830 = vmatprep.subr.mxu0 %v5543
        %5831 = vmatpush1.xpose.msra.mxu0 %v5541
        %5832 = vmatprep.subr.mxu0 %v5535
        %5833 = vmatpush1.xpose.msra.mxu0 %v5533
        %5834 = vmatprep.subr.mxu0 %v5527
        %5835 = vmatpush1.xpose.msra.mxu0 %v5525
        %5836 = vmatprep.subr.mxu0 %v5519
        %5837 = vmatpush1.xpose.msra.mxu0 %v5517
        %5838 = vmatprep.subr.mxu0 %v5511
        %5839 = vmatpush1.xpose.msra.mxu0 %v5509
        %5840 = vmatprep.subr.mxu0 %v5503
        %5841 = vmatpush1.xpose.msra.mxu0 %v5501
        %5842 = vmatprep.subr.mxu0 %v5495
        %5843 = vmatpush1.xpose.msra.mxu0 %v5493
        %5844 = vmatprep.subr.mxu0 %v5487
        %5845 = vmatpush1.xpose.msra.mxu0 %v5485
        %5846 = vmatprep.subr.mxu0 %v5479
        %5847 = vmatpush1.xpose.msra.mxu0 %v5477
        %5848 = vmatprep.subr.mxu0 %v5471
        %5849 = vmatpush1.xpose.msra.mxu0 %v5469
        %5850 = vmatprep.subr.mxu0 %v5463
        %5851 = vmatpush1.xpose.msra.mxu0 %v5461
        %5852 = vmatprep.subr.mxu0 %v5455
        %5853 = vmatpush1.xpose.msra.mxu0 %v5453
        %5854 = vmatprep.subr.mxu0 %v5447
        %5855 = vmatpush1.xpose.msra.mxu0 %v5445
        %5856 = vmatprep.subr.mxu0 %v5439
        %5857 = vmatpush1.xpose.msra.mxu0 %v5437
        %5858 = vmatprep.subr.mxu0 %v5431
        %5859 = vmatpush1.xpose.msra.mxu0 %v5429
        %5860 = vmatprep.subr.mxu0 %v5423
        %5861 = vmatpush1.xpose.msra.mxu0 %v5421
        %5862 = vmatprep.subr.mxu0 %v5671
        %5863 = vmatpush2.xpose.msra.mxu0 %v5669
        %5864 = vmatprep.subr.mxu0 %v5663
        %5865 = vmatpush2.xpose.msra.mxu0 %v5661
        %5866 = vmatprep.subr.mxu0 %v5655
        %5867 = vmatpush2.xpose.msra.mxu0 %v5653
        %5868 = vmatprep.subr.mxu0 %v5647
        %5869 = vmatpush2.xpose.msra.mxu0 %v5645
        %5870 = vmatprep.subr.mxu0 %v5639
        %5871 = vmatpush2.xpose.msra.mxu0 %v5637
        %5872 = vmatprep.subr.mxu0 %v5631
        %5873 = vmatpush2.xpose.msra.mxu0 %v5629
        %5874 = vmatprep.subr.mxu0 %v5623
        %5875 = vmatpush2.xpose.msra.mxu0 %v5621
        %5876 = vmatprep.subr.mxu0 %v5615
        %5877 = vmatpush2.xpose.msra.mxu0 %v5613
        %5878 = vmatprep.subr.mxu0 %v5607
        %5879 = vmatpush2.xpose.msra.mxu0 %v5605
        %5880 = vmatprep.subr.mxu0 %v5599
        %5881 = vmatpush2.xpose.msra.mxu0 %v5597
        %5882 = vmatprep.subr.mxu0 %v5591
        %5883 = vmatpush2.xpose.msra.mxu0 %v5589
        %5884 = vmatprep.subr.mxu0 %v5583
        %5885 = vmatpush2.xpose.msra.mxu0 %v5581
        %5886 = vmatprep.subr.mxu0 %v5575
        %5887 = vmatpush2.xpose.msra.mxu0 %v5573
        %5888 = vmatprep.subr.mxu0 %v5567
        %5889 = vmatpush2.xpose.msra.mxu0 %v5565
        %5890 = vmatprep.subr.mxu0 %v5559
        %5891 = vmatpush2.xpose.msra.mxu0 %v5557
        %5892 = vmatprep.subr.mxu0 %v5551
        %5893 = vmatpush2.xpose.msra.mxu0 %v5549
        %5894 = vmatprep.mubr.f32.mxu0 %v628
        %5895 = vmatmul.mubr.f32.gmra.mxu0 %v626
        %v5896 = vpop.f32.mrf.mxu0
        %v5897 = vadd.f32 0.0, %v5896
        %v5898 = vpop.f32.mrf.mxu0
        %v5899 = vadd.f32 0.0, %v5898
        %5900 = vmatprep.mubr.f32.mxu0 1.0
        %5901 = vmatmul.mubr.f32.gmra.mxu0 1.0
        %v5902 = vpop.f32.mrf.mxu0
        %v5903 = vadd.f32 0.0, %v5902
        %v5904 = vpop.f32.mrf.mxu0
        %v5905 = vadd.f32 0.0, %v5904
        %5906 = vdwg.mxu0
        %5907 = vmatprep.subr.mxu0 %v5547
        %5908 = vmatpush1.xpose.msra.mxu0 %v5545
        %5909 = vmatprep.subr.mxu0 %v5539
        %5910 = vmatpush1.xpose.msra.mxu0 %v5537
        %5911 = vmatprep.subr.mxu0 %v5531
        %5912 = vmatpush1.xpose.msra.mxu0 %v5529
        %5913 = vmatprep.subr.mxu0 %v5523
        %5914 = vmatpush1.xpose.msra.mxu0 %v5521
        %5915 = vmatprep.subr.mxu0 %v5515
        %5916 = vmatpush1.xpose.msra.mxu0 %v5513
        %5917 = vmatprep.subr.mxu0 %v5507
        %5918 = vmatpush1.xpose.msra.mxu0 %v5505
        %5919 = vmatprep.subr.mxu0 %v5499
        %5920 = vmatpush1.xpose.msra.mxu0 %v5497
        %5921 = vmatprep.subr.mxu0 %v5491
        %5922 = vmatpush1.xpose.msra.mxu0 %v5489
        %5923 = vmatprep.subr.mxu0 %v5483
        %5924 = vmatpush1.xpose.msra.mxu0 %v5481
        %5925 = vmatprep.subr.mxu0 %v5475
        %5926 = vmatpush1.xpose.msra.mxu0 %v5473
        %5927 = vmatprep.subr.mxu0 %v5467
        %5928 = vmatpush1.xpose.msra.mxu0 %v5465
        %5929 = vmatprep.subr.mxu0 %v5459
        %5930 = vmatpush1.xpose.msra.mxu0 %v5457
        %5931 = vmatprep.subr.mxu0 %v5451
        %5932 = vmatpush1.xpose.msra.mxu0 %v5449
        %5933 = vmatprep.subr.mxu0 %v5443
        %5934 = vmatpush1.xpose.msra.mxu0 %v5441
        %5935 = vmatprep.subr.mxu0 %v5435
        %5936 = vmatpush1.xpose.msra.mxu0 %v5433
        %5937 = vmatprep.subr.mxu0 %v5427
        %5938 = vmatpush1.xpose.msra.mxu0 %v5425
        %5939 = vmatprep.subr.mxu0 %v5675
        %5940 = vmatpush2.xpose.msra.mxu0 %v5673
        %5941 = vmatprep.subr.mxu0 %v5667
        %5942 = vmatpush2.xpose.msra.mxu0 %v5665
        %5943 = vmatprep.subr.mxu0 %v5659
        %5944 = vmatpush2.xpose.msra.mxu0 %v5657
        %5945 = vmatprep.subr.mxu0 %v5651
        %5946 = vmatpush2.xpose.msra.mxu0 %v5649
        %5947 = vmatprep.subr.mxu0 %v5643
        %5948 = vmatpush2.xpose.msra.mxu0 %v5641
        %5949 = vmatprep.subr.mxu0 %v5635
        %5950 = vmatpush2.xpose.msra.mxu0 %v5633
        %5951 = vmatprep.subr.mxu0 %v5627
        %5952 = vmatpush2.xpose.msra.mxu0 %v5625
        %5953 = vmatprep.subr.mxu0 %v5619
        %5954 = vmatpush2.xpose.msra.mxu0 %v5617
        %5955 = vmatprep.subr.mxu0 %v5611
        %5956 = vmatpush2.xpose.msra.mxu0 %v5609
        %5957 = vmatprep.subr.mxu0 %v5603
        %5958 = vmatpush2.xpose.msra.mxu0 %v5601
        %5959 = vmatprep.subr.mxu0 %v5595
        %5960 = vmatpush2.xpose.msra.mxu0 %v5593
        %5961 = vmatprep.subr.mxu0 %v5587
        %5962 = vmatpush2.xpose.msra.mxu0 %v5585
        %5963 = vmatprep.subr.mxu0 %v5579
        %5964 = vmatpush2.xpose.msra.mxu0 %v5577
        %5965 = vmatprep.subr.mxu0 %v5571
        %5966 = vmatpush2.xpose.msra.mxu0 %v5569
        %5967 = vmatprep.subr.mxu0 %v5563
        %5968 = vmatpush2.xpose.msra.mxu0 %v5561
        %5969 = vmatprep.subr.mxu0 %v5555
        %5970 = vmatpush2.xpose.msra.mxu0 %v5553
        %5971 = vmatprep.mubr.f32.mxu0 %v729
        %5972 = vmatmul.mubr.f32.gmra.mxu0 %v727
        %v5973 = vpop.f32.mrf.mxu0
        %v5974 = vadd.f32 %v5897, %v5973
        %v5975 = vpop.f32.mrf.mxu0
        %v5976 = vadd.f32 %v5899, %v5975
        %5977 = vmatprep.mubr.f32.mxu0 1.0
        %5978 = vmatmul.mubr.f32.gmra.mxu0 1.0
        %v5979 = vpop.f32.mrf.mxu0
        %v5980 = vadd.f32 %v5903, %v5979
        %v5981 = vpop.f32.mrf.mxu0
        %v5982 = vadd.f32 %v5905, %v5981
        %5983 = vdwg.mxu0
        %v5984 = vrcp.pop %v5826
        %v5985 = vrcp.pop %v5828
        %v5986 = vrcp.pop %v5980
        %v5987 = vrcp.pop %v5982
        %v5988 = vlaneseq
        %v5989 = vshrl.u32 %v5988, 7
        %v5990 = vsub.s32 0, %v5989
        %v5991 = vrot.slane %v5984, %v5990
        %v5992 = vlaneseq
        %v5993 = vshrl.u32 %v5992, 7
        %v5994 = vsub.s32 0, %v5993
        %v5995 = vrot.slane %v5985, %v5994
        %v5996 = vlaneseq
        %v5997 = vshrl.u32 %v5996, 7
        %v5998 = vsub.s32 0, %v5997
        %v5999 = vrot.slane %v5986, %v5998
        %v6000 = vlaneseq
        %v6001 = vshrl.u32 %v6000, 7
        %v6002 = vsub.s32 0, %v6001
        %v6003 = vrot.slane %v5987, %v6002
        %v6004 = vmul.f32 %v5820, %v5991
        %v6005 = vmul.f32 %v5822, %v5995
        %v6006 = vmul.f32 %v5974, %v5999
        %v6007 = vmul.f32 %v5976, %v6003
        %v6008 = vld [vmem:[%s3] sm:$0xff]
        %v6009 = vld [vmem:[%s3 + $0x8] sm:$0xff]
        %v6010 = vld [vmem:[%s4] sm:$0xff]
        %v6011 = vld [vmem:[%s4 + $0x8] sm:$0xff]
        %v6012 = vadd.f32 %v3366, %v3367
        %v6013 = vadd.f32 %v6012, %v3368
        %v6014 = vadd.f32 %v6013, %v3369
        %6015 = vadd.xlane.f32.xlu0 %v6014
        %v6016 = vpop.xlane.xlu0 %6015
        %v6017 = vadd.f32 %v6004, %v6005
        %v6018 = vadd.f32 %v6017, %v6006
        %v6019 = vadd.f32 %v6018, %v6007
        %6020 = vadd.xlane.f32.xlu0 %v6019
        %v6021 = vpop.xlane.xlu0 %6020
        %v6022 = vmul.f32 %v3366, %v3366
        %v6023 = vmul.f32 %v3367, %v3367
        %v6024 = vmul.f32 %v3368, %v3368
        %v6025 = vmul.f32 %v3369, %v3369
        %v6026 = vmul.f32 %v6004, %v6004
        %v6027 = vmul.f32 %v6005, %v6005
        %v6028 = vmul.f32 %v6006, %v6006
        %v6029 = vmul.f32 %v6007, %v6007
        %v6030 = vadd.f32 %v6022, %v6023
        %v6031 = vadd.f32 %v6030, %v6024
        %v6032 = vadd.f32 %v6031, %v6025
        %6033 = vadd.xlane.f32.xlu0 %v6032
        %v6034 = vpop.xlane.xlu0 %6033
        %v6035 = vadd.f32 %v6026, %v6027
        %v6036 = vadd.f32 %v6035, %v6028
        %v6037 = vadd.f32 %v6036, %v6029
        %6038 = vadd.xlane.f32.xlu0 %v6037
        %v6039 = vpop.xlane.xlu0 %6038
        %v6040 = vsel %vm859, %v6008, 0.0
        %6041 = vadd.xlane.f32.xlu0 %v6040
        %v6042 = vpop.xlane.xlu0 %6041
        %v6043 = vsel %vm859, %v6009, 0.0
        %6044 = vadd.xlane.f32.xlu0 %v6043
        %v6045 = vpop.xlane.xlu0 %6044
        %v6046 = vmul.f32 %v6008, %v6008
        %v6047 = vmul.f32 %v6009, %v6009
        %v6048 = vsel %vm859, %v6046, 0.0
        %6049 = vadd.xlane.f32.xlu0 %v6048
        %v6050 = vpop.xlane.xlu0 %6049
        %v6051 = vsel %vm859, %v6047, 0.0
        %6052 = vadd.xlane.f32.xlu0 %v6051
        %v6053 = vpop.xlane.xlu0 %6052
        %v6054 = vmul.f32 %v6016, %v6042
        %v6055 = vmul.f32 %v6021, %v6045
        %vm6056 = vcmask 7168
        %v6057 = vsel %vm6056, %v6054, 0.0
        %v6058 = vsel %vm6056, %v6055, 0.0
        %v6059 = vadd.f32 %v6057, %v6058
        %6060 = vadd.xlane.f32.xlu0 %v6059
        %v6061 = vpop.xlane.xlu0 %6060
        %v6062 = vrot.slane %v6061, 4
        %v6063 = vadd.f32 %v6061, %v6062
        %v6064 = vrot.slane %v6063, 2
        %v6065 = vadd.f32 %v6063, %v6064
        %v6066 = vrot.slane %v6065, 1
        %v6067 = vadd.f32 %v6065, %v6066
        %s6068 = vtos %v6067
        %v6069 = vsel %vm6056, %v6010, 0.0
        %v6070 = vsel %vm6056, %v6011, 0.0
        %v6071 = vadd.f32 %v6069, %v6070
        %6072 = vadd.xlane.f32.xlu0 %v6071
        %v6073 = vpop.xlane.xlu0 %6072
        %v6074 = vrot.slane %v6073, 4
        %v6075 = vadd.f32 %v6073, %v6074
        %v6076 = vrot.slane %v6075, 2
        %v6077 = vadd.f32 %v6075, %v6076
        %v6078 = vrot.slane %v6077, 1
        %v6079 = vadd.f32 %v6077, %v6078
        %s6080 = vtos %v6079
        %s6081 = smul.f32 %s6080, 4096.0
        %s6082 = sadd.f32 %s6068, %s6081
        %s6083 = smul.f32 %s6082, 1.5258789e-05
        %v6084 = vstv %s6083
        %v6085 = vsub.f32 %v6010, %v6084
        %v6086 = vsub.f32 %v6011, %v6084
        %v6087 = vmul.f32 %v6034, %v6050
        %v6088 = vmul.f32 %v6039, %v6053
        %v6089 = vsel %vm6056, %v6087, 0.0
        %v6090 = vsel %vm6056, %v6088, 0.0
        %v6091 = vadd.f32 %v6089, %v6090
        %6092 = vadd.xlane.f32.xlu0 %v6091
        %v6093 = vpop.xlane.xlu0 %6092
        %v6094 = vrot.slane %v6093, 4
        %v6095 = vadd.f32 %v6093, %v6094
        %v6096 = vrot.slane %v6095, 2
        %v6097 = vadd.f32 %v6095, %v6096
        %v6098 = vrot.slane %v6097, 1
        %v6099 = vadd.f32 %v6097, %v6098
        %s6100 = vtos %v6099
        %v6101 = vmul.f32 %v6085, %v6016
        %v6102 = vmul.f32 %v6086, %v6021
        %v6103 = vmul.f32 %v6101, %v6042
        %v6104 = vmul.f32 %v6102, %v6045
        %v6105 = vsel %vm6056, %v6103, 0.0
        %v6106 = vsel %vm6056, %v6104, 0.0
        %v6107 = vadd.f32 %v6105, %v6106
        %6108 = vadd.xlane.f32.xlu0 %v6107
        %v6109 = vpop.xlane.xlu0 %6108
        %v6110 = vrot.slane %v6109, 4
        %v6111 = vadd.f32 %v6109, %v6110
        %v6112 = vrot.slane %v6111, 2
        %v6113 = vadd.f32 %v6111, %v6112
        %v6114 = vrot.slane %v6113, 1
        %v6115 = vadd.f32 %v6113, %v6114
        %s6116 = vtos %v6115
        %s6117 = smul.f32 %s6116, 2.0
        %s6118 = sadd.f32 %s6100, %s6117
        %v6119 = vmul.f32 %v6085, %v6085
        %v6120 = vmul.f32 %v6086, %v6086
        %v6121 = vsel %vm6056, %v6119, 0.0
        %v6122 = vsel %vm6056, %v6120, 0.0
        %v6123 = vadd.f32 %v6121, %v6122
        %6124 = vadd.xlane.f32.xlu0 %v6123
        %v6125 = vpop.xlane.xlu0 %6124
        %v6126 = vrot.slane %v6125, 4
        %v6127 = vadd.f32 %v6125, %v6126
        %v6128 = vrot.slane %v6127, 2
        %v6129 = vadd.f32 %v6127, %v6128
        %v6130 = vrot.slane %v6129, 1
        %v6131 = vadd.f32 %v6129, %v6130
        %s6132 = vtos %v6131
        %s6133 = smul.f32 %s6132, 4096.0
        %s6134 = sadd.f32 %s6118, %s6133
        %s6135 = smul.f32 %s6134, 1.5258789e-05
        %s6136 = sadd.f32 %s6135, 1e-05
        %v6137 = vstv %s6136
        %v6138 = vrsqrt.pop %v6137
        %s6139 = vtos %v6138
        %v6140 = vld [vmem:[%s5] sm:$0xff]
        %v6141 = vld [vmem:[%s5 + $0x8] sm:$0xff]
        %v6142 = vstv %s6139
        %v6143 = vmul.f32 %v6142, %v6140
        %v6144 = vmul.f32 %v6142, %v6141
        %6146 = vset.pattern.permute.xlu0 0
        %6147 = vperm.xlu0 %6146, %v6143
        %v6148 = vpop.permute.xlu0 %6147
        %6151 = vset.pattern.permute.xlu0 0
        %6152 = vperm.xlu0 %6151, %v6144
        %v6153 = vpop.permute.xlu0 %6152
        %v6155 = vmul.f32 %v6008, %v6148
        %v6156 = vmul.f32 %v6009, %v6153
        %v6157 = vmul.f32 %v6085, %v6143
        %v6158 = vmul.f32 %v6086, %v6144
        %v6159 = vld [vmem:[%s6] sm:$0xff]
        %v6160 = vld [vmem:[%s6 + $0x8] sm:$0xff]
        %v6161 = vadd.f32 %v6157, %v6159
        %v6162 = vadd.f32 %v6158, %v6160
        %v6163 = vld [vmem:[%s7] sm:$0xff]
        %6164 = vxpose.xlu0.b32.start [1/16] %v6155, 128
        %6165 = vxpose.xlu0.b32.cont [2/16] %v6156, 128
        %6166 = vxpose.xlu0.b32.cont [3/16] 0.0, 128
        %6167 = vxpose.xlu0.b32.cont [4/16] 0.0, 128
        %6168 = vxpose.xlu0.b32.cont [5/16] 0.0, 128
        %6169 = vxpose.xlu0.b32.cont [6/16] 0.0, 128
        %6170 = vxpose.xlu0.b32.cont [7/16] 0.0, 128
        %6171 = vxpose.xlu0.b32.cont [8/16] 0.0, 128
        %6172 = vxpose.xlu0.b32.cont [9/16] 0.0, 128
        %6173 = vxpose.xlu0.b32.cont [10/16] 0.0, 128
        %6174 = vxpose.xlu0.b32.cont [11/16] 0.0, 128
        %6175 = vxpose.xlu0.b32.cont [12/16] 0.0, 128
        %6176 = vxpose.xlu0.b32.cont [13/16] 0.0, 128
        %6177 = vxpose.xlu0.b32.cont [14/16] 0.0, 128
        %6178 = vxpose.xlu0.b32.cont [15/16] 0.0, 128
        %6179 = vxpose.xlu0.b32.end [16/16] 0.0, 128
        %v6180 = vpop.trf.xlu0
        %v6181 = vpop.trf.xlu0
        %v6182 = vpop.trf.xlu0
        %v6183 = vpop.trf.xlu0
        %v6184 = vpop.trf.xlu0
        %v6185 = vpop.trf.xlu0
        %v6186 = vpop.trf.xlu0
        %v6187 = vpop.trf.xlu0
        %v6188 = vpop.trf.xlu0
        %v6189 = vpop.trf.xlu0
        %v6190 = vpop.trf.xlu0
        %v6191 = vpop.trf.xlu0
        %v6192 = vpop.trf.xlu0
        %v6193 = vpop.trf.xlu0
        %v6194 = vpop.trf.xlu0
        %v6195 = vpop.trf.xlu0
        %v6197 = vcombine.high %v6180, %v6180
        %v6199 = vunpack.c.l.s4 1966171168
        %v6200 = vunpack.c.0.s8 %v6199
        %v6201 = vlaneseq
        %v6202 = vshrl.u32 %v6201, 7
        %v6203 = vsub.s32 %v6200, %v6202
        %v6204 = vrot.slane %v6180, %v6203
        %v6206 = vunpack.c.l.s4 1966171168
        %v6207 = vunpack.c.0.s8 %v6206
        %v6208 = vlaneseq
        %v6209 = vshrl.u32 %v6208, 7
        %v6210 = vsub.s32 %v6207, %v6209
        %v6211 = vrot.slane %v6197, %v6210
        %v6212 = vcombine.high %v6204, %v6204
        %v6213 = vcombine.high %v6211, %v6211
        %v6215 = vunpack.c.l.s4 1966171168
        %v6216 = vunpack.c.0.s8 %v6215
        %v6217 = vlaneseq
        %v6218 = vshrl.u32 %v6217, 7
        %v6219 = vsub.s32 %v6216, %v6218
        %v6220 = vrot.slane %v6204, %v6219
        %v6222 = vunpack.c.l.s4 1966171168
        %v6223 = vunpack.c.0.s8 %v6222
        %v6224 = vlaneseq
        %v6225 = vshrl.u32 %v6224, 7
        %v6226 = vsub.s32 %v6223, %v6225
        %v6227 = vrot.slane %v6211, %v6226
        %v6229 = vunpack.c.l.s4 1966171168
        %v6230 = vunpack.c.0.s8 %v6229
        %v6231 = vlaneseq
        %v6232 = vshrl.u32 %v6231, 7
        %v6233 = vsub.s32 %v6230, %v6232
        %v6234 = vrot.slane %v6212, %v6233
        %v6236 = vunpack.c.l.s4 1966171168
        %v6237 = vunpack.c.0.s8 %v6236
        %v6238 = vlaneseq
        %v6239 = vshrl.u32 %v6238, 7
        %v6240 = vsub.s32 %v6237, %v6239
        %v6241 = vrot.slane %v6213, %v6240
        %v6242 = vcombine.high %v6220, %v6220
        %v6243 = vcombine.high %v6227, %v6227
        %v6244 = vcombine.high %v6234, %v6234
        %v6245 = vcombine.high %v6241, %v6241
        %v6246 = vlaneseq
        %v6247 = vshrl.u32 %v6246, 7
        %v6248 = vsub.s32 0, %v6247
        %v6249 = vrot.slane %v6220, %v6248
        %v6250 = vlaneseq
        %v6251 = vshrl.u32 %v6250, 7
        %v6252 = vsub.s32 0, %v6251
        %v6253 = vrot.slane %v6234, %v6252
        %v6254 = vlaneseq
        %v6255 = vshrl.u32 %v6254, 7
        %v6256 = vsub.s32 0, %v6255
        %v6257 = vrot.slane %v6242, %v6256
        %v6258 = vlaneseq
        %v6259 = vshrl.u32 %v6258, 7
        %v6260 = vsub.s32 0, %v6259
        %v6261 = vrot.slane %v6244, %v6260
        %v6262 = vlaneseq
        %v6263 = vshrl.u32 %v6262, 7
        %v6264 = vsub.s32 0, %v6263
        %v6265 = vrot.slane %v6227, %v6264
        %v6266 = vlaneseq
        %v6267 = vshrl.u32 %v6266, 7
        %v6268 = vsub.s32 0, %v6267
        %v6269 = vrot.slane %v6241, %v6268
        %v6270 = vlaneseq
        %v6271 = vshrl.u32 %v6270, 7
        %v6272 = vsub.s32 0, %v6271
        %v6273 = vrot.slane %v6243, %v6272
        %v6274 = vlaneseq
        %v6275 = vshrl.u32 %v6274, 7
        %v6276 = vsub.s32 0, %v6275
        %v6277 = vrot.slane %v6245, %v6276
        %v6286 = vmul.f32 %v6249, %v6163
        %v6287 = vmul.f32 %v6253, %v6163
        %v6288 = vmul.f32 %v6257, %v6163
        %v6289 = vmul.f32 %v6261, %v6163
        %v6290 = vmul.f32 %v6265, %v6163
        %v6291 = vmul.f32 %v6269, %v6163
        %v6292 = vmul.f32 %v6273, %v6163
        %v6293 = vmul.f32 %v6277, %v6163
        %v6295 = vsel %vm510, %v6163, 0
        %6297 = vmatprep.subr.mxu0 0.0
        %6298 = vmatpush1.msra.mxu0 0.0
        %6299 = vmatprep.subr.mxu0 0.0
        %6300 = vmatpush1.msra.mxu0 0.0
        %6301 = vmatprep.subr.mxu0 0.0
        %6302 = vmatpush1.msra.mxu0 0.0
        %6303 = vmatprep.subr.mxu0 0.0
        %6304 = vmatpush1.msra.mxu0 0.0
        %6305 = vmatprep.subr.mxu0 0.0
        %6306 = vmatpush1.msra.mxu0 0.0
        %6307 = vmatprep.subr.mxu0 0.0
        %6308 = vmatpush1.msra.mxu0 0.0
        %6309 = vmatprep.subr.mxu0 0.0
        %6310 = vmatpush1.msra.mxu0 0.0
        %6311 = vmatprep.subr.mxu0 0.0
        %6312 = vmatpush1.msra.mxu0 0.0
        %6313 = vmatprep.subr.mxu0 0.0
        %6314 = vmatpush1.msra.mxu0 0.0
        %6315 = vmatprep.subr.mxu0 0.0
        %6316 = vmatpush1.msra.mxu0 0.0
        %6317 = vmatprep.subr.mxu0 0.0
        %6318 = vmatpush1.msra.mxu0 0.0
        %6319 = vmatprep.subr.mxu0 0.0
        %6320 = vmatpush1.msra.mxu0 0.0
        %6321 = vmatprep.subr.mxu0 0.0
        %6322 = vmatpush1.msra.mxu0 0.0
        %6323 = vmatprep.subr.mxu0 0.0
        %6324 = vmatpush1.msra.mxu0 0.0
        %6325 = vmatprep.subr.mxu0 0.0
        %6326 = vmatpush1.msra.mxu0 %v6162
        %6327 = vmatprep.subr.mxu0 0.0
        %6328 = vmatpush1.msra.mxu0 %v6161
        %6329 = vmatprep.subr.mxu0 0.0
        %6330 = vmatpush2.msra.mxu0 0.0
        %6331 = vmatprep.subr.mxu0 0.0
        %6332 = vmatpush2.msra.mxu0 0.0
        %6333 = vmatprep.subr.mxu0 0.0
        %6334 = vmatpush2.msra.mxu0 0.0
        %6335 = vmatprep.subr.mxu0 0.0
        %6336 = vmatpush2.msra.mxu0 0.0
        %6337 = vmatprep.subr.mxu0 0.0
        %6338 = vmatpush2.msra.mxu0 0.0
        %6339 = vmatprep.subr.mxu0 0.0
        %6340 = vmatpush2.msra.mxu0 0.0
        %6341 = vmatprep.subr.mxu0 0.0
        %6342 = vmatpush2.msra.mxu0 0.0
        %6343 = vmatprep.subr.mxu0 0.0
        %6344 = vmatpush2.msra.mxu0 0.0
        %6345 = vmatprep.subr.mxu0 0.0
        %6346 = vmatpush2.msra.mxu0 0.0
        %6347 = vmatprep.subr.mxu0 0.0
        %6348 = vmatpush2.msra.mxu0 0.0
        %6349 = vmatprep.subr.mxu0 0.0
        %6350 = vmatpush2.msra.mxu0 0.0
        %6351 = vmatprep.subr.mxu0 0.0
        %6352 = vmatpush2.msra.mxu0 0.0
        %6353 = vmatprep.subr.mxu0 0.0
        %6354 = vmatpush2.msra.mxu0 0.0
        %6355 = vmatprep.subr.mxu0 0.0
        %6356 = vmatpush2.msra.mxu0 0.0
        %6357 = vmatprep.subr.mxu0 0.0
        %6358 = vmatpush2.msra.mxu0 0.0
        %6359 = vmatprep.subr.mxu0 0.0
        %6360 = vmatpush2.msra.mxu0 0.0
        %6361 = vmatprep.mubr.f32.mxu0 0.0
        %6362 = vmatmul.mubr.f32.gmra.mxu0 %v6295
        %v6363 = vpop.f32.mrf.mxu0
        %v6364 = vadd.f32 0.0, %v6363
        %v6365 = vpop.f32.mrf.mxu0
        %6366 = vdwg.mxu0
        %v6367 = vld [vmem:[%s9] sm:$0xff]
        %v6368 = vadd.f32 %v6367, %v6364
        %v6369 = vld [vmem:[%s8] sm:$0xff]
        %v6370 = vld [vmem:[%s8 + $0x8] sm:$0xff]
        %v6371 = vld [vmem:[%s8 + $0x10] sm:$0xff]
        %v6372 = vld [vmem:[%s8 + $0x18] sm:$0xff]
        %v6373 = vld [vmem:[%s8 + $0x20] sm:$0xff]
        %v6374 = vld [vmem:[%s8 + $0x28] sm:$0xff]
        %v6375 = vld [vmem:[%s8 + $0x30] sm:$0xff]
        %v6376 = vld [vmem:[%s8 + $0x38] sm:$0xff]
        %vm6377 = vcmask 588800
        %v6379 = vsel %vm6377, %v6369, 0
        %v6382 = vsel %vm6377, %v6370, 0
        %v6385 = vsel %vm6377, %v6371, 0
        %v6388 = vsel %vm6377, %v6372, 0
        %v6391 = vsel %vm6377, %v6373, 0
        %v6394 = vsel %vm6377, %v6374, 0
        %v6397 = vsel %vm6377, %v6375, 0
        %v6400 = vsel %vm6377, %v6376, 0
        %6402 = vmatprep.subr.mxu0 0.0
        %6403 = vmatpush1.msra.mxu0 0.0
        %6404 = vmatprep.subr.mxu0 0.0
        %6405 = vmatpush1.msra.mxu0 0.0
        %6406 = vmatprep.subr.mxu0 0.0
        %6407 = vmatpush1.msra.mxu0 0.0
        %6408 = vmatprep.subr.mxu0 0.0
        %6409 = vmatpush1.msra.mxu0 0.0
        %6410 = vmatprep.subr.mxu0 0.0
        %6411 = vmatpush1.msra.mxu0 0.0
        %6412 = vmatprep.subr.mxu0 0.0
        %6413 = vmatpush1.msra.mxu0 0.0
        %6414 = vmatprep.subr.mxu0 0.0
        %6415 = vmatpush1.msra.mxu0 0.0
        %6416 = vmatprep.subr.mxu0 %v465
        %6417 = vmatpush1.msra.mxu0 %v464
        %6418 = vmatprep.subr.mxu0 %v461
        %6419 = vmatpush1.msra.mxu0 %v460
        %6420 = vmatprep.subr.mxu0 %v457
        %6421 = vmatpush1.msra.mxu0 %v456
        %6422 = vmatprep.subr.mxu0 %v453
        %6423 = vmatpush1.msra.mxu0 %v452
        %6424 = vmatprep.subr.mxu0 %v449
        %6425 = vmatpush1.msra.mxu0 %v448
        %6426 = vmatprep.subr.mxu0 %v445
        %6427 = vmatpush1.msra.mxu0 %v444
        %6428 = vmatprep.subr.mxu0 %v441
        %6429 = vmatpush1.msra.mxu0 %v440
        %6430 = vmatprep.subr.mxu0 %v437
        %6431 = vmatpush1.msra.mxu0 %v436
        %6432 = vmatprep.subr.mxu0 %v433
        %6433 = vmatpush1.msra.mxu0 %v432
        %6434 = vmatprep.subr.mxu0 0.0
        %6435 = vmatpush2.msra.mxu0 0.0
        %6436 = vmatprep.subr.mxu0 0.0
        %6437 = vmatpush2.msra.mxu0 0.0
        %6438 = vmatprep.subr.mxu0 0.0
        %6439 = vmatpush2.msra.mxu0 0.0
        %6440 = vmatprep.subr.mxu0 0.0
        %6441 = vmatpush2.msra.mxu0 0.0
        %6442 = vmatprep.subr.mxu0 0.0
        %6443 = vmatpush2.msra.mxu0 0.0
        %6444 = vmatprep.subr.mxu0 0.0
        %6445 = vmatpush2.msra.mxu0 0.0
        %6446 = vmatprep.subr.mxu0 0.0
        %6447 = vmatpush2.msra.mxu0 0.0
        %6448 = vmatprep.subr.mxu0 0.0
        %6449 = vmatpush2.msra.mxu0 0.0
        %6450 = vmatprep.subr.mxu0 0.0
        %6451 = vmatpush2.msra.mxu0 0.0
        %6452 = vmatprep.subr.mxu0 0.0
        %6453 = vmatpush2.msra.mxu0 0.0
        %6454 = vmatprep.subr.mxu0 0.0
        %6455 = vmatpush2.msra.mxu0 0.0
        %6456 = vmatprep.subr.mxu0 0.0
        %6457 = vmatpush2.msra.mxu0 0.0
        %6458 = vmatprep.subr.mxu0 0.0
        %6459 = vmatpush2.msra.mxu0 0.0
        %6460 = vmatprep.subr.mxu0 0.0
        %6461 = vmatpush2.msra.mxu0 0.0
        %6462 = vmatprep.subr.mxu0 0.0
        %6463 = vmatpush2.msra.mxu0 0.0
        %6464 = vmatprep.subr.mxu0 0.0
        %6465 = vmatpush2.msra.mxu0 0.0
        %6466 = vmatprep.mubr.f32.mxu0 0.0
        %6467 = vmatmul.mubr.f32.gmra.mxu0 %v6379
        %v6468 = vpop.f32.mrf.mxu0
        %v6469 = vadd.f32 0.0, %v6468
        %v6470 = vpop.f32.mrf.mxu0
        %v6471 = vadd.f32 0.0, %v6470
        %6472 = vmatprep.mubr.f32.mxu0 0.0
        %6473 = vmatmul.mubr.f32.gmra.mxu0 %v6382
        %v6474 = vpop.f32.mrf.mxu0
        %v6475 = vadd.f32 0.0, %v6474
        %v6476 = vpop.f32.mrf.mxu0
        %v6477 = vadd.f32 0.0, %v6476
        %6478 = vmatprep.mubr.f32.mxu0 0.0
        %6479 = vmatmul.mubr.f32.gmra.mxu0 %v6385
        %v6480 = vpop.f32.mrf.mxu0
        %v6481 = vadd.f32 0.0, %v6480
        %v6482 = vpop.f32.mrf.mxu0
        %v6483 = vadd.f32 0.0, %v6482
        %6484 = vmatprep.mubr.f32.mxu0 0.0
        %6485 = vmatmul.mubr.f32.gmra.mxu0 %v6388
        %v6486 = vpop.f32.mrf.mxu0
        %v6487 = vadd.f32 0.0, %v6486
        %v6488 = vpop.f32.mrf.mxu0
        %v6489 = vadd.f32 0.0, %v6488
        %6490 = vmatprep.mubr.f32.mxu0 0.0
        %6491 = vmatmul.mubr.f32.gmra.mxu0 %v6391
        %v6492 = vpop.f32.mrf.mxu0
        %v6493 = vadd.f32 0.0, %v6492
        %v6494 = vpop.f32.mrf.mxu0
        %v6495 = vadd.f32 0.0, %v6494
        %6496 = vmatprep.mubr.f32.mxu0 0.0
        %6497 = vmatmul.mubr.f32.gmra.mxu0 %v6394
        %v6498 = vpop.f32.mrf.mxu0
        %v6499 = vadd.f32 0.0, %v6498
        %v6500 = vpop.f32.mrf.mxu0
        %v6501 = vadd.f32 0.0, %v6500
        %6502 = vmatprep.mubr.f32.mxu0 0.0
        %6503 = vmatmul.mubr.f32.gmra.mxu0 %v6397
        %v6504 = vpop.f32.mrf.mxu0
        %v6505 = vadd.f32 0.0, %v6504
        %v6506 = vpop.f32.mrf.mxu0
        %v6507 = vadd.f32 0.0, %v6506
        %6508 = vmatprep.mubr.f32.mxu0 0.0
        %6509 = vmatmul.mubr.f32.gmra.mxu0 %v6400
        %v6510 = vpop.f32.mrf.mxu0
        %v6511 = vadd.f32 0.0, %v6510
        %v6512 = vpop.f32.mrf.mxu0
        %v6513 = vadd.f32 0.0, %v6512
        %6514 = vdwg.mxu0
        %6515 = vmatprep.subr.mxu0 0.0
        %6516 = vmatpush1.msra.mxu0 0.0
        %6517 = vmatprep.subr.mxu0 0.0
        %6518 = vmatpush1.msra.mxu0 0.0
        %6519 = vmatprep.subr.mxu0 0.0
        %6520 = vmatpush1.msra.mxu0 0.0
        %6521 = vmatprep.subr.mxu0 0.0
        %6522 = vmatpush1.msra.mxu0 0.0
        %6523 = vmatprep.subr.mxu0 0.0
        %6524 = vmatpush1.msra.mxu0 0.0
        %6525 = vmatprep.subr.mxu0 0.0
        %6526 = vmatpush1.msra.mxu0 0.0
        %6527 = vmatprep.subr.mxu0 0.0
        %6528 = vmatpush1.msra.mxu0 0.0
        %6529 = vmatprep.subr.mxu0 %v467
        %6530 = vmatpush1.msra.mxu0 %v466
        %6531 = vmatprep.subr.mxu0 %v463
        %6532 = vmatpush1.msra.mxu0 %v462
        %6533 = vmatprep.subr.mxu0 %v459
        %6534 = vmatpush1.msra.mxu0 %v458
        %6535 = vmatprep.subr.mxu0 %v455
        %6536 = vmatpush1.msra.mxu0 %v454
        %6537 = vmatprep.subr.mxu0 %v451
        %6538 = vmatpush1.msra.mxu0 %v450
        %6539 = vmatprep.subr.mxu0 %v447
        %6540 = vmatpush1.msra.mxu0 %v446
        %6541 = vmatprep.subr.mxu0 %v443
        %6542 = vmatpush1.msra.mxu0 %v442
        %6543 = vmatprep.subr.mxu0 %v439
        %6544 = vmatpush1.msra.mxu0 %v438
        %6545 = vmatprep.subr.mxu0 %v435
        %6546 = vmatpush1.msra.mxu0 %v434
        %6547 = vmatprep.subr.mxu0 0.0
        %6548 = vmatpush2.msra.mxu0 0.0
        %6549 = vmatprep.subr.mxu0 0.0
        %6550 = vmatpush2.msra.mxu0 0.0
        %6551 = vmatprep.subr.mxu0 0.0
        %6552 = vmatpush2.msra.mxu0 0.0
        %6553 = vmatprep.subr.mxu0 0.0
        %6554 = vmatpush2.msra.mxu0 0.0
        %6555 = vmatprep.subr.mxu0 0.0
        %6556 = vmatpush2.msra.mxu0 0.0
        %6557 = vmatprep.subr.mxu0 0.0
        %6558 = vmatpush2.msra.mxu0 0.0
        %6559 = vmatprep.subr.mxu0 0.0
        %6560 = vmatpush2.msra.mxu0 0.0
        %6561 = vmatprep.subr.mxu0 0.0
        %6562 = vmatpush2.msra.mxu0 0.0
        %6563 = vmatprep.subr.mxu0 0.0
        %6564 = vmatpush2.msra.mxu0 0.0
        %6565 = vmatprep.subr.mxu0 0.0
        %6566 = vmatpush2.msra.mxu0 0.0
        %6567 = vmatprep.subr.mxu0 0.0
        %6568 = vmatpush2.msra.mxu0 0.0
        %6569 = vmatprep.subr.mxu0 0.0
        %6570 = vmatpush2.msra.mxu0 0.0
        %6571 = vmatprep.subr.mxu0 0.0
        %6572 = vmatpush2.msra.mxu0 0.0
        %6573 = vmatprep.subr.mxu0 0.0
        %6574 = vmatpush2.msra.mxu0 0.0
        %6575 = vmatprep.subr.mxu0 0.0
        %6576 = vmatpush2.msra.mxu0 0.0
        %6577 = vmatprep.subr.mxu0 0.0
        %6578 = vmatpush2.msra.mxu0 0.0
        %6579 = vmatprep.mubr.f32.mxu0 0.0
        %6580 = vmatmul.mubr.f32.gmra.mxu0 %v6379
        %v6581 = vpop.f32.mrf.mxu0
        %v6582 = vadd.f32 0.0, %v6581
        %v6583 = vpop.f32.mrf.mxu0
        %v6584 = vadd.f32 0.0, %v6583
        %6585 = vmatprep.mubr.f32.mxu0 0.0
        %6586 = vmatmul.mubr.f32.gmra.mxu0 %v6382
        %v6587 = vpop.f32.mrf.mxu0
        %v6588 = vadd.f32 0.0, %v6587
        %v6589 = vpop.f32.mrf.mxu0
        %v6590 = vadd.f32 0.0, %v6589
        %6591 = vmatprep.mubr.f32.mxu0 0.0
        %6592 = vmatmul.mubr.f32.gmra.mxu0 %v6385
        %v6593 = vpop.f32.mrf.mxu0
        %v6594 = vadd.f32 0.0, %v6593
        %v6595 = vpop.f32.mrf.mxu0
        %v6596 = vadd.f32 0.0, %v6595
        %6597 = vmatprep.mubr.f32.mxu0 0.0
        %6598 = vmatmul.mubr.f32.gmra.mxu0 %v6388
        %v6599 = vpop.f32.mrf.mxu0
        %v6600 = vadd.f32 0.0, %v6599
        %v6601 = vpop.f32.mrf.mxu0
        %v6602 = vadd.f32 0.0, %v6601
        %6603 = vmatprep.mubr.f32.mxu0 0.0
        %6604 = vmatmul.mubr.f32.gmra.mxu0 %v6391
        %v6605 = vpop.f32.mrf.mxu0
        %v6606 = vadd.f32 0.0, %v6605
        %v6607 = vpop.f32.mrf.mxu0
        %v6608 = vadd.f32 0.0, %v6607
        %6609 = vmatprep.mubr.f32.mxu0 0.0
        %6610 = vmatmul.mubr.f32.gmra.mxu0 %v6394
        %v6611 = vpop.f32.mrf.mxu0
        %v6612 = vadd.f32 0.0, %v6611
        %v6613 = vpop.f32.mrf.mxu0
        %v6614 = vadd.f32 0.0, %v6613
        %6615 = vmatprep.mubr.f32.mxu0 0.0
        %6616 = vmatmul.mubr.f32.gmra.mxu0 %v6397
        %v6617 = vpop.f32.mrf.mxu0
        %v6618 = vadd.f32 0.0, %v6617
        %v6619 = vpop.f32.mrf.mxu0
        %v6620 = vadd.f32 0.0, %v6619
        %6621 = vmatprep.mubr.f32.mxu0 0.0
        %6622 = vmatmul.mubr.f32.gmra.mxu0 %v6400
        %v6623 = vpop.f32.mrf.mxu0
        %v6624 = vadd.f32 0.0, %v6623
        %v6625 = vpop.f32.mrf.mxu0
        %v6626 = vadd.f32 0.0, %v6625
        %6627 = vdwg.mxu0
        %v6629 = vsel %vm510, %v6286, 0
        %v6632 = vsel %vm510, %v6287, 0
        %v6635 = vsel %vm510, %v6288, 0
        %v6638 = vsel %vm510, %v6289, 0
        %v6641 = vsel %vm510, %v6290, 0
        %v6644 = vsel %vm510, %v6291, 0
        %v6647 = vsel %vm510, %v6292, 0
        %v6650 = vsel %vm510, %v6293, 0
        %6652 = vmatprep.subr.mxu0 0.0
        %6653 = vmatpush1.msra.mxu0 0.0
        %6654 = vmatprep.subr.mxu0 0.0
        %6655 = vmatpush1.msra.mxu0 0.0
        %6656 = vmatprep.subr.mxu0 0.0
        %6657 = vmatpush1.msra.mxu0 0.0
        %6658 = vmatprep.subr.mxu0 0.0
        %6659 = vmatpush1.msra.mxu0 0.0
        %6660 = vmatprep.subr.mxu0 0.0
        %6661 = vmatpush1.msra.mxu0 0.0
        %6662 = vmatprep.subr.mxu0 0.0
        %6663 = vmatpush1.msra.mxu0 0.0
        %6664 = vmatprep.subr.mxu0 0.0
        %6665 = vmatpush1.msra.mxu0 0.0
        %6666 = vmatprep.subr.mxu0 0.0
        %6667 = vmatpush1.msra.mxu0 0.0
        %6668 = vmatprep.subr.mxu0 0.0
        %6669 = vmatpush1.msra.mxu0 0.0
        %6670 = vmatprep.subr.mxu0 0.0
        %6671 = vmatpush1.msra.mxu0 0.0
        %6672 = vmatprep.subr.mxu0 0.0
        %6673 = vmatpush1.msra.mxu0 0.0
        %6674 = vmatprep.subr.mxu0 0.0
        %6675 = vmatpush1.msra.mxu0 0.0
        %6676 = vmatprep.subr.mxu0 0.0
        %6677 = vmatpush1.msra.mxu0 0.0
        %6678 = vmatprep.subr.mxu0 0.0
        %6679 = vmatpush1.msra.mxu0 0.0
        %6680 = vmatprep.subr.mxu0 %v6005
        %6681 = vmatpush1.msra.mxu0 %v6004
        %6682 = vmatprep.subr.mxu0 %v3367
        %6683 = vmatpush1.msra.mxu0 %v3366
        %6684 = vmatprep.subr.mxu0 0.0
        %6685 = vmatpush2.msra.mxu0 0.0
        %6686 = vmatprep.subr.mxu0 0.0
        %6687 = vmatpush2.msra.mxu0 0.0
        %6688 = vmatprep.subr.mxu0 0.0
        %6689 = vmatpush2.msra.mxu0 0.0
        %6690 = vmatprep.subr.mxu0 0.0
        %6691 = vmatpush2.msra.mxu0 0.0
        %6692 = vmatprep.subr.mxu0 0.0
        %6693 = vmatpush2.msra.mxu0 0.0
        %6694 = vmatprep.subr.mxu0 0.0
        %6695 = vmatpush2.msra.mxu0 0.0
        %6696 = vmatprep.subr.mxu0 0.0
        %6697 = vmatpush2.msra.mxu0 0.0
        %6698 = vmatprep.subr.mxu0 0.0
        %6699 = vmatpush2.msra.mxu0 0.0
        %6700 = vmatprep.subr.mxu0 0.0
        %6701 = vmatpush2.msra.mxu0 0.0
        %6702 = vmatprep.subr.mxu0 0.0
        %6703 = vmatpush2.msra.mxu0 0.0
        %6704 = vmatprep.subr.mxu0 0.0
        %6705 = vmatpush2.msra.mxu0 0.0
        %6706 = vmatprep.subr.mxu0 0.0
        %6707 = vmatpush2.msra.mxu0 0.0
        %6708 = vmatprep.subr.mxu0 0.0
        %6709 = vmatpush2.msra.mxu0 0.0
        %6710 = vmatprep.subr.mxu0 0.0
        %6711 = vmatpush2.msra.mxu0 0.0
        %6712 = vmatprep.subr.mxu0 0.0
        %6713 = vmatpush2.msra.mxu0 0.0
        %6714 = vmatprep.subr.mxu0 0.0
        %6715 = vmatpush2.msra.mxu0 0.0
        %6716 = vmatprep.mubr.f32.mxu0 0.0
        %6717 = vmatmul.mubr.f32.gmra.mxu0 %v6629
        %v6718 = vpop.f32.mrf.mxu0
        %v6719 = vadd.f32 %v6469, %v6718
        %v6720 = vpop.f32.mrf.mxu0
        %v6721 = vadd.f32 %v6471, %v6720
        %6722 = vmatprep.mubr.f32.mxu0 0.0
        %6723 = vmatmul.mubr.f32.gmra.mxu0 %v6632
        %v6724 = vpop.f32.mrf.mxu0
        %v6725 = vadd.f32 %v6475, %v6724
        %v6726 = vpop.f32.mrf.mxu0
        %v6727 = vadd.f32 %v6477, %v6726
        %6728 = vmatprep.mubr.f32.mxu0 0.0
        %6729 = vmatmul.mubr.f32.gmra.mxu0 %v6635
        %v6730 = vpop.f32.mrf.mxu0
        %v6731 = vadd.f32 %v6481, %v6730
        %v6732 = vpop.f32.mrf.mxu0
        %v6733 = vadd.f32 %v6483, %v6732
        %6734 = vmatprep.mubr.f32.mxu0 0.0
        %6735 = vmatmul.mubr.f32.gmra.mxu0 %v6638
        %v6736 = vpop.f32.mrf.mxu0
        %v6737 = vadd.f32 %v6487, %v6736
        %v6738 = vpop.f32.mrf.mxu0
        %v6739 = vadd.f32 %v6489, %v6738
        %6740 = vmatprep.mubr.f32.mxu0 0.0
        %6741 = vmatmul.mubr.f32.gmra.mxu0 %v6641
        %v6742 = vpop.f32.mrf.mxu0
        %v6743 = vadd.f32 %v6493, %v6742
        %v6744 = vpop.f32.mrf.mxu0
        %v6745 = vadd.f32 %v6495, %v6744
        %6746 = vmatprep.mubr.f32.mxu0 0.0
        %6747 = vmatmul.mubr.f32.gmra.mxu0 %v6644
        %v6748 = vpop.f32.mrf.mxu0
        %v6749 = vadd.f32 %v6499, %v6748
        %v6750 = vpop.f32.mrf.mxu0
        %v6751 = vadd.f32 %v6501, %v6750
        %6752 = vmatprep.mubr.f32.mxu0 0.0
        %6753 = vmatmul.mubr.f32.gmra.mxu0 %v6647
        %v6754 = vpop.f32.mrf.mxu0
        %v6755 = vadd.f32 %v6505, %v6754
        %v6756 = vpop.f32.mrf.mxu0
        %v6757 = vadd.f32 %v6507, %v6756
        %6758 = vmatprep.mubr.f32.mxu0 0.0
        %6759 = vmatmul.mubr.f32.gmra.mxu0 %v6650
        %v6760 = vpop.f32.mrf.mxu0
        %v6761 = vadd.f32 %v6511, %v6760
        %v6762 = vpop.f32.mrf.mxu0
        %v6763 = vadd.f32 %v6513, %v6762
        %6764 = vdwg.mxu0
        %6765 = vmatprep.subr.mxu0 0.0
        %6766 = vmatpush1.msra.mxu0 0.0
        %6767 = vmatprep.subr.mxu0 0.0
        %6768 = vmatpush1.msra.mxu0 0.0
        %6769 = vmatprep.subr.mxu0 0.0
        %6770 = vmatpush1.msra.mxu0 0.0
        %6771 = vmatprep.subr.mxu0 0.0
        %6772 = vmatpush1.msra.mxu0 0.0
        %6773 = vmatprep.subr.mxu0 0.0
        %6774 = vmatpush1.msra.mxu0 0.0
        %6775 = vmatprep.subr.mxu0 0.0
        %6776 = vmatpush1.msra.mxu0 0.0
        %6777 = vmatprep.subr.mxu0 0.0
        %6778 = vmatpush1.msra.mxu0 0.0
        %6779 = vmatprep.subr.mxu0 0.0
        %6780 = vmatpush1.msra.mxu0 0.0
        %6781 = vmatprep.subr.mxu0 0.0
        %6782 = vmatpush1.msra.mxu0 0.0
        %6783 = vmatprep.subr.mxu0 0.0
        %6784 = vmatpush1.msra.mxu0 0.0
        %6785 = vmatprep.subr.mxu0 0.0
        %6786 = vmatpush1.msra.mxu0 0.0
        %6787 = vmatprep.subr.mxu0 0.0
        %6788 = vmatpush1.msra.mxu0 0.0
        %6789 = vmatprep.subr.mxu0 0.0
        %6790 = vmatpush1.msra.mxu0 0.0
        %6791 = vmatprep.subr.mxu0 0.0
        %6792 = vmatpush1.msra.mxu0 0.0
        %6793 = vmatprep.subr.mxu0 %v6007
        %6794 = vmatpush1.msra.mxu0 %v6006
        %6795 = vmatprep.subr.mxu0 %v3369
        %6796 = vmatpush1.msra.mxu0 %v3368
        %6797 = vmatprep.subr.mxu0 0.0
        %6798 = vmatpush2.msra.mxu0 0.0
        %6799 = vmatprep.subr.mxu0 0.0
        %6800 = vmatpush2.msra.mxu0 0.0
        %6801 = vmatprep.subr.mxu0 0.0
        %6802 = vmatpush2.msra.mxu0 0.0
        %6803 = vmatprep.subr.mxu0 0.0
        %6804 = vmatpush2.msra.mxu0 0.0
        %6805 = vmatprep.subr.mxu0 0.0
        %6806 = vmatpush2.msra.mxu0 0.0
        %6807 = vmatprep.subr.mxu0 0.0
        %6808 = vmatpush2.msra.mxu0 0.0
        %6809 = vmatprep.subr.mxu0 0.0
        %6810 = vmatpush2.msra.mxu0 0.0
        %6811 = vmatprep.subr.mxu0 0.0
        %6812 = vmatpush2.msra.mxu0 0.0
        %6813 = vmatprep.subr.mxu0 0.0
        %6814 = vmatpush2.msra.mxu0 0.0
        %6815 = vmatprep.subr.mxu0 0.0
        %6816 = vmatpush2.msra.mxu0 0.0
        %6817 = vmatprep.subr.mxu0 0.0
        %6818 = vmatpush2.msra.mxu0 0.0
        %6819 = vmatprep.subr.mxu0 0.0
        %6820 = vmatpush2.msra.mxu0 0.0
        %6821 = vmatprep.subr.mxu0 0.0
        %6822 = vmatpush2.msra.mxu0 0.0
        %6823 = vmatprep.subr.mxu0 0.0
        %6824 = vmatpush2.msra.mxu0 0.0
        %6825 = vmatprep.subr.mxu0 0.0
        %6826 = vmatpush2.msra.mxu0 0.0
        %6827 = vmatprep.subr.mxu0 0.0
        %6828 = vmatpush2.msra.mxu0 0.0
        %6829 = vmatprep.mubr.f32.mxu0 0.0
        %6830 = vmatmul.mubr.f32.gmra.mxu0 %v6629
        %v6831 = vpop.f32.mrf.mxu0
        %v6832 = vadd.f32 %v6582, %v6831
        %v6833 = vpop.f32.mrf.mxu0
        %v6834 = vadd.f32 %v6584, %v6833
        %6835 = vmatprep.mubr.f32.mxu0 0.0
        %6836 = vmatmul.mubr.f32.gmra.mxu0 %v6632
        %v6837 = vpop.f32.mrf.mxu0
        %v6838 = vadd.f32 %v6588, %v6837
        %v6839 = vpop.f32.mrf.mxu0
        %v6840 = vadd.f32 %v6590, %v6839
        %6841 = vmatprep.mubr.f32.mxu0 0.0
        %6842 = vmatmul.mubr.f32.gmra.mxu0 %v6635
        %v6843 = vpop.f32.mrf.mxu0
        %v6844 = vadd.f32 %v6594, %v6843
        %v6845 = vpop.f32.mrf.mxu0
        %v6846 = vadd.f32 %v6596, %v6845
        %6847 = vmatprep.mubr.f32.mxu0 0.0
        %6848 = vmatmul.mubr.f32.gmra.mxu0 %v6638
        %v6849 = vpop.f32.mrf.mxu0
        %v6850 = vadd.f32 %v6600, %v6849
        %v6851 = vpop.f32.mrf.mxu0
        %v6852 = vadd.f32 %v6602, %v6851
        %6853 = vmatprep.mubr.f32.mxu0 0.0
        %6854 = vmatmul.mubr.f32.gmra.mxu0 %v6641
        %v6855 = vpop.f32.mrf.mxu0
        %v6856 = vadd.f32 %v6606, %v6855
        %v6857 = vpop.f32.mrf.mxu0
        %v6858 = vadd.f32 %v6608, %v6857
        %6859 = vmatprep.mubr.f32.mxu0 0.0
        %6860 = vmatmul.mubr.f32.gmra.mxu0 %v6644
        %v6861 = vpop.f32.mrf.mxu0
        %v6862 = vadd.f32 %v6612, %v6861
        %v6863 = vpop.f32.mrf.mxu0
        %v6864 = vadd.f32 %v6614, %v6863
        %6865 = vmatprep.mubr.f32.mxu0 0.0
        %6866 = vmatmul.mubr.f32.gmra.mxu0 %v6647
        %v6867 = vpop.f32.mrf.mxu0
        %v6868 = vadd.f32 %v6618, %v6867
        %v6869 = vpop.f32.mrf.mxu0
        %v6870 = vadd.f32 %v6620, %v6869
        %6871 = vmatprep.mubr.f32.mxu0 0.0
        %6872 = vmatmul.mubr.f32.gmra.mxu0 %v6650
        %v6873 = vpop.f32.mrf.mxu0
        %v6874 = vadd.f32 %v6624, %v6873
        %v6875 = vpop.f32.mrf.mxu0
        %v6876 = vadd.f32 %v6626, %v6875
        %6877 = vdwg.mxu0
        %6879 = vset.pattern.permute.xlu0 0
        %6880 = vperm.xlu0 %6879, %v6368
        %v6881 = vpop.permute.xlu0 %6880
        %v6883 = vadd.f32 %v6719, %v6881
        %v6884 = vadd.f32 %v6721, %v6881
        %v6885 = vadd.f32 %v6832, %v6881
        %v6886 = vadd.f32 %v6834, %v6881
        %v6887 = vadd.f32 %v6725, %v6881
        %v6888 = vadd.f32 %v6727, %v6881
        %v6889 = vadd.f32 %v6838, %v6881
        %v6890 = vadd.f32 %v6840, %v6881
        %v6891 = vadd.f32 %v6731, %v6881
        %v6892 = vadd.f32 %v6733, %v6881
        %v6893 = vadd.f32 %v6844, %v6881
        %v6894 = vadd.f32 %v6846, %v6881
        %v6895 = vadd.f32 %v6737, %v6881
        %v6896 = vadd.f32 %v6739, %v6881
        %v6897 = vadd.f32 %v6850, %v6881
        %v6898 = vadd.f32 %v6852, %v6881
        %v6899 = vadd.f32 %v6743, %v6881
        %v6900 = vadd.f32 %v6745, %v6881
        %v6901 = vadd.f32 %v6856, %v6881
        %v6902 = vadd.f32 %v6858, %v6881
        %v6903 = vadd.f32 %v6749, %v6881
        %v6904 = vadd.f32 %v6751, %v6881
        %v6905 = vadd.f32 %v6862, %v6881
        %v6906 = vadd.f32 %v6864, %v6881
        %v6907 = vadd.f32 %v6755, %v6881
        %v6908 = vadd.f32 %v6757, %v6881
        %v6909 = vadd.f32 %v6868, %v6881
        %v6910 = vadd.f32 %v6870, %v6881
        %v6911 = vadd.f32 %v6761, %v6881
        %v6912 = vadd.f32 %v6763, %v6881
        %v6913 = vadd.f32 %v6874, %v6881
        %v6914 = vadd.f32 %v6876, %v6881
        %v6915 = vadd.f32 %v6883, %v6884
        %v6916 = vadd.f32 %v6915, %v6885
        %v6917 = vadd.f32 %v6916, %v6886
        %v6918 = vadd.f32 %v6917, %v6887
        %v6919 = vadd.f32 %v6918, %v6888
        %v6920 = vadd.f32 %v6919, %v6889
        %v6921 = vadd.f32 %v6920, %v6890
        %v6922 = vadd.f32 %v6921, %v6891
        %v6923 = vadd.f32 %v6922, %v6892
        %v6924 = vadd.f32 %v6923, %v6893
        %v6925 = vadd.f32 %v6924, %v6894
        %v6926 = vadd.f32 %v6925, %v6895
        %v6927 = vadd.f32 %v6926, %v6896
        %v6928 = vadd.f32 %v6927, %v6897
        %v6929 = vadd.f32 %v6928, %v6898
        %v6930 = vadd.f32 %v6929, %v6899
        %v6931 = vadd.f32 %v6930, %v6900
        %v6932 = vadd.f32 %v6931, %v6901
        %v6933 = vadd.f32 %v6932, %v6902
        %v6934 = vadd.f32 %v6933, %v6903
        %v6935 = vadd.f32 %v6934, %v6904
        %v6936 = vadd.f32 %v6935, %v6905
        %v6937 = vadd.f32 %v6936, %v6906
        %v6938 = vadd.f32 %v6937, %v6907
        %v6939 = vadd.f32 %v6938, %v6908
        %v6940 = vadd.f32 %v6939, %v6909
        %v6941 = vadd.f32 %v6940, %v6910
        %v6942 = vadd.f32 %v6941, %v6911
        %v6943 = vadd.f32 %v6942, %v6912
        %v6944 = vadd.f32 %v6943, %v6913
        %v6945 = vadd.f32 %v6944, %v6914
        %6946 = vadd.xlane.f32.xlu0 %v6945
        %v6947 = vpop.xlane.xlu0 %6946
        %v6948 = vrot.slane %v6947, 4
        %v6949 = vadd.f32 %v6947, %v6948
        %v6950 = vrot.slane %v6949, 2
        %v6951 = vadd.f32 %v6949, %v6950
        %v6952 = vrot.slane %v6951, 1
        %v6953 = vadd.f32 %v6951, %v6952
        %s6954 = vtos %v6953
        %s6955 = smul.f32 %s6954, 3.0517578e-05
        %v6956 = vstv %s6955
        %v6957 = vsub.f32 %v6883, %v6956
        %v6958 = vsub.f32 %v6884, %v6956
        %v6959 = vsub.f32 %v6885, %v6956
        %v6960 = vsub.f32 %v6886, %v6956
        %v6961 = vsub.f32 %v6887, %v6956
        %v6962 = vsub.f32 %v6888, %v6956
        %v6963 = vsub.f32 %v6889, %v6956
        %v6964 = vsub.f32 %v6890, %v6956
        %v6965 = vsub.f32 %v6891, %v6956
        %v6966 = vsub.f32 %v6892, %v6956
        %v6967 = vsub.f32 %v6893, %v6956
        %v6968 = vsub.f32 %v6894, %v6956
        %v6969 = vsub.f32 %v6895, %v6956
        %v6970 = vsub.f32 %v6896, %v6956
        %v6971 = vsub.f32 %v6897, %v6956
        %v6972 = vsub.f32 %v6898, %v6956
        %v6973 = vsub.f32 %v6899, %v6956
        %v6974 = vsub.f32 %v6900, %v6956
        %v6975 = vsub.f32 %v6901, %v6956
        %v6976 = vsub.f32 %v6902, %v6956
        %v6977 = vsub.f32 %v6903, %v6956
        %v6978 = vsub.f32 %v6904, %v6956
        %v6979 = vsub.f32 %v6905, %v6956
        %v6980 = vsub.f32 %v6906, %v6956
        %v6981 = vsub.f32 %v6907, %v6956
        %v6982 = vsub.f32 %v6908, %v6956
        %v6983 = vsub.f32 %v6909, %v6956
        %v6984 = vsub.f32 %v6910, %v6956
        %v6985 = vsub.f32 %v6911, %v6956
        %v6986 = vsub.f32 %v6912, %v6956
        %v6987 = vsub.f32 %v6913, %v6956
        %v6988 = vsub.f32 %v6914, %v6956
        %v6989 = vmul.f32 %v6957, %v6957
        %v6990 = vmul.f32 %v6958, %v6958
        %v6991 = vmul.f32 %v6959, %v6959
        %v6992 = vmul.f32 %v6960, %v6960
        %v6993 = vmul.f32 %v6961, %v6961
        %v6994 = vmul.f32 %v6962, %v6962
        %v6995 = vmul.f32 %v6963, %v6963
        %v6996 = vmul.f32 %v6964, %v6964
        %v6997 = vmul.f32 %v6965, %v6965
        %v6998 = vmul.f32 %v6966, %v6966
        %v6999 = vmul.f32 %v6967, %v6967
        %v7000 = vmul.f32 %v6968, %v6968
        %v7001 = vmul.f32 %v6969, %v6969
        %v7002 = vmul.f32 %v6970, %v6970
        %v7003 = vmul.f32 %v6971, %v6971
        %v7004 = vmul.f32 %v6972, %v6972
        %v7005 = vmul.f32 %v6973, %v6973
        %v7006 = vmul.f32 %v6974, %v6974
        %v7007 = vmul.f32 %v6975, %v6975
        %v7008 = vmul.f32 %v6976, %v6976
        %v7009 = vmul.f32 %v6977, %v6977
        %v7010 = vmul.f32 %v6978, %v6978
        %v7011 = vmul.f32 %v6979, %v6979
        %v7012 = vmul.f32 %v6980, %v6980
        %v7013 = vmul.f32 %v6981, %v6981
        %v7014 = vmul.f32 %v6982, %v6982
        %v7015 = vmul.f32 %v6983, %v6983
        %v7016 = vmul.f32 %v6984, %v6984
        %v7017 = vmul.f32 %v6985, %v6985
        %v7018 = vmul.f32 %v6986, %v6986
        %v7019 = vmul.f32 %v6987, %v6987
        %v7020 = vmul.f32 %v6988, %v6988
        %v7021 = vadd.f32 %v6989, %v6990
        %v7022 = vadd.f32 %v7021, %v6991
        %v7023 = vadd.f32 %v7022, %v6992
        %v7024 = vadd.f32 %v7023, %v6993
        %v7025 = vadd.f32 %v7024, %v6994
        %v7026 = vadd.f32 %v7025, %v6995
        %v7027 = vadd.f32 %v7026, %v6996
        %v7028 = vadd.f32 %v7027, %v6997
        %v7029 = vadd.f32 %v7028, %v6998
        %v7030 = vadd.f32 %v7029, %v6999
        %v7031 = vadd.f32 %v7030, %v7000
        %v7032 = vadd.f32 %v7031, %v7001
        %v7033 = vadd.f32 %v7032, %v7002
        %v7034 = vadd.f32 %v7033, %v7003
        %v7035 = vadd.f32 %v7034, %v7004
        %v7036 = vadd.f32 %v7035, %v7005
        %v7037 = vadd.f32 %v7036, %v7006
        %v7038 = vadd.f32 %v7037, %v7007
        %v7039 = vadd.f32 %v7038, %v7008
        %v7040 = vadd.f32 %v7039, %v7009
        %v7041 = vadd.f32 %v7040, %v7010
        %v7042 = vadd.f32 %v7041, %v7011
        %v7043 = vadd.f32 %v7042, %v7012
        %v7044 = vadd.f32 %v7043, %v7013
        %v7045 = vadd.f32 %v7044, %v7014
        %v7046 = vadd.f32 %v7045, %v7015
        %v7047 = vadd.f32 %v7046, %v7016
        %v7048 = vadd.f32 %v7047, %v7017
        %v7049 = vadd.f32 %v7048, %v7018
        %v7050 = vadd.f32 %v7049, %v7019
        %v7051 = vadd.f32 %v7050, %v7020
        %7052 = vadd.xlane.f32.xlu0 %v7051
        %v7053 = vpop.xlane.xlu0 %7052
        %v7054 = vrot.slane %v7053, 4
        %v7055 = vadd.f32 %v7053, %v7054
        %v7056 = vrot.slane %v7055, 2
        %v7057 = vadd.f32 %v7055, %v7056
        %v7058 = vrot.slane %v7057, 1
        %v7059 = vadd.f32 %v7057, %v7058
        %s7060 = vtos %v7059
        %s7061 = smul.f32 %s7060, 3.0517578e-05
        %s7062 = sadd.f32 %s7061, 1e-05
        %v7063 = vstv %s7062
        %v7064 = vrsqrt.pop %v7063
        %s7065 = vtos %v7064
        %v7066 = vld [vmem:[%s10] sm:$0xff]
        %v7067 = vld [vmem:[%s10 + $0x8] sm:$0xff]
        %v7068 = vld [vmem:[%s10 + $0x10] sm:$0xff]
        %v7069 = vld [vmem:[%s10 + $0x18] sm:$0xff]
        %v7070 = vld [vmem:[%s10 + $0x20] sm:$0xff]
        %v7071 = vld [vmem:[%s10 + $0x28] sm:$0xff]
        %v7072 = vld [vmem:[%s10 + $0x30] sm:$0xff]
        %v7073 = vld [vmem:[%s10 + $0x38] sm:$0xff]
        %v7074 = vstv %s7065
        %v7075 = vmul.f32 %v7074, %v7066
        %v7076 = vmul.f32 %v7074, %v7067
        %v7077 = vmul.f32 %v7074, %v7068
        %v7078 = vmul.f32 %v7074, %v7069
        %v7079 = vmul.f32 %v7074, %v7070
        %v7080 = vmul.f32 %v7074, %v7071
        %v7081 = vmul.f32 %v7074, %v7072
        %v7082 = vmul.f32 %v7074, %v7073
        %7084 = vset.pattern.permute.xlu0 0
        %7085 = vperm.xlu0 %7084, %v7075
        %v7086 = vpop.permute.xlu0 %7085
        %7089 = vset.pattern.permute.xlu0 0
        %7090 = vperm.xlu0 %7089, %v7076
        %v7091 = vpop.permute.xlu0 %7090
        %7094 = vset.pattern.permute.xlu0 0
        %7095 = vperm.xlu0 %7094, %v7077
        %v7096 = vpop.permute.xlu0 %7095
        %7099 = vset.pattern.permute.xlu0 0
        %7100 = vperm.xlu0 %7099, %v7078
        %v7101 = vpop.permute.xlu0 %7100
        %7104 = vset.pattern.permute.xlu0 0
        %7105 = vperm.xlu0 %7104, %v7079
        %v7106 = vpop.permute.xlu0 %7105
        %7109 = vset.pattern.permute.xlu0 0
        %7110 = vperm.xlu0 %7109, %v7080
        %v7111 = vpop.permute.xlu0 %7110
        %7114 = vset.pattern.permute.xlu0 0
        %7115 = vperm.xlu0 %7114, %v7081
        %v7116 = vpop.permute.xlu0 %7115
        %7119 = vset.pattern.permute.xlu0 0
        %7120 = vperm.xlu0 %7119, %v7082
        %v7121 = vpop.permute.xlu0 %7120
        %v7123 = vmul.f32 %v6957, %v7086
        %v7124 = vmul.f32 %v6958, %v7086
        %v7125 = vmul.f32 %v6959, %v7086
        %v7126 = vmul.f32 %v6960, %v7086
        %v7127 = vmul.f32 %v6961, %v7091
        %v7128 = vmul.f32 %v6962, %v7091
        %v7129 = vmul.f32 %v6963, %v7091
        %v7130 = vmul.f32 %v6964, %v7091
        %v7131 = vmul.f32 %v6965, %v7096
        %v7132 = vmul.f32 %v6966, %v7096
        %v7133 = vmul.f32 %v6967, %v7096
        %v7134 = vmul.f32 %v6968, %v7096
        %v7135 = vmul.f32 %v6969, %v7101
        %v7136 = vmul.f32 %v6970, %v7101
        %v7137 = vmul.f32 %v6971, %v7101
        %v7138 = vmul.f32 %v6972, %v7101
        %v7139 = vmul.f32 %v6973, %v7106
        %v7140 = vmul.f32 %v6974, %v7106
        %v7141 = vmul.f32 %v6975, %v7106
        %v7142 = vmul.f32 %v6976, %v7106
        %v7143 = vmul.f32 %v6977, %v7111
        %v7144 = vmul.f32 %v6978, %v7111
        %v7145 = vmul.f32 %v6979, %v7111
        %v7146 = vmul.f32 %v6980, %v7111
        %v7147 = vmul.f32 %v6981, %v7116
        %v7148 = vmul.f32 %v6982, %v7116
        %v7149 = vmul.f32 %v6983, %v7116
        %v7150 = vmul.f32 %v6984, %v7116
        %v7151 = vmul.f32 %v6985, %v7121
        %v7152 = vmul.f32 %v6986, %v7121
        %v7153 = vmul.f32 %v6987, %v7121
        %v7154 = vmul.f32 %v6988, %v7121
        %v7155 = vld [vmem:[%s11] sm:$0xff]
        %v7156 = vld [vmem:[%s11 + $0x8] sm:$0xff]
        %v7157 = vld [vmem:[%s11 + $0x10] sm:$0xff]
        %v7158 = vld [vmem:[%s11 + $0x18] sm:$0xff]
        %v7159 = vld [vmem:[%s11 + $0x20] sm:$0xff]
        %v7160 = vld [vmem:[%s11 + $0x28] sm:$0xff]
        %v7161 = vld [vmem:[%s11 + $0x30] sm:$0xff]
        %v7162 = vld [vmem:[%s11 + $0x38] sm:$0xff]
        %7164 = vset.pattern.permute.xlu0 0
        %7165 = vperm.xlu0 %7164, %v7155
        %v7166 = vpop.permute.xlu0 %7165
        %7169 = vset.pattern.permute.xlu0 0
        %7170 = vperm.xlu0 %7169, %v7156
        %v7171 = vpop.permute.xlu0 %7170
        %7174 = vset.pattern.permute.xlu0 0
        %7175 = vperm.xlu0 %7174, %v7157
        %v7176 = vpop.permute.xlu0 %7175
        %7179 = vset.pattern.permute.xlu0 0
        %7180 = vperm.xlu0 %7179, %v7158
        %v7181 = vpop.permute.xlu0 %7180
        %7184 = vset.pattern.permute.xlu0 0
        %7185 = vperm.xlu0 %7184, %v7159
        %v7186 = vpop.permute.xlu0 %7185
        %7189 = vset.pattern.permute.xlu0 0
        %7190 = vperm.xlu0 %7189, %v7160
        %v7191 = vpop.permute.xlu0 %7190
        %7194 = vset.pattern.permute.xlu0 0
        %7195 = vperm.xlu0 %7194, %v7161
        %v7196 = vpop.permute.xlu0 %7195
        %7199 = vset.pattern.permute.xlu0 0
        %7200 = vperm.xlu0 %7199, %v7162
        %v7201 = vpop.permute.xlu0 %7200
        %v7203 = vadd.f32 %v7123, %v7166
        %v7204 = vadd.f32 %v7124, %v7166
        %v7205 = vadd.f32 %v7125, %v7166
        %v7206 = vadd.f32 %v7126, %v7166
        %v7207 = vadd.f32 %v7127, %v7171
        %v7208 = vadd.f32 %v7128, %v7171
        %v7209 = vadd.f32 %v7129, %v7171
        %v7210 = vadd.f32 %v7130, %v7171
        %v7211 = vadd.f32 %v7131, %v7176
        %v7212 = vadd.f32 %v7132, %v7176
        %v7213 = vadd.f32 %v7133, %v7176
        %v7214 = vadd.f32 %v7134, %v7176
        %v7215 = vadd.f32 %v7135, %v7181
        %v7216 = vadd.f32 %v7136, %v7181
        %v7217 = vadd.f32 %v7137, %v7181
        %v7218 = vadd.f32 %v7138, %v7181
        %v7219 = vadd.f32 %v7139, %v7186
        %v7220 = vadd.f32 %v7140, %v7186
        %v7221 = vadd.f32 %v7141, %v7186
        %v7222 = vadd.f32 %v7142, %v7186
        %v7223 = vadd.f32 %v7143, %v7191
        %v7224 = vadd.f32 %v7144, %v7191
        %v7225 = vadd.f32 %v7145, %v7191
        %v7226 = vadd.f32 %v7146, %v7191
        %v7227 = vadd.f32 %v7147, %v7196
        %v7228 = vadd.f32 %v7148, %v7196
        %v7229 = vadd.f32 %v7149, %v7196
        %v7230 = vadd.f32 %v7150, %v7196
        %v7231 = vadd.f32 %v7151, %v7201
        %v7232 = vadd.f32 %v7152, %v7201
        %v7233 = vadd.f32 %v7153, %v7201
        %v7234 = vadd.f32 %v7154, %v7201
        %7235 = vst [vmem:[%s431] sm:$0xff] %v7203
        %7236 = vst [vmem:[%s431 + $0x8] sm:$0xff] %v7204
        %7237 = vst [vmem:[%s431 + $0x10] sm:$0xff] %v7205
        %7238 = vst [vmem:[%s431 + $0x18] sm:$0xff] %v7206
        %7239 = vst [vmem:[%s431 + $0x20] sm:$0xff] %v7207
        %7240 = vst [vmem:[%s431 + $0x28] sm:$0xff] %v7208
        %7241 = vst [vmem:[%s431 + $0x30] sm:$0xff] %v7209
        %7242 = vst [vmem:[%s431 + $0x38] sm:$0xff] %v7210
        %7243 = vst [vmem:[%s431 + $0x40] sm:$0xff] %v7211
        %7244 = vst [vmem:[%s431 + $0x48] sm:$0xff] %v7212
        %7245 = vst [vmem:[%s431 + $0x50] sm:$0xff] %v7213
        %7246 = vst [vmem:[%s431 + $0x58] sm:$0xff] %v7214
        %7247 = vst [vmem:[%s431 + $0x60] sm:$0xff] %v7215
        %7248 = vst [vmem:[%s431 + $0x68] sm:$0xff] %v7216
        %7249 = vst [vmem:[%s431 + $0x70] sm:$0xff] %v7217
        %7250 = vst [vmem:[%s431 + $0x78] sm:$0xff] %v7218
        %7251 = vst [vmem:[%s431 + $0x80] sm:$0xff] %v7219
        %7252 = vst [vmem:[%s431 + $0x88] sm:$0xff] %v7220
        %7253 = vst [vmem:[%s431 + $0x90] sm:$0xff] %v7221
        %7254 = vst [vmem:[%s431 + $0x98] sm:$0xff] %v7222
        %7255 = vst [vmem:[%s431 + $0xa0] sm:$0xff] %v7223
        %7256 = vst [vmem:[%s431 + $0xa8] sm:$0xff] %v7224
        %7257 = vst [vmem:[%s431 + $0xb0] sm:$0xff] %v7225
        %7258 = vst [vmem:[%s431 + $0xb8] sm:$0xff] %v7226
        %7259 = vst [vmem:[%s431 + $0xc0] sm:$0xff] %v7227
        %7260 = vst [vmem:[%s431 + $0xc8] sm:$0xff] %v7228
        %7261 = vst [vmem:[%s431 + $0xd0] sm:$0xff] %v7229
        %7262 = vst [vmem:[%s431 + $0xd8] sm:$0xff] %v7230
        %7263 = vst [vmem:[%s431 + $0xe0] sm:$0xff] %v7231
        %7264 = vst [vmem:[%s431 + $0xe8] sm:$0xff] %v7232
        %7265 = vst [vmem:[%s431 + $0xf0] sm:$0xff] %v7233
        %7266 = vst [vmem:[%s431 + $0xf8] sm:$0xff] %v7234
        %s7267 = sand.u32 %s294, 1
        %s7268 = scalar_lea.sflag [#allocation4], %s7267
        %s7269 = sand.u32 %s294, 1
        %s7270 = smul.addr %s7269, 256
        %s7271 = scalar_lea.vmem [#allocation5], %s7270
        // Predicated region
        $region73: #{tpu_custom_call.1} parent=67 // pred_check
          %p7272 = pneg %p304
        $region74: #{tpu_custom_call.1} parent=67 // pred_check_branch
          %7274 = sbr.rel (%p7272) target = $region76
        $region75: #{tpu_custom_call.1} parent=67 // pred_region
          %s7276 = ssub.s32 4096, 4096
          %7277 = vsyncadd %s7268, %s7276
          %s7278 = smul.addr %s29, 32
          %s7279 = smul.addr %s7278, 128
          %s7280 = scalar_lea.hbm %s12, %s7279
          %s7281 = sshll.u32 %s7271, 4
          %s7282 = int_to_ptr.vmem [resolvable:$true] %s7281
          %7287 = dma.vmem_to_hbm [thread:$0]  %s7282, 4096, %s7280, %s7268, 512, 512, 32
        $region76: #{tpu_custom_call.1} parent=67 // pred_fallthru
          _
      $region68: #{tpu_custom_call.1} parent=5 // pred_fallthru
        _
      %p7288 = scmp.le.s32.totalorder 2, %s24
      // Predicated region
      $region77: #{tpu_custom_call.1} parent=5 // pred_check
        %p7289 = pneg %p7288
      $region78: #{tpu_custom_call.1} parent=5 // pred_check_branch
        %7291 = sbr.rel (%p7289) target = $region80
      $region79: #{tpu_custom_call.1} parent=5 // pred_region
        %s7292 = ssub.s32 %s24, 2
        // Predicated region
        $region81: #{tpu_custom_call.1} parent=79 // pred_check
          %p7293 = pneg %p310
        $region82: #{tpu_custom_call.1} parent=79 // pred_check_branch
          %7295 = sbr.rel (%p7293) target = $region84
        $region83: #{tpu_custom_call.1} parent=79 // pred_region
          %s7296 = sand.u32 %s295, 1
          %s7297 = scalar_lea.sflag [#allocation4], %s7296
          %s7298 = sand.u32 %s295, 1
          %s7299 = smul.addr %s7298, 256
          %s7300 = scalar_lea.vmem [#allocation5], %s7299
          %7301 = dma.done %s7297, 4096
        $region84: #{tpu_custom_call.1} parent=79 // pred_fallthru
          _
      $region80: #{tpu_custom_call.1} parent=5 // pred_fallthru
        _
    $region6: #{tpu_custom_call.1} parent=1 // loop_footer
      %s28 = sadd.s32 1, %s24
    $region7: #{tpu_custom_call.1} parent=1 // loop_footer_branch
      %23 = sbr.rel target = $region3
    $region8: #{tpu_custom_call.1} parent=1 // loop_exit
      _
    %7302 = vsyncpa [#allocation3], 1
    %s7303 = scalar_lea.sflag [#allocation3], 1
    %7304 = vsyncpa %s7303, 1
    %7305 = vsyncpa [#allocation4], 1
    %s7306 = scalar_lea.sflag [#allocation4], 1
    %7307 = vsyncpa %s7306, 1

</llo_original>
